<compile_context>
chip_gen: v5e
topology: v5e:2x2
jax: 0.10.0
libtpu: 0.0.40
codegen_flags: <defaults>
</compile_context>

<pallas_src>
import functools
from types import SimpleNamespace

import jax
import jax.numpy as jnp
from jax.experimental import pallas as pl
from jax.experimental.pallas import tpu as pltpu


# --------------------------------------------------------------------------
# Configuration
# --------------------------------------------------------------------------
_MSE_LANES = 1024                       # preferred lane-dense flatten width (mult. of 128)
_MSE_MAX_TILE_ROWS_CAP = 4096
_KL_TILE_ROWS = 2048                    # max rows per KL tile (classes on the lane axis)
_KL_BLOCK_BYTES = 4 * 1024 * 1024       # cap a (tile, C) f32 KL block at ~4 MiB
_VMEM_LIMIT_BYTES = 32 * 1024 * 1024    # ~20 MiB actually used; fits v7x 64 MiB physical
_PALLAS_MIN_ELEMS = 256 * 1024          # below this, launch/step overhead dwarfs the work


def _cdiv(a, b):
    return -(-a // b)


def _round_up(a, b):
    return _cdiv(a, b) * b


@functools.lru_cache(maxsize=1)
def _device_kind():
    try:
        return jax.devices()[0].device_kind.lower()
    except Exception:
        return ""


@functools.lru_cache(maxsize=1)
def _is_v7x():
    k = _device_kind()
    return ("v7" in k) or ("7x" in k)


def _num_tensorcores():
    # v7x exposes 2 TensorCores per chip (a leading "parallel" grid axis shards across
    # them); v5e / v6e have a single TensorCore, so the extra axis would only duplicate
    # the zero/finalize phases and is dropped entirely.
    return 2 if _is_v7x() else 1


def _mse_max_tile_rows(lanes):
    # v7x: faster HBM makes the fixed ~0.35us per-grid-step overhead the limiter, so use
    # bigger tiles (2 inputs x 2 bufs x 4 MiB + 4 MiB acc ~= 20 MiB, inside the 32 MiB
    # scoped limit and v7x's 64 MiB physical VMEM).  v5e/v6e keep 512-row (2 MiB) tiles.
    base = 1024 if _is_v7x() else 512
    return min(base * (_MSE_LANES // lanes), _MSE_MAX_TILE_ROWS_CAP)


def _sublane(dtype):
    # dtype-native sublane multiple: 8 for 4-byte, 16 for 2-byte, 32 for 1-byte dtypes.
    return {4: 8, 2: 16, 1: 32}.get(jnp.dtype(dtype).itemsize, 8)


def _split_rows(n_rows, max_tile_rows, sublane):
    """Pick (tile_rows, total_tiles, n_cores, tiles_per_core) for a row-tiled reduction."""
    n_rows = max(int(n_rows), 1)
    tile = min(int(max_tile_rows), _round_up(n_rows, sublane))
    tile = _round_up(tile, sublane)
    total_tiles = _cdiv(n_rows, tile)
    max_cores = _num_tensorcores()
    n_cores = max_cores if total_tiles >= max_cores else 1
    tiles_per_core = _cdiv(total_tiles, n_cores)
    return tile, total_tiles, n_cores, tiles_per_core


# --------------------------------------------------------------------------
# Pallas kernels
# --------------------------------------------------------------------------

def _mse_partial_kernel(a_ref, b_ref, out_ref, acc_ref, *,
                        inv_n, valid_rows, tile_rows, tiles_per_core, two_axis):
    """Per-core partial sum of (a-b)^2 * inv_n over row tiles (ragged tail masked)."""
    if two_axis:
        core, step, n_steps = pl.program_id(0), pl.program_id(1), pl.num_programs(1)
    else:
        core, step, n_steps = 0, pl.program_id(0), pl.num_programs(0)

    @pl.when(step == 0)
    def _():
        acc_ref[...] = jnp.zeros_like(acc_ref)

    d = a_ref[...].astype(jnp.float32) - b_ref[...].astype(jnp.float32)
    dd = d * d

    row_start = (core * tiles_per_core + step) * tile_rows
    tile_is_full = row_start + tile_rows <= valid_rows

    @pl.when(tile_is_full)
    def _():
        acc_ref[...] += dd            # fast path: pure VPU adds, no masking

    @pl.when(jnp.logical_not(tile_is_full))
    def _():
        # Ragged tail (and any fully out-of-range tile on the last core): mask rows past
        # the true row count; out-of-bounds block contents are undefined but masked to 0.
        rows = jax.lax.broadcasted_iota(jnp.int32, dd.shape, 0) + row_start
        acc_ref[...] += jnp.where(rows < valid_rows, dd, 0.0)

    @pl.when(step == n_steps - 1)
    def _():
        out_ref[0, 0] = jnp.sum(acc_ref[...]) * inv_n


def _kl_partial_kernel(s_ref, t_ref, out_ref, acc_ref, *,
                       inv_temp, scale, valid_rows, tile_rows, tiles_per_core, two_axis):
    """Per-core partial of KL(softmax(t/T) || softmax(s/T)) * scale over row tiles.

    Per-row formulation (p = softmax(t) is never materialized):
        row_kl = (1/t_sum) * sum_c t_exp * (t_shift - log_q) - log(t_sum)
    accumulated into a (tile, 1) scratch.
    """
    if two_axis:
        core, step, n_steps = pl.program_id(0), pl.program_id(1), pl.num_programs(1)
    else:
        core, step, n_steps = 0, pl.program_id(0), pl.num_programs(0)

    @pl.when(step == 0)
    def _():
        acc_ref[...] = jnp.zeros_like(acc_ref)

    s = s_ref[...].astype(jnp.float32) * inv_temp
    t = t_ref[...].astype(jnp.float32) * inv_temp

    # log_softmax(student) over the lane (class) axis.
    s_shift = s - jnp.max(s, axis=-1, keepdims=True)
    log_q = s_shift - jnp.log(jnp.sum(jnp.exp(s_shift), axis=-1, keepdims=True))

    # teacher softmax pieces; reciprocal on the EUP slot + one Newton step (VPU has slack,
    # removes the ~1e-4 bias of the approximate reciprocal at zero wall-clock cost).
    t_shift = t - jnp.max(t, axis=-1, keepdims=True)
    t_exp = jnp.exp(t_shift)
    t_sum = jnp.sum(t_exp, axis=-1, keepdims=True)
    r = pl.reciprocal(t_sum, approx=True)
    r = r * (2.0 - t_sum * r)
    row_kl = r * jnp.sum(t_exp * (t_shift - log_q), axis=-1, keepdims=True) - jnp.log(t_sum)

    row_start = (core * tiles_per_core + step) * tile_rows
    tile_is_full = row_start + tile_rows <= valid_rows

    @pl.when(tile_is_full)
    def _():
        acc_ref[...] += row_kl

    @pl.when(jnp.logical_not(tile_is_full))
    def _():
        rows = jax.lax.broadcasted_iota(jnp.int32, row_kl.shape, 0) + row_start
        acc_ref[...] += jnp.where(rows < valid_rows, row_kl, 0.0)

    @pl.when(step == n_steps - 1)
    def _():
        out_ref[0, 0] = jnp.sum(acc_ref[...]) * scale


# --------------------------------------------------------------------------
# Shared pallas_call builder + kernel wrappers
# --------------------------------------------------------------------------

def _partial_sum_call(kernel, a2, b2, tile, cols, n_cores, tiles_per_core,
                      total_tiles, acc_shape):
    last_block = total_tiles - 1
    if n_cores > 1:
        grid = (n_cores, tiles_per_core)

        def in_map(p, t):
            # Clamp so a (rare) fully out-of-range tile on the last core still issues an
            # in-bounds DMA; its contribution is masked to zero in the kernel.
            return (jnp.minimum(p * tiles_per_core + t, last_block), 0)

        out_map = lambda p, t: (p, 0)
        dims = ("parallel", "arbitrary")
    else:
        grid = (total_tiles,)
        in_map = lambda t: (t, 0)
        out_map = lambda t: (0, 0)
        dims = ("arbitrary",)

    return pl.pallas_call(
        kernel,
        out_shape=jax.ShapeDtypeStruct((n_cores, 1), jnp.float32),
        grid_spec=pltpu.PrefetchScalarGridSpec(
            num_scalar_prefetch=0,
            grid=grid,
            in_specs=[pl.BlockSpec((tile, cols), in_map),
                      pl.BlockSpec((tile, cols), in_map)],
            out_specs=pl.BlockSpec((1, 1), out_map,
                                   memory_space=pltpu.MemorySpace.SMEM),
            scratch_shapes=[pltpu.VMEM(acc_shape, jnp.float32)],
        ),
        compiler_params=pltpu.CompilerParams(
            dimension_semantics=dims,
            vmem_limit_bytes=_VMEM_LIMIT_BYTES,
        ),
    )(a2, b2)


def pallas_mse_loss(a, b):
    """Equivalent of F.mse_loss(a, b) (mean over all elements).

    Falls back to plain JAX for tiny or lane-unfriendly element counts.
    """
    assert a.shape == b.shape, (a.shape, b.shape)
    n = int(a.size)

    lanes = None
    for cand in (_MSE_LANES, 512, 256, 128):
        if n % cand == 0:
            lanes = cand
            break

    if n < _PALLAS_MIN_ELEMS or lanes is None:
        # TODO(synk): element counts not divisible by 128 fall back to XLA; a bulk+tail
        # split inside the kernel would cover them without an extra copy.
        d = a.astype(jnp.float32) - b.astype(jnp.float32)
        return jnp.mean(d * d)

    rows = n // lanes
    a2 = a.reshape(rows, lanes)     # free bitcast of a contiguous array (no jnp.pad copy)
    b2 = b.reshape(rows, lanes)
    sub = max(_sublane(a.dtype), _sublane(b.dtype))
    tile, total_tiles, n_cores, tiles_per_core = _split_rows(
        rows, _mse_max_tile_rows(lanes), sub)

    kernel = functools.partial(
        _mse_partial_kernel, inv_n=1.0 / float(n), valid_rows=rows, tile_rows=tile,
        tiles_per_core=tiles_per_core, two_axis=(n_cores > 1))
    # TODO(synk): the full-tile accumulator adds hidden VMEM RMW traffic; a sublane-folded
    # (8, lanes) accumulator would free VMEM for even larger v7x tiles.
    partials = _partial_sum_call(kernel, a2, b2, tile, lanes, n_cores, tiles_per_core,
                                 total_tiles, acc_shape=(tile, lanes))
    return jnp.sum(partials)


def pallas_kl_loss(student_logits, teacher_logits, temperature):
    """F.kl_div(log_softmax(s/T), softmax(t/T), reduction='batchmean') * T**2.

    NOTE: 'batchmean' divides by student_logits.shape[0] of the *un-reshaped* tensor,
    matching PyTorch's input.size(0).
    """
    assert student_logits.ndim == teacher_logits.ndim
    c = int(student_logits.shape[-1])
    batch = int(student_logits.shape[0])
    inv_temp = 1.0 / float(temperature)
    scale = (float(temperature) ** 2) / float(batch)

    s2 = student_logits.reshape(-1, c)   # free reshape, no padding
    t2 = teacher_logits.reshape(-1, c)
    rows = int(s2.shape[0])

    if rows * c < _PALLAS_MIN_ELEMS:
        # Tiny logits: plain JAX fuses with the surrounding glue, skips the launch cost.
        log_q = jax.nn.log_softmax(s2.astype(jnp.float32) * inv_temp, axis=-1)
        log_p = jax.nn.log_softmax(t2.astype(jnp.float32) * inv_temp, axis=-1)
        p = jnp.exp(log_p)
        return jnp.sum(p * (log_p - log_q)) * scale

    sub = max(_sublane(s2.dtype), _sublane(t2.dtype))
    budget_rows = max(sub, ((_KL_BLOCK_BYTES // (4 * c)) // sub) * sub)
    tile, total_tiles, n_cores, tiles_per_core = _split_rows(
        rows, min(_KL_TILE_ROWS, budget_rows), sub)

    kernel = functools.partial(
        _kl_partial_kernel, inv_temp=inv_temp, scale=scale, valid_rows=rows,
        tile_rows=tile, tiles_per_core=tiles_per_core, two_axis=(n_cores > 1))
    partials = _partial_sum_call(kernel, s2, t2, tile, c, n_cores, tiles_per_core,
                                 total_tiles, acc_shape=(tile, 1))
    return jnp.sum(partials)


def _resize_nearest_nchw(x, size_hw):
    # TODO(synk): torch F.interpolate(mode='nearest') uses floor-index rounding; jax.image
    # 'nearest' may differ at a few edge pixels -- acceptable for a distillation loss.
    n, ch = int(x.shape[0]), int(x.shape[1])
    return jax.image.resize(x, (n, ch, int(size_hw[0]), int(size_hw[1])), method="nearest")


# --------------------------------------------------------------------------
# DistillationLoss forward (dict plumbing is plain Python/JAX glue)
# --------------------------------------------------------------------------

class DistillationLossPallas:
    def __init__(self, temperature=2.0, alpha=0.5, beta=0.5, gamma=0.5):
        self.temperature = temperature
        self.alpha = alpha
        self.beta = beta
        self.gamma = gamma

    def kl_loss(self, student_logits, teacher_logits):
        if student_logits is None or teacher_logits is None:
            return jnp.asarray(0.0, jnp.float32)
        if student_logits.ndim != teacher_logits.ndim:
            return jnp.asarray(0.0, jnp.float32)
        return pallas_kl_loss(student_logits, teacher_logits, self.temperature)

    def feature_distillation_loss(self, student_features, teacher_features):
        if student_features is None or teacher_features is None:
            return jnp.asarray(0.0, jnp.float32)
        s_is_list = isinstance(student_features, (list, tuple))
        t_is_list = isinstance(teacher_features, (list, tuple))
        if (s_is_list and len(student_features) == 0) or (
            t_is_list and len(teacher_features) == 0
        ):
            return jnp.asarray(0.0, jnp.float32)
        # single-tensor case
        if not s_is_list and not t_is_list:
            s_feat, t_feat = student_features, teacher_features
            if s_feat.shape == t_feat.shape:
                return pallas_mse_loss(s_feat, t_feat)
            if (s_feat.ndim == 4 and t_feat.ndim == 4
                    and s_feat.shape[:2] == t_feat.shape[:2]):
                s_feat = _resize_nearest_nchw(s_feat, t_feat.shape[-2:])
                return pallas_mse_loss(s_feat, t_feat)
            return jnp.asarray(0.0, jnp.float32)
        # list case: average per-level MSE over usable levels
        # TODO(synk): the large levels could be fused into a single streamed Pallas pass
        # (per-row weights via an SMEM table) to save K-1 kernel launches.
        if s_is_list and t_is_list:
            total = jnp.asarray(0.0, jnp.float32)
            count = 0
            for s_feat, t_feat in zip(student_features, teacher_features):
                if s_feat is None or t_feat is None:
                    continue
                if s_feat.ndim < 3 or t_feat.ndim < 3:
                    continue
                if s_feat.shape[-2:] != t_feat.shape[-2:]:
                    if (s_feat.ndim == 4 and t_feat.ndim == 4
                            and s_feat.shape[:2] == t_feat.shape[:2]):
                        s_feat = _resize_nearest_nchw(s_feat, t_feat.shape[-2:])
                    else:
                        continue
                if s_feat.shape != t_feat.shape:
                    continue
                total = total + pallas_mse_loss(s_feat, t_feat)
                count += 1
            if count > 0:
                return total / count
        return jnp.asarray(0.0, jnp.float32)

    def box_distillation_loss(self, student_boxes, teacher_boxes):
        if student_boxes is None or teacher_boxes is None:
            return jnp.asarray(0.0, jnp.float32)
        s_is_list = isinstance(student_boxes, (list, tuple))
        t_is_list = isinstance(teacher_boxes, (list, tuple))
        if (s_is_list and len(student_boxes) == 0) or (
            t_is_list and len(teacher_boxes) == 0
        ):
            return jnp.asarray(0.0, jnp.float32)
        if not s_is_list and not t_is_list:
            if student_boxes.shape == teacher_boxes.shape:
                return pallas_mse_loss(student_boxes, teacher_boxes)
            return jnp.asarray(0.0, jnp.float32)
        if s_is_list and t_is_list:
            total = jnp.asarray(0.0, jnp.float32)
            count = 0
            for s_box, t_box in zip(student_boxes, teacher_boxes):
                if s_box is None or t_box is None:
                    continue
                if s_box.shape[0] == 0 or t_box.shape[0] == 0:
                    continue
                if s_box.shape[-1] == t_box.shape[-1] == 4 and s_box.shape == t_box.shape:
                    total = total + pallas_mse_loss(s_box, t_box)
                    count += 1
            if count > 0:
                return total / count
        return jnp.asarray(0.0, jnp.float32)

    def forward(self, student_outputs, teacher_outputs):
        feat_loss = jnp.asarray(0.0, jnp.float32)
        box_loss = jnp.asarray(0.0, jnp.float32)
        cls_loss = jnp.asarray(0.0, jnp.float32)

        student_features = None
        teacher_features = None
        if "loss" in student_outputs:
            model = student_outputs.get("model", None)
            if model is not None and hasattr(model, "backbone") and hasattr(
                    model.backbone, "features"):
                student_features = model.backbone.features
        if "feature_maps" in teacher_outputs:
            teacher_features = teacher_outputs["feature_maps"]

        student_boxes = student_outputs.get("bbox", None)
        teacher_boxes = teacher_outputs.get("boxes", None)
        student_scores = student_outputs.get("scores", None)
        teacher_scores = teacher_outputs.get("scores", None)

        if student_features is not None and teacher_features is not None:
            feat_loss = self.feature_distillation_loss(student_features, teacher_features)
        if student_boxes is not None and teacher_boxes is not None:
            box_loss = self.box_distillation_loss(student_boxes, teacher_boxes)
        if student_scores is not None and teacher_scores is not None:
            cls_loss = self.kl_loss(student_scores, teacher_scores)

        # PyTorch fallback branch ("token loss" if every distillation term is zero),
        # computed on-device with jnp.where so forward() stays jit-compatible and never
        # forces a host sync.
        tok = student_outputs.get("loss", None)
        if tok is not None and isinstance(tok, jax.Array):
            all_zero = jnp.logical_and(
                jnp.logical_and(feat_loss == 0.0, box_loss == 0.0), cls_loss == 0.0)
            feat_loss = jnp.where(all_zero,
                                  jnp.asarray(tok, jnp.float32) * 0.0001, feat_loss)

        return self.alpha * feat_loss + self.beta * box_loss + self.gamma * cls_loss


# --------------------------------------------------------------------------
# Pure-JAX references (for silent sanity checks)
# --------------------------------------------------------------------------

def _ref_mse(a, b):
    return jnp.mean((a.astype(jnp.float32) - b.astype(jnp.float32)) ** 2)


def _ref_kl(s, t, temp):
    s_t = s.astype(jnp.float32) / temp
    t_t = t.astype(jnp.float32) / temp
    log_q = jax.nn.log_softmax(s_t, axis=-1)
    p = jax.nn.softmax(t_t, axis=-1)
    log_p = jax.nn.log_softmax(t_t, axis=-1)
    return jnp.sum(p * (log_p - log_q)) / s.shape[0] * (temp ** 2)


# --------------------------------------------------------------------------
# Main
# --------------------------------------------------------------------------

if __name__ == "__main__":
    key = jax.random.PRNGKey(0)
    ks = jax.random.split(key, 12)

    # --- small forward-pass demo (shapes consistent with a detection distillation setup)
    s_feat0 = jax.random.normal(ks[0], (2, 4, 16, 16), jnp.float32)
    s_feat1 = jax.random.normal(ks[1], (2, 4, 8, 8), jnp.float32)
    t_feat0 = jax.random.normal(ks[2], (2, 4, 16, 16), jnp.float32)
    t_feat1 = jax.random.normal(ks[3], (2, 4, 8, 8), jnp.float32)
    s_boxes = jax.random.normal(ks[4], (8, 4), jnp.float32)
    t_boxes = jax.random.normal(ks[5], (8, 4), jnp.float32)
    s_scores = jax.random.normal(ks[6], (8, 80), jnp.float32)
    t_scores = jax.random.normal(ks[7], (8, 80), jnp.float32)

    student_outputs = {
        "loss": jnp.asarray(1.23, jnp.float32),
        "model": SimpleNamespace(
            backbone=SimpleNamespace(features=[s_feat0, s_feat1])),
        "bbox": s_boxes,
        "scores": s_scores,
    }
    teacher_outputs = {
        "feature_maps": [t_feat0, t_feat1],
        "boxes": t_boxes,
        "scores": t_scores,
    }

    distill = DistillationLossPallas(temperature=2.0, alpha=0.5, beta=0.5, gamma=0.5)
    total = jax.block_until_ready(distill.forward(student_outputs, teacher_outputs))

    ref_feat = 0.5 * (_ref_mse(s_feat0, t_feat0) + _ref_mse(s_feat1, t_feat1))
    ref_box = _ref_mse(s_boxes, t_boxes)
    ref_cls = _ref_kl(s_scores, t_scores, 2.0)
    ref_total = 0.5 * ref_feat + 0.5 * ref_box + 0.5 * ref_cls
    assert jnp.allclose(total, ref_total, rtol=1e-5, atol=1e-6), (total, ref_total)

    # --- direct Pallas-path checks above the dispatch threshold (these exercise the
    #     ragged row-tile masking path: 520 rows of 1024 lanes, and 4100 rows of 80).
    a_big = jax.random.normal(ks[8], (2, 4, 160, 416), jnp.float32)
    b_big = jax.random.normal(ks[9], (2, 4, 160, 416), jnp.float32)
    mse_pallas = jax.block_until_ready(pallas_mse_loss(a_big, b_big))
    mse_ref = _ref_mse(a_big, b_big)
    assert jnp.allclose(mse_pallas, mse_ref, rtol=1e-4, atol=1e-6), (mse_pallas, mse_ref)

    s_big = jax.random.normal(ks[10], (4100, 80), jnp.float32)
    t_big = jax.random.normal(ks[11], (4100, 80), jnp.float32)
    kl_pallas = jax.block_until_ready(pallas_kl_loss(s_big, t_big, 2.0))
    kl_ref = _ref_kl(s_big, t_big, 2.0)
    assert jnp.allclose(kl_pallas, kl_ref, rtol=1e-4, atol=1e-5), (kl_pallas, kl_ref)

    print("KERNEL_OK")
</pallas_src>

<mosaic_0001>
module attributes {stable_mosaic.version = 11 : i64} {
  func.func @_mse_partial_kernel(%arg0: i32, %arg1: memref<512x1024xf32, #tpu.memory_space<vmem>>, %arg2: memref<512x1024xf32, #tpu.memory_space<vmem>>, %arg3: memref<1x1xf32, #tpu.memory_space<smem>>, %arg4: memref<512x1024xf32, #tpu.memory_space<vmem>>) attributes {dimension_semantics = [#tpu.dimension_semantics<arbitrary>], iteration_bounds = array<i64: 2>, scalar_prefetch = 0 : i64, scratch_operands = 1 : i64, tpu.core_type = #tpu.core_type<tc>, window_params = [{transform_indices = @transform_0, window_bounds = array<i64: 512, 1024>}, {transform_indices = @transform_1, window_bounds = array<i64: 512, 1024>}, {transform_indices = @transform_2, window_bounds = array<i64: 1, 1>}]} {
    %c0_i32 = arith.constant 0 : i32
    %0 = arith.cmpi eq, %arg0, %c0_i32 : i32
    %1 = arith.extui %0 : i1 to i32
    %c0_i32_0 = arith.constant 0 : i32
    %2 = arith.cmpi ne, %1, %c0_i32_0 : i32
    scf.if %2 {
      %cst = arith.constant 0.000000e+00 : f32
      %19 = vector.broadcast %cst : f32 to vector<512x1024xf32>
      %c0_9 = arith.constant 0 : index
      %c0_10 = arith.constant 0 : index
      %20 = vector.load %arg4[%c0_9, %c0_10] : memref<512x1024xf32, #tpu.memory_space<vmem>>, vector<512x1024xf32>
      tpu.vector_store %arg4[%c0_9, %c0_10], %19 {strides = array<i32>} : memref<512x1024xf32, #tpu.memory_space<vmem>>, vector<512x1024xf32>,
    } else {
    }
    %c0 = arith.constant 0 : index
    %c0_1 = arith.constant 0 : index
    %3 = vector.load %arg1[%c0, %c0_1] : memref<512x1024xf32, #tpu.memory_space<vmem>>, vector<512x1024xf32>
    %c0_2 = arith.constant 0 : index
    %c0_3 = arith.constant 0 : index
    %4 = vector.load %arg2[%c0_2, %c0_3] : memref<512x1024xf32, #tpu.memory_space<vmem>>, vector<512x1024xf32>
    %5 = arith.subf %3, %4 : vector<512x1024xf32>
    %6 = arith.mulf %5, %5 : vector<512x1024xf32>
    %c0_i32_4 = arith.constant 0 : i32
    %7 = arith.addi %c0_i32_4, %arg0 : i32
    %c512_i32 = arith.constant 512 : i32
    %8 = arith.muli %7, %c512_i32 : i32
    %c512_i32_5 = arith.constant 512 : i32
    %9 = arith.addi %8, %c512_i32_5 : i32
    %c520_i32 = arith.constant 520 : i32
    %10 = arith.cmpi sle, %9, %c520_i32 : i32
    %11 = arith.extui %10 : i1 to i32
    %c0_i32_6 = arith.constant 0 : i32
    %12 = arith.cmpi ne, %11, %c0_i32_6 : i32
    scf.if %12 {
      %c0_9 = arith.constant 0 : index
      %c0_10 = arith.constant 0 : index
      %19 = vector.load %arg4[%c0_9, %c0_10] : memref<512x1024xf32, #tpu.memory_space<vmem>>, vector<512x1024xf32>
      %20 = arith.addf %19, %6 : vector<512x1024xf32>
      %c0_11 = arith.constant 0 : index
      %c0_12 = arith.constant 0 : index
      %21 = vector.load %arg4[%c0_11, %c0_12] : memref<512x1024xf32, #tpu.memory_space<vmem>>, vector<512x1024xf32>
      tpu.vector_store %arg4[%c0_11, %c0_12], %20 {strides = array<i32>} : memref<512x1024xf32, #tpu.memory_space<vmem>>, vector<512x1024xf32>,
    } else {
    }
    %true = arith.constant true
    %13 = arith.xori %10, %true : i1
    %14 = arith.extui %13 : i1 to i32
    %c0_i32_7 = arith.constant 0 : i32
    %15 = arith.cmpi ne, %14, %c0_i32_7 : i32
    scf.if %15 {
      %19 = tpu.iota {dimensions = array<i32: 0>} : vector<512x1024xi32>
      %20 = vector.broadcast %8 : i32 to vector<512x1024xi32>
      %21 = arith.addi %19, %20 : vector<512x1024xi32>
      %c0_9 = arith.constant 0 : index
      %c0_10 = arith.constant 0 : index
      %22 = vector.load %arg4[%c0_9, %c0_10] : memref<512x1024xf32, #tpu.memory_space<vmem>>, vector<512x1024xf32>
      %c520_i32_11 = arith.constant 520 : i32
      %23 = vector.broadcast %c520_i32_11 : i32 to vector<512x1024xi32>
      %24 = arith.cmpi slt, %21, %23 : vector<512x1024xi32>
      %cst = arith.constant 0.000000e+00 : f32
      %25 = vector.broadcast %cst : f32 to vector<512x1024xf32>
      %26 = arith.select %24, %6, %25 : vector<512x1024xi1>, vector<512x1024xf32>
      %27 = arith.addf %22, %26 : vector<512x1024xf32>
      %c0_12 = arith.constant 0 : index
      %c0_13 = arith.constant 0 : index
      %28 = vector.load %arg4[%c0_12, %c0_13] : memref<512x1024xf32, #tpu.memory_space<vmem>>, vector<512x1024xf32>
      tpu.vector_store %arg4[%c0_12, %c0_13], %27 {strides = array<i32>} : memref<512x1024xf32, #tpu.memory_space<vmem>>, vector<512x1024xf32>,
    } else {
    }
    %c1_i32 = arith.constant 1 : i32
    %16 = arith.cmpi eq, %arg0, %c1_i32 : i32
    %17 = arith.extui %16 : i1 to i32
    %c0_i32_8 = arith.constant 0 : i32
    %18 = arith.cmpi ne, %17, %c0_i32_8 : i32
    scf.if %18 {
      %c0_9 = arith.constant 0 : index
      %c0_10 = arith.constant 0 : index
      %19 = vector.load %arg4[%c0_9, %c0_10] : memref<512x1024xf32, #tpu.memory_space<vmem>>, vector<512x1024xf32>
      %20 = vector.shape_cast %19 : vector<512x1024xf32> to vector<1x512x1024xf32>
      %cst = arith.constant dense<0.000000e+00> : vector<1xf32>
      %21 = vector.multi_reduction <add>, %20, %cst [1, 2] : vector<1x512x1024xf32> to vector<1xf32>
      %22 = vector.shape_cast %21 : vector<1xf32> to vector<1x1x1xf32>
      %23 = vector.extract %22[0, 0, 0] : f32 from vector<1x1x1xf32>
      %cst_11 = arith.constant 1.87800481E-6 : f32
      %24 = arith.mulf %23, %cst_11 : f32
      %c0_12 = arith.constant 0 : index
      %c0_13 = arith.constant 0 : index
      %25 = memref.load %arg3[%c0_12, %c0_13] : memref<1x1xf32, #tpu.memory_space<smem>>
      memref.store %24, %arg3[%c0_12, %c0_13] : memref<1x1xf32, #tpu.memory_space<smem>>
    } else {
    }
    return
  }
  func.func @transform_0(%arg0: i32) -> (i32, i32) {
    %c0_i32 = arith.constant 0 : i32
    %c0_i32_0 = arith.constant 0 : i32
    return %arg0, %c0_i32 : i32, i32
  }
  func.func @transform_1(%arg0: i32) -> (i32, i32) {
    %c0_i32 = arith.constant 0 : i32
    %c0_i32_0 = arith.constant 0 : i32
    return %arg0, %c0_i32 : i32, i32
  }
  func.func @transform_2(%arg0: i32) -> (i32, i32) {
    %c0_i32 = arith.constant 0 : i32
    %c0_i32_0 = arith.constant 0 : i32
    %c0_i32_1 = arith.constant 0 : i32
    return %c0_i32, %c0_i32_0 : i32, i32
  }
}

</mosaic_0001>

<llo_original>
// kernel: tpu_custom_call.1
$region0: #{tpu_custom_call.1}
  #allocation0 [shape = 'u32[]', space=smem, size = 0x4, offset = 0x4, fixed_abs, tag = 'smem constant byte address 0x4 - core index']
  #allocation1 [shape = 'u32[72,128]{1,0:T(1,128)}', space=vmem, size = 0x9000, scoped, tag = 'internal scratch']
  #allocation2 [shape = 'f32[512,1024]{1,0:T(8,128)}', space=vmem, size = 0x200000, scoped, tag = 'scratch operand']
  %s0 = inlined_call_operand.hbm [shape: f32[520,1024], index: 0, kind: input, shape index: {}]
  %s1 = inlined_call_operand.hbm [shape: f32[520,1024], index: 1, kind: input, shape index: {}]
  %s2 = inlined_call_operand.hbm [shape: f32[1,1], index: 2, kind: output, shape index: {}]
  %s3 = sld [smem:[#allocation0]]
  $region65: #{tpu_custom_call.1} parent=0
    _
  %s5 = ssub.s32 1, %s3
  %s6 = scalar_select 0, %s5, %s3
  $region1: #{tpu_custom_call.1} parent=0
    #allocation3 [shape = 'u8[4194304]{0}', space=vmem, size = 0x400000, scoped, tag = 'input window, operand 0']
    #allocation4 [shape = 's32[2]{0}', space=sflag, size = 0x8, scoped, tag = 'scoped memory for tpu_custom_call.1']
    #allocation5 [shape = 's32[2]{0}', space=sflag, size = 0x8, scoped, tag = 'scoped memory for tpu_custom_call.1']
    #allocation6 [shape = 'u8[4194304]{0}', space=vmem, size = 0x400000, scoped, tag = 'input window, operand 1']
    #allocation7 [shape = 's32[2]{0}', space=sflag, size = 0x8, scoped, tag = 'scoped memory for tpu_custom_call.1']
    #allocation8 [shape = 'u8[512]{0}', space=smem, size = 0x200, scoped, tag = 'output window, operand 0, single buffered']
    %7 = vsyncpa [#allocation4], 0
    %s8 = scalar_lea.sflag [#allocation4], 1
    %9 = vsyncpa %s8, 0
    %10 = vsyncpa [#allocation7], 0
    %s11 = scalar_lea.sflag [#allocation7], 1
    %12 = vsyncpa %s11, 0
    %13 = vsyncpa [#allocation5], 0
    loop: start=0, step=1, limit=4
    $region2: #{tpu_custom_call.1} parent=1 // loop_pre_header
      _
    $region3: #{tpu_custom_call.1} parent=1 // loop_header
      %s15 = sphi 0, %s19
      %p16 = scmp.ge.s32.totalorder %s15, 4
      %s25 = sphi 0, %s27
      %s28 = sphi 0, %s25
      %s29 = sphi 0, %s28
      %s45 = sphi 0, %s29
      %s51 = sphi 0, %s53
      %s54 = sphi 0, %s51
      %s55 = sphi 0, %s54
      %s71 = sphi 0, %s55
      %s75 = sphi 0, %s75
      %s77 = sphi 0, %s75
      %s78 = sphi 0, %s77
      %s92 = sphi 0, %s78
    $region4: #{tpu_custom_call.1} parent=1 // loop_header_branch
      %18 = sbr.rel (%p16) target = $region8
    $region5: #{tpu_custom_call.1} parent=1 // loop_body
      %s20 = ssub.s32 %s15, 1
      %s21 = ssub.s32 %s15, 2
      %s22 = sadd.s32 %s15, 1
      %s23 = ssub.s32 %s15, %s22
      %p24 = scmp.eq.s32.totalorder %s23, 0
      %s26 = sadd.s32 %s25, 1
      %s27 = scalar_select %p24, %s25, %s26
      %p30 = pneg %p24
      %p31 = scmp.eq.s32.totalorder %s15, 1
      %p32 = por %p30, %p31
      %p33 = scmp.ne.s32.totalorder %s25, %s28
      %p34 = scmp.eq.s32.totalorder %s15, 0
      %p35 = por %p33, %p34
      %p36 = scmp.ne.s32.totalorder %s25, %s28
      %p37 = scmp.eq.s32.totalorder %s20, 1
      %p38 = por %p36, %p37
      %p39 = scmp.ne.s32.totalorder %s28, %s29
      %p40 = scmp.eq.s32.totalorder %s20, 0
      %p41 = por %p39, %p40
      %p42 = scmp.ne.s32.totalorder %s28, %s29
      %p43 = scmp.eq.s32.totalorder %s21, 1
      %p44 = por %p42, %p43
      %p46 = scmp.ne.s32.totalorder %s29, %s45
      %p47 = scmp.eq.s32.totalorder %s21, 0
      %p48 = por %p46, %p47
      %s49 = ssub.s32 %s15, %s22
      %p50 = scmp.eq.s32.totalorder %s49, 0
      %s52 = sadd.s32 %s51, 1
      %s53 = scalar_select %p50, %s51, %s52
      %p56 = pneg %p50
      %p57 = scmp.eq.s32.totalorder %s15, 1
      %p58 = por %p56, %p57
      %p59 = scmp.ne.s32.totalorder %s51, %s54
      %p60 = scmp.eq.s32.totalorder %s15, 0
      %p61 = por %p59, %p60
      %p62 = scmp.ne.s32.totalorder %s51, %s54
      %p63 = scmp.eq.s32.totalorder %s20, 1
      %p64 = por %p62, %p63
      %p65 = scmp.ne.s32.totalorder %s54, %s55
      %p66 = scmp.eq.s32.totalorder %s20, 0
      %p67 = por %p65, %p66
      %p68 = scmp.ne.s32.totalorder %s54, %s55
      %p69 = scmp.eq.s32.totalorder %s21, 1
      %p70 = por %p68, %p69
      %p72 = scmp.ne.s32.totalorder %s55, %s71
      %p73 = scmp.eq.s32.totalorder %s21, 0
      %p74 = por %p72, %p73
      %s76 = sadd.s32 %s75, 1
      %p79 = scmp.eq.s32.totalorder %s15, 1
      %p80 = scmp.ne.s32.totalorder %s75, %s77
      %p81 = scmp.eq.s32.totalorder %s15, 0
      %p82 = por %p80, %p81
      %p83 = scmp.ne.s32.totalorder %s75, %s77
      %p84 = scmp.eq.s32.totalorder %s20, 1
      %p85 = por %p83, %p84
      %p86 = scmp.ne.s32.totalorder %s77, %s78
      %p87 = scmp.eq.s32.totalorder %s20, 0
      %p88 = por %p86, %p87
      %p89 = scmp.ne.s32.totalorder %s77, %s78
      %p90 = scmp.eq.s32.totalorder %s21, 1
      %p91 = por %p89, %p90
      %p93 = scmp.ne.s32.totalorder %s78, %s92
      %p94 = scmp.eq.s32.totalorder %s21, 0
      %p95 = por %p93, %p94
      %p96 = scmp.le.s32.totalorder 1, %s15
      %p97 = scmp.lt.s32.totalorder %s15, 3
      %p98 = pnand %p96, %p97
      %p99 = pneg %p98
      // Predicated region
      $region9: #{tpu_custom_call.1} parent=5 // pred_check
        _
      $region10: #{tpu_custom_call.1} parent=5 // pred_check_branch
        %101 = sbr.rel (%p98) target = $region12
      $region11: #{tpu_custom_call.1} parent=5 // pred_region
        %s102 = ssub.s32 %s15, 1
      $region12: #{tpu_custom_call.1} parent=5 // pred_fallthru
        _
      %p103 = scmp.lt.s32.totalorder %s15, 2
      // Predicated region
      $region13: #{tpu_custom_call.1} parent=5 // pred_check
        %p104 = pneg %p103
      $region14: #{tpu_custom_call.1} parent=5 // pred_check_branch
        %106 = sbr.rel (%p104) target = $region16
      $region15: #{tpu_custom_call.1} parent=5 // pred_region
        // Predicated region
        $region17: #{tpu_custom_call.1} parent=15 // pred_check
          %p107 = pneg %p35
        $region18: #{tpu_custom_call.1} parent=15 // pred_check_branch
          %109 = sbr.rel (%p107) target = $region20
        $region19: #{tpu_custom_call.1} parent=15 // pred_region
          %s110 = sand.u32 %s25, 1
          %s111 = scalar_lea.sflag [#allocation4], %s110
          %s112 = sand.u32 %s25, 1
          %s113 = smul.addr %s112, 4096
          %s114 = scalar_lea.vmem [#allocation3], %s113
          %s115 = smul.u32 64, %s15
          %s116 = ssub.s32 65, %s115
          %p117 = scmp.lt.s32.totalorder %s116, 64
          %s118 = scalar_select %p117, %s116, 64
          %s119 = smul.u32 8, %s118
          %s120 = smul.u32 %s119, 8
          %s121 = ssub.s32 4096, %s120
          %s122 = sshll.u32 %s121, 4
          %123 = vsyncadd %s111, %s122
          %p124 = scmp.ne.s32.totalorder 0, %s120
          %s125 = smul.addr %s115, 8
          %s126 = smul.addr %s125, 8
          %s127 = scalar_lea.hbm %s0, %s126
          %s128 = smul.u32 64, %s118
          %s129 = sshll.u32 %s127, 4
          %s130 = int_to_ptr.hbm [resolvable:$true] %s129
          %s131 = sshll.u32 %s114, 4
          %s132 = int_to_ptr.vmem [resolvable:$true] %s131
          %s133 = sshll.u32 %s128, 4
          %137 = dma.hbm_to_vmem [thread:$0]  (%p124), %s130, %s133, %s132, %s111, 1024, 1024, 64
        $region20: #{tpu_custom_call.1} parent=15 // pred_fallthru
          _
        // Predicated region
        $region21: #{tpu_custom_call.1} parent=15 // pred_check
          %p138 = pneg %p61
        $region22: #{tpu_custom_call.1} parent=15 // pred_check_branch
          %140 = sbr.rel (%p138) target = $region24
        $region23: #{tpu_custom_call.1} parent=15 // pred_region
          %s141 = sand.u32 %s51, 1
          %s142 = scalar_lea.sflag [#allocation7], %s141
          %s143 = sand.u32 %s51, 1
          %s144 = smul.addr %s143, 4096
          %s145 = scalar_lea.vmem [#allocation6], %s144
          %s146 = smul.u32 64, %s15
          %s147 = ssub.s32 65, %s146
          %p148 = scmp.lt.s32.totalorder %s147, 64
          %s149 = scalar_select %p148, %s147, 64
          %s150 = smul.u32 8, %s149
          %s151 = smul.u32 %s150, 8
          %s152 = ssub.s32 4096, %s151
          %s153 = sshll.u32 %s152, 4
          %154 = vsyncadd %s142, %s153
          %p155 = scmp.ne.s32.totalorder 0, %s151
          %s156 = smul.addr %s146, 8
          %s157 = smul.addr %s156, 8
          %s158 = scalar_lea.hbm %s1, %s157
          %s159 = smul.u32 64, %s149
          %s160 = sshll.u32 %s158, 4
          %s161 = int_to_ptr.hbm [resolvable:$true] %s160
          %s162 = sshll.u32 %s145, 4
          %s163 = int_to_ptr.vmem [resolvable:$true] %s162
          %s164 = sshll.u32 %s159, 4
          %168 = dma.hbm_to_vmem [thread:$0]  (%p155), %s161, %s164, %s163, %s142, 1024, 1024, 64
        $region24: #{tpu_custom_call.1} parent=15 // pred_fallthru
          _
      $region16: #{tpu_custom_call.1} parent=5 // pred_fallthru
        _
      %p169 = scmp.le.s32.totalorder 1, %s15
      %p170 = scmp.lt.s32.totalorder %s15, 3
      %p171 = pnand %p169, %p170
      %p172 = pneg %p171
      // Predicated region
      $region25: #{tpu_custom_call.1} parent=5 // pred_check
        _
      $region26: #{tpu_custom_call.1} parent=5 // pred_check_branch
        %174 = sbr.rel (%p171) target = $region28
      $region27: #{tpu_custom_call.1} parent=5 // pred_region
        %s175 = ssub.s32 %s15, 1
        %s176 = sand.u32 %s28, 1
        %s177 = scalar_lea.sflag [#allocation4], %s176
        %s178 = sand.u32 %s28, 1
        %s179 = smul.addr %s178, 4096
        %s180 = scalar_lea.vmem [#allocation3], %s179
        // Predicated region
        $region29: #{tpu_custom_call.1} parent=27 // pred_check
          %p181 = pneg %p41
        $region30: #{tpu_custom_call.1} parent=27 // pred_check_branch
          %183 = sbr.rel (%p181) target = $region32
        $region31: #{tpu_custom_call.1} parent=27 // pred_region
          %185 = dma.done %s177, 65536
        $region32: #{tpu_custom_call.1} parent=27 // pred_fallthru
          _
        %s186 = sand.u32 %s54, 1
        %s187 = scalar_lea.sflag [#allocation7], %s186
        %s188 = sand.u32 %s54, 1
        %s189 = smul.addr %s188, 4096
        %s190 = scalar_lea.vmem [#allocation6], %s189
        // Predicated region
        $region33: #{tpu_custom_call.1} parent=27 // pred_check
          %p191 = pneg %p67
        $region34: #{tpu_custom_call.1} parent=27 // pred_check_branch
          %193 = sbr.rel (%p191) target = $region36
        $region35: #{tpu_custom_call.1} parent=27 // pred_region
          %195 = dma.done %s187, 65536
        $region36: #{tpu_custom_call.1} parent=27 // pred_fallthru
          _
        %s196 = sand.u32 %s28, 1
        %s197 = scalar_lea.sflag [#allocation4], %s196
        %s198 = sand.u32 %s28, 1
        %s199 = smul.addr %s198, 4096
        %s200 = scalar_lea.vmem [#allocation3], %s199
        %p201 = pneg %p41
        %p202 = pneg %p38
        %s203 = sand.u32 %s54, 1
        %s204 = scalar_lea.sflag [#allocation7], %s203
        %s205 = sand.u32 %s54, 1
        %s206 = smul.addr %s205, 4096
        %s207 = scalar_lea.vmem [#allocation6], %s206
        %p208 = pneg %p67
        %p209 = pneg %p64
        %p210 = pneg %p88
        %p211 = pneg %p85
        %s212 = smul.u32 64, %s20
        %s213 = ssub.s32 65, %s212
        %p214 = scmp.lt.s32.totalorder %s213, 64
        %s215 = scalar_select %p214, %s213, 64
        %s216 = smul.u32 8, %s215
        %s217 = smul.u32 %s216, 8
        %s218 = smul.u32 64, %s20
        %s219 = ssub.s32 65, %s218
        %p220 = scmp.lt.s32.totalorder %s219, 64
        %s221 = scalar_select %p220, %s219, 64
        %s222 = smul.u32 8, %s221
        %s223 = smul.u32 %s222, 8
        %p224 = scmp.eq.s32.totalorder %s20, 0
        // Predicated region
        $region37: #{tpu_custom_call.1} parent=27 // pred_check
          %p225 = pneg %p224
        $region38: #{tpu_custom_call.1} parent=27 // pred_check_branch
          %227 = sbr.rel (%p225) target = $region40
        $region39: #{tpu_custom_call.1} parent=27 // pred_region
          %228 = vst [vmem:[#allocation2] sm:$0xff] 0.0
          %229 = vst [vmem:[#allocation2 + $0x8] sm:$0xff] 0.0
          %230 = vst [vmem:[#allocation2 + $0x10] sm:$0xff] 0.0
          %231 = vst [vmem:[#allocation2 + $0x18] sm:$0xff] 0.0
          %232 = vst [vmem:[#allocation2 + $0x20] sm:$0xff] 0.0
          %233 = vst [vmem:[#allocation2 + $0x28] sm:$0xff] 0.0
          %234 = vst [vmem:[#allocation2 + $0x30] sm:$0xff] 0.0
          %235 = vst [vmem:[#allocation2 + $0x38] sm:$0xff] 0.0
          %236 = vst [vmem:[#allocation2 + $0x40] sm:$0xff] 0.0
          %237 = vst [vmem:[#allocation2 + $0x48] sm:$0xff] 0.0
          %238 = vst [vmem:[#allocation2 + $0x50] sm:$0xff] 0.0
          %239 = vst [vmem:[#allocation2 + $0x58] sm:$0xff] 0.0
          %240 = vst [vmem:[#allocation2 + $0x60] sm:$0xff] 0.0
          %241 = vst [vmem:[#allocation2 + $0x68] sm:$0xff] 0.0
          %242 = vst [vmem:[#allocation2 + $0x70] sm:$0xff] 0.0
          %243 = vst [vmem:[#allocation2 + $0x78] sm:$0xff] 0.0
          %244 = vst [vmem:[#allocation2 + $0x80] sm:$0xff] 0.0
          %245 = vst [vmem:[#allocation2 + $0x88] sm:$0xff] 0.0
          %246 = vst [vmem:[#allocation2 + $0x90] sm:$0xff] 0.0
          %247 = vst [vmem:[#allocation2 + $0x98] sm:$0xff] 0.0
          %248 = vst [vmem:[#allocation2 + $0xa0] sm:$0xff] 0.0
          %249 = vst [vmem:[#allocation2 + $0xa8] sm:$0xff] 0.0
          %250 = vst [vmem:[#allocation2 + $0xb0] sm:$0xff] 0.0
          %251 = vst [vmem:[#allocation2 + $0xb8] sm:$0xff] 0.0
          %252 = vst [vmem:[#allocation2 + $0xc0] sm:$0xff] 0.0
          %253 = vst [vmem:[#allocation2 + $0xc8] sm:$0xff] 0.0
          %254 = vst [vmem:[#allocation2 + $0xd0] sm:$0xff] 0.0
          %255 = vst [vmem:[#allocation2 + $0xd8] sm:$0xff] 0.0
          %256 = vst [vmem:[#allocation2 + $0xe0] sm:$0xff] 0.0
          %257 = vst [vmem:[#allocation2 + $0xe8] sm:$0xff] 0.0
          %258 = vst [vmem:[#allocation2 + $0xf0] sm:$0xff] 0.0
          %259 = vst [vmem:[#allocation2 + $0xf8] sm:$0xff] 0.0
          %260 = vst [vmem:[#allocation2 + $0x100] sm:$0xff] 0.0
          %261 = vst [vmem:[#allocation2 + $0x108] sm:$0xff] 0.0
          %262 = vst [vmem:[#allocation2 + $0x110] sm:$0xff] 0.0
          %263 = vst [vmem:[#allocation2 + $0x118] sm:$0xff] 0.0
          %264 = vst [vmem:[#allocation2 + $0x120] sm:$0xff] 0.0
          %265 = vst [vmem:[#allocation2 + $0x128] sm:$0xff] 0.0
          %266 = vst [vmem:[#allocation2 + $0x130] sm:$0xff] 0.0
          %267 = vst [vmem:[#allocation2 + $0x138] sm:$0xff] 0.0
          %268 = vst [vmem:[#allocation2 + $0x140] sm:$0xff] 0.0
          %269 = vst [vmem:[#allocation2 + $0x148] sm:$0xff] 0.0
          %270 = vst [vmem:[#allocation2 + $0x150] sm:$0xff] 0.0
          %271 = vst [vmem:[#allocation2 + $0x158] sm:$0xff] 0.0
          %272 = vst [vmem:[#allocation2 + $0x160] sm:$0xff] 0.0
          %273 = vst [vmem:[#allocation2 + $0x168] sm:$0xff] 0.0
          %274 = vst [vmem:[#allocation2 + $0x170] sm:$0xff] 0.0
          %275 = vst [vmem:[#allocation2 + $0x178] sm:$0xff] 0.0
          %276 = vst [vmem:[#allocation2 + $0x180] sm:$0xff] 0.0
          %277 = vst [vmem:[#allocation2 + $0x188] sm:$0xff] 0.0
          %278 = vst [vmem:[#allocation2 + $0x190] sm:$0xff] 0.0
          %279 = vst [vmem:[#allocation2 + $0x198] sm:$0xff] 0.0
          %280 = vst [vmem:[#allocation2 + $0x1a0] sm:$0xff] 0.0
          %281 = vst [vmem:[#allocation2 + $0x1a8] sm:$0xff] 0.0
          %282 = vst [vmem:[#allocation2 + $0x1b0] sm:$0xff] 0.0
          %283 = vst [vmem:[#allocation2 + $0x1b8] sm:$0xff] 0.0
          %284 = vst [vmem:[#allocation2 + $0x1c0] sm:$0xff] 0.0
          %285 = vst [vmem:[#allocation2 + $0x1c8] sm:$0xff] 0.0
          %286 = vst [vmem:[#allocation2 + $0x1d0] sm:$0xff] 0.0
          %287 = vst [vmem:[#allocation2 + $0x1d8] sm:$0xff] 0.0
          %288 = vst [vmem:[#allocation2 + $0x1e0] sm:$0xff] 0.0
          %289 = vst [vmem:[#allocation2 + $0x1e8] sm:$0xff] 0.0
          %290 = vst [vmem:[#allocation2 + $0x1f0] sm:$0xff] 0.0
          %291 = vst [vmem:[#allocation2 + $0x1f8] sm:$0xff] 0.0
          %292 = vst [vmem:[#allocation2 + $0x200] sm:$0xff] 0.0
          %293 = vst [vmem:[#allocation2 + $0x208] sm:$0xff] 0.0
          %294 = vst [vmem:[#allocation2 + $0x210] sm:$0xff] 0.0
          %295 = vst [vmem:[#allocation2 + $0x218] sm:$0xff] 0.0
          %296 = vst [vmem:[#allocation2 + $0x220] sm:$0xff] 0.0
          %297 = vst [vmem:[#allocation2 + $0x228] sm:$0xff] 0.0
          %298 = vst [vmem:[#allocation2 + $0x230] sm:$0xff] 0.0
          %299 = vst [vmem:[#allocation2 + $0x238] sm:$0xff] 0.0
          %300 = vst [vmem:[#allocation2 + $0x240] sm:$0xff] 0.0
          %301 = vst [vmem:[#allocation2 + $0x248] sm:$0xff] 0.0
          %302 = vst [vmem:[#allocation2 + $0x250] sm:$0xff] 0.0
          %303 = vst [vmem:[#allocation2 + $0x258] sm:$0xff] 0.0
          %304 = vst [vmem:[#allocation2 + $0x260] sm:$0xff] 0.0
          %305 = vst [vmem:[#allocation2 + $0x268] sm:$0xff] 0.0
          %306 = vst [vmem:[#allocation2 + $0x270] sm:$0xff] 0.0
          %307 = vst [vmem:[#allocation2 + $0x278] sm:$0xff] 0.0
          %308 = vst [vmem:[#allocation2 + $0x280] sm:$0xff] 0.0
          %309 = vst [vmem:[#allocation2 + $0x288] sm:$0xff] 0.0
          %310 = vst [vmem:[#allocation2 + $0x290] sm:$0xff] 0.0
          %311 = vst [vmem:[#allocation2 + $0x298] sm:$0xff] 0.0
          %312 = vst [vmem:[#allocation2 + $0x2a0] sm:$0xff] 0.0
          %313 = vst [vmem:[#allocation2 + $0x2a8] sm:$0xff] 0.0
          %314 = vst [vmem:[#allocation2 + $0x2b0] sm:$0xff] 0.0
          %315 = vst [vmem:[#allocation2 + $0x2b8] sm:$0xff] 0.0
          %316 = vst [vmem:[#allocation2 + $0x2c0] sm:$0xff] 0.0
          %317 = vst [vmem:[#allocation2 + $0x2c8] sm:$0xff] 0.0
          %318 = vst [vmem:[#allocation2 + $0x2d0] sm:$0xff] 0.0
          %319 = vst [vmem:[#allocation2 + $0x2d8] sm:$0xff] 0.0
          %320 = vst [vmem:[#allocation2 + $0x2e0] sm:$0xff] 0.0
          %321 = vst [vmem:[#allocation2 + $0x2e8] sm:$0xff] 0.0
          %322 = vst [vmem:[#allocation2 + $0x2f0] sm:$0xff] 0.0
          %323 = vst [vmem:[#allocation2 + $0x2f8] sm:$0xff] 0.0
          %324 = vst [vmem:[#allocation2 + $0x300] sm:$0xff] 0.0
          %325 = vst [vmem:[#allocation2 + $0x308] sm:$0xff] 0.0
          %326 = vst [vmem:[#allocation2 + $0x310] sm:$0xff] 0.0
          %327 = vst [vmem:[#allocation2 + $0x318] sm:$0xff] 0.0
          %328 = vst [vmem:[#allocation2 + $0x320] sm:$0xff] 0.0
          %329 = vst [vmem:[#allocation2 + $0x328] sm:$0xff] 0.0
          %330 = vst [vmem:[#allocation2 + $0x330] sm:$0xff] 0.0
          %331 = vst [vmem:[#allocation2 + $0x338] sm:$0xff] 0.0
          %332 = vst [vmem:[#allocation2 + $0x340] sm:$0xff] 0.0
          %333 = vst [vmem:[#allocation2 + $0x348] sm:$0xff] 0.0
          %334 = vst [vmem:[#allocation2 + $0x350] sm:$0xff] 0.0
          %335 = vst [vmem:[#allocation2 + $0x358] sm:$0xff] 0.0
          %336 = vst [vmem:[#allocation2 + $0x360] sm:$0xff] 0.0
          %337 = vst [vmem:[#allocation2 + $0x368] sm:$0xff] 0.0
          %338 = vst [vmem:[#allocation2 + $0x370] sm:$0xff] 0.0
          %339 = vst [vmem:[#allocation2 + $0x378] sm:$0xff] 0.0
          %340 = vst [vmem:[#allocation2 + $0x380] sm:$0xff] 0.0
          %341 = vst [vmem:[#allocation2 + $0x388] sm:$0xff] 0.0
          %342 = vst [vmem:[#allocation2 + $0x390] sm:$0xff] 0.0
          %343 = vst [vmem:[#allocation2 + $0x398] sm:$0xff] 0.0
          %344 = vst [vmem:[#allocation2 + $0x3a0] sm:$0xff] 0.0
          %345 = vst [vmem:[#allocation2 + $0x3a8] sm:$0xff] 0.0
          %346 = vst [vmem:[#allocation2 + $0x3b0] sm:$0xff] 0.0
          %347 = vst [vmem:[#allocation2 + $0x3b8] sm:$0xff] 0.0
          %348 = vst [vmem:[#allocation2 + $0x3c0] sm:$0xff] 0.0
          %349 = vst [vmem:[#allocation2 + $0x3c8] sm:$0xff] 0.0
          %350 = vst [vmem:[#allocation2 + $0x3d0] sm:$0xff] 0.0
          %351 = vst [vmem:[#allocation2 + $0x3d8] sm:$0xff] 0.0
          %352 = vst [vmem:[#allocation2 + $0x3e0] sm:$0xff] 0.0
          %353 = vst [vmem:[#allocation2 + $0x3e8] sm:$0xff] 0.0
          %354 = vst [vmem:[#allocation2 + $0x3f0] sm:$0xff] 0.0
          %355 = vst [vmem:[#allocation2 + $0x3f8] sm:$0xff] 0.0
          %356 = vst [vmem:[#allocation2 + $0x400] sm:$0xff] 0.0
          %357 = vst [vmem:[#allocation2 + $0x408] sm:$0xff] 0.0
          %358 = vst [vmem:[#allocation2 + $0x410] sm:$0xff] 0.0
          %359 = vst [vmem:[#allocation2 + $0x418] sm:$0xff] 0.0
          %360 = vst [vmem:[#allocation2 + $0x420] sm:$0xff] 0.0
          %361 = vst [vmem:[#allocation2 + $0x428] sm:$0xff] 0.0
          %362 = vst [vmem:[#allocation2 + $0x430] sm:$0xff] 0.0
          %363 = vst [vmem:[#allocation2 + $0x438] sm:$0xff] 0.0
          %364 = vst [vmem:[#allocation2 + $0x440] sm:$0xff] 0.0
          %365 = vst [vmem:[#allocation2 + $0x448] sm:$0xff] 0.0
          %366 = vst [vmem:[#allocation2 + $0x450] sm:$0xff] 0.0
          %367 = vst [vmem:[#allocation2 + $0x458] sm:$0xff] 0.0
          %368 = vst [vmem:[#allocation2 + $0x460] sm:$0xff] 0.0
          %369 = vst [vmem:[#allocation2 + $0x468] sm:$0xff] 0.0
          %370 = vst [vmem:[#allocation2 + $0x470] sm:$0xff] 0.0
          %371 = vst [vmem:[#allocation2 + $0x478] sm:$0xff] 0.0
          %372 = vst [vmem:[#allocation2 + $0x480] sm:$0xff] 0.0
          %373 = vst [vmem:[#allocation2 + $0x488] sm:$0xff] 0.0
          %374 = vst [vmem:[#allocation2 + $0x490] sm:$0xff] 0.0
          %375 = vst [vmem:[#allocation2 + $0x498] sm:$0xff] 0.0
          %376 = vst [vmem:[#allocation2 + $0x4a0] sm:$0xff] 0.0
          %377 = vst [vmem:[#allocation2 + $0x4a8] sm:$0xff] 0.0
          %378 = vst [vmem:[#allocation2 + $0x4b0] sm:$0xff] 0.0
          %379 = vst [vmem:[#allocation2 + $0x4b8] sm:$0xff] 0.0
          %380 = vst [vmem:[#allocation2 + $0x4c0] sm:$0xff] 0.0
          %381 = vst [vmem:[#allocation2 + $0x4c8] sm:$0xff] 0.0
          %382 = vst [vmem:[#allocation2 + $0x4d0] sm:$0xff] 0.0
          %383 = vst [vmem:[#allocation2 + $0x4d8] sm:$0xff] 0.0
          %384 = vst [vmem:[#allocation2 + $0x4e0] sm:$0xff] 0.0
          %385 = vst [vmem:[#allocation2 + $0x4e8] sm:$0xff] 0.0
          %386 = vst [vmem:[#allocation2 + $0x4f0] sm:$0xff] 0.0
          %387 = vst [vmem:[#allocation2 + $0x4f8] sm:$0xff] 0.0
          %388 = vst [vmem:[#allocation2 + $0x500] sm:$0xff] 0.0
          %389 = vst [vmem:[#allocation2 + $0x508] sm:$0xff] 0.0
          %390 = vst [vmem:[#allocation2 + $0x510] sm:$0xff] 0.0
          %391 = vst [vmem:[#allocation2 + $0x518] sm:$0xff] 0.0
          %392 = vst [vmem:[#allocation2 + $0x520] sm:$0xff] 0.0
          %393 = vst [vmem:[#allocation2 + $0x528] sm:$0xff] 0.0
          %394 = vst [vmem:[#allocation2 + $0x530] sm:$0xff] 0.0
          %395 = vst [vmem:[#allocation2 + $0x538] sm:$0xff] 0.0
          %396 = vst [vmem:[#allocation2 + $0x540] sm:$0xff] 0.0
          %397 = vst [vmem:[#allocation2 + $0x548] sm:$0xff] 0.0
          %398 = vst [vmem:[#allocation2 + $0x550] sm:$0xff] 0.0
          %399 = vst [vmem:[#allocation2 + $0x558] sm:$0xff] 0.0
          %400 = vst [vmem:[#allocation2 + $0x560] sm:$0xff] 0.0
          %401 = vst [vmem:[#allocation2 + $0x568] sm:$0xff] 0.0
          %402 = vst [vmem:[#allocation2 + $0x570] sm:$0xff] 0.0
          %403 = vst [vmem:[#allocation2 + $0x578] sm:$0xff] 0.0
          %404 = vst [vmem:[#allocation2 + $0x580] sm:$0xff] 0.0
          %405 = vst [vmem:[#allocation2 + $0x588] sm:$0xff] 0.0
          %406 = vst [vmem:[#allocation2 + $0x590] sm:$0xff] 0.0
          %407 = vst [vmem:[#allocation2 + $0x598] sm:$0xff] 0.0
          %408 = vst [vmem:[#allocation2 + $0x5a0] sm:$0xff] 0.0
          %409 = vst [vmem:[#allocation2 + $0x5a8] sm:$0xff] 0.0
          %410 = vst [vmem:[#allocation2 + $0x5b0] sm:$0xff] 0.0
          %411 = vst [vmem:[#allocation2 + $0x5b8] sm:$0xff] 0.0
          %412 = vst [vmem:[#allocation2 + $0x5c0] sm:$0xff] 0.0
          %413 = vst [vmem:[#allocation2 + $0x5c8] sm:$0xff] 0.0
          %414 = vst [vmem:[#allocation2 + $0x5d0] sm:$0xff] 0.0
          %415 = vst [vmem:[#allocation2 + $0x5d8] sm:$0xff] 0.0
          %416 = vst [vmem:[#allocation2 + $0x5e0] sm:$0xff] 0.0
          %417 = vst [vmem:[#allocation2 + $0x5e8] sm:$0xff] 0.0
          %418 = vst [vmem:[#allocation2 + $0x5f0] sm:$0xff] 0.0
          %419 = vst [vmem:[#allocation2 + $0x5f8] sm:$0xff] 0.0
          %420 = vst [vmem:[#allocation2 + $0x600] sm:$0xff] 0.0
          %421 = vst [vmem:[#allocation2 + $0x608] sm:$0xff] 0.0
          %422 = vst [vmem:[#allocation2 + $0x610] sm:$0xff] 0.0
          %423 = vst [vmem:[#allocation2 + $0x618] sm:$0xff] 0.0
          %424 = vst [vmem:[#allocation2 + $0x620] sm:$0xff] 0.0
          %425 = vst [vmem:[#allocation2 + $0x628] sm:$0xff] 0.0
          %426 = vst [vmem:[#allocation2 + $0x630] sm:$0xff] 0.0
          %427 = vst [vmem:[#allocation2 + $0x638] sm:$0xff] 0.0
          %428 = vst [vmem:[#allocation2 + $0x640] sm:$0xff] 0.0
          %429 = vst [vmem:[#allocation2 + $0x648] sm:$0xff] 0.0
          %430 = vst [vmem:[#allocation2 + $0x650] sm:$0xff] 0.0
          %431 = vst [vmem:[#allocation2 + $0x658] sm:$0xff] 0.0
          %432 = vst [vmem:[#allocation2 + $0x660] sm:$0xff] 0.0
          %433 = vst [vmem:[#allocation2 + $0x668] sm:$0xff] 0.0
          %434 = vst [vmem:[#allocation2 + $0x670] sm:$0xff] 0.0
          %435 = vst [vmem:[#allocation2 + $0x678] sm:$0xff] 0.0
          %436 = vst [vmem:[#allocation2 + $0x680] sm:$0xff] 0.0
          %437 = vst [vmem:[#allocation2 + $0x688] sm:$0xff] 0.0
          %438 = vst [vmem:[#allocation2 + $0x690] sm:$0xff] 0.0
          %439 = vst [vmem:[#allocation2 + $0x698] sm:$0xff] 0.0
          %440 = vst [vmem:[#allocation2 + $0x6a0] sm:$0xff] 0.0
          %441 = vst [vmem:[#allocation2 + $0x6a8] sm:$0xff] 0.0
          %442 = vst [vmem:[#allocation2 + $0x6b0] sm:$0xff] 0.0
          %443 = vst [vmem:[#allocation2 + $0x6b8] sm:$0xff] 0.0
          %444 = vst [vmem:[#allocation2 + $0x6c0] sm:$0xff] 0.0
          %445 = vst [vmem:[#allocation2 + $0x6c8] sm:$0xff] 0.0
          %446 = vst [vmem:[#allocation2 + $0x6d0] sm:$0xff] 0.0
          %447 = vst [vmem:[#allocation2 + $0x6d8] sm:$0xff] 0.0
          %448 = vst [vmem:[#allocation2 + $0x6e0] sm:$0xff] 0.0
          %449 = vst [vmem:[#allocation2 + $0x6e8] sm:$0xff] 0.0
          %450 = vst [vmem:[#allocation2 + $0x6f0] sm:$0xff] 0.0
          %451 = vst [vmem:[#allocation2 + $0x6f8] sm:$0xff] 0.0
          %452 = vst [vmem:[#allocation2 + $0x700] sm:$0xff] 0.0
          %453 = vst [vmem:[#allocation2 + $0x708] sm:$0xff] 0.0
          %454 = vst [vmem:[#allocation2 + $0x710] sm:$0xff] 0.0
          %455 = vst [vmem:[#allocation2 + $0x718] sm:$0xff] 0.0
          %456 = vst [vmem:[#allocation2 + $0x720] sm:$0xff] 0.0
          %457 = vst [vmem:[#allocation2 + $0x728] sm:$0xff] 0.0
          %458 = vst [vmem:[#allocation2 + $0x730] sm:$0xff] 0.0
          %459 = vst [vmem:[#allocation2 + $0x738] sm:$0xff] 0.0
          %460 = vst [vmem:[#allocation2 + $0x740] sm:$0xff] 0.0
          %461 = vst [vmem:[#allocation2 + $0x748] sm:$0xff] 0.0
          %462 = vst [vmem:[#allocation2 + $0x750] sm:$0xff] 0.0
          %463 = vst [vmem:[#allocation2 + $0x758] sm:$0xff] 0.0
          %464 = vst [vmem:[#allocation2 + $0x760] sm:$0xff] 0.0
          %465 = vst [vmem:[#allocation2 + $0x768] sm:$0xff] 0.0
          %466 = vst [vmem:[#allocation2 + $0x770] sm:$0xff] 0.0
          %467 = vst [vmem:[#allocation2 + $0x778] sm:$0xff] 0.0
          %468 = vst [vmem:[#allocation2 + $0x780] sm:$0xff] 0.0
          %469 = vst [vmem:[#allocation2 + $0x788] sm:$0xff] 0.0
          %470 = vst [vmem:[#allocation2 + $0x790] sm:$0xff] 0.0
          %471 = vst [vmem:[#allocation2 + $0x798] sm:$0xff] 0.0
          %472 = vst [vmem:[#allocation2 + $0x7a0] sm:$0xff] 0.0
          %473 = vst [vmem:[#allocation2 + $0x7a8] sm:$0xff] 0.0
          %474 = vst [vmem:[#allocation2 + $0x7b0] sm:$0xff] 0.0
          %475 = vst [vmem:[#allocation2 + $0x7b8] sm:$0xff] 0.0
          %476 = vst [vmem:[#allocation2 + $0x7c0] sm:$0xff] 0.0
          %477 = vst [vmem:[#allocation2 + $0x7c8] sm:$0xff] 0.0
          %478 = vst [vmem:[#allocation2 + $0x7d0] sm:$0xff] 0.0
          %479 = vst [vmem:[#allocation2 + $0x7d8] sm:$0xff] 0.0
          %480 = vst [vmem:[#allocation2 + $0x7e0] sm:$0xff] 0.0
          %481 = vst [vmem:[#allocation2 + $0x7e8] sm:$0xff] 0.0
          %482 = vst [vmem:[#allocation2 + $0x7f0] sm:$0xff] 0.0
          %483 = vst [vmem:[#allocation2 + $0x7f8] sm:$0xff] 0.0
          %484 = vst [vmem:[#allocation2 + $0x800] sm:$0xff] 0.0
          %485 = vst [vmem:[#allocation2 + $0x808] sm:$0xff] 0.0
          %486 = vst [vmem:[#allocation2 + $0x810] sm:$0xff] 0.0
          %487 = vst [vmem:[#allocation2 + $0x818] sm:$0xff] 0.0
          %488 = vst [vmem:[#allocation2 + $0x820] sm:$0xff] 0.0
          %489 = vst [vmem:[#allocation2 + $0x828] sm:$0xff] 0.0
          %490 = vst [vmem:[#allocation2 + $0x830] sm:$0xff] 0.0
          %491 = vst [vmem:[#allocation2 + $0x838] sm:$0xff] 0.0
          %492 = vst [vmem:[#allocation2 + $0x840] sm:$0xff] 0.0
          %493 = vst [vmem:[#allocation2 + $0x848] sm:$0xff] 0.0
          %494 = vst [vmem:[#allocation2 + $0x850] sm:$0xff] 0.0
          %495 = vst [vmem:[#allocation2 + $0x858] sm:$0xff] 0.0
          %496 = vst [vmem:[#allocation2 + $0x860] sm:$0xff] 0.0
          %497 = vst [vmem:[#allocation2 + $0x868] sm:$0xff] 0.0
          %498 = vst [vmem:[#allocation2 + $0x870] sm:$0xff] 0.0
          %499 = vst [vmem:[#allocation2 + $0x878] sm:$0xff] 0.0
          %500 = vst [vmem:[#allocation2 + $0x880] sm:$0xff] 0.0
          %501 = vst [vmem:[#allocation2 + $0x888] sm:$0xff] 0.0
          %502 = vst [vmem:[#allocation2 + $0x890] sm:$0xff] 0.0
          %503 = vst [vmem:[#allocation2 + $0x898] sm:$0xff] 0.0
          %504 = vst [vmem:[#allocation2 + $0x8a0] sm:$0xff] 0.0
          %505 = vst [vmem:[#allocation2 + $0x8a8] sm:$0xff] 0.0
          %506 = vst [vmem:[#allocation2 + $0x8b0] sm:$0xff] 0.0
          %507 = vst [vmem:[#allocation2 + $0x8b8] sm:$0xff] 0.0
          %508 = vst [vmem:[#allocation2 + $0x8c0] sm:$0xff] 0.0
          %509 = vst [vmem:[#allocation2 + $0x8c8] sm:$0xff] 0.0
          %510 = vst [vmem:[#allocation2 + $0x8d0] sm:$0xff] 0.0
          %511 = vst [vmem:[#allocation2 + $0x8d8] sm:$0xff] 0.0
          %512 = vst [vmem:[#allocation2 + $0x8e0] sm:$0xff] 0.0
          %513 = vst [vmem:[#allocation2 + $0x8e8] sm:$0xff] 0.0
          %514 = vst [vmem:[#allocation2 + $0x8f0] sm:$0xff] 0.0
          %515 = vst [vmem:[#allocation2 + $0x8f8] sm:$0xff] 0.0
          %516 = vst [vmem:[#allocation2 + $0x900] sm:$0xff] 0.0
          %517 = vst [vmem:[#allocation2 + $0x908] sm:$0xff] 0.0
          %518 = vst [vmem:[#allocation2 + $0x910] sm:$0xff] 0.0
          %519 = vst [vmem:[#allocation2 + $0x918] sm:$0xff] 0.0
          %520 = vst [vmem:[#allocation2 + $0x920] sm:$0xff] 0.0
          %521 = vst [vmem:[#allocation2 + $0x928] sm:$0xff] 0.0
          %522 = vst [vmem:[#allocation2 + $0x930] sm:$0xff] 0.0
          %523 = vst [vmem:[#allocation2 + $0x938] sm:$0xff] 0.0
          %524 = vst [vmem:[#allocation2 + $0x940] sm:$0xff] 0.0
          %525 = vst [vmem:[#allocation2 + $0x948] sm:$0xff] 0.0
          %526 = vst [vmem:[#allocation2 + $0x950] sm:$0xff] 0.0
          %527 = vst [vmem:[#allocation2 + $0x958] sm:$0xff] 0.0
          %528 = vst [vmem:[#allocation2 + $0x960] sm:$0xff] 0.0
          %529 = vst [vmem:[#allocation2 + $0x968] sm:$0xff] 0.0
          %530 = vst [vmem:[#allocation2 + $0x970] sm:$0xff] 0.0
          %531 = vst [vmem:[#allocation2 + $0x978] sm:$0xff] 0.0
          %532 = vst [vmem:[#allocation2 + $0x980] sm:$0xff] 0.0
          %533 = vst [vmem:[#allocation2 + $0x988] sm:$0xff] 0.0
          %534 = vst [vmem:[#allocation2 + $0x990] sm:$0xff] 0.0
          %535 = vst [vmem:[#allocation2 + $0x998] sm:$0xff] 0.0
          %536 = vst [vmem:[#allocation2 + $0x9a0] sm:$0xff] 0.0
          %537 = vst [vmem:[#allocation2 + $0x9a8] sm:$0xff] 0.0
          %538 = vst [vmem:[#allocation2 + $0x9b0] sm:$0xff] 0.0
          %539 = vst [vmem:[#allocation2 + $0x9b8] sm:$0xff] 0.0
          %540 = vst [vmem:[#allocation2 + $0x9c0] sm:$0xff] 0.0
          %541 = vst [vmem:[#allocation2 + $0x9c8] sm:$0xff] 0.0
          %542 = vst [vmem:[#allocation2 + $0x9d0] sm:$0xff] 0.0
          %543 = vst [vmem:[#allocation2 + $0x9d8] sm:$0xff] 0.0
          %544 = vst [vmem:[#allocation2 + $0x9e0] sm:$0xff] 0.0
          %545 = vst [vmem:[#allocation2 + $0x9e8] sm:$0xff] 0.0
          %546 = vst [vmem:[#allocation2 + $0x9f0] sm:$0xff] 0.0
          %547 = vst [vmem:[#allocation2 + $0x9f8] sm:$0xff] 0.0
          %548 = vst [vmem:[#allocation2 + $0xa00] sm:$0xff] 0.0
          %549 = vst [vmem:[#allocation2 + $0xa08] sm:$0xff] 0.0
          %550 = vst [vmem:[#allocation2 + $0xa10] sm:$0xff] 0.0
          %551 = vst [vmem:[#allocation2 + $0xa18] sm:$0xff] 0.0
          %552 = vst [vmem:[#allocation2 + $0xa20] sm:$0xff] 0.0
          %553 = vst [vmem:[#allocation2 + $0xa28] sm:$0xff] 0.0
          %554 = vst [vmem:[#allocation2 + $0xa30] sm:$0xff] 0.0
          %555 = vst [vmem:[#allocation2 + $0xa38] sm:$0xff] 0.0
          %556 = vst [vmem:[#allocation2 + $0xa40] sm:$0xff] 0.0
          %557 = vst [vmem:[#allocation2 + $0xa48] sm:$0xff] 0.0
          %558 = vst [vmem:[#allocation2 + $0xa50] sm:$0xff] 0.0
          %559 = vst [vmem:[#allocation2 + $0xa58] sm:$0xff] 0.0
          %560 = vst [vmem:[#allocation2 + $0xa60] sm:$0xff] 0.0
          %561 = vst [vmem:[#allocation2 + $0xa68] sm:$0xff] 0.0
          %562 = vst [vmem:[#allocation2 + $0xa70] sm:$0xff] 0.0
          %563 = vst [vmem:[#allocation2 + $0xa78] sm:$0xff] 0.0
          %564 = vst [vmem:[#allocation2 + $0xa80] sm:$0xff] 0.0
          %565 = vst [vmem:[#allocation2 + $0xa88] sm:$0xff] 0.0
          %566 = vst [vmem:[#allocation2 + $0xa90] sm:$0xff] 0.0
          %567 = vst [vmem:[#allocation2 + $0xa98] sm:$0xff] 0.0
          %568 = vst [vmem:[#allocation2 + $0xaa0] sm:$0xff] 0.0
          %569 = vst [vmem:[#allocation2 + $0xaa8] sm:$0xff] 0.0
          %570 = vst [vmem:[#allocation2 + $0xab0] sm:$0xff] 0.0
          %571 = vst [vmem:[#allocation2 + $0xab8] sm:$0xff] 0.0
          %572 = vst [vmem:[#allocation2 + $0xac0] sm:$0xff] 0.0
          %573 = vst [vmem:[#allocation2 + $0xac8] sm:$0xff] 0.0
          %574 = vst [vmem:[#allocation2 + $0xad0] sm:$0xff] 0.0
          %575 = vst [vmem:[#allocation2 + $0xad8] sm:$0xff] 0.0
          %576 = vst [vmem:[#allocation2 + $0xae0] sm:$0xff] 0.0
          %577 = vst [vmem:[#allocation2 + $0xae8] sm:$0xff] 0.0
          %578 = vst [vmem:[#allocation2 + $0xaf0] sm:$0xff] 0.0
          %579 = vst [vmem:[#allocation2 + $0xaf8] sm:$0xff] 0.0
          %580 = vst [vmem:[#allocation2 + $0xb00] sm:$0xff] 0.0
          %581 = vst [vmem:[#allocation2 + $0xb08] sm:$0xff] 0.0
          %582 = vst [vmem:[#allocation2 + $0xb10] sm:$0xff] 0.0
          %583 = vst [vmem:[#allocation2 + $0xb18] sm:$0xff] 0.0
          %584 = vst [vmem:[#allocation2 + $0xb20] sm:$0xff] 0.0
          %585 = vst [vmem:[#allocation2 + $0xb28] sm:$0xff] 0.0
          %586 = vst [vmem:[#allocation2 + $0xb30] sm:$0xff] 0.0
          %587 = vst [vmem:[#allocation2 + $0xb38] sm:$0xff] 0.0
          %588 = vst [vmem:[#allocation2 + $0xb40] sm:$0xff] 0.0
          %589 = vst [vmem:[#allocation2 + $0xb48] sm:$0xff] 0.0
          %590 = vst [vmem:[#allocation2 + $0xb50] sm:$0xff] 0.0
          %591 = vst [vmem:[#allocation2 + $0xb58] sm:$0xff] 0.0
          %592 = vst [vmem:[#allocation2 + $0xb60] sm:$0xff] 0.0
          %593 = vst [vmem:[#allocation2 + $0xb68] sm:$0xff] 0.0
          %594 = vst [vmem:[#allocation2 + $0xb70] sm:$0xff] 0.0
          %595 = vst [vmem:[#allocation2 + $0xb78] sm:$0xff] 0.0
          %596 = vst [vmem:[#allocation2 + $0xb80] sm:$0xff] 0.0
          %597 = vst [vmem:[#allocation2 + $0xb88] sm:$0xff] 0.0
          %598 = vst [vmem:[#allocation2 + $0xb90] sm:$0xff] 0.0
          %599 = vst [vmem:[#allocation2 + $0xb98] sm:$0xff] 0.0
          %600 = vst [vmem:[#allocation2 + $0xba0] sm:$0xff] 0.0
          %601 = vst [vmem:[#allocation2 + $0xba8] sm:$0xff] 0.0
          %602 = vst [vmem:[#allocation2 + $0xbb0] sm:$0xff] 0.0
          %603 = vst [vmem:[#allocation2 + $0xbb8] sm:$0xff] 0.0
          %604 = vst [vmem:[#allocation2 + $0xbc0] sm:$0xff] 0.0
          %605 = vst [vmem:[#allocation2 + $0xbc8] sm:$0xff] 0.0
          %606 = vst [vmem:[#allocation2 + $0xbd0] sm:$0xff] 0.0
          %607 = vst [vmem:[#allocation2 + $0xbd8] sm:$0xff] 0.0
          %608 = vst [vmem:[#allocation2 + $0xbe0] sm:$0xff] 0.0
          %609 = vst [vmem:[#allocation2 + $0xbe8] sm:$0xff] 0.0
          %610 = vst [vmem:[#allocation2 + $0xbf0] sm:$0xff] 0.0
          %611 = vst [vmem:[#allocation2 + $0xbf8] sm:$0xff] 0.0
          %612 = vst [vmem:[#allocation2 + $0xc00] sm:$0xff] 0.0
          %613 = vst [vmem:[#allocation2 + $0xc08] sm:$0xff] 0.0
          %614 = vst [vmem:[#allocation2 + $0xc10] sm:$0xff] 0.0
          %615 = vst [vmem:[#allocation2 + $0xc18] sm:$0xff] 0.0
          %616 = vst [vmem:[#allocation2 + $0xc20] sm:$0xff] 0.0
          %617 = vst [vmem:[#allocation2 + $0xc28] sm:$0xff] 0.0
          %618 = vst [vmem:[#allocation2 + $0xc30] sm:$0xff] 0.0
          %619 = vst [vmem:[#allocation2 + $0xc38] sm:$0xff] 0.0
          %620 = vst [vmem:[#allocation2 + $0xc40] sm:$0xff] 0.0
          %621 = vst [vmem:[#allocation2 + $0xc48] sm:$0xff] 0.0
          %622 = vst [vmem:[#allocation2 + $0xc50] sm:$0xff] 0.0
          %623 = vst [vmem:[#allocation2 + $0xc58] sm:$0xff] 0.0
          %624 = vst [vmem:[#allocation2 + $0xc60] sm:$0xff] 0.0
          %625 = vst [vmem:[#allocation2 + $0xc68] sm:$0xff] 0.0
          %626 = vst [vmem:[#allocation2 + $0xc70] sm:$0xff] 0.0
          %627 = vst [vmem:[#allocation2 + $0xc78] sm:$0xff] 0.0
          %628 = vst [vmem:[#allocation2 + $0xc80] sm:$0xff] 0.0
          %629 = vst [vmem:[#allocation2 + $0xc88] sm:$0xff] 0.0
          %630 = vst [vmem:[#allocation2 + $0xc90] sm:$0xff] 0.0
          %631 = vst [vmem:[#allocation2 + $0xc98] sm:$0xff] 0.0
          %632 = vst [vmem:[#allocation2 + $0xca0] sm:$0xff] 0.0
          %633 = vst [vmem:[#allocation2 + $0xca8] sm:$0xff] 0.0
          %634 = vst [vmem:[#allocation2 + $0xcb0] sm:$0xff] 0.0
          %635 = vst [vmem:[#allocation2 + $0xcb8] sm:$0xff] 0.0
          %636 = vst [vmem:[#allocation2 + $0xcc0] sm:$0xff] 0.0
          %637 = vst [vmem:[#allocation2 + $0xcc8] sm:$0xff] 0.0
          %638 = vst [vmem:[#allocation2 + $0xcd0] sm:$0xff] 0.0
          %639 = vst [vmem:[#allocation2 + $0xcd8] sm:$0xff] 0.0
          %640 = vst [vmem:[#allocation2 + $0xce0] sm:$0xff] 0.0
          %641 = vst [vmem:[#allocation2 + $0xce8] sm:$0xff] 0.0
          %642 = vst [vmem:[#allocation2 + $0xcf0] sm:$0xff] 0.0
          %643 = vst [vmem:[#allocation2 + $0xcf8] sm:$0xff] 0.0
          %644 = vst [vmem:[#allocation2 + $0xd00] sm:$0xff] 0.0
          %645 = vst [vmem:[#allocation2 + $0xd08] sm:$0xff] 0.0
          %646 = vst [vmem:[#allocation2 + $0xd10] sm:$0xff] 0.0
          %647 = vst [vmem:[#allocation2 + $0xd18] sm:$0xff] 0.0
          %648 = vst [vmem:[#allocation2 + $0xd20] sm:$0xff] 0.0
          %649 = vst [vmem:[#allocation2 + $0xd28] sm:$0xff] 0.0
          %650 = vst [vmem:[#allocation2 + $0xd30] sm:$0xff] 0.0
          %651 = vst [vmem:[#allocation2 + $0xd38] sm:$0xff] 0.0
          %652 = vst [vmem:[#allocation2 + $0xd40] sm:$0xff] 0.0
          %653 = vst [vmem:[#allocation2 + $0xd48] sm:$0xff] 0.0
          %654 = vst [vmem:[#allocation2 + $0xd50] sm:$0xff] 0.0
          %655 = vst [vmem:[#allocation2 + $0xd58] sm:$0xff] 0.0
          %656 = vst [vmem:[#allocation2 + $0xd60] sm:$0xff] 0.0
          %657 = vst [vmem:[#allocation2 + $0xd68] sm:$0xff] 0.0
          %658 = vst [vmem:[#allocation2 + $0xd70] sm:$0xff] 0.0
          %659 = vst [vmem:[#allocation2 + $0xd78] sm:$0xff] 0.0
          %660 = vst [vmem:[#allocation2 + $0xd80] sm:$0xff] 0.0
          %661 = vst [vmem:[#allocation2 + $0xd88] sm:$0xff] 0.0
          %662 = vst [vmem:[#allocation2 + $0xd90] sm:$0xff] 0.0
          %663 = vst [vmem:[#allocation2 + $0xd98] sm:$0xff] 0.0
          %664 = vst [vmem:[#allocation2 + $0xda0] sm:$0xff] 0.0
          %665 = vst [vmem:[#allocation2 + $0xda8] sm:$0xff] 0.0
          %666 = vst [vmem:[#allocation2 + $0xdb0] sm:$0xff] 0.0
          %667 = vst [vmem:[#allocation2 + $0xdb8] sm:$0xff] 0.0
          %668 = vst [vmem:[#allocation2 + $0xdc0] sm:$0xff] 0.0
          %669 = vst [vmem:[#allocation2 + $0xdc8] sm:$0xff] 0.0
          %670 = vst [vmem:[#allocation2 + $0xdd0] sm:$0xff] 0.0
          %671 = vst [vmem:[#allocation2 + $0xdd8] sm:$0xff] 0.0
          %672 = vst [vmem:[#allocation2 + $0xde0] sm:$0xff] 0.0
          %673 = vst [vmem:[#allocation2 + $0xde8] sm:$0xff] 0.0
          %674 = vst [vmem:[#allocation2 + $0xdf0] sm:$0xff] 0.0
          %675 = vst [vmem:[#allocation2 + $0xdf8] sm:$0xff] 0.0
          %676 = vst [vmem:[#allocation2 + $0xe00] sm:$0xff] 0.0
          %677 = vst [vmem:[#allocation2 + $0xe08] sm:$0xff] 0.0
          %678 = vst [vmem:[#allocation2 + $0xe10] sm:$0xff] 0.0
          %679 = vst [vmem:[#allocation2 + $0xe18] sm:$0xff] 0.0
          %680 = vst [vmem:[#allocation2 + $0xe20] sm:$0xff] 0.0
          %681 = vst [vmem:[#allocation2 + $0xe28] sm:$0xff] 0.0
          %682 = vst [vmem:[#allocation2 + $0xe30] sm:$0xff] 0.0
          %683 = vst [vmem:[#allocation2 + $0xe38] sm:$0xff] 0.0
          %684 = vst [vmem:[#allocation2 + $0xe40] sm:$0xff] 0.0
          %685 = vst [vmem:[#allocation2 + $0xe48] sm:$0xff] 0.0
          %686 = vst [vmem:[#allocation2 + $0xe50] sm:$0xff] 0.0
          %687 = vst [vmem:[#allocation2 + $0xe58] sm:$0xff] 0.0
          %688 = vst [vmem:[#allocation2 + $0xe60] sm:$0xff] 0.0
          %689 = vst [vmem:[#allocation2 + $0xe68] sm:$0xff] 0.0
          %690 = vst [vmem:[#allocation2 + $0xe70] sm:$0xff] 0.0
          %691 = vst [vmem:[#allocation2 + $0xe78] sm:$0xff] 0.0
          %692 = vst [vmem:[#allocation2 + $0xe80] sm:$0xff] 0.0
          %693 = vst [vmem:[#allocation2 + $0xe88] sm:$0xff] 0.0
          %694 = vst [vmem:[#allocation2 + $0xe90] sm:$0xff] 0.0
          %695 = vst [vmem:[#allocation2 + $0xe98] sm:$0xff] 0.0
          %696 = vst [vmem:[#allocation2 + $0xea0] sm:$0xff] 0.0
          %697 = vst [vmem:[#allocation2 + $0xea8] sm:$0xff] 0.0
          %698 = vst [vmem:[#allocation2 + $0xeb0] sm:$0xff] 0.0
          %699 = vst [vmem:[#allocation2 + $0xeb8] sm:$0xff] 0.0
          %700 = vst [vmem:[#allocation2 + $0xec0] sm:$0xff] 0.0
          %701 = vst [vmem:[#allocation2 + $0xec8] sm:$0xff] 0.0
          %702 = vst [vmem:[#allocation2 + $0xed0] sm:$0xff] 0.0
          %703 = vst [vmem:[#allocation2 + $0xed8] sm:$0xff] 0.0
          %704 = vst [vmem:[#allocation2 + $0xee0] sm:$0xff] 0.0
          %705 = vst [vmem:[#allocation2 + $0xee8] sm:$0xff] 0.0
          %706 = vst [vmem:[#allocation2 + $0xef0] sm:$0xff] 0.0
          %707 = vst [vmem:[#allocation2 + $0xef8] sm:$0xff] 0.0
          %708 = vst [vmem:[#allocation2 + $0xf00] sm:$0xff] 0.0
          %709 = vst [vmem:[#allocation2 + $0xf08] sm:$0xff] 0.0
          %710 = vst [vmem:[#allocation2 + $0xf10] sm:$0xff] 0.0
          %711 = vst [vmem:[#allocation2 + $0xf18] sm:$0xff] 0.0
          %712 = vst [vmem:[#allocation2 + $0xf20] sm:$0xff] 0.0
          %713 = vst [vmem:[#allocation2 + $0xf28] sm:$0xff] 0.0
          %714 = vst [vmem:[#allocation2 + $0xf30] sm:$0xff] 0.0
          %715 = vst [vmem:[#allocation2 + $0xf38] sm:$0xff] 0.0
          %716 = vst [vmem:[#allocation2 + $0xf40] sm:$0xff] 0.0
          %717 = vst [vmem:[#allocation2 + $0xf48] sm:$0xff] 0.0
          %718 = vst [vmem:[#allocation2 + $0xf50] sm:$0xff] 0.0
          %719 = vst [vmem:[#allocation2 + $0xf58] sm:$0xff] 0.0
          %720 = vst [vmem:[#allocation2 + $0xf60] sm:$0xff] 0.0
          %721 = vst [vmem:[#allocation2 + $0xf68] sm:$0xff] 0.0
          %722 = vst [vmem:[#allocation2 + $0xf70] sm:$0xff] 0.0
          %723 = vst [vmem:[#allocation2 + $0xf78] sm:$0xff] 0.0
          %724 = vst [vmem:[#allocation2 + $0xf80] sm:$0xff] 0.0
          %725 = vst [vmem:[#allocation2 + $0xf88] sm:$0xff] 0.0
          %726 = vst [vmem:[#allocation2 + $0xf90] sm:$0xff] 0.0
          %727 = vst [vmem:[#allocation2 + $0xf98] sm:$0xff] 0.0
          %728 = vst [vmem:[#allocation2 + $0xfa0] sm:$0xff] 0.0
          %729 = vst [vmem:[#allocation2 + $0xfa8] sm:$0xff] 0.0
          %730 = vst [vmem:[#allocation2 + $0xfb0] sm:$0xff] 0.0
          %731 = vst [vmem:[#allocation2 + $0xfb8] sm:$0xff] 0.0
          %732 = vst [vmem:[#allocation2 + $0xfc0] sm:$0xff] 0.0
          %733 = vst [vmem:[#allocation2 + $0xfc8] sm:$0xff] 0.0
          %734 = vst [vmem:[#allocation2 + $0xfd0] sm:$0xff] 0.0
          %735 = vst [vmem:[#allocation2 + $0xfd8] sm:$0xff] 0.0
          %736 = vst [vmem:[#allocation2 + $0xfe0] sm:$0xff] 0.0
          %737 = vst [vmem:[#allocation2 + $0xfe8] sm:$0xff] 0.0
          %738 = vst [vmem:[#allocation2 + $0xff0] sm:$0xff] 0.0
          %739 = vst [vmem:[#allocation2 + $0xff8] sm:$0xff] 0.0
        $region40: #{tpu_custom_call.1} parent=27 // pred_fallthru
          _
        %v740 = vld [vmem:[%s180] sm:$0xff]
        %v741 = vld [vmem:[%s180 + $0x8] sm:$0xff]
        %v742 = vld [vmem:[%s180 + $0x10] sm:$0xff]
        %v743 = vld [vmem:[%s180 + $0x18] sm:$0xff]
        %v744 = vld [vmem:[%s180 + $0x20] sm:$0xff]
        %v745 = vld [vmem:[%s180 + $0x28] sm:$0xff]
        %v746 = vld [vmem:[%s180 + $0x30] sm:$0xff]
        %v747 = vld [vmem:[%s180 + $0x38] sm:$0xff]
        %v748 = vld [vmem:[%s180 + $0x40] sm:$0xff]
        %v749 = vld [vmem:[%s180 + $0x48] sm:$0xff]
        %v750 = vld [vmem:[%s180 + $0x50] sm:$0xff]
        %v751 = vld [vmem:[%s180 + $0x58] sm:$0xff]
        %v752 = vld [vmem:[%s180 + $0x60] sm:$0xff]
        %v753 = vld [vmem:[%s180 + $0x68] sm:$0xff]
        %v754 = vld [vmem:[%s180 + $0x70] sm:$0xff]
        %v755 = vld [vmem:[%s180 + $0x78] sm:$0xff]
        %v756 = vld [vmem:[%s180 + $0x80] sm:$0xff]
        %v757 = vld [vmem:[%s180 + $0x88] sm:$0xff]
        %v758 = vld [vmem:[%s180 + $0x90] sm:$0xff]
        %v759 = vld [vmem:[%s180 + $0x98] sm:$0xff]
        %v760 = vld [vmem:[%s180 + $0xa0] sm:$0xff]
        %v761 = vld [vmem:[%s180 + $0xa8] sm:$0xff]
        %v762 = vld [vmem:[%s180 + $0xb0] sm:$0xff]
        %v763 = vld [vmem:[%s180 + $0xb8] sm:$0xff]
        %v764 = vld [vmem:[%s180 + $0xc0] sm:$0xff]
        %v765 = vld [vmem:[%s180 + $0xc8] sm:$0xff]
        %v766 = vld [vmem:[%s180 + $0xd0] sm:$0xff]
        %v767 = vld [vmem:[%s180 + $0xd8] sm:$0xff]
        %v768 = vld [vmem:[%s180 + $0xe0] sm:$0xff]
        %v769 = vld [vmem:[%s180 + $0xe8] sm:$0xff]
        %v770 = vld [vmem:[%s180 + $0xf0] sm:$0xff]
        %v771 = vld [vmem:[%s180 + $0xf8] sm:$0xff]
        %v772 = vld [vmem:[%s180 + $0x100] sm:$0xff]
        %v773 = vld [vmem:[%s180 + $0x108] sm:$0xff]
        %v774 = vld [vmem:[%s180 + $0x110] sm:$0xff]
        %v775 = vld [vmem:[%s180 + $0x118] sm:$0xff]
        %v776 = vld [vmem:[%s180 + $0x120] sm:$0xff]
        %v777 = vld [vmem:[%s180 + $0x128] sm:$0xff]
        %v778 = vld [vmem:[%s180 + $0x130] sm:$0xff]
        %v779 = vld [vmem:[%s180 + $0x138] sm:$0xff]
        %v780 = vld [vmem:[%s180 + $0x140] sm:$0xff]
        %v781 = vld [vmem:[%s180 + $0x148] sm:$0xff]
        %v782 = vld [vmem:[%s180 + $0x150] sm:$0xff]
        %v783 = vld [vmem:[%s180 + $0x158] sm:$0xff]
        %v784 = vld [vmem:[%s180 + $0x160] sm:$0xff]
        %v785 = vld [vmem:[%s180 + $0x168] sm:$0xff]
        %v786 = vld [vmem:[%s180 + $0x170] sm:$0xff]
        %v787 = vld [vmem:[%s180 + $0x178] sm:$0xff]
        %v788 = vld [vmem:[%s180 + $0x180] sm:$0xff]
        %v789 = vld [vmem:[%s180 + $0x188] sm:$0xff]
        %v790 = vld [vmem:[%s180 + $0x190] sm:$0xff]
        %v791 = vld [vmem:[%s180 + $0x198] sm:$0xff]
        %v792 = vld [vmem:[%s180 + $0x1a0] sm:$0xff]
        %v793 = vld [vmem:[%s180 + $0x1a8] sm:$0xff]
        %v794 = vld [vmem:[%s180 + $0x1b0] sm:$0xff]
        %v795 = vld [vmem:[%s180 + $0x1b8] sm:$0xff]
        %v796 = vld [vmem:[%s180 + $0x1c0] sm:$0xff]
        %v797 = vld [vmem:[%s180 + $0x1c8] sm:$0xff]
        %v798 = vld [vmem:[%s180 + $0x1d0] sm:$0xff]
        %v799 = vld [vmem:[%s180 + $0x1d8] sm:$0xff]
        %v800 = vld [vmem:[%s180 + $0x1e0] sm:$0xff]
        %v801 = vld [vmem:[%s180 + $0x1e8] sm:$0xff]
        %v802 = vld [vmem:[%s180 + $0x1f0] sm:$0xff]
        %v803 = vld [vmem:[%s180 + $0x1f8] sm:$0xff]
        %v804 = vld [vmem:[%s180 + $0x200] sm:$0xff]
        %v805 = vld [vmem:[%s180 + $0x208] sm:$0xff]
        %v806 = vld [vmem:[%s180 + $0x210] sm:$0xff]
        %v807 = vld [vmem:[%s180 + $0x218] sm:$0xff]
        %v808 = vld [vmem:[%s180 + $0x220] sm:$0xff]
        %v809 = vld [vmem:[%s180 + $0x228] sm:$0xff]
        %v810 = vld [vmem:[%s180 + $0x230] sm:$0xff]
        %v811 = vld [vmem:[%s180 + $0x238] sm:$0xff]
        %v812 = vld [vmem:[%s180 + $0x240] sm:$0xff]
        %v813 = vld [vmem:[%s180 + $0x248] sm:$0xff]
        %v814 = vld [vmem:[%s180 + $0x250] sm:$0xff]
        %v815 = vld [vmem:[%s180 + $0x258] sm:$0xff]
        %v816 = vld [vmem:[%s180 + $0x260] sm:$0xff]
        %v817 = vld [vmem:[%s180 + $0x268] sm:$0xff]
        %v818 = vld [vmem:[%s180 + $0x270] sm:$0xff]
        %v819 = vld [vmem:[%s180 + $0x278] sm:$0xff]
        %v820 = vld [vmem:[%s180 + $0x280] sm:$0xff]
        %v821 = vld [vmem:[%s180 + $0x288] sm:$0xff]
        %v822 = vld [vmem:[%s180 + $0x290] sm:$0xff]
        %v823 = vld [vmem:[%s180 + $0x298] sm:$0xff]
        %v824 = vld [vmem:[%s180 + $0x2a0] sm:$0xff]
        %v825 = vld [vmem:[%s180 + $0x2a8] sm:$0xff]
        %v826 = vld [vmem:[%s180 + $0x2b0] sm:$0xff]
        %v827 = vld [vmem:[%s180 + $0x2b8] sm:$0xff]
        %v828 = vld [vmem:[%s180 + $0x2c0] sm:$0xff]
        %v829 = vld [vmem:[%s180 + $0x2c8] sm:$0xff]
        %v830 = vld [vmem:[%s180 + $0x2d0] sm:$0xff]
        %v831 = vld [vmem:[%s180 + $0x2d8] sm:$0xff]
        %v832 = vld [vmem:[%s180 + $0x2e0] sm:$0xff]
        %v833 = vld [vmem:[%s180 + $0x2e8] sm:$0xff]
        %v834 = vld [vmem:[%s180 + $0x2f0] sm:$0xff]
        %v835 = vld [vmem:[%s180 + $0x2f8] sm:$0xff]
        %v836 = vld [vmem:[%s180 + $0x300] sm:$0xff]
        %v837 = vld [vmem:[%s180 + $0x308] sm:$0xff]
        %v838 = vld [vmem:[%s180 + $0x310] sm:$0xff]
        %v839 = vld [vmem:[%s180 + $0x318] sm:$0xff]
        %v840 = vld [vmem:[%s180 + $0x320] sm:$0xff]
        %v841 = vld [vmem:[%s180 + $0x328] sm:$0xff]
        %v842 = vld [vmem:[%s180 + $0x330] sm:$0xff]
        %v843 = vld [vmem:[%s180 + $0x338] sm:$0xff]
        %v844 = vld [vmem:[%s180 + $0x340] sm:$0xff]
        %v845 = vld [vmem:[%s180 + $0x348] sm:$0xff]
        %v846 = vld [vmem:[%s180 + $0x350] sm:$0xff]
        %v847 = vld [vmem:[%s180 + $0x358] sm:$0xff]
        %v848 = vld [vmem:[%s180 + $0x360] sm:$0xff]
        %v849 = vld [vmem:[%s180 + $0x368] sm:$0xff]
        %v850 = vld [vmem:[%s180 + $0x370] sm:$0xff]
        %v851 = vld [vmem:[%s180 + $0x378] sm:$0xff]
        %v852 = vld [vmem:[%s180 + $0x380] sm:$0xff]
        %v853 = vld [vmem:[%s180 + $0x388] sm:$0xff]
        %v854 = vld [vmem:[%s180 + $0x390] sm:$0xff]
        %v855 = vld [vmem:[%s180 + $0x398] sm:$0xff]
        %v856 = vld [vmem:[%s180 + $0x3a0] sm:$0xff]
        %v857 = vld [vmem:[%s180 + $0x3a8] sm:$0xff]
        %v858 = vld [vmem:[%s180 + $0x3b0] sm:$0xff]
        %v859 = vld [vmem:[%s180 + $0x3b8] sm:$0xff]
        %v860 = vld [vmem:[%s180 + $0x3c0] sm:$0xff]
        %v861 = vld [vmem:[%s180 + $0x3c8] sm:$0xff]
        %v862 = vld [vmem:[%s180 + $0x3d0] sm:$0xff]
        %v863 = vld [vmem:[%s180 + $0x3d8] sm:$0xff]
        %v864 = vld [vmem:[%s180 + $0x3e0] sm:$0xff]
        %v865 = vld [vmem:[%s180 + $0x3e8] sm:$0xff]
        %v866 = vld [vmem:[%s180 + $0x3f0] sm:$0xff]
        %v867 = vld [vmem:[%s180 + $0x3f8] sm:$0xff]
        %v868 = vld [vmem:[%s180 + $0x400] sm:$0xff]
        %v869 = vld [vmem:[%s180 + $0x408] sm:$0xff]
        %v870 = vld [vmem:[%s180 + $0x410] sm:$0xff]
        %v871 = vld [vmem:[%s180 + $0x418] sm:$0xff]
        %v872 = vld [vmem:[%s180 + $0x420] sm:$0xff]
        %v873 = vld [vmem:[%s180 + $0x428] sm:$0xff]
        %v874 = vld [vmem:[%s180 + $0x430] sm:$0xff]
        %v875 = vld [vmem:[%s180 + $0x438] sm:$0xff]
        %v876 = vld [vmem:[%s180 + $0x440] sm:$0xff]
        %v877 = vld [vmem:[%s180 + $0x448] sm:$0xff]
        %v878 = vld [vmem:[%s180 + $0x450] sm:$0xff]
        %v879 = vld [vmem:[%s180 + $0x458] sm:$0xff]
        %v880 = vld [vmem:[%s180 + $0x460] sm:$0xff]
        %v881 = vld [vmem:[%s180 + $0x468] sm:$0xff]
        %v882 = vld [vmem:[%s180 + $0x470] sm:$0xff]
        %v883 = vld [vmem:[%s180 + $0x478] sm:$0xff]
        %v884 = vld [vmem:[%s180 + $0x480] sm:$0xff]
        %v885 = vld [vmem:[%s180 + $0x488] sm:$0xff]
        %v886 = vld [vmem:[%s180 + $0x490] sm:$0xff]
        %v887 = vld [vmem:[%s180 + $0x498] sm:$0xff]
        %v888 = vld [vmem:[%s180 + $0x4a0] sm:$0xff]
        %v889 = vld [vmem:[%s180 + $0x4a8] sm:$0xff]
        %v890 = vld [vmem:[%s180 + $0x4b0] sm:$0xff]
        %v891 = vld [vmem:[%s180 + $0x4b8] sm:$0xff]
        %v892 = vld [vmem:[%s180 + $0x4c0] sm:$0xff]
        %v893 = vld [vmem:[%s180 + $0x4c8] sm:$0xff]
        %v894 = vld [vmem:[%s180 + $0x4d0] sm:$0xff]
        %v895 = vld [vmem:[%s180 + $0x4d8] sm:$0xff]
        %v896 = vld [vmem:[%s180 + $0x4e0] sm:$0xff]
        %v897 = vld [vmem:[%s180 + $0x4e8] sm:$0xff]
        %v898 = vld [vmem:[%s180 + $0x4f0] sm:$0xff]
        %v899 = vld [vmem:[%s180 + $0x4f8] sm:$0xff]
        %v900 = vld [vmem:[%s180 + $0x500] sm:$0xff]
        %v901 = vld [vmem:[%s180 + $0x508] sm:$0xff]
        %v902 = vld [vmem:[%s180 + $0x510] sm:$0xff]
        %v903 = vld [vmem:[%s180 + $0x518] sm:$0xff]
        %v904 = vld [vmem:[%s180 + $0x520] sm:$0xff]
        %v905 = vld [vmem:[%s180 + $0x528] sm:$0xff]
        %v906 = vld [vmem:[%s180 + $0x530] sm:$0xff]
        %v907 = vld [vmem:[%s180 + $0x538] sm:$0xff]
        %v908 = vld [vmem:[%s180 + $0x540] sm:$0xff]
        %v909 = vld [vmem:[%s180 + $0x548] sm:$0xff]
        %v910 = vld [vmem:[%s180 + $0x550] sm:$0xff]
        %v911 = vld [vmem:[%s180 + $0x558] sm:$0xff]
        %v912 = vld [vmem:[%s180 + $0x560] sm:$0xff]
        %v913 = vld [vmem:[%s180 + $0x568] sm:$0xff]
        %v914 = vld [vmem:[%s180 + $0x570] sm:$0xff]
        %v915 = vld [vmem:[%s180 + $0x578] sm:$0xff]
        %v916 = vld [vmem:[%s180 + $0x580] sm:$0xff]
        %v917 = vld [vmem:[%s180 + $0x588] sm:$0xff]
        %v918 = vld [vmem:[%s180 + $0x590] sm:$0xff]
        %v919 = vld [vmem:[%s180 + $0x598] sm:$0xff]
        %v920 = vld [vmem:[%s180 + $0x5a0] sm:$0xff]
        %v921 = vld [vmem:[%s180 + $0x5a8] sm:$0xff]
        %v922 = vld [vmem:[%s180 + $0x5b0] sm:$0xff]
        %v923 = vld [vmem:[%s180 + $0x5b8] sm:$0xff]
        %v924 = vld [vmem:[%s180 + $0x5c0] sm:$0xff]
        %v925 = vld [vmem:[%s180 + $0x5c8] sm:$0xff]
        %v926 = vld [vmem:[%s180 + $0x5d0] sm:$0xff]
        %v927 = vld [vmem:[%s180 + $0x5d8] sm:$0xff]
        %v928 = vld [vmem:[%s180 + $0x5e0] sm:$0xff]
        %v929 = vld [vmem:[%s180 + $0x5e8] sm:$0xff]
        %v930 = vld [vmem:[%s180 + $0x5f0] sm:$0xff]
        %v931 = vld [vmem:[%s180 + $0x5f8] sm:$0xff]
        %v932 = vld [vmem:[%s180 + $0x600] sm:$0xff]
        %v933 = vld [vmem:[%s180 + $0x608] sm:$0xff]
        %v934 = vld [vmem:[%s180 + $0x610] sm:$0xff]
        %v935 = vld [vmem:[%s180 + $0x618] sm:$0xff]
        %v936 = vld [vmem:[%s180 + $0x620] sm:$0xff]
        %v937 = vld [vmem:[%s180 + $0x628] sm:$0xff]
        %v938 = vld [vmem:[%s180 + $0x630] sm:$0xff]
        %v939 = vld [vmem:[%s180 + $0x638] sm:$0xff]
        %v940 = vld [vmem:[%s180 + $0x640] sm:$0xff]
        %v941 = vld [vmem:[%s180 + $0x648] sm:$0xff]
        %v942 = vld [vmem:[%s180 + $0x650] sm:$0xff]
        %v943 = vld [vmem:[%s180 + $0x658] sm:$0xff]
        %v944 = vld [vmem:[%s180 + $0x660] sm:$0xff]
        %v945 = vld [vmem:[%s180 + $0x668] sm:$0xff]
        %v946 = vld [vmem:[%s180 + $0x670] sm:$0xff]
        %v947 = vld [vmem:[%s180 + $0x678] sm:$0xff]
        %v948 = vld [vmem:[%s180 + $0x680] sm:$0xff]
        %v949 = vld [vmem:[%s180 + $0x688] sm:$0xff]
        %v950 = vld [vmem:[%s180 + $0x690] sm:$0xff]
        %v951 = vld [vmem:[%s180 + $0x698] sm:$0xff]
        %v952 = vld [vmem:[%s180 + $0x6a0] sm:$0xff]
        %v953 = vld [vmem:[%s180 + $0x6a8] sm:$0xff]
        %v954 = vld [vmem:[%s180 + $0x6b0] sm:$0xff]
        %v955 = vld [vmem:[%s180 + $0x6b8] sm:$0xff]
        %v956 = vld [vmem:[%s180 + $0x6c0] sm:$0xff]
        %v957 = vld [vmem:[%s180 + $0x6c8] sm:$0xff]
        %v958 = vld [vmem:[%s180 + $0x6d0] sm:$0xff]
        %v959 = vld [vmem:[%s180 + $0x6d8] sm:$0xff]
        %v960 = vld [vmem:[%s180 + $0x6e0] sm:$0xff]
        %v961 = vld [vmem:[%s180 + $0x6e8] sm:$0xff]
        %v962 = vld [vmem:[%s180 + $0x6f0] sm:$0xff]
        %v963 = vld [vmem:[%s180 + $0x6f8] sm:$0xff]
        %v964 = vld [vmem:[%s180 + $0x700] sm:$0xff]
        %v965 = vld [vmem:[%s180 + $0x708] sm:$0xff]
        %v966 = vld [vmem:[%s180 + $0x710] sm:$0xff]
        %v967 = vld [vmem:[%s180 + $0x718] sm:$0xff]
        %v968 = vld [vmem:[%s180 + $0x720] sm:$0xff]
        %v969 = vld [vmem:[%s180 + $0x728] sm:$0xff]
        %v970 = vld [vmem:[%s180 + $0x730] sm:$0xff]
        %v971 = vld [vmem:[%s180 + $0x738] sm:$0xff]
        %v972 = vld [vmem:[%s180 + $0x740] sm:$0xff]
        %v973 = vld [vmem:[%s180 + $0x748] sm:$0xff]
        %v974 = vld [vmem:[%s180 + $0x750] sm:$0xff]
        %v975 = vld [vmem:[%s180 + $0x758] sm:$0xff]
        %v976 = vld [vmem:[%s180 + $0x760] sm:$0xff]
        %v977 = vld [vmem:[%s180 + $0x768] sm:$0xff]
        %v978 = vld [vmem:[%s180 + $0x770] sm:$0xff]
        %v979 = vld [vmem:[%s180 + $0x778] sm:$0xff]
        %v980 = vld [vmem:[%s180 + $0x780] sm:$0xff]
        %v981 = vld [vmem:[%s180 + $0x788] sm:$0xff]
        %v982 = vld [vmem:[%s180 + $0x790] sm:$0xff]
        %v983 = vld [vmem:[%s180 + $0x798] sm:$0xff]
        %v984 = vld [vmem:[%s180 + $0x7a0] sm:$0xff]
        %v985 = vld [vmem:[%s180 + $0x7a8] sm:$0xff]
        %v986 = vld [vmem:[%s180 + $0x7b0] sm:$0xff]
        %v987 = vld [vmem:[%s180 + $0x7b8] sm:$0xff]
        %v988 = vld [vmem:[%s180 + $0x7c0] sm:$0xff]
        %v989 = vld [vmem:[%s180 + $0x7c8] sm:$0xff]
        %v990 = vld [vmem:[%s180 + $0x7d0] sm:$0xff]
        %v991 = vld [vmem:[%s180 + $0x7d8] sm:$0xff]
        %v992 = vld [vmem:[%s180 + $0x7e0] sm:$0xff]
        %v993 = vld [vmem:[%s180 + $0x7e8] sm:$0xff]
        %v994 = vld [vmem:[%s180 + $0x7f0] sm:$0xff]
        %v995 = vld [vmem:[%s180 + $0x7f8] sm:$0xff]
        %v996 = vld [vmem:[%s180 + $0x800] sm:$0xff]
        %v997 = vld [vmem:[%s180 + $0x808] sm:$0xff]
        %v998 = vld [vmem:[%s180 + $0x810] sm:$0xff]
        %v999 = vld [vmem:[%s180 + $0x818] sm:$0xff]
        %v1000 = vld [vmem:[%s180 + $0x820] sm:$0xff]
        %v1001 = vld [vmem:[%s180 + $0x828] sm:$0xff]
        %v1002 = vld [vmem:[%s180 + $0x830] sm:$0xff]
        %v1003 = vld [vmem:[%s180 + $0x838] sm:$0xff]
        %v1004 = vld [vmem:[%s180 + $0x840] sm:$0xff]
        %v1005 = vld [vmem:[%s180 + $0x848] sm:$0xff]
        %v1006 = vld [vmem:[%s180 + $0x850] sm:$0xff]
        %v1007 = vld [vmem:[%s180 + $0x858] sm:$0xff]
        %v1008 = vld [vmem:[%s180 + $0x860] sm:$0xff]
        %v1009 = vld [vmem:[%s180 + $0x868] sm:$0xff]
        %v1010 = vld [vmem:[%s180 + $0x870] sm:$0xff]
        %v1011 = vld [vmem:[%s180 + $0x878] sm:$0xff]
        %v1012 = vld [vmem:[%s180 + $0x880] sm:$0xff]
        %v1013 = vld [vmem:[%s180 + $0x888] sm:$0xff]
        %v1014 = vld [vmem:[%s180 + $0x890] sm:$0xff]
        %v1015 = vld [vmem:[%s180 + $0x898] sm:$0xff]
        %v1016 = vld [vmem:[%s180 + $0x8a0] sm:$0xff]
        %v1017 = vld [vmem:[%s180 + $0x8a8] sm:$0xff]
        %v1018 = vld [vmem:[%s180 + $0x8b0] sm:$0xff]
        %v1019 = vld [vmem:[%s180 + $0x8b8] sm:$0xff]
        %v1020 = vld [vmem:[%s180 + $0x8c0] sm:$0xff]
        %v1021 = vld [vmem:[%s180 + $0x8c8] sm:$0xff]
        %v1022 = vld [vmem:[%s180 + $0x8d0] sm:$0xff]
        %v1023 = vld [vmem:[%s180 + $0x8d8] sm:$0xff]
        %v1024 = vld [vmem:[%s180 + $0x8e0] sm:$0xff]
        %v1025 = vld [vmem:[%s180 + $0x8e8] sm:$0xff]
        %v1026 = vld [vmem:[%s180 + $0x8f0] sm:$0xff]
        %v1027 = vld [vmem:[%s180 + $0x8f8] sm:$0xff]
        %v1028 = vld [vmem:[%s180 + $0x900] sm:$0xff]
        %v1029 = vld [vmem:[%s180 + $0x908] sm:$0xff]
        %v1030 = vld [vmem:[%s180 + $0x910] sm:$0xff]
        %v1031 = vld [vmem:[%s180 + $0x918] sm:$0xff]
        %v1032 = vld [vmem:[%s180 + $0x920] sm:$0xff]
        %v1033 = vld [vmem:[%s180 + $0x928] sm:$0xff]
        %v1034 = vld [vmem:[%s180 + $0x930] sm:$0xff]
        %v1035 = vld [vmem:[%s180 + $0x938] sm:$0xff]
        %v1036 = vld [vmem:[%s180 + $0x940] sm:$0xff]
        %v1037 = vld [vmem:[%s180 + $0x948] sm:$0xff]
        %v1038 = vld [vmem:[%s180 + $0x950] sm:$0xff]
        %v1039 = vld [vmem:[%s180 + $0x958] sm:$0xff]
        %v1040 = vld [vmem:[%s180 + $0x960] sm:$0xff]
        %v1041 = vld [vmem:[%s180 + $0x968] sm:$0xff]
        %v1042 = vld [vmem:[%s180 + $0x970] sm:$0xff]
        %v1043 = vld [vmem:[%s180 + $0x978] sm:$0xff]
        %v1044 = vld [vmem:[%s180 + $0x980] sm:$0xff]
        %v1045 = vld [vmem:[%s180 + $0x988] sm:$0xff]
        %v1046 = vld [vmem:[%s180 + $0x990] sm:$0xff]
        %v1047 = vld [vmem:[%s180 + $0x998] sm:$0xff]
        %v1048 = vld [vmem:[%s180 + $0x9a0] sm:$0xff]
        %v1049 = vld [vmem:[%s180 + $0x9a8] sm:$0xff]
        %v1050 = vld [vmem:[%s180 + $0x9b0] sm:$0xff]
        %v1051 = vld [vmem:[%s180 + $0x9b8] sm:$0xff]
        %v1052 = vld [vmem:[%s180 + $0x9c0] sm:$0xff]
        %v1053 = vld [vmem:[%s180 + $0x9c8] sm:$0xff]
        %v1054 = vld [vmem:[%s180 + $0x9d0] sm:$0xff]
        %v1055 = vld [vmem:[%s180 + $0x9d8] sm:$0xff]
        %v1056 = vld [vmem:[%s180 + $0x9e0] sm:$0xff]
        %v1057 = vld [vmem:[%s180 + $0x9e8] sm:$0xff]
        %v1058 = vld [vmem:[%s180 + $0x9f0] sm:$0xff]
        %v1059 = vld [vmem:[%s180 + $0x9f8] sm:$0xff]
        %v1060 = vld [vmem:[%s180 + $0xa00] sm:$0xff]
        %v1061 = vld [vmem:[%s180 + $0xa08] sm:$0xff]
        %v1062 = vld [vmem:[%s180 + $0xa10] sm:$0xff]
        %v1063 = vld [vmem:[%s180 + $0xa18] sm:$0xff]
        %v1064 = vld [vmem:[%s180 + $0xa20] sm:$0xff]
        %v1065 = vld [vmem:[%s180 + $0xa28] sm:$0xff]
        %v1066 = vld [vmem:[%s180 + $0xa30] sm:$0xff]
        %v1067 = vld [vmem:[%s180 + $0xa38] sm:$0xff]
        %v1068 = vld [vmem:[%s180 + $0xa40] sm:$0xff]
        %v1069 = vld [vmem:[%s180 + $0xa48] sm:$0xff]
        %v1070 = vld [vmem:[%s180 + $0xa50] sm:$0xff]
        %v1071 = vld [vmem:[%s180 + $0xa58] sm:$0xff]
        %v1072 = vld [vmem:[%s180 + $0xa60] sm:$0xff]
        %v1073 = vld [vmem:[%s180 + $0xa68] sm:$0xff]
        %v1074 = vld [vmem:[%s180 + $0xa70] sm:$0xff]
        %v1075 = vld [vmem:[%s180 + $0xa78] sm:$0xff]
        %v1076 = vld [vmem:[%s180 + $0xa80] sm:$0xff]
        %v1077 = vld [vmem:[%s180 + $0xa88] sm:$0xff]
        %v1078 = vld [vmem:[%s180 + $0xa90] sm:$0xff]
        %v1079 = vld [vmem:[%s180 + $0xa98] sm:$0xff]
        %v1080 = vld [vmem:[%s180 + $0xaa0] sm:$0xff]
        %v1081 = vld [vmem:[%s180 + $0xaa8] sm:$0xff]
        %v1082 = vld [vmem:[%s180 + $0xab0] sm:$0xff]
        %v1083 = vld [vmem:[%s180 + $0xab8] sm:$0xff]
        %v1084 = vld [vmem:[%s180 + $0xac0] sm:$0xff]
        %v1085 = vld [vmem:[%s180 + $0xac8] sm:$0xff]
        %v1086 = vld [vmem:[%s180 + $0xad0] sm:$0xff]
        %v1087 = vld [vmem:[%s180 + $0xad8] sm:$0xff]
        %v1088 = vld [vmem:[%s180 + $0xae0] sm:$0xff]
        %v1089 = vld [vmem:[%s180 + $0xae8] sm:$0xff]
        %v1090 = vld [vmem:[%s180 + $0xaf0] sm:$0xff]
        %v1091 = vld [vmem:[%s180 + $0xaf8] sm:$0xff]
        %v1092 = vld [vmem:[%s180 + $0xb00] sm:$0xff]
        %v1093 = vld [vmem:[%s180 + $0xb08] sm:$0xff]
        %v1094 = vld [vmem:[%s180 + $0xb10] sm:$0xff]
        %v1095 = vld [vmem:[%s180 + $0xb18] sm:$0xff]
        %v1096 = vld [vmem:[%s180 + $0xb20] sm:$0xff]
        %v1097 = vld [vmem:[%s180 + $0xb28] sm:$0xff]
        %v1098 = vld [vmem:[%s180 + $0xb30] sm:$0xff]
        %v1099 = vld [vmem:[%s180 + $0xb38] sm:$0xff]
        %v1100 = vld [vmem:[%s180 + $0xb40] sm:$0xff]
        %v1101 = vld [vmem:[%s180 + $0xb48] sm:$0xff]
        %v1102 = vld [vmem:[%s180 + $0xb50] sm:$0xff]
        %v1103 = vld [vmem:[%s180 + $0xb58] sm:$0xff]
        %v1104 = vld [vmem:[%s180 + $0xb60] sm:$0xff]
        %v1105 = vld [vmem:[%s180 + $0xb68] sm:$0xff]
        %v1106 = vld [vmem:[%s180 + $0xb70] sm:$0xff]
        %v1107 = vld [vmem:[%s180 + $0xb78] sm:$0xff]
        %v1108 = vld [vmem:[%s180 + $0xb80] sm:$0xff]
        %v1109 = vld [vmem:[%s180 + $0xb88] sm:$0xff]
        %v1110 = vld [vmem:[%s180 + $0xb90] sm:$0xff]
        %v1111 = vld [vmem:[%s180 + $0xb98] sm:$0xff]
        %v1112 = vld [vmem:[%s180 + $0xba0] sm:$0xff]
        %v1113 = vld [vmem:[%s180 + $0xba8] sm:$0xff]
        %v1114 = vld [vmem:[%s180 + $0xbb0] sm:$0xff]
        %v1115 = vld [vmem:[%s180 + $0xbb8] sm:$0xff]
        %v1116 = vld [vmem:[%s180 + $0xbc0] sm:$0xff]
        %v1117 = vld [vmem:[%s180 + $0xbc8] sm:$0xff]
        %v1118 = vld [vmem:[%s180 + $0xbd0] sm:$0xff]
        %v1119 = vld [vmem:[%s180 + $0xbd8] sm:$0xff]
        %v1120 = vld [vmem:[%s180 + $0xbe0] sm:$0xff]
        %v1121 = vld [vmem:[%s180 + $0xbe8] sm:$0xff]
        %v1122 = vld [vmem:[%s180 + $0xbf0] sm:$0xff]
        %v1123 = vld [vmem:[%s180 + $0xbf8] sm:$0xff]
        %v1124 = vld [vmem:[%s180 + $0xc00] sm:$0xff]
        %v1125 = vld [vmem:[%s180 + $0xc08] sm:$0xff]
        %v1126 = vld [vmem:[%s180 + $0xc10] sm:$0xff]
        %v1127 = vld [vmem:[%s180 + $0xc18] sm:$0xff]
        %v1128 = vld [vmem:[%s180 + $0xc20] sm:$0xff]
        %v1129 = vld [vmem:[%s180 + $0xc28] sm:$0xff]
        %v1130 = vld [vmem:[%s180 + $0xc30] sm:$0xff]
        %v1131 = vld [vmem:[%s180 + $0xc38] sm:$0xff]
        %v1132 = vld [vmem:[%s180 + $0xc40] sm:$0xff]
        %v1133 = vld [vmem:[%s180 + $0xc48] sm:$0xff]
        %v1134 = vld [vmem:[%s180 + $0xc50] sm:$0xff]
        %v1135 = vld [vmem:[%s180 + $0xc58] sm:$0xff]
        %v1136 = vld [vmem:[%s180 + $0xc60] sm:$0xff]
        %v1137 = vld [vmem:[%s180 + $0xc68] sm:$0xff]
        %v1138 = vld [vmem:[%s180 + $0xc70] sm:$0xff]
        %v1139 = vld [vmem:[%s180 + $0xc78] sm:$0xff]
        %v1140 = vld [vmem:[%s180 + $0xc80] sm:$0xff]
        %v1141 = vld [vmem:[%s180 + $0xc88] sm:$0xff]
        %v1142 = vld [vmem:[%s180 + $0xc90] sm:$0xff]
        %v1143 = vld [vmem:[%s180 + $0xc98] sm:$0xff]
        %v1144 = vld [vmem:[%s180 + $0xca0] sm:$0xff]
        %v1145 = vld [vmem:[%s180 + $0xca8] sm:$0xff]
        %v1146 = vld [vmem:[%s180 + $0xcb0] sm:$0xff]
        %v1147 = vld [vmem:[%s180 + $0xcb8] sm:$0xff]
        %v1148 = vld [vmem:[%s180 + $0xcc0] sm:$0xff]
        %v1149 = vld [vmem:[%s180 + $0xcc8] sm:$0xff]
        %v1150 = vld [vmem:[%s180 + $0xcd0] sm:$0xff]
        %v1151 = vld [vmem:[%s180 + $0xcd8] sm:$0xff]
        %v1152 = vld [vmem:[%s180 + $0xce0] sm:$0xff]
        %v1153 = vld [vmem:[%s180 + $0xce8] sm:$0xff]
        %v1154 = vld [vmem:[%s180 + $0xcf0] sm:$0xff]
        %v1155 = vld [vmem:[%s180 + $0xcf8] sm:$0xff]
        %v1156 = vld [vmem:[%s180 + $0xd00] sm:$0xff]
        %v1157 = vld [vmem:[%s180 + $0xd08] sm:$0xff]
        %v1158 = vld [vmem:[%s180 + $0xd10] sm:$0xff]
        %v1159 = vld [vmem:[%s180 + $0xd18] sm:$0xff]
        %v1160 = vld [vmem:[%s180 + $0xd20] sm:$0xff]
        %v1161 = vld [vmem:[%s180 + $0xd28] sm:$0xff]
        %v1162 = vld [vmem:[%s180 + $0xd30] sm:$0xff]
        %v1163 = vld [vmem:[%s180 + $0xd38] sm:$0xff]
        %v1164 = vld [vmem:[%s180 + $0xd40] sm:$0xff]
        %v1165 = vld [vmem:[%s180 + $0xd48] sm:$0xff]
        %v1166 = vld [vmem:[%s180 + $0xd50] sm:$0xff]
        %v1167 = vld [vmem:[%s180 + $0xd58] sm:$0xff]
        %v1168 = vld [vmem:[%s180 + $0xd60] sm:$0xff]
        %v1169 = vld [vmem:[%s180 + $0xd68] sm:$0xff]
        %v1170 = vld [vmem:[%s180 + $0xd70] sm:$0xff]
        %v1171 = vld [vmem:[%s180 + $0xd78] sm:$0xff]
        %v1172 = vld [vmem:[%s180 + $0xd80] sm:$0xff]
        %v1173 = vld [vmem:[%s180 + $0xd88] sm:$0xff]
        %v1174 = vld [vmem:[%s180 + $0xd90] sm:$0xff]
        %v1175 = vld [vmem:[%s180 + $0xd98] sm:$0xff]
        %v1176 = vld [vmem:[%s180 + $0xda0] sm:$0xff]
        %v1177 = vld [vmem:[%s180 + $0xda8] sm:$0xff]
        %v1178 = vld [vmem:[%s180 + $0xdb0] sm:$0xff]
        %v1179 = vld [vmem:[%s180 + $0xdb8] sm:$0xff]
        %v1180 = vld [vmem:[%s180 + $0xdc0] sm:$0xff]
        %v1181 = vld [vmem:[%s180 + $0xdc8] sm:$0xff]
        %v1182 = vld [vmem:[%s180 + $0xdd0] sm:$0xff]
        %v1183 = vld [vmem:[%s180 + $0xdd8] sm:$0xff]
        %v1184 = vld [vmem:[%s180 + $0xde0] sm:$0xff]
        %v1185 = vld [vmem:[%s180 + $0xde8] sm:$0xff]
        %v1186 = vld [vmem:[%s180 + $0xdf0] sm:$0xff]
        %v1187 = vld [vmem:[%s180 + $0xdf8] sm:$0xff]
        %v1188 = vld [vmem:[%s180 + $0xe00] sm:$0xff]
        %v1189 = vld [vmem:[%s180 + $0xe08] sm:$0xff]
        %v1190 = vld [vmem:[%s180 + $0xe10] sm:$0xff]
        %v1191 = vld [vmem:[%s180 + $0xe18] sm:$0xff]
        %v1192 = vld [vmem:[%s180 + $0xe20] sm:$0xff]
        %v1193 = vld [vmem:[%s180 + $0xe28] sm:$0xff]
        %v1194 = vld [vmem:[%s180 + $0xe30] sm:$0xff]
        %v1195 = vld [vmem:[%s180 + $0xe38] sm:$0xff]
        %v1196 = vld [vmem:[%s180 + $0xe40] sm:$0xff]
        %v1197 = vld [vmem:[%s180 + $0xe48] sm:$0xff]
        %v1198 = vld [vmem:[%s180 + $0xe50] sm:$0xff]
        %v1199 = vld [vmem:[%s180 + $0xe58] sm:$0xff]
        %v1200 = vld [vmem:[%s180 + $0xe60] sm:$0xff]
        %v1201 = vld [vmem:[%s180 + $0xe68] sm:$0xff]
        %v1202 = vld [vmem:[%s180 + $0xe70] sm:$0xff]
        %v1203 = vld [vmem:[%s180 + $0xe78] sm:$0xff]
        %v1204 = vld [vmem:[%s180 + $0xe80] sm:$0xff]
        %v1205 = vld [vmem:[%s180 + $0xe88] sm:$0xff]
        %v1206 = vld [vmem:[%s180 + $0xe90] sm:$0xff]
        %v1207 = vld [vmem:[%s180 + $0xe98] sm:$0xff]
        %v1208 = vld [vmem:[%s180 + $0xea0] sm:$0xff]
        %v1209 = vld [vmem:[%s180 + $0xea8] sm:$0xff]
        %v1210 = vld [vmem:[%s180 + $0xeb0] sm:$0xff]
        %v1211 = vld [vmem:[%s180 + $0xeb8] sm:$0xff]
        %v1212 = vld [vmem:[%s180 + $0xec0] sm:$0xff]
        %v1213 = vld [vmem:[%s180 + $0xec8] sm:$0xff]
        %v1214 = vld [vmem:[%s180 + $0xed0] sm:$0xff]
        %v1215 = vld [vmem:[%s180 + $0xed8] sm:$0xff]
        %v1216 = vld [vmem:[%s180 + $0xee0] sm:$0xff]
        %v1217 = vld [vmem:[%s180 + $0xee8] sm:$0xff]
        %v1218 = vld [vmem:[%s180 + $0xef0] sm:$0xff]
        %v1219 = vld [vmem:[%s180 + $0xef8] sm:$0xff]
        %v1220 = vld [vmem:[%s180 + $0xf00] sm:$0xff]
        %v1221 = vld [vmem:[%s180 + $0xf08] sm:$0xff]
        %v1222 = vld [vmem:[%s180 + $0xf10] sm:$0xff]
        %v1223 = vld [vmem:[%s180 + $0xf18] sm:$0xff]
        %v1224 = vld [vmem:[%s180 + $0xf20] sm:$0xff]
        %v1225 = vld [vmem:[%s180 + $0xf28] sm:$0xff]
        %v1226 = vld [vmem:[%s180 + $0xf30] sm:$0xff]
        %v1227 = vld [vmem:[%s180 + $0xf38] sm:$0xff]
        %v1228 = vld [vmem:[%s180 + $0xf40] sm:$0xff]
        %v1229 = vld [vmem:[%s180 + $0xf48] sm:$0xff]
        %v1230 = vld [vmem:[%s180 + $0xf50] sm:$0xff]
        %v1231 = vld [vmem:[%s180 + $0xf58] sm:$0xff]
        %v1232 = vld [vmem:[%s180 + $0xf60] sm:$0xff]
        %v1233 = vld [vmem:[%s180 + $0xf68] sm:$0xff]
        %v1234 = vld [vmem:[%s180 + $0xf70] sm:$0xff]
        %v1235 = vld [vmem:[%s180 + $0xf78] sm:$0xff]
        %v1236 = vld [vmem:[%s180 + $0xf80] sm:$0xff]
        %v1237 = vld [vmem:[%s180 + $0xf88] sm:$0xff]
        %v1238 = vld [vmem:[%s180 + $0xf90] sm:$0xff]
        %v1239 = vld [vmem:[%s180 + $0xf98] sm:$0xff]
        %v1240 = vld [vmem:[%s180 + $0xfa0] sm:$0xff]
        %v1241 = vld [vmem:[%s180 + $0xfa8] sm:$0xff]
        %v1242 = vld [vmem:[%s180 + $0xfb0] sm:$0xff]
        %v1243 = vld [vmem:[%s180 + $0xfb8] sm:$0xff]
        %v1244 = vld [vmem:[%s180 + $0xfc0] sm:$0xff]
        %v1245 = vld [vmem:[%s180 + $0xfc8] sm:$0xff]
        %v1246 = vld [vmem:[%s180 + $0xfd0] sm:$0xff]
        %v1247 = vld [vmem:[%s180 + $0xfd8] sm:$0xff]
        %v1248 = vld [vmem:[%s180 + $0xfe0] sm:$0xff]
        %v1249 = vld [vmem:[%s180 + $0xfe8] sm:$0xff]
        %v1250 = vld [vmem:[%s180 + $0xff0] sm:$0xff]
        %v1251 = vld [vmem:[%s180 + $0xff8] sm:$0xff]
        %v1252 = vld [vmem:[%s190] sm:$0xff]
        %v1253 = vld [vmem:[%s190 + $0x8] sm:$0xff]
        %v1254 = vld [vmem:[%s190 + $0x10] sm:$0xff]
        %v1255 = vld [vmem:[%s190 + $0x18] sm:$0xff]
        %v1256 = vld [vmem:[%s190 + $0x20] sm:$0xff]
        %v1257 = vld [vmem:[%s190 + $0x28] sm:$0xff]
        %v1258 = vld [vmem:[%s190 + $0x30] sm:$0xff]
        %v1259 = vld [vmem:[%s190 + $0x38] sm:$0xff]
        %v1260 = vld [vmem:[%s190 + $0x40] sm:$0xff]
        %v1261 = vld [vmem:[%s190 + $0x48] sm:$0xff]
        %v1262 = vld [vmem:[%s190 + $0x50] sm:$0xff]
        %v1263 = vld [vmem:[%s190 + $0x58] sm:$0xff]
        %v1264 = vld [vmem:[%s190 + $0x60] sm:$0xff]
        %v1265 = vld [vmem:[%s190 + $0x68] sm:$0xff]
        %v1266 = vld [vmem:[%s190 + $0x70] sm:$0xff]
        %v1267 = vld [vmem:[%s190 + $0x78] sm:$0xff]
        %v1268 = vld [vmem:[%s190 + $0x80] sm:$0xff]
        %v1269 = vld [vmem:[%s190 + $0x88] sm:$0xff]
        %v1270 = vld [vmem:[%s190 + $0x90] sm:$0xff]
        %v1271 = vld [vmem:[%s190 + $0x98] sm:$0xff]
        %v1272 = vld [vmem:[%s190 + $0xa0] sm:$0xff]
        %v1273 = vld [vmem:[%s190 + $0xa8] sm:$0xff]
        %v1274 = vld [vmem:[%s190 + $0xb0] sm:$0xff]
        %v1275 = vld [vmem:[%s190 + $0xb8] sm:$0xff]
        %v1276 = vld [vmem:[%s190 + $0xc0] sm:$0xff]
        %v1277 = vld [vmem:[%s190 + $0xc8] sm:$0xff]
        %v1278 = vld [vmem:[%s190 + $0xd0] sm:$0xff]
        %v1279 = vld [vmem:[%s190 + $0xd8] sm:$0xff]
        %v1280 = vld [vmem:[%s190 + $0xe0] sm:$0xff]
        %v1281 = vld [vmem:[%s190 + $0xe8] sm:$0xff]
        %v1282 = vld [vmem:[%s190 + $0xf0] sm:$0xff]
        %v1283 = vld [vmem:[%s190 + $0xf8] sm:$0xff]
        %v1284 = vld [vmem:[%s190 + $0x100] sm:$0xff]
        %v1285 = vld [vmem:[%s190 + $0x108] sm:$0xff]
        %v1286 = vld [vmem:[%s190 + $0x110] sm:$0xff]
        %v1287 = vld [vmem:[%s190 + $0x118] sm:$0xff]
        %v1288 = vld [vmem:[%s190 + $0x120] sm:$0xff]
        %v1289 = vld [vmem:[%s190 + $0x128] sm:$0xff]
        %v1290 = vld [vmem:[%s190 + $0x130] sm:$0xff]
        %v1291 = vld [vmem:[%s190 + $0x138] sm:$0xff]
        %v1292 = vld [vmem:[%s190 + $0x140] sm:$0xff]
        %v1293 = vld [vmem:[%s190 + $0x148] sm:$0xff]
        %v1294 = vld [vmem:[%s190 + $0x150] sm:$0xff]
        %v1295 = vld [vmem:[%s190 + $0x158] sm:$0xff]
        %v1296 = vld [vmem:[%s190 + $0x160] sm:$0xff]
        %v1297 = vld [vmem:[%s190 + $0x168] sm:$0xff]
        %v1298 = vld [vmem:[%s190 + $0x170] sm:$0xff]
        %v1299 = vld [vmem:[%s190 + $0x178] sm:$0xff]
        %v1300 = vld [vmem:[%s190 + $0x180] sm:$0xff]
        %v1301 = vld [vmem:[%s190 + $0x188] sm:$0xff]
        %v1302 = vld [vmem:[%s190 + $0x190] sm:$0xff]
        %v1303 = vld [vmem:[%s190 + $0x198] sm:$0xff]
        %v1304 = vld [vmem:[%s190 + $0x1a0] sm:$0xff]
        %v1305 = vld [vmem:[%s190 + $0x1a8] sm:$0xff]
        %v1306 = vld [vmem:[%s190 + $0x1b0] sm:$0xff]
        %v1307 = vld [vmem:[%s190 + $0x1b8] sm:$0xff]
        %v1308 = vld [vmem:[%s190 + $0x1c0] sm:$0xff]
        %v1309 = vld [vmem:[%s190 + $0x1c8] sm:$0xff]
        %v1310 = vld [vmem:[%s190 + $0x1d0] sm:$0xff]
        %v1311 = vld [vmem:[%s190 + $0x1d8] sm:$0xff]
        %v1312 = vld [vmem:[%s190 + $0x1e0] sm:$0xff]
        %v1313 = vld [vmem:[%s190 + $0x1e8] sm:$0xff]
        %v1314 = vld [vmem:[%s190 + $0x1f0] sm:$0xff]
        %v1315 = vld [vmem:[%s190 + $0x1f8] sm:$0xff]
        %v1316 = vld [vmem:[%s190 + $0x200] sm:$0xff]
        %v1317 = vld [vmem:[%s190 + $0x208] sm:$0xff]
        %v1318 = vld [vmem:[%s190 + $0x210] sm:$0xff]
        %v1319 = vld [vmem:[%s190 + $0x218] sm:$0xff]
        %v1320 = vld [vmem:[%s190 + $0x220] sm:$0xff]
        %v1321 = vld [vmem:[%s190 + $0x228] sm:$0xff]
        %v1322 = vld [vmem:[%s190 + $0x230] sm:$0xff]
        %v1323 = vld [vmem:[%s190 + $0x238] sm:$0xff]
        %v1324 = vld [vmem:[%s190 + $0x240] sm:$0xff]
        %v1325 = vld [vmem:[%s190 + $0x248] sm:$0xff]
        %v1326 = vld [vmem:[%s190 + $0x250] sm:$0xff]
        %v1327 = vld [vmem:[%s190 + $0x258] sm:$0xff]
        %v1328 = vld [vmem:[%s190 + $0x260] sm:$0xff]
        %v1329 = vld [vmem:[%s190 + $0x268] sm:$0xff]
        %v1330 = vld [vmem:[%s190 + $0x270] sm:$0xff]
        %v1331 = vld [vmem:[%s190 + $0x278] sm:$0xff]
        %v1332 = vld [vmem:[%s190 + $0x280] sm:$0xff]
        %v1333 = vld [vmem:[%s190 + $0x288] sm:$0xff]
        %v1334 = vld [vmem:[%s190 + $0x290] sm:$0xff]
        %v1335 = vld [vmem:[%s190 + $0x298] sm:$0xff]
        %v1336 = vld [vmem:[%s190 + $0x2a0] sm:$0xff]
        %v1337 = vld [vmem:[%s190 + $0x2a8] sm:$0xff]
        %v1338 = vld [vmem:[%s190 + $0x2b0] sm:$0xff]
        %v1339 = vld [vmem:[%s190 + $0x2b8] sm:$0xff]
        %v1340 = vld [vmem:[%s190 + $0x2c0] sm:$0xff]
        %v1341 = vld [vmem:[%s190 + $0x2c8] sm:$0xff]
        %v1342 = vld [vmem:[%s190 + $0x2d0] sm:$0xff]
        %v1343 = vld [vmem:[%s190 + $0x2d8] sm:$0xff]
        %v1344 = vld [vmem:[%s190 + $0x2e0] sm:$0xff]
        %v1345 = vld [vmem:[%s190 + $0x2e8] sm:$0xff]
        %v1346 = vld [vmem:[%s190 + $0x2f0] sm:$0xff]
        %v1347 = vld [vmem:[%s190 + $0x2f8] sm:$0xff]
        %v1348 = vld [vmem:[%s190 + $0x300] sm:$0xff]
        %v1349 = vld [vmem:[%s190 + $0x308] sm:$0xff]
        %v1350 = vld [vmem:[%s190 + $0x310] sm:$0xff]
        %v1351 = vld [vmem:[%s190 + $0x318] sm:$0xff]
        %v1352 = vld [vmem:[%s190 + $0x320] sm:$0xff]
        %v1353 = vld [vmem:[%s190 + $0x328] sm:$0xff]
        %v1354 = vld [vmem:[%s190 + $0x330] sm:$0xff]
        %v1355 = vld [vmem:[%s190 + $0x338] sm:$0xff]
        %v1356 = vld [vmem:[%s190 + $0x340] sm:$0xff]
        %v1357 = vld [vmem:[%s190 + $0x348] sm:$0xff]
        %v1358 = vld [vmem:[%s190 + $0x350] sm:$0xff]
        %v1359 = vld [vmem:[%s190 + $0x358] sm:$0xff]
        %v1360 = vld [vmem:[%s190 + $0x360] sm:$0xff]
        %v1361 = vld [vmem:[%s190 + $0x368] sm:$0xff]
        %v1362 = vld [vmem:[%s190 + $0x370] sm:$0xff]
        %v1363 = vld [vmem:[%s190 + $0x378] sm:$0xff]
        %v1364 = vld [vmem:[%s190 + $0x380] sm:$0xff]
        %v1365 = vld [vmem:[%s190 + $0x388] sm:$0xff]
        %v1366 = vld [vmem:[%s190 + $0x390] sm:$0xff]
        %v1367 = vld [vmem:[%s190 + $0x398] sm:$0xff]
        %v1368 = vld [vmem:[%s190 + $0x3a0] sm:$0xff]
        %v1369 = vld [vmem:[%s190 + $0x3a8] sm:$0xff]
        %v1370 = vld [vmem:[%s190 + $0x3b0] sm:$0xff]
        %v1371 = vld [vmem:[%s190 + $0x3b8] sm:$0xff]
        %v1372 = vld [vmem:[%s190 + $0x3c0] sm:$0xff]
        %v1373 = vld [vmem:[%s190 + $0x3c8] sm:$0xff]
        %v1374 = vld [vmem:[%s190 + $0x3d0] sm:$0xff]
        %v1375 = vld [vmem:[%s190 + $0x3d8] sm:$0xff]
        %v1376 = vld [vmem:[%s190 + $0x3e0] sm:$0xff]
        %v1377 = vld [vmem:[%s190 + $0x3e8] sm:$0xff]
        %v1378 = vld [vmem:[%s190 + $0x3f0] sm:$0xff]
        %v1379 = vld [vmem:[%s190 + $0x3f8] sm:$0xff]
        %v1380 = vld [vmem:[%s190 + $0x400] sm:$0xff]
        %v1381 = vld [vmem:[%s190 + $0x408] sm:$0xff]
        %v1382 = vld [vmem:[%s190 + $0x410] sm:$0xff]
        %v1383 = vld [vmem:[%s190 + $0x418] sm:$0xff]
        %v1384 = vld [vmem:[%s190 + $0x420] sm:$0xff]
        %v1385 = vld [vmem:[%s190 + $0x428] sm:$0xff]
        %v1386 = vld [vmem:[%s190 + $0x430] sm:$0xff]
        %v1387 = vld [vmem:[%s190 + $0x438] sm:$0xff]
        %v1388 = vld [vmem:[%s190 + $0x440] sm:$0xff]
        %v1389 = vld [vmem:[%s190 + $0x448] sm:$0xff]
        %v1390 = vld [vmem:[%s190 + $0x450] sm:$0xff]
        %v1391 = vld [vmem:[%s190 + $0x458] sm:$0xff]
        %v1392 = vld [vmem:[%s190 + $0x460] sm:$0xff]
        %v1393 = vld [vmem:[%s190 + $0x468] sm:$0xff]
        %v1394 = vld [vmem:[%s190 + $0x470] sm:$0xff]
        %v1395 = vld [vmem:[%s190 + $0x478] sm:$0xff]
        %v1396 = vld [vmem:[%s190 + $0x480] sm:$0xff]
        %v1397 = vld [vmem:[%s190 + $0x488] sm:$0xff]
        %v1398 = vld [vmem:[%s190 + $0x490] sm:$0xff]
        %v1399 = vld [vmem:[%s190 + $0x498] sm:$0xff]
        %v1400 = vld [vmem:[%s190 + $0x4a0] sm:$0xff]
        %v1401 = vld [vmem:[%s190 + $0x4a8] sm:$0xff]
        %v1402 = vld [vmem:[%s190 + $0x4b0] sm:$0xff]
        %v1403 = vld [vmem:[%s190 + $0x4b8] sm:$0xff]
        %v1404 = vld [vmem:[%s190 + $0x4c0] sm:$0xff]
        %v1405 = vld [vmem:[%s190 + $0x4c8] sm:$0xff]
        %v1406 = vld [vmem:[%s190 + $0x4d0] sm:$0xff]
        %v1407 = vld [vmem:[%s190 + $0x4d8] sm:$0xff]
        %v1408 = vld [vmem:[%s190 + $0x4e0] sm:$0xff]
        %v1409 = vld [vmem:[%s190 + $0x4e8] sm:$0xff]
        %v1410 = vld [vmem:[%s190 + $0x4f0] sm:$0xff]
        %v1411 = vld [vmem:[%s190 + $0x4f8] sm:$0xff]
        %v1412 = vld [vmem:[%s190 + $0x500] sm:$0xff]
        %v1413 = vld [vmem:[%s190 + $0x508] sm:$0xff]
        %v1414 = vld [vmem:[%s190 + $0x510] sm:$0xff]
        %v1415 = vld [vmem:[%s190 + $0x518] sm:$0xff]
        %v1416 = vld [vmem:[%s190 + $0x520] sm:$0xff]
        %v1417 = vld [vmem:[%s190 + $0x528] sm:$0xff]
        %v1418 = vld [vmem:[%s190 + $0x530] sm:$0xff]
        %v1419 = vld [vmem:[%s190 + $0x538] sm:$0xff]
        %v1420 = vld [vmem:[%s190 + $0x540] sm:$0xff]
        %v1421 = vld [vmem:[%s190 + $0x548] sm:$0xff]
        %v1422 = vld [vmem:[%s190 + $0x550] sm:$0xff]
        %v1423 = vld [vmem:[%s190 + $0x558] sm:$0xff]
        %v1424 = vld [vmem:[%s190 + $0x560] sm:$0xff]
        %v1425 = vld [vmem:[%s190 + $0x568] sm:$0xff]
        %v1426 = vld [vmem:[%s190 + $0x570] sm:$0xff]
        %v1427 = vld [vmem:[%s190 + $0x578] sm:$0xff]
        %v1428 = vld [vmem:[%s190 + $0x580] sm:$0xff]
        %v1429 = vld [vmem:[%s190 + $0x588] sm:$0xff]
        %v1430 = vld [vmem:[%s190 + $0x590] sm:$0xff]
        %v1431 = vld [vmem:[%s190 + $0x598] sm:$0xff]
        %v1432 = vld [vmem:[%s190 + $0x5a0] sm:$0xff]
        %v1433 = vld [vmem:[%s190 + $0x5a8] sm:$0xff]
        %v1434 = vld [vmem:[%s190 + $0x5b0] sm:$0xff]
        %v1435 = vld [vmem:[%s190 + $0x5b8] sm:$0xff]
        %v1436 = vld [vmem:[%s190 + $0x5c0] sm:$0xff]
        %v1437 = vld [vmem:[%s190 + $0x5c8] sm:$0xff]
        %v1438 = vld [vmem:[%s190 + $0x5d0] sm:$0xff]
        %v1439 = vld [vmem:[%s190 + $0x5d8] sm:$0xff]
        %v1440 = vld [vmem:[%s190 + $0x5e0] sm:$0xff]
        %v1441 = vld [vmem:[%s190 + $0x5e8] sm:$0xff]
        %v1442 = vld [vmem:[%s190 + $0x5f0] sm:$0xff]
        %v1443 = vld [vmem:[%s190 + $0x5f8] sm:$0xff]
        %v1444 = vld [vmem:[%s190 + $0x600] sm:$0xff]
        %v1445 = vld [vmem:[%s190 + $0x608] sm:$0xff]
        %v1446 = vld [vmem:[%s190 + $0x610] sm:$0xff]
        %v1447 = vld [vmem:[%s190 + $0x618] sm:$0xff]
        %v1448 = vld [vmem:[%s190 + $0x620] sm:$0xff]
        %v1449 = vld [vmem:[%s190 + $0x628] sm:$0xff]
        %v1450 = vld [vmem:[%s190 + $0x630] sm:$0xff]
        %v1451 = vld [vmem:[%s190 + $0x638] sm:$0xff]
        %v1452 = vld [vmem:[%s190 + $0x640] sm:$0xff]
        %v1453 = vld [vmem:[%s190 + $0x648] sm:$0xff]
        %v1454 = vld [vmem:[%s190 + $0x650] sm:$0xff]
        %v1455 = vld [vmem:[%s190 + $0x658] sm:$0xff]
        %v1456 = vld [vmem:[%s190 + $0x660] sm:$0xff]
        %v1457 = vld [vmem:[%s190 + $0x668] sm:$0xff]
        %v1458 = vld [vmem:[%s190 + $0x670] sm:$0xff]
        %v1459 = vld [vmem:[%s190 + $0x678] sm:$0xff]
        %v1460 = vld [vmem:[%s190 + $0x680] sm:$0xff]
        %v1461 = vld [vmem:[%s190 + $0x688] sm:$0xff]
        %v1462 = vld [vmem:[%s190 + $0x690] sm:$0xff]
        %v1463 = vld [vmem:[%s190 + $0x698] sm:$0xff]
        %v1464 = vld [vmem:[%s190 + $0x6a0] sm:$0xff]
        %v1465 = vld [vmem:[%s190 + $0x6a8] sm:$0xff]
        %v1466 = vld [vmem:[%s190 + $0x6b0] sm:$0xff]
        %v1467 = vld [vmem:[%s190 + $0x6b8] sm:$0xff]
        %v1468 = vld [vmem:[%s190 + $0x6c0] sm:$0xff]
        %v1469 = vld [vmem:[%s190 + $0x6c8] sm:$0xff]
        %v1470 = vld [vmem:[%s190 + $0x6d0] sm:$0xff]
        %v1471 = vld [vmem:[%s190 + $0x6d8] sm:$0xff]
        %v1472 = vld [vmem:[%s190 + $0x6e0] sm:$0xff]
        %v1473 = vld [vmem:[%s190 + $0x6e8] sm:$0xff]
        %v1474 = vld [vmem:[%s190 + $0x6f0] sm:$0xff]
        %v1475 = vld [vmem:[%s190 + $0x6f8] sm:$0xff]
        %v1476 = vld [vmem:[%s190 + $0x700] sm:$0xff]
        %v1477 = vld [vmem:[%s190 + $0x708] sm:$0xff]
        %v1478 = vld [vmem:[%s190 + $0x710] sm:$0xff]
        %v1479 = vld [vmem:[%s190 + $0x718] sm:$0xff]
        %v1480 = vld [vmem:[%s190 + $0x720] sm:$0xff]
        %v1481 = vld [vmem:[%s190 + $0x728] sm:$0xff]
        %v1482 = vld [vmem:[%s190 + $0x730] sm:$0xff]
        %v1483 = vld [vmem:[%s190 + $0x738] sm:$0xff]
        %v1484 = vld [vmem:[%s190 + $0x740] sm:$0xff]
        %v1485 = vld [vmem:[%s190 + $0x748] sm:$0xff]
        %v1486 = vld [vmem:[%s190 + $0x750] sm:$0xff]
        %v1487 = vld [vmem:[%s190 + $0x758] sm:$0xff]
        %v1488 = vld [vmem:[%s190 + $0x760] sm:$0xff]
        %v1489 = vld [vmem:[%s190 + $0x768] sm:$0xff]
        %v1490 = vld [vmem:[%s190 + $0x770] sm:$0xff]
        %v1491 = vld [vmem:[%s190 + $0x778] sm:$0xff]
        %v1492 = vld [vmem:[%s190 + $0x780] sm:$0xff]
        %v1493 = vld [vmem:[%s190 + $0x788] sm:$0xff]
        %v1494 = vld [vmem:[%s190 + $0x790] sm:$0xff]
        %v1495 = vld [vmem:[%s190 + $0x798] sm:$0xff]
        %v1496 = vld [vmem:[%s190 + $0x7a0] sm:$0xff]
        %v1497 = vld [vmem:[%s190 + $0x7a8] sm:$0xff]
        %v1498 = vld [vmem:[%s190 + $0x7b0] sm:$0xff]
        %v1499 = vld [vmem:[%s190 + $0x7b8] sm:$0xff]
        %v1500 = vld [vmem:[%s190 + $0x7c0] sm:$0xff]
        %v1501 = vld [vmem:[%s190 + $0x7c8] sm:$0xff]
        %v1502 = vld [vmem:[%s190 + $0x7d0] sm:$0xff]
        %v1503 = vld [vmem:[%s190 + $0x7d8] sm:$0xff]
        %v1504 = vld [vmem:[%s190 + $0x7e0] sm:$0xff]
        %v1505 = vld [vmem:[%s190 + $0x7e8] sm:$0xff]
        %v1506 = vld [vmem:[%s190 + $0x7f0] sm:$0xff]
        %v1507 = vld [vmem:[%s190 + $0x7f8] sm:$0xff]
        %v1508 = vld [vmem:[%s190 + $0x800] sm:$0xff]
        %v1509 = vld [vmem:[%s190 + $0x808] sm:$0xff]
        %v1510 = vld [vmem:[%s190 + $0x810] sm:$0xff]
        %v1511 = vld [vmem:[%s190 + $0x818] sm:$0xff]
        %v1512 = vld [vmem:[%s190 + $0x820] sm:$0xff]
        %v1513 = vld [vmem:[%s190 + $0x828] sm:$0xff]
        %v1514 = vld [vmem:[%s190 + $0x830] sm:$0xff]
        %v1515 = vld [vmem:[%s190 + $0x838] sm:$0xff]
        %v1516 = vld [vmem:[%s190 + $0x840] sm:$0xff]
        %v1517 = vld [vmem:[%s190 + $0x848] sm:$0xff]
        %v1518 = vld [vmem:[%s190 + $0x850] sm:$0xff]
        %v1519 = vld [vmem:[%s190 + $0x858] sm:$0xff]
        %v1520 = vld [vmem:[%s190 + $0x860] sm:$0xff]
        %v1521 = vld [vmem:[%s190 + $0x868] sm:$0xff]
        %v1522 = vld [vmem:[%s190 + $0x870] sm:$0xff]
        %v1523 = vld [vmem:[%s190 + $0x878] sm:$0xff]
        %v1524 = vld [vmem:[%s190 + $0x880] sm:$0xff]
        %v1525 = vld [vmem:[%s190 + $0x888] sm:$0xff]
        %v1526 = vld [vmem:[%s190 + $0x890] sm:$0xff]
        %v1527 = vld [vmem:[%s190 + $0x898] sm:$0xff]
        %v1528 = vld [vmem:[%s190 + $0x8a0] sm:$0xff]
        %v1529 = vld [vmem:[%s190 + $0x8a8] sm:$0xff]
        %v1530 = vld [vmem:[%s190 + $0x8b0] sm:$0xff]
        %v1531 = vld [vmem:[%s190 + $0x8b8] sm:$0xff]
        %v1532 = vld [vmem:[%s190 + $0x8c0] sm:$0xff]
        %v1533 = vld [vmem:[%s190 + $0x8c8] sm:$0xff]
        %v1534 = vld [vmem:[%s190 + $0x8d0] sm:$0xff]
        %v1535 = vld [vmem:[%s190 + $0x8d8] sm:$0xff]
        %v1536 = vld [vmem:[%s190 + $0x8e0] sm:$0xff]
        %v1537 = vld [vmem:[%s190 + $0x8e8] sm:$0xff]
        %v1538 = vld [vmem:[%s190 + $0x8f0] sm:$0xff]
        %v1539 = vld [vmem:[%s190 + $0x8f8] sm:$0xff]
        %v1540 = vld [vmem:[%s190 + $0x900] sm:$0xff]
        %v1541 = vld [vmem:[%s190 + $0x908] sm:$0xff]
        %v1542 = vld [vmem:[%s190 + $0x910] sm:$0xff]
        %v1543 = vld [vmem:[%s190 + $0x918] sm:$0xff]
        %v1544 = vld [vmem:[%s190 + $0x920] sm:$0xff]
        %v1545 = vld [vmem:[%s190 + $0x928] sm:$0xff]
        %v1546 = vld [vmem:[%s190 + $0x930] sm:$0xff]
        %v1547 = vld [vmem:[%s190 + $0x938] sm:$0xff]
        %v1548 = vld [vmem:[%s190 + $0x940] sm:$0xff]
        %v1549 = vld [vmem:[%s190 + $0x948] sm:$0xff]
        %v1550 = vld [vmem:[%s190 + $0x950] sm:$0xff]
        %v1551 = vld [vmem:[%s190 + $0x958] sm:$0xff]
        %v1552 = vld [vmem:[%s190 + $0x960] sm:$0xff]
        %v1553 = vld [vmem:[%s190 + $0x968] sm:$0xff]
        %v1554 = vld [vmem:[%s190 + $0x970] sm:$0xff]
        %v1555 = vld [vmem:[%s190 + $0x978] sm:$0xff]
        %v1556 = vld [vmem:[%s190 + $0x980] sm:$0xff]
        %v1557 = vld [vmem:[%s190 + $0x988] sm:$0xff]
        %v1558 = vld [vmem:[%s190 + $0x990] sm:$0xff]
        %v1559 = vld [vmem:[%s190 + $0x998] sm:$0xff]
        %v1560 = vld [vmem:[%s190 + $0x9a0] sm:$0xff]
        %v1561 = vld [vmem:[%s190 + $0x9a8] sm:$0xff]
        %v1562 = vld [vmem:[%s190 + $0x9b0] sm:$0xff]
        %v1563 = vld [vmem:[%s190 + $0x9b8] sm:$0xff]
        %v1564 = vld [vmem:[%s190 + $0x9c0] sm:$0xff]
        %v1565 = vld [vmem:[%s190 + $0x9c8] sm:$0xff]
        %v1566 = vld [vmem:[%s190 + $0x9d0] sm:$0xff]
        %v1567 = vld [vmem:[%s190 + $0x9d8] sm:$0xff]
        %v1568 = vld [vmem:[%s190 + $0x9e0] sm:$0xff]
        %v1569 = vld [vmem:[%s190 + $0x9e8] sm:$0xff]
        %v1570 = vld [vmem:[%s190 + $0x9f0] sm:$0xff]
        %v1571 = vld [vmem:[%s190 + $0x9f8] sm:$0xff]
        %v1572 = vld [vmem:[%s190 + $0xa00] sm:$0xff]
        %v1573 = vld [vmem:[%s190 + $0xa08] sm:$0xff]
        %v1574 = vld [vmem:[%s190 + $0xa10] sm:$0xff]
        %v1575 = vld [vmem:[%s190 + $0xa18] sm:$0xff]
        %v1576 = vld [vmem:[%s190 + $0xa20] sm:$0xff]
        %v1577 = vld [vmem:[%s190 + $0xa28] sm:$0xff]
        %v1578 = vld [vmem:[%s190 + $0xa30] sm:$0xff]
        %v1579 = vld [vmem:[%s190 + $0xa38] sm:$0xff]
        %v1580 = vld [vmem:[%s190 + $0xa40] sm:$0xff]
        %v1581 = vld [vmem:[%s190 + $0xa48] sm:$0xff]
        %v1582 = vld [vmem:[%s190 + $0xa50] sm:$0xff]
        %v1583 = vld [vmem:[%s190 + $0xa58] sm:$0xff]
        %v1584 = vld [vmem:[%s190 + $0xa60] sm:$0xff]
        %v1585 = vld [vmem:[%s190 + $0xa68] sm:$0xff]
        %v1586 = vld [vmem:[%s190 + $0xa70] sm:$0xff]
        %v1587 = vld [vmem:[%s190 + $0xa78] sm:$0xff]
        %v1588 = vld [vmem:[%s190 + $0xa80] sm:$0xff]
        %v1589 = vld [vmem:[%s190 + $0xa88] sm:$0xff]
        %v1590 = vld [vmem:[%s190 + $0xa90] sm:$0xff]
        %v1591 = vld [vmem:[%s190 + $0xa98] sm:$0xff]
        %v1592 = vld [vmem:[%s190 + $0xaa0] sm:$0xff]
        %v1593 = vld [vmem:[%s190 + $0xaa8] sm:$0xff]
        %v1594 = vld [vmem:[%s190 + $0xab0] sm:$0xff]
        %v1595 = vld [vmem:[%s190 + $0xab8] sm:$0xff]
        %v1596 = vld [vmem:[%s190 + $0xac0] sm:$0xff]
        %v1597 = vld [vmem:[%s190 + $0xac8] sm:$0xff]
        %v1598 = vld [vmem:[%s190 + $0xad0] sm:$0xff]
        %v1599 = vld [vmem:[%s190 + $0xad8] sm:$0xff]
        %v1600 = vld [vmem:[%s190 + $0xae0] sm:$0xff]
        %v1601 = vld [vmem:[%s190 + $0xae8] sm:$0xff]
        %v1602 = vld [vmem:[%s190 + $0xaf0] sm:$0xff]
        %v1603 = vld [vmem:[%s190 + $0xaf8] sm:$0xff]
        %v1604 = vld [vmem:[%s190 + $0xb00] sm:$0xff]
        %v1605 = vld [vmem:[%s190 + $0xb08] sm:$0xff]
        %v1606 = vld [vmem:[%s190 + $0xb10] sm:$0xff]
        %v1607 = vld [vmem:[%s190 + $0xb18] sm:$0xff]
        %v1608 = vld [vmem:[%s190 + $0xb20] sm:$0xff]
        %v1609 = vld [vmem:[%s190 + $0xb28] sm:$0xff]
        %v1610 = vld [vmem:[%s190 + $0xb30] sm:$0xff]
        %v1611 = vld [vmem:[%s190 + $0xb38] sm:$0xff]
        %v1612 = vld [vmem:[%s190 + $0xb40] sm:$0xff]
        %v1613 = vld [vmem:[%s190 + $0xb48] sm:$0xff]
        %v1614 = vld [vmem:[%s190 + $0xb50] sm:$0xff]
        %v1615 = vld [vmem:[%s190 + $0xb58] sm:$0xff]
        %v1616 = vld [vmem:[%s190 + $0xb60] sm:$0xff]
        %v1617 = vld [vmem:[%s190 + $0xb68] sm:$0xff]
        %v1618 = vld [vmem:[%s190 + $0xb70] sm:$0xff]
        %v1619 = vld [vmem:[%s190 + $0xb78] sm:$0xff]
        %v1620 = vld [vmem:[%s190 + $0xb80] sm:$0xff]
        %v1621 = vld [vmem:[%s190 + $0xb88] sm:$0xff]
        %v1622 = vld [vmem:[%s190 + $0xb90] sm:$0xff]
        %v1623 = vld [vmem:[%s190 + $0xb98] sm:$0xff]
        %v1624 = vld [vmem:[%s190 + $0xba0] sm:$0xff]
        %v1625 = vld [vmem:[%s190 + $0xba8] sm:$0xff]
        %v1626 = vld [vmem:[%s190 + $0xbb0] sm:$0xff]
        %v1627 = vld [vmem:[%s190 + $0xbb8] sm:$0xff]
        %v1628 = vld [vmem:[%s190 + $0xbc0] sm:$0xff]
        %v1629 = vld [vmem:[%s190 + $0xbc8] sm:$0xff]
        %v1630 = vld [vmem:[%s190 + $0xbd0] sm:$0xff]
        %v1631 = vld [vmem:[%s190 + $0xbd8] sm:$0xff]
        %v1632 = vld [vmem:[%s190 + $0xbe0] sm:$0xff]
        %v1633 = vld [vmem:[%s190 + $0xbe8] sm:$0xff]
        %v1634 = vld [vmem:[%s190 + $0xbf0] sm:$0xff]
        %v1635 = vld [vmem:[%s190 + $0xbf8] sm:$0xff]
        %v1636 = vld [vmem:[%s190 + $0xc00] sm:$0xff]
        %v1637 = vld [vmem:[%s190 + $0xc08] sm:$0xff]
        %v1638 = vld [vmem:[%s190 + $0xc10] sm:$0xff]
        %v1639 = vld [vmem:[%s190 + $0xc18] sm:$0xff]
        %v1640 = vld [vmem:[%s190 + $0xc20] sm:$0xff]
        %v1641 = vld [vmem:[%s190 + $0xc28] sm:$0xff]
        %v1642 = vld [vmem:[%s190 + $0xc30] sm:$0xff]
        %v1643 = vld [vmem:[%s190 + $0xc38] sm:$0xff]
        %v1644 = vld [vmem:[%s190 + $0xc40] sm:$0xff]
        %v1645 = vld [vmem:[%s190 + $0xc48] sm:$0xff]
        %v1646 = vld [vmem:[%s190 + $0xc50] sm:$0xff]
        %v1647 = vld [vmem:[%s190 + $0xc58] sm:$0xff]
        %v1648 = vld [vmem:[%s190 + $0xc60] sm:$0xff]
        %v1649 = vld [vmem:[%s190 + $0xc68] sm:$0xff]
        %v1650 = vld [vmem:[%s190 + $0xc70] sm:$0xff]
        %v1651 = vld [vmem:[%s190 + $0xc78] sm:$0xff]
        %v1652 = vld [vmem:[%s190 + $0xc80] sm:$0xff]
        %v1653 = vld [vmem:[%s190 + $0xc88] sm:$0xff]
        %v1654 = vld [vmem:[%s190 + $0xc90] sm:$0xff]
        %v1655 = vld [vmem:[%s190 + $0xc98] sm:$0xff]
        %v1656 = vld [vmem:[%s190 + $0xca0] sm:$0xff]
        %v1657 = vld [vmem:[%s190 + $0xca8] sm:$0xff]
        %v1658 = vld [vmem:[%s190 + $0xcb0] sm:$0xff]
        %v1659 = vld [vmem:[%s190 + $0xcb8] sm:$0xff]
        %v1660 = vld [vmem:[%s190 + $0xcc0] sm:$0xff]
        %v1661 = vld [vmem:[%s190 + $0xcc8] sm:$0xff]
        %v1662 = vld [vmem:[%s190 + $0xcd0] sm:$0xff]
        %v1663 = vld [vmem:[%s190 + $0xcd8] sm:$0xff]
        %v1664 = vld [vmem:[%s190 + $0xce0] sm:$0xff]
        %v1665 = vld [vmem:[%s190 + $0xce8] sm:$0xff]
        %v1666 = vld [vmem:[%s190 + $0xcf0] sm:$0xff]
        %v1667 = vld [vmem:[%s190 + $0xcf8] sm:$0xff]
        %v1668 = vld [vmem:[%s190 + $0xd00] sm:$0xff]
        %v1669 = vld [vmem:[%s190 + $0xd08] sm:$0xff]
        %v1670 = vld [vmem:[%s190 + $0xd10] sm:$0xff]
        %v1671 = vld [vmem:[%s190 + $0xd18] sm:$0xff]
        %v1672 = vld [vmem:[%s190 + $0xd20] sm:$0xff]
        %v1673 = vld [vmem:[%s190 + $0xd28] sm:$0xff]
        %v1674 = vld [vmem:[%s190 + $0xd30] sm:$0xff]
        %v1675 = vld [vmem:[%s190 + $0xd38] sm:$0xff]
        %v1676 = vld [vmem:[%s190 + $0xd40] sm:$0xff]
        %v1677 = vld [vmem:[%s190 + $0xd48] sm:$0xff]
        %v1678 = vld [vmem:[%s190 + $0xd50] sm:$0xff]
        %v1679 = vld [vmem:[%s190 + $0xd58] sm:$0xff]
        %v1680 = vld [vmem:[%s190 + $0xd60] sm:$0xff]
        %v1681 = vld [vmem:[%s190 + $0xd68] sm:$0xff]
        %v1682 = vld [vmem:[%s190 + $0xd70] sm:$0xff]
        %v1683 = vld [vmem:[%s190 + $0xd78] sm:$0xff]
        %v1684 = vld [vmem:[%s190 + $0xd80] sm:$0xff]
        %v1685 = vld [vmem:[%s190 + $0xd88] sm:$0xff]
        %v1686 = vld [vmem:[%s190 + $0xd90] sm:$0xff]
        %v1687 = vld [vmem:[%s190 + $0xd98] sm:$0xff]
        %v1688 = vld [vmem:[%s190 + $0xda0] sm:$0xff]
        %v1689 = vld [vmem:[%s190 + $0xda8] sm:$0xff]
        %v1690 = vld [vmem:[%s190 + $0xdb0] sm:$0xff]
        %v1691 = vld [vmem:[%s190 + $0xdb8] sm:$0xff]
        %v1692 = vld [vmem:[%s190 + $0xdc0] sm:$0xff]
        %v1693 = vld [vmem:[%s190 + $0xdc8] sm:$0xff]
        %v1694 = vld [vmem:[%s190 + $0xdd0] sm:$0xff]
        %v1695 = vld [vmem:[%s190 + $0xdd8] sm:$0xff]
        %v1696 = vld [vmem:[%s190 + $0xde0] sm:$0xff]
        %v1697 = vld [vmem:[%s190 + $0xde8] sm:$0xff]
        %v1698 = vld [vmem:[%s190 + $0xdf0] sm:$0xff]
        %v1699 = vld [vmem:[%s190 + $0xdf8] sm:$0xff]
        %v1700 = vld [vmem:[%s190 + $0xe00] sm:$0xff]
        %v1701 = vld [vmem:[%s190 + $0xe08] sm:$0xff]
        %v1702 = vld [vmem:[%s190 + $0xe10] sm:$0xff]
        %v1703 = vld [vmem:[%s190 + $0xe18] sm:$0xff]
        %v1704 = vld [vmem:[%s190 + $0xe20] sm:$0xff]
        %v1705 = vld [vmem:[%s190 + $0xe28] sm:$0xff]
        %v1706 = vld [vmem:[%s190 + $0xe30] sm:$0xff]
        %v1707 = vld [vmem:[%s190 + $0xe38] sm:$0xff]
        %v1708 = vld [vmem:[%s190 + $0xe40] sm:$0xff]
        %v1709 = vld [vmem:[%s190 + $0xe48] sm:$0xff]
        %v1710 = vld [vmem:[%s190 + $0xe50] sm:$0xff]
        %v1711 = vld [vmem:[%s190 + $0xe58] sm:$0xff]
        %v1712 = vld [vmem:[%s190 + $0xe60] sm:$0xff]
        %v1713 = vld [vmem:[%s190 + $0xe68] sm:$0xff]
        %v1714 = vld [vmem:[%s190 + $0xe70] sm:$0xff]
        %v1715 = vld [vmem:[%s190 + $0xe78] sm:$0xff]
        %v1716 = vld [vmem:[%s190 + $0xe80] sm:$0xff]
        %v1717 = vld [vmem:[%s190 + $0xe88] sm:$0xff]
        %v1718 = vld [vmem:[%s190 + $0xe90] sm:$0xff]
        %v1719 = vld [vmem:[%s190 + $0xe98] sm:$0xff]
        %v1720 = vld [vmem:[%s190 + $0xea0] sm:$0xff]
        %v1721 = vld [vmem:[%s190 + $0xea8] sm:$0xff]
        %v1722 = vld [vmem:[%s190 + $0xeb0] sm:$0xff]
        %v1723 = vld [vmem:[%s190 + $0xeb8] sm:$0xff]
        %v1724 = vld [vmem:[%s190 + $0xec0] sm:$0xff]
        %v1725 = vld [vmem:[%s190 + $0xec8] sm:$0xff]
        %v1726 = vld [vmem:[%s190 + $0xed0] sm:$0xff]
        %v1727 = vld [vmem:[%s190 + $0xed8] sm:$0xff]
        %v1728 = vld [vmem:[%s190 + $0xee0] sm:$0xff]
        %v1729 = vld [vmem:[%s190 + $0xee8] sm:$0xff]
        %v1730 = vld [vmem:[%s190 + $0xef0] sm:$0xff]
        %v1731 = vld [vmem:[%s190 + $0xef8] sm:$0xff]
        %v1732 = vld [vmem:[%s190 + $0xf00] sm:$0xff]
        %v1733 = vld [vmem:[%s190 + $0xf08] sm:$0xff]
        %v1734 = vld [vmem:[%s190 + $0xf10] sm:$0xff]
        %v1735 = vld [vmem:[%s190 + $0xf18] sm:$0xff]
        %v1736 = vld [vmem:[%s190 + $0xf20] sm:$0xff]
        %v1737 = vld [vmem:[%s190 + $0xf28] sm:$0xff]
        %v1738 = vld [vmem:[%s190 + $0xf30] sm:$0xff]
        %v1739 = vld [vmem:[%s190 + $0xf38] sm:$0xff]
        %v1740 = vld [vmem:[%s190 + $0xf40] sm:$0xff]
        %v1741 = vld [vmem:[%s190 + $0xf48] sm:$0xff]
        %v1742 = vld [vmem:[%s190 + $0xf50] sm:$0xff]
        %v1743 = vld [vmem:[%s190 + $0xf58] sm:$0xff]
        %v1744 = vld [vmem:[%s190 + $0xf60] sm:$0xff]
        %v1745 = vld [vmem:[%s190 + $0xf68] sm:$0xff]
        %v1746 = vld [vmem:[%s190 + $0xf70] sm:$0xff]
        %v1747 = vld [vmem:[%s190 + $0xf78] sm:$0xff]
        %v1748 = vld [vmem:[%s190 + $0xf80] sm:$0xff]
        %v1749 = vld [vmem:[%s190 + $0xf88] sm:$0xff]
        %v1750 = vld [vmem:[%s190 + $0xf90] sm:$0xff]
        %v1751 = vld [vmem:[%s190 + $0xf98] sm:$0xff]
        %v1752 = vld [vmem:[%s190 + $0xfa0] sm:$0xff]
        %v1753 = vld [vmem:[%s190 + $0xfa8] sm:$0xff]
        %v1754 = vld [vmem:[%s190 + $0xfb0] sm:$0xff]
        %v1755 = vld [vmem:[%s190 + $0xfb8] sm:$0xff]
        %v1756 = vld [vmem:[%s190 + $0xfc0] sm:$0xff]
        %v1757 = vld [vmem:[%s190 + $0xfc8] sm:$0xff]
        %v1758 = vld [vmem:[%s190 + $0xfd0] sm:$0xff]
        %v1759 = vld [vmem:[%s190 + $0xfd8] sm:$0xff]
        %v1760 = vld [vmem:[%s190 + $0xfe0] sm:$0xff]
        %v1761 = vld [vmem:[%s190 + $0xfe8] sm:$0xff]
        %v1762 = vld [vmem:[%s190 + $0xff0] sm:$0xff]
        %v1763 = vld [vmem:[%s190 + $0xff8] sm:$0xff]
        %v1764 = vsub.f32 %v740, %v1252
        %v1765 = vsub.f32 %v741, %v1253
        %v1766 = vsub.f32 %v742, %v1254
        %v1767 = vsub.f32 %v743, %v1255
        %v1768 = vsub.f32 %v744, %v1256
        %v1769 = vsub.f32 %v745, %v1257
        %v1770 = vsub.f32 %v746, %v1258
        %v1771 = vsub.f32 %v747, %v1259
        %v1772 = vsub.f32 %v748, %v1260
        %v1773 = vsub.f32 %v749, %v1261
        %v1774 = vsub.f32 %v750, %v1262
        %v1775 = vsub.f32 %v751, %v1263
        %v1776 = vsub.f32 %v752, %v1264
        %v1777 = vsub.f32 %v753, %v1265
        %v1778 = vsub.f32 %v754, %v1266
        %v1779 = vsub.f32 %v755, %v1267
        %v1780 = vsub.f32 %v756, %v1268
        %v1781 = vsub.f32 %v757, %v1269
        %v1782 = vsub.f32 %v758, %v1270
        %v1783 = vsub.f32 %v759, %v1271
        %v1784 = vsub.f32 %v760, %v1272
        %v1785 = vsub.f32 %v761, %v1273
        %v1786 = vsub.f32 %v762, %v1274
        %v1787 = vsub.f32 %v763, %v1275
        %v1788 = vsub.f32 %v764, %v1276
        %v1789 = vsub.f32 %v765, %v1277
        %v1790 = vsub.f32 %v766, %v1278
        %v1791 = vsub.f32 %v767, %v1279
        %v1792 = vsub.f32 %v768, %v1280
        %v1793 = vsub.f32 %v769, %v1281
        %v1794 = vsub.f32 %v770, %v1282
        %v1795 = vsub.f32 %v771, %v1283
        %v1796 = vsub.f32 %v772, %v1284
        %v1797 = vsub.f32 %v773, %v1285
        %v1798 = vsub.f32 %v774, %v1286
        %v1799 = vsub.f32 %v775, %v1287
        %v1800 = vsub.f32 %v776, %v1288
        %v1801 = vsub.f32 %v777, %v1289
        %v1802 = vsub.f32 %v778, %v1290
        %v1803 = vsub.f32 %v779, %v1291
        %v1804 = vsub.f32 %v780, %v1292
        %v1805 = vsub.f32 %v781, %v1293
        %v1806 = vsub.f32 %v782, %v1294
        %v1807 = vsub.f32 %v783, %v1295
        %v1808 = vsub.f32 %v784, %v1296
        %v1809 = vsub.f32 %v785, %v1297
        %v1810 = vsub.f32 %v786, %v1298
        %v1811 = vsub.f32 %v787, %v1299
        %v1812 = vsub.f32 %v788, %v1300
        %v1813 = vsub.f32 %v789, %v1301
        %v1814 = vsub.f32 %v790, %v1302
        %v1815 = vsub.f32 %v791, %v1303
        %v1816 = vsub.f32 %v792, %v1304
        %v1817 = vsub.f32 %v793, %v1305
        %v1818 = vsub.f32 %v794, %v1306
        %v1819 = vsub.f32 %v795, %v1307
        %v1820 = vsub.f32 %v796, %v1308
        %v1821 = vsub.f32 %v797, %v1309
        %v1822 = vsub.f32 %v798, %v1310
        %v1823 = vsub.f32 %v799, %v1311
        %v1824 = vsub.f32 %v800, %v1312
        %v1825 = vsub.f32 %v801, %v1313
        %v1826 = vsub.f32 %v802, %v1314
        %v1827 = vsub.f32 %v803, %v1315
        %v1828 = vsub.f32 %v804, %v1316
        %v1829 = vsub.f32 %v805, %v1317
        %v1830 = vsub.f32 %v806, %v1318
        %v1831 = vsub.f32 %v807, %v1319
        %v1832 = vsub.f32 %v808, %v1320
        %v1833 = vsub.f32 %v809, %v1321
        %v1834 = vsub.f32 %v810, %v1322
        %v1835 = vsub.f32 %v811, %v1323
        %v1836 = vsub.f32 %v812, %v1324
        %v1837 = vsub.f32 %v813, %v1325
        %v1838 = vsub.f32 %v814, %v1326
        %v1839 = vsub.f32 %v815, %v1327
        %v1840 = vsub.f32 %v816, %v1328
        %v1841 = vsub.f32 %v817, %v1329
        %v1842 = vsub.f32 %v818, %v1330
        %v1843 = vsub.f32 %v819, %v1331
        %v1844 = vsub.f32 %v820, %v1332
        %v1845 = vsub.f32 %v821, %v1333
        %v1846 = vsub.f32 %v822, %v1334
        %v1847 = vsub.f32 %v823, %v1335
        %v1848 = vsub.f32 %v824, %v1336
        %v1849 = vsub.f32 %v825, %v1337
        %v1850 = vsub.f32 %v826, %v1338
        %v1851 = vsub.f32 %v827, %v1339
        %v1852 = vsub.f32 %v828, %v1340
        %v1853 = vsub.f32 %v829, %v1341
        %v1854 = vsub.f32 %v830, %v1342
        %v1855 = vsub.f32 %v831, %v1343
        %v1856 = vsub.f32 %v832, %v1344
        %v1857 = vsub.f32 %v833, %v1345
        %v1858 = vsub.f32 %v834, %v1346
        %v1859 = vsub.f32 %v835, %v1347
        %v1860 = vsub.f32 %v836, %v1348
        %v1861 = vsub.f32 %v837, %v1349
        %v1862 = vsub.f32 %v838, %v1350
        %v1863 = vsub.f32 %v839, %v1351
        %v1864 = vsub.f32 %v840, %v1352
        %v1865 = vsub.f32 %v841, %v1353
        %v1866 = vsub.f32 %v842, %v1354
        %v1867 = vsub.f32 %v843, %v1355
        %v1868 = vsub.f32 %v844, %v1356
        %v1869 = vsub.f32 %v845, %v1357
        %v1870 = vsub.f32 %v846, %v1358
        %v1871 = vsub.f32 %v847, %v1359
        %v1872 = vsub.f32 %v848, %v1360
        %v1873 = vsub.f32 %v849, %v1361
        %v1874 = vsub.f32 %v850, %v1362
        %v1875 = vsub.f32 %v851, %v1363
        %v1876 = vsub.f32 %v852, %v1364
        %v1877 = vsub.f32 %v853, %v1365
        %v1878 = vsub.f32 %v854, %v1366
        %v1879 = vsub.f32 %v855, %v1367
        %v1880 = vsub.f32 %v856, %v1368
        %v1881 = vsub.f32 %v857, %v1369
        %v1882 = vsub.f32 %v858, %v1370
        %v1883 = vsub.f32 %v859, %v1371
        %v1884 = vsub.f32 %v860, %v1372
        %v1885 = vsub.f32 %v861, %v1373
        %v1886 = vsub.f32 %v862, %v1374
        %v1887 = vsub.f32 %v863, %v1375
        %v1888 = vsub.f32 %v864, %v1376
        %v1889 = vsub.f32 %v865, %v1377
        %v1890 = vsub.f32 %v866, %v1378
        %v1891 = vsub.f32 %v867, %v1379
        %v1892 = vsub.f32 %v868, %v1380
        %v1893 = vsub.f32 %v869, %v1381
        %v1894 = vsub.f32 %v870, %v1382
        %v1895 = vsub.f32 %v871, %v1383
        %v1896 = vsub.f32 %v872, %v1384
        %v1897 = vsub.f32 %v873, %v1385
        %v1898 = vsub.f32 %v874, %v1386
        %v1899 = vsub.f32 %v875, %v1387
        %v1900 = vsub.f32 %v876, %v1388
        %v1901 = vsub.f32 %v877, %v1389
        %v1902 = vsub.f32 %v878, %v1390
        %v1903 = vsub.f32 %v879, %v1391
        %v1904 = vsub.f32 %v880, %v1392
        %v1905 = vsub.f32 %v881, %v1393
        %v1906 = vsub.f32 %v882, %v1394
        %v1907 = vsub.f32 %v883, %v1395
        %v1908 = vsub.f32 %v884, %v1396
        %v1909 = vsub.f32 %v885, %v1397
        %v1910 = vsub.f32 %v886, %v1398
        %v1911 = vsub.f32 %v887, %v1399
        %v1912 = vsub.f32 %v888, %v1400
        %v1913 = vsub.f32 %v889, %v1401
        %v1914 = vsub.f32 %v890, %v1402
        %v1915 = vsub.f32 %v891, %v1403
        %v1916 = vsub.f32 %v892, %v1404
        %v1917 = vsub.f32 %v893, %v1405
        %v1918 = vsub.f32 %v894, %v1406
        %v1919 = vsub.f32 %v895, %v1407
        %v1920 = vsub.f32 %v896, %v1408
        %v1921 = vsub.f32 %v897, %v1409
        %v1922 = vsub.f32 %v898, %v1410
        %v1923 = vsub.f32 %v899, %v1411
        %v1924 = vsub.f32 %v900, %v1412
        %v1925 = vsub.f32 %v901, %v1413
        %v1926 = vsub.f32 %v902, %v1414
        %v1927 = vsub.f32 %v903, %v1415
        %v1928 = vsub.f32 %v904, %v1416
        %v1929 = vsub.f32 %v905, %v1417
        %v1930 = vsub.f32 %v906, %v1418
        %v1931 = vsub.f32 %v907, %v1419
        %v1932 = vsub.f32 %v908, %v1420
        %v1933 = vsub.f32 %v909, %v1421
        %v1934 = vsub.f32 %v910, %v1422
        %v1935 = vsub.f32 %v911, %v1423
        %v1936 = vsub.f32 %v912, %v1424
        %v1937 = vsub.f32 %v913, %v1425
        %v1938 = vsub.f32 %v914, %v1426
        %v1939 = vsub.f32 %v915, %v1427
        %v1940 = vsub.f32 %v916, %v1428
        %v1941 = vsub.f32 %v917, %v1429
        %v1942 = vsub.f32 %v918, %v1430
        %v1943 = vsub.f32 %v919, %v1431
        %v1944 = vsub.f32 %v920, %v1432
        %v1945 = vsub.f32 %v921, %v1433
        %v1946 = vsub.f32 %v922, %v1434
        %v1947 = vsub.f32 %v923, %v1435
        %v1948 = vsub.f32 %v924, %v1436
        %v1949 = vsub.f32 %v925, %v1437
        %v1950 = vsub.f32 %v926, %v1438
        %v1951 = vsub.f32 %v927, %v1439
        %v1952 = vsub.f32 %v928, %v1440
        %v1953 = vsub.f32 %v929, %v1441
        %v1954 = vsub.f32 %v930, %v1442
        %v1955 = vsub.f32 %v931, %v1443
        %v1956 = vsub.f32 %v932, %v1444
        %v1957 = vsub.f32 %v933, %v1445
        %v1958 = vsub.f32 %v934, %v1446
        %v1959 = vsub.f32 %v935, %v1447
        %v1960 = vsub.f32 %v936, %v1448
        %v1961 = vsub.f32 %v937, %v1449
        %v1962 = vsub.f32 %v938, %v1450
        %v1963 = vsub.f32 %v939, %v1451
        %v1964 = vsub.f32 %v940, %v1452
        %v1965 = vsub.f32 %v941, %v1453
        %v1966 = vsub.f32 %v942, %v1454
        %v1967 = vsub.f32 %v943, %v1455
        %v1968 = vsub.f32 %v944, %v1456
        %v1969 = vsub.f32 %v945, %v1457
        %v1970 = vsub.f32 %v946, %v1458
        %v1971 = vsub.f32 %v947, %v1459
        %v1972 = vsub.f32 %v948, %v1460
        %v1973 = vsub.f32 %v949, %v1461
        %v1974 = vsub.f32 %v950, %v1462
        %v1975 = vsub.f32 %v951, %v1463
        %v1976 = vsub.f32 %v952, %v1464
        %v1977 = vsub.f32 %v953, %v1465
        %v1978 = vsub.f32 %v954, %v1466
        %v1979 = vsub.f32 %v955, %v1467
        %v1980 = vsub.f32 %v956, %v1468
        %v1981 = vsub.f32 %v957, %v1469
        %v1982 = vsub.f32 %v958, %v1470
        %v1983 = vsub.f32 %v959, %v1471
        %v1984 = vsub.f32 %v960, %v1472
        %v1985 = vsub.f32 %v961, %v1473
        %v1986 = vsub.f32 %v962, %v1474
        %v1987 = vsub.f32 %v963, %v1475
        %v1988 = vsub.f32 %v964, %v1476
        %v1989 = vsub.f32 %v965, %v1477
        %v1990 = vsub.f32 %v966, %v1478
        %v1991 = vsub.f32 %v967, %v1479
        %v1992 = vsub.f32 %v968, %v1480
        %v1993 = vsub.f32 %v969, %v1481
        %v1994 = vsub.f32 %v970, %v1482
        %v1995 = vsub.f32 %v971, %v1483
        %v1996 = vsub.f32 %v972, %v1484
        %v1997 = vsub.f32 %v973, %v1485
        %v1998 = vsub.f32 %v974, %v1486
        %v1999 = vsub.f32 %v975, %v1487
        %v2000 = vsub.f32 %v976, %v1488
        %v2001 = vsub.f32 %v977, %v1489
        %v2002 = vsub.f32 %v978, %v1490
        %v2003 = vsub.f32 %v979, %v1491
        %v2004 = vsub.f32 %v980, %v1492
        %v2005 = vsub.f32 %v981, %v1493
        %v2006 = vsub.f32 %v982, %v1494
        %v2007 = vsub.f32 %v983, %v1495
        %v2008 = vsub.f32 %v984, %v1496
        %v2009 = vsub.f32 %v985, %v1497
        %v2010 = vsub.f32 %v986, %v1498
        %v2011 = vsub.f32 %v987, %v1499
        %v2012 = vsub.f32 %v988, %v1500
        %v2013 = vsub.f32 %v989, %v1501
        %v2014 = vsub.f32 %v990, %v1502
        %v2015 = vsub.f32 %v991, %v1503
        %v2016 = vsub.f32 %v992, %v1504
        %v2017 = vsub.f32 %v993, %v1505
        %v2018 = vsub.f32 %v994, %v1506
        %v2019 = vsub.f32 %v995, %v1507
        %v2020 = vsub.f32 %v996, %v1508
        %v2021 = vsub.f32 %v997, %v1509
        %v2022 = vsub.f32 %v998, %v1510
        %v2023 = vsub.f32 %v999, %v1511
        %v2024 = vsub.f32 %v1000, %v1512
        %v2025 = vsub.f32 %v1001, %v1513
        %v2026 = vsub.f32 %v1002, %v1514
        %v2027 = vsub.f32 %v1003, %v1515
        %v2028 = vsub.f32 %v1004, %v1516
        %v2029 = vsub.f32 %v1005, %v1517
        %v2030 = vsub.f32 %v1006, %v1518
        %v2031 = vsub.f32 %v1007, %v1519
        %v2032 = vsub.f32 %v1008, %v1520
        %v2033 = vsub.f32 %v1009, %v1521
        %v2034 = vsub.f32 %v1010, %v1522
        %v2035 = vsub.f32 %v1011, %v1523
        %v2036 = vsub.f32 %v1012, %v1524
        %v2037 = vsub.f32 %v1013, %v1525
        %v2038 = vsub.f32 %v1014, %v1526
        %v2039 = vsub.f32 %v1015, %v1527
        %v2040 = vsub.f32 %v1016, %v1528
        %v2041 = vsub.f32 %v1017, %v1529
        %v2042 = vsub.f32 %v1018, %v1530
        %v2043 = vsub.f32 %v1019, %v1531
        %v2044 = vsub.f32 %v1020, %v1532
        %v2045 = vsub.f32 %v1021, %v1533
        %v2046 = vsub.f32 %v1022, %v1534
        %v2047 = vsub.f32 %v1023, %v1535
        %v2048 = vsub.f32 %v1024, %v1536
        %v2049 = vsub.f32 %v1025, %v1537
        %v2050 = vsub.f32 %v1026, %v1538
        %v2051 = vsub.f32 %v1027, %v1539
        %v2052 = vsub.f32 %v1028, %v1540
        %v2053 = vsub.f32 %v1029, %v1541
        %v2054 = vsub.f32 %v1030, %v1542
        %v2055 = vsub.f32 %v1031, %v1543
        %v2056 = vsub.f32 %v1032, %v1544
        %v2057 = vsub.f32 %v1033, %v1545
        %v2058 = vsub.f32 %v1034, %v1546
        %v2059 = vsub.f32 %v1035, %v1547
        %v2060 = vsub.f32 %v1036, %v1548
        %v2061 = vsub.f32 %v1037, %v1549
        %v2062 = vsub.f32 %v1038, %v1550
        %v2063 = vsub.f32 %v1039, %v1551
        %v2064 = vsub.f32 %v1040, %v1552
        %v2065 = vsub.f32 %v1041, %v1553
        %v2066 = vsub.f32 %v1042, %v1554
        %v2067 = vsub.f32 %v1043, %v1555
        %v2068 = vsub.f32 %v1044, %v1556
        %v2069 = vsub.f32 %v1045, %v1557
        %v2070 = vsub.f32 %v1046, %v1558
        %v2071 = vsub.f32 %v1047, %v1559
        %v2072 = vsub.f32 %v1048, %v1560
        %v2073 = vsub.f32 %v1049, %v1561
        %v2074 = vsub.f32 %v1050, %v1562
        %v2075 = vsub.f32 %v1051, %v1563
        %v2076 = vsub.f32 %v1052, %v1564
        %v2077 = vsub.f32 %v1053, %v1565
        %v2078 = vsub.f32 %v1054, %v1566
        %v2079 = vsub.f32 %v1055, %v1567
        %v2080 = vsub.f32 %v1056, %v1568
        %v2081 = vsub.f32 %v1057, %v1569
        %v2082 = vsub.f32 %v1058, %v1570
        %v2083 = vsub.f32 %v1059, %v1571
        %v2084 = vsub.f32 %v1060, %v1572
        %v2085 = vsub.f32 %v1061, %v1573
        %v2086 = vsub.f32 %v1062, %v1574
        %v2087 = vsub.f32 %v1063, %v1575
        %v2088 = vsub.f32 %v1064, %v1576
        %v2089 = vsub.f32 %v1065, %v1577
        %v2090 = vsub.f32 %v1066, %v1578
        %v2091 = vsub.f32 %v1067, %v1579
        %v2092 = vsub.f32 %v1068, %v1580
        %v2093 = vsub.f32 %v1069, %v1581
        %v2094 = vsub.f32 %v1070, %v1582
        %v2095 = vsub.f32 %v1071, %v1583
        %v2096 = vsub.f32 %v1072, %v1584
        %v2097 = vsub.f32 %v1073, %v1585
        %v2098 = vsub.f32 %v1074, %v1586
        %v2099 = vsub.f32 %v1075, %v1587
        %v2100 = vsub.f32 %v1076, %v1588
        %v2101 = vsub.f32 %v1077, %v1589
        %v2102 = vsub.f32 %v1078, %v1590
        %v2103 = vsub.f32 %v1079, %v1591
        %v2104 = vsub.f32 %v1080, %v1592
        %v2105 = vsub.f32 %v1081, %v1593
        %v2106 = vsub.f32 %v1082, %v1594
        %v2107 = vsub.f32 %v1083, %v1595
        %v2108 = vsub.f32 %v1084, %v1596
        %v2109 = vsub.f32 %v1085, %v1597
        %v2110 = vsub.f32 %v1086, %v1598
        %v2111 = vsub.f32 %v1087, %v1599
        %v2112 = vsub.f32 %v1088, %v1600
        %v2113 = vsub.f32 %v1089, %v1601
        %v2114 = vsub.f32 %v1090, %v1602
        %v2115 = vsub.f32 %v1091, %v1603
        %v2116 = vsub.f32 %v1092, %v1604
        %v2117 = vsub.f32 %v1093, %v1605
        %v2118 = vsub.f32 %v1094, %v1606
        %v2119 = vsub.f32 %v1095, %v1607
        %v2120 = vsub.f32 %v1096, %v1608
        %v2121 = vsub.f32 %v1097, %v1609
        %v2122 = vsub.f32 %v1098, %v1610
        %v2123 = vsub.f32 %v1099, %v1611
        %v2124 = vsub.f32 %v1100, %v1612
        %v2125 = vsub.f32 %v1101, %v1613
        %v2126 = vsub.f32 %v1102, %v1614
        %v2127 = vsub.f32 %v1103, %v1615
        %v2128 = vsub.f32 %v1104, %v1616
        %v2129 = vsub.f32 %v1105, %v1617
        %v2130 = vsub.f32 %v1106, %v1618
        %v2131 = vsub.f32 %v1107, %v1619
        %v2132 = vsub.f32 %v1108, %v1620
        %v2133 = vsub.f32 %v1109, %v1621
        %v2134 = vsub.f32 %v1110, %v1622
        %v2135 = vsub.f32 %v1111, %v1623
        %v2136 = vsub.f32 %v1112, %v1624
        %v2137 = vsub.f32 %v1113, %v1625
        %v2138 = vsub.f32 %v1114, %v1626
        %v2139 = vsub.f32 %v1115, %v1627
        %v2140 = vsub.f32 %v1116, %v1628
        %v2141 = vsub.f32 %v1117, %v1629
        %v2142 = vsub.f32 %v1118, %v1630
        %v2143 = vsub.f32 %v1119, %v1631
        %v2144 = vsub.f32 %v1120, %v1632
        %v2145 = vsub.f32 %v1121, %v1633
        %v2146 = vsub.f32 %v1122, %v1634
        %v2147 = vsub.f32 %v1123, %v1635
        %v2148 = vsub.f32 %v1124, %v1636
        %v2149 = vsub.f32 %v1125, %v1637
        %v2150 = vsub.f32 %v1126, %v1638
        %v2151 = vsub.f32 %v1127, %v1639
        %v2152 = vsub.f32 %v1128, %v1640
        %v2153 = vsub.f32 %v1129, %v1641
        %v2154 = vsub.f32 %v1130, %v1642
        %v2155 = vsub.f32 %v1131, %v1643
        %v2156 = vsub.f32 %v1132, %v1644
        %v2157 = vsub.f32 %v1133, %v1645
        %v2158 = vsub.f32 %v1134, %v1646
        %v2159 = vsub.f32 %v1135, %v1647
        %v2160 = vsub.f32 %v1136, %v1648
        %v2161 = vsub.f32 %v1137, %v1649
        %v2162 = vsub.f32 %v1138, %v1650
        %v2163 = vsub.f32 %v1139, %v1651
        %v2164 = vsub.f32 %v1140, %v1652
        %v2165 = vsub.f32 %v1141, %v1653
        %v2166 = vsub.f32 %v1142, %v1654
        %v2167 = vsub.f32 %v1143, %v1655
        %v2168 = vsub.f32 %v1144, %v1656
        %v2169 = vsub.f32 %v1145, %v1657
        %v2170 = vsub.f32 %v1146, %v1658
        %v2171 = vsub.f32 %v1147, %v1659
        %v2172 = vsub.f32 %v1148, %v1660
        %v2173 = vsub.f32 %v1149, %v1661
        %v2174 = vsub.f32 %v1150, %v1662
        %v2175 = vsub.f32 %v1151, %v1663
        %v2176 = vsub.f32 %v1152, %v1664
        %v2177 = vsub.f32 %v1153, %v1665
        %v2178 = vsub.f32 %v1154, %v1666
        %v2179 = vsub.f32 %v1155, %v1667
        %v2180 = vsub.f32 %v1156, %v1668
        %v2181 = vsub.f32 %v1157, %v1669
        %v2182 = vsub.f32 %v1158, %v1670
        %v2183 = vsub.f32 %v1159, %v1671
        %v2184 = vsub.f32 %v1160, %v1672
        %v2185 = vsub.f32 %v1161, %v1673
        %v2186 = vsub.f32 %v1162, %v1674
        %v2187 = vsub.f32 %v1163, %v1675
        %v2188 = vsub.f32 %v1164, %v1676
        %v2189 = vsub.f32 %v1165, %v1677
        %v2190 = vsub.f32 %v1166, %v1678
        %v2191 = vsub.f32 %v1167, %v1679
        %v2192 = vsub.f32 %v1168, %v1680
        %v2193 = vsub.f32 %v1169, %v1681
        %v2194 = vsub.f32 %v1170, %v1682
        %v2195 = vsub.f32 %v1171, %v1683
        %v2196 = vsub.f32 %v1172, %v1684
        %v2197 = vsub.f32 %v1173, %v1685
        %v2198 = vsub.f32 %v1174, %v1686
        %v2199 = vsub.f32 %v1175, %v1687
        %v2200 = vsub.f32 %v1176, %v1688
        %v2201 = vsub.f32 %v1177, %v1689
        %v2202 = vsub.f32 %v1178, %v1690
        %v2203 = vsub.f32 %v1179, %v1691
        %v2204 = vsub.f32 %v1180, %v1692
        %v2205 = vsub.f32 %v1181, %v1693
        %v2206 = vsub.f32 %v1182, %v1694
        %v2207 = vsub.f32 %v1183, %v1695
        %v2208 = vsub.f32 %v1184, %v1696
        %v2209 = vsub.f32 %v1185, %v1697
        %v2210 = vsub.f32 %v1186, %v1698
        %v2211 = vsub.f32 %v1187, %v1699
        %v2212 = vsub.f32 %v1188, %v1700
        %v2213 = vsub.f32 %v1189, %v1701
        %v2214 = vsub.f32 %v1190, %v1702
        %v2215 = vsub.f32 %v1191, %v1703
        %v2216 = vsub.f32 %v1192, %v1704
        %v2217 = vsub.f32 %v1193, %v1705
        %v2218 = vsub.f32 %v1194, %v1706
        %v2219 = vsub.f32 %v1195, %v1707
        %v2220 = vsub.f32 %v1196, %v1708
        %v2221 = vsub.f32 %v1197, %v1709
        %v2222 = vsub.f32 %v1198, %v1710
        %v2223 = vsub.f32 %v1199, %v1711
        %v2224 = vsub.f32 %v1200, %v1712
        %v2225 = vsub.f32 %v1201, %v1713
        %v2226 = vsub.f32 %v1202, %v1714
        %v2227 = vsub.f32 %v1203, %v1715
        %v2228 = vsub.f32 %v1204, %v1716
        %v2229 = vsub.f32 %v1205, %v1717
        %v2230 = vsub.f32 %v1206, %v1718
        %v2231 = vsub.f32 %v1207, %v1719
        %v2232 = vsub.f32 %v1208, %v1720
        %v2233 = vsub.f32 %v1209, %v1721
        %v2234 = vsub.f32 %v1210, %v1722
        %v2235 = vsub.f32 %v1211, %v1723
        %v2236 = vsub.f32 %v1212, %v1724
        %v2237 = vsub.f32 %v1213, %v1725
        %v2238 = vsub.f32 %v1214, %v1726
        %v2239 = vsub.f32 %v1215, %v1727
        %v2240 = vsub.f32 %v1216, %v1728
        %v2241 = vsub.f32 %v1217, %v1729
        %v2242 = vsub.f32 %v1218, %v1730
        %v2243 = vsub.f32 %v1219, %v1731
        %v2244 = vsub.f32 %v1220, %v1732
        %v2245 = vsub.f32 %v1221, %v1733
        %v2246 = vsub.f32 %v1222, %v1734
        %v2247 = vsub.f32 %v1223, %v1735
        %v2248 = vsub.f32 %v1224, %v1736
        %v2249 = vsub.f32 %v1225, %v1737
        %v2250 = vsub.f32 %v1226, %v1738
        %v2251 = vsub.f32 %v1227, %v1739
        %v2252 = vsub.f32 %v1228, %v1740
        %v2253 = vsub.f32 %v1229, %v1741
        %v2254 = vsub.f32 %v1230, %v1742
        %v2255 = vsub.f32 %v1231, %v1743
        %v2256 = vsub.f32 %v1232, %v1744
        %v2257 = vsub.f32 %v1233, %v1745
        %v2258 = vsub.f32 %v1234, %v1746
        %v2259 = vsub.f32 %v1235, %v1747
        %v2260 = vsub.f32 %v1236, %v1748
        %v2261 = vsub.f32 %v1237, %v1749
        %v2262 = vsub.f32 %v1238, %v1750
        %v2263 = vsub.f32 %v1239, %v1751
        %v2264 = vsub.f32 %v1240, %v1752
        %v2265 = vsub.f32 %v1241, %v1753
        %v2266 = vsub.f32 %v1242, %v1754
        %v2267 = vsub.f32 %v1243, %v1755
        %v2268 = vsub.f32 %v1244, %v1756
        %v2269 = vsub.f32 %v1245, %v1757
        %v2270 = vsub.f32 %v1246, %v1758
        %v2271 = vsub.f32 %v1247, %v1759
        %v2272 = vsub.f32 %v1248, %v1760
        %v2273 = vsub.f32 %v1249, %v1761
        %v2274 = vsub.f32 %v1250, %v1762
        %v2275 = vsub.f32 %v1251, %v1763
        %v2276 = vmul.f32 %v1764, %v1764
        %v2277 = vmul.f32 %v1765, %v1765
        %v2278 = vmul.f32 %v1766, %v1766
        %v2279 = vmul.f32 %v1767, %v1767
        %v2280 = vmul.f32 %v1768, %v1768
        %v2281 = vmul.f32 %v1769, %v1769
        %v2282 = vmul.f32 %v1770, %v1770
        %v2283 = vmul.f32 %v1771, %v1771
        %v2284 = vmul.f32 %v1772, %v1772
        %v2285 = vmul.f32 %v1773, %v1773
        %v2286 = vmul.f32 %v1774, %v1774
        %v2287 = vmul.f32 %v1775, %v1775
        %v2288 = vmul.f32 %v1776, %v1776
        %v2289 = vmul.f32 %v1777, %v1777
        %v2290 = vmul.f32 %v1778, %v1778
        %v2291 = vmul.f32 %v1779, %v1779
        %v2292 = vmul.f32 %v1780, %v1780
        %v2293 = vmul.f32 %v1781, %v1781
        %v2294 = vmul.f32 %v1782, %v1782
        %v2295 = vmul.f32 %v1783, %v1783
        %v2296 = vmul.f32 %v1784, %v1784
        %v2297 = vmul.f32 %v1785, %v1785
        %v2298 = vmul.f32 %v1786, %v1786
        %v2299 = vmul.f32 %v1787, %v1787
        %v2300 = vmul.f32 %v1788, %v1788
        %v2301 = vmul.f32 %v1789, %v1789
        %v2302 = vmul.f32 %v1790, %v1790
        %v2303 = vmul.f32 %v1791, %v1791
        %v2304 = vmul.f32 %v1792, %v1792
        %v2305 = vmul.f32 %v1793, %v1793
        %v2306 = vmul.f32 %v1794, %v1794
        %v2307 = vmul.f32 %v1795, %v1795
        %v2308 = vmul.f32 %v1796, %v1796
        %v2309 = vmul.f32 %v1797, %v1797
        %v2310 = vmul.f32 %v1798, %v1798
        %v2311 = vmul.f32 %v1799, %v1799
        %v2312 = vmul.f32 %v1800, %v1800
        %v2313 = vmul.f32 %v1801, %v1801
        %v2314 = vmul.f32 %v1802, %v1802
        %v2315 = vmul.f32 %v1803, %v1803
        %v2316 = vmul.f32 %v1804, %v1804
        %v2317 = vmul.f32 %v1805, %v1805
        %v2318 = vmul.f32 %v1806, %v1806
        %v2319 = vmul.f32 %v1807, %v1807
        %v2320 = vmul.f32 %v1808, %v1808
        %v2321 = vmul.f32 %v1809, %v1809
        %v2322 = vmul.f32 %v1810, %v1810
        %v2323 = vmul.f32 %v1811, %v1811
        %v2324 = vmul.f32 %v1812, %v1812
        %v2325 = vmul.f32 %v1813, %v1813
        %v2326 = vmul.f32 %v1814, %v1814
        %v2327 = vmul.f32 %v1815, %v1815
        %v2328 = vmul.f32 %v1816, %v1816
        %v2329 = vmul.f32 %v1817, %v1817
        %v2330 = vmul.f32 %v1818, %v1818
        %v2331 = vmul.f32 %v1819, %v1819
        %v2332 = vmul.f32 %v1820, %v1820
        %v2333 = vmul.f32 %v1821, %v1821
        %v2334 = vmul.f32 %v1822, %v1822
        %v2335 = vmul.f32 %v1823, %v1823
        %v2336 = vmul.f32 %v1824, %v1824
        %v2337 = vmul.f32 %v1825, %v1825
        %v2338 = vmul.f32 %v1826, %v1826
        %v2339 = vmul.f32 %v1827, %v1827
        %v2340 = vmul.f32 %v1828, %v1828
        %v2341 = vmul.f32 %v1829, %v1829
        %v2342 = vmul.f32 %v1830, %v1830
        %v2343 = vmul.f32 %v1831, %v1831
        %v2344 = vmul.f32 %v1832, %v1832
        %v2345 = vmul.f32 %v1833, %v1833
        %v2346 = vmul.f32 %v1834, %v1834
        %v2347 = vmul.f32 %v1835, %v1835
        %v2348 = vmul.f32 %v1836, %v1836
        %v2349 = vmul.f32 %v1837, %v1837
        %v2350 = vmul.f32 %v1838, %v1838
        %v2351 = vmul.f32 %v1839, %v1839
        %v2352 = vmul.f32 %v1840, %v1840
        %v2353 = vmul.f32 %v1841, %v1841
        %v2354 = vmul.f32 %v1842, %v1842
        %v2355 = vmul.f32 %v1843, %v1843
        %v2356 = vmul.f32 %v1844, %v1844
        %v2357 = vmul.f32 %v1845, %v1845
        %v2358 = vmul.f32 %v1846, %v1846
        %v2359 = vmul.f32 %v1847, %v1847
        %v2360 = vmul.f32 %v1848, %v1848
        %v2361 = vmul.f32 %v1849, %v1849
        %v2362 = vmul.f32 %v1850, %v1850
        %v2363 = vmul.f32 %v1851, %v1851
        %v2364 = vmul.f32 %v1852, %v1852
        %v2365 = vmul.f32 %v1853, %v1853
        %v2366 = vmul.f32 %v1854, %v1854
        %v2367 = vmul.f32 %v1855, %v1855
        %v2368 = vmul.f32 %v1856, %v1856
        %v2369 = vmul.f32 %v1857, %v1857
        %v2370 = vmul.f32 %v1858, %v1858
        %v2371 = vmul.f32 %v1859, %v1859
        %v2372 = vmul.f32 %v1860, %v1860
        %v2373 = vmul.f32 %v1861, %v1861
        %v2374 = vmul.f32 %v1862, %v1862
        %v2375 = vmul.f32 %v1863, %v1863
        %v2376 = vmul.f32 %v1864, %v1864
        %v2377 = vmul.f32 %v1865, %v1865
        %v2378 = vmul.f32 %v1866, %v1866
        %v2379 = vmul.f32 %v1867, %v1867
        %v2380 = vmul.f32 %v1868, %v1868
        %v2381 = vmul.f32 %v1869, %v1869
        %v2382 = vmul.f32 %v1870, %v1870
        %v2383 = vmul.f32 %v1871, %v1871
        %v2384 = vmul.f32 %v1872, %v1872
        %v2385 = vmul.f32 %v1873, %v1873
        %v2386 = vmul.f32 %v1874, %v1874
        %v2387 = vmul.f32 %v1875, %v1875
        %v2388 = vmul.f32 %v1876, %v1876
        %v2389 = vmul.f32 %v1877, %v1877
        %v2390 = vmul.f32 %v1878, %v1878
        %v2391 = vmul.f32 %v1879, %v1879
        %v2392 = vmul.f32 %v1880, %v1880
        %v2393 = vmul.f32 %v1881, %v1881
        %v2394 = vmul.f32 %v1882, %v1882
        %v2395 = vmul.f32 %v1883, %v1883
        %v2396 = vmul.f32 %v1884, %v1884
        %v2397 = vmul.f32 %v1885, %v1885
        %v2398 = vmul.f32 %v1886, %v1886
        %v2399 = vmul.f32 %v1887, %v1887
        %v2400 = vmul.f32 %v1888, %v1888
        %v2401 = vmul.f32 %v1889, %v1889
        %v2402 = vmul.f32 %v1890, %v1890
        %v2403 = vmul.f32 %v1891, %v1891
        %v2404 = vmul.f32 %v1892, %v1892
        %v2405 = vmul.f32 %v1893, %v1893
        %v2406 = vmul.f32 %v1894, %v1894
        %v2407 = vmul.f32 %v1895, %v1895
        %v2408 = vmul.f32 %v1896, %v1896
        %v2409 = vmul.f32 %v1897, %v1897
        %v2410 = vmul.f32 %v1898, %v1898
        %v2411 = vmul.f32 %v1899, %v1899
        %v2412 = vmul.f32 %v1900, %v1900
        %v2413 = vmul.f32 %v1901, %v1901
        %v2414 = vmul.f32 %v1902, %v1902
        %v2415 = vmul.f32 %v1903, %v1903
        %v2416 = vmul.f32 %v1904, %v1904
        %v2417 = vmul.f32 %v1905, %v1905
        %v2418 = vmul.f32 %v1906, %v1906
        %v2419 = vmul.f32 %v1907, %v1907
        %v2420 = vmul.f32 %v1908, %v1908
        %v2421 = vmul.f32 %v1909, %v1909
        %v2422 = vmul.f32 %v1910, %v1910
        %v2423 = vmul.f32 %v1911, %v1911
        %v2424 = vmul.f32 %v1912, %v1912
        %v2425 = vmul.f32 %v1913, %v1913
        %v2426 = vmul.f32 %v1914, %v1914
        %v2427 = vmul.f32 %v1915, %v1915
        %v2428 = vmul.f32 %v1916, %v1916
        %v2429 = vmul.f32 %v1917, %v1917
        %v2430 = vmul.f32 %v1918, %v1918
        %v2431 = vmul.f32 %v1919, %v1919
        %v2432 = vmul.f32 %v1920, %v1920
        %v2433 = vmul.f32 %v1921, %v1921
        %v2434 = vmul.f32 %v1922, %v1922
        %v2435 = vmul.f32 %v1923, %v1923
        %v2436 = vmul.f32 %v1924, %v1924
        %v2437 = vmul.f32 %v1925, %v1925
        %v2438 = vmul.f32 %v1926, %v1926
        %v2439 = vmul.f32 %v1927, %v1927
        %v2440 = vmul.f32 %v1928, %v1928
        %v2441 = vmul.f32 %v1929, %v1929
        %v2442 = vmul.f32 %v1930, %v1930
        %v2443 = vmul.f32 %v1931, %v1931
        %v2444 = vmul.f32 %v1932, %v1932
        %v2445 = vmul.f32 %v1933, %v1933
        %v2446 = vmul.f32 %v1934, %v1934
        %v2447 = vmul.f32 %v1935, %v1935
        %v2448 = vmul.f32 %v1936, %v1936
        %v2449 = vmul.f32 %v1937, %v1937
        %v2450 = vmul.f32 %v1938, %v1938
        %v2451 = vmul.f32 %v1939, %v1939
        %v2452 = vmul.f32 %v1940, %v1940
        %v2453 = vmul.f32 %v1941, %v1941
        %v2454 = vmul.f32 %v1942, %v1942
        %v2455 = vmul.f32 %v1943, %v1943
        %v2456 = vmul.f32 %v1944, %v1944
        %v2457 = vmul.f32 %v1945, %v1945
        %v2458 = vmul.f32 %v1946, %v1946
        %v2459 = vmul.f32 %v1947, %v1947
        %v2460 = vmul.f32 %v1948, %v1948
        %v2461 = vmul.f32 %v1949, %v1949
        %v2462 = vmul.f32 %v1950, %v1950
        %v2463 = vmul.f32 %v1951, %v1951
        %v2464 = vmul.f32 %v1952, %v1952
        %v2465 = vmul.f32 %v1953, %v1953
        %v2466 = vmul.f32 %v1954, %v1954
        %v2467 = vmul.f32 %v1955, %v1955
        %v2468 = vmul.f32 %v1956, %v1956
        %v2469 = vmul.f32 %v1957, %v1957
        %v2470 = vmul.f32 %v1958, %v1958
        %v2471 = vmul.f32 %v1959, %v1959
        %v2472 = vmul.f32 %v1960, %v1960
        %v2473 = vmul.f32 %v1961, %v1961
        %v2474 = vmul.f32 %v1962, %v1962
        %v2475 = vmul.f32 %v1963, %v1963
        %v2476 = vmul.f32 %v1964, %v1964
        %v2477 = vmul.f32 %v1965, %v1965
        %v2478 = vmul.f32 %v1966, %v1966
        %v2479 = vmul.f32 %v1967, %v1967
        %v2480 = vmul.f32 %v1968, %v1968
        %v2481 = vmul.f32 %v1969, %v1969
        %v2482 = vmul.f32 %v1970, %v1970
        %v2483 = vmul.f32 %v1971, %v1971
        %v2484 = vmul.f32 %v1972, %v1972
        %v2485 = vmul.f32 %v1973, %v1973
        %v2486 = vmul.f32 %v1974, %v1974
        %v2487 = vmul.f32 %v1975, %v1975
        %v2488 = vmul.f32 %v1976, %v1976
        %v2489 = vmul.f32 %v1977, %v1977
        %v2490 = vmul.f32 %v1978, %v1978
        %v2491 = vmul.f32 %v1979, %v1979
        %v2492 = vmul.f32 %v1980, %v1980
        %v2493 = vmul.f32 %v1981, %v1981
        %v2494 = vmul.f32 %v1982, %v1982
        %v2495 = vmul.f32 %v1983, %v1983
        %v2496 = vmul.f32 %v1984, %v1984
        %v2497 = vmul.f32 %v1985, %v1985
        %v2498 = vmul.f32 %v1986, %v1986
        %v2499 = vmul.f32 %v1987, %v1987
        %v2500 = vmul.f32 %v1988, %v1988
        %v2501 = vmul.f32 %v1989, %v1989
        %v2502 = vmul.f32 %v1990, %v1990
        %v2503 = vmul.f32 %v1991, %v1991
        %v2504 = vmul.f32 %v1992, %v1992
        %v2505 = vmul.f32 %v1993, %v1993
        %v2506 = vmul.f32 %v1994, %v1994
        %v2507 = vmul.f32 %v1995, %v1995
        %v2508 = vmul.f32 %v1996, %v1996
        %v2509 = vmul.f32 %v1997, %v1997
        %v2510 = vmul.f32 %v1998, %v1998
        %v2511 = vmul.f32 %v1999, %v1999
        %v2512 = vmul.f32 %v2000, %v2000
        %v2513 = vmul.f32 %v2001, %v2001
        %v2514 = vmul.f32 %v2002, %v2002
        %v2515 = vmul.f32 %v2003, %v2003
        %v2516 = vmul.f32 %v2004, %v2004
        %v2517 = vmul.f32 %v2005, %v2005
        %v2518 = vmul.f32 %v2006, %v2006
        %v2519 = vmul.f32 %v2007, %v2007
        %v2520 = vmul.f32 %v2008, %v2008
        %v2521 = vmul.f32 %v2009, %v2009
        %v2522 = vmul.f32 %v2010, %v2010
        %v2523 = vmul.f32 %v2011, %v2011
        %v2524 = vmul.f32 %v2012, %v2012
        %v2525 = vmul.f32 %v2013, %v2013
        %v2526 = vmul.f32 %v2014, %v2014
        %v2527 = vmul.f32 %v2015, %v2015
        %v2528 = vmul.f32 %v2016, %v2016
        %v2529 = vmul.f32 %v2017, %v2017
        %v2530 = vmul.f32 %v2018, %v2018
        %v2531 = vmul.f32 %v2019, %v2019
        %v2532 = vmul.f32 %v2020, %v2020
        %v2533 = vmul.f32 %v2021, %v2021
        %v2534 = vmul.f32 %v2022, %v2022
        %v2535 = vmul.f32 %v2023, %v2023
        %v2536 = vmul.f32 %v2024, %v2024
        %v2537 = vmul.f32 %v2025, %v2025
        %v2538 = vmul.f32 %v2026, %v2026
        %v2539 = vmul.f32 %v2027, %v2027
        %v2540 = vmul.f32 %v2028, %v2028
        %v2541 = vmul.f32 %v2029, %v2029
        %v2542 = vmul.f32 %v2030, %v2030
        %v2543 = vmul.f32 %v2031, %v2031
        %v2544 = vmul.f32 %v2032, %v2032
        %v2545 = vmul.f32 %v2033, %v2033
        %v2546 = vmul.f32 %v2034, %v2034
        %v2547 = vmul.f32 %v2035, %v2035
        %v2548 = vmul.f32 %v2036, %v2036
        %v2549 = vmul.f32 %v2037, %v2037
        %v2550 = vmul.f32 %v2038, %v2038
        %v2551 = vmul.f32 %v2039, %v2039
        %v2552 = vmul.f32 %v2040, %v2040
        %v2553 = vmul.f32 %v2041, %v2041
        %v2554 = vmul.f32 %v2042, %v2042
        %v2555 = vmul.f32 %v2043, %v2043
        %v2556 = vmul.f32 %v2044, %v2044
        %v2557 = vmul.f32 %v2045, %v2045
        %v2558 = vmul.f32 %v2046, %v2046
        %v2559 = vmul.f32 %v2047, %v2047
        %v2560 = vmul.f32 %v2048, %v2048
        %v2561 = vmul.f32 %v2049, %v2049
        %v2562 = vmul.f32 %v2050, %v2050
        %v2563 = vmul.f32 %v2051, %v2051
        %v2564 = vmul.f32 %v2052, %v2052
        %v2565 = vmul.f32 %v2053, %v2053
        %v2566 = vmul.f32 %v2054, %v2054
        %v2567 = vmul.f32 %v2055, %v2055
        %v2568 = vmul.f32 %v2056, %v2056
        %v2569 = vmul.f32 %v2057, %v2057
        %v2570 = vmul.f32 %v2058, %v2058
        %v2571 = vmul.f32 %v2059, %v2059
        %v2572 = vmul.f32 %v2060, %v2060
        %v2573 = vmul.f32 %v2061, %v2061
        %v2574 = vmul.f32 %v2062, %v2062
        %v2575 = vmul.f32 %v2063, %v2063
        %v2576 = vmul.f32 %v2064, %v2064
        %v2577 = vmul.f32 %v2065, %v2065
        %v2578 = vmul.f32 %v2066, %v2066
        %v2579 = vmul.f32 %v2067, %v2067
        %v2580 = vmul.f32 %v2068, %v2068
        %v2581 = vmul.f32 %v2069, %v2069
        %v2582 = vmul.f32 %v2070, %v2070
        %v2583 = vmul.f32 %v2071, %v2071
        %v2584 = vmul.f32 %v2072, %v2072
        %v2585 = vmul.f32 %v2073, %v2073
        %v2586 = vmul.f32 %v2074, %v2074
        %v2587 = vmul.f32 %v2075, %v2075
        %v2588 = vmul.f32 %v2076, %v2076
        %v2589 = vmul.f32 %v2077, %v2077
        %v2590 = vmul.f32 %v2078, %v2078
        %v2591 = vmul.f32 %v2079, %v2079
        %v2592 = vmul.f32 %v2080, %v2080
        %v2593 = vmul.f32 %v2081, %v2081
        %v2594 = vmul.f32 %v2082, %v2082
        %v2595 = vmul.f32 %v2083, %v2083
        %v2596 = vmul.f32 %v2084, %v2084
        %v2597 = vmul.f32 %v2085, %v2085
        %v2598 = vmul.f32 %v2086, %v2086
        %v2599 = vmul.f32 %v2087, %v2087
        %v2600 = vmul.f32 %v2088, %v2088
        %v2601 = vmul.f32 %v2089, %v2089
        %v2602 = vmul.f32 %v2090, %v2090
        %v2603 = vmul.f32 %v2091, %v2091
        %v2604 = vmul.f32 %v2092, %v2092
        %v2605 = vmul.f32 %v2093, %v2093
        %v2606 = vmul.f32 %v2094, %v2094
        %v2607 = vmul.f32 %v2095, %v2095
        %v2608 = vmul.f32 %v2096, %v2096
        %v2609 = vmul.f32 %v2097, %v2097
        %v2610 = vmul.f32 %v2098, %v2098
        %v2611 = vmul.f32 %v2099, %v2099
        %v2612 = vmul.f32 %v2100, %v2100
        %v2613 = vmul.f32 %v2101, %v2101
        %v2614 = vmul.f32 %v2102, %v2102
        %v2615 = vmul.f32 %v2103, %v2103
        %v2616 = vmul.f32 %v2104, %v2104
        %v2617 = vmul.f32 %v2105, %v2105
        %v2618 = vmul.f32 %v2106, %v2106
        %v2619 = vmul.f32 %v2107, %v2107
        %v2620 = vmul.f32 %v2108, %v2108
        %v2621 = vmul.f32 %v2109, %v2109
        %v2622 = vmul.f32 %v2110, %v2110
        %v2623 = vmul.f32 %v2111, %v2111
        %v2624 = vmul.f32 %v2112, %v2112
        %v2625 = vmul.f32 %v2113, %v2113
        %v2626 = vmul.f32 %v2114, %v2114
        %v2627 = vmul.f32 %v2115, %v2115
        %v2628 = vmul.f32 %v2116, %v2116
        %v2629 = vmul.f32 %v2117, %v2117
        %v2630 = vmul.f32 %v2118, %v2118
        %v2631 = vmul.f32 %v2119, %v2119
        %v2632 = vmul.f32 %v2120, %v2120
        %v2633 = vmul.f32 %v2121, %v2121
        %v2634 = vmul.f32 %v2122, %v2122
        %v2635 = vmul.f32 %v2123, %v2123
        %v2636 = vmul.f32 %v2124, %v2124
        %v2637 = vmul.f32 %v2125, %v2125
        %v2638 = vmul.f32 %v2126, %v2126
        %v2639 = vmul.f32 %v2127, %v2127
        %v2640 = vmul.f32 %v2128, %v2128
        %v2641 = vmul.f32 %v2129, %v2129
        %v2642 = vmul.f32 %v2130, %v2130
        %v2643 = vmul.f32 %v2131, %v2131
        %v2644 = vmul.f32 %v2132, %v2132
        %v2645 = vmul.f32 %v2133, %v2133
        %v2646 = vmul.f32 %v2134, %v2134
        %v2647 = vmul.f32 %v2135, %v2135
        %v2648 = vmul.f32 %v2136, %v2136
        %v2649 = vmul.f32 %v2137, %v2137
        %v2650 = vmul.f32 %v2138, %v2138
        %v2651 = vmul.f32 %v2139, %v2139
        %v2652 = vmul.f32 %v2140, %v2140
        %v2653 = vmul.f32 %v2141, %v2141
        %v2654 = vmul.f32 %v2142, %v2142
        %v2655 = vmul.f32 %v2143, %v2143
        %v2656 = vmul.f32 %v2144, %v2144
        %v2657 = vmul.f32 %v2145, %v2145
        %v2658 = vmul.f32 %v2146, %v2146
        %v2659 = vmul.f32 %v2147, %v2147
        %v2660 = vmul.f32 %v2148, %v2148
        %v2661 = vmul.f32 %v2149, %v2149
        %v2662 = vmul.f32 %v2150, %v2150
        %v2663 = vmul.f32 %v2151, %v2151
        %v2664 = vmul.f32 %v2152, %v2152
        %v2665 = vmul.f32 %v2153, %v2153
        %v2666 = vmul.f32 %v2154, %v2154
        %v2667 = vmul.f32 %v2155, %v2155
        %v2668 = vmul.f32 %v2156, %v2156
        %v2669 = vmul.f32 %v2157, %v2157
        %v2670 = vmul.f32 %v2158, %v2158
        %v2671 = vmul.f32 %v2159, %v2159
        %v2672 = vmul.f32 %v2160, %v2160
        %v2673 = vmul.f32 %v2161, %v2161
        %v2674 = vmul.f32 %v2162, %v2162
        %v2675 = vmul.f32 %v2163, %v2163
        %v2676 = vmul.f32 %v2164, %v2164
        %v2677 = vmul.f32 %v2165, %v2165
        %v2678 = vmul.f32 %v2166, %v2166
        %v2679 = vmul.f32 %v2167, %v2167
        %v2680 = vmul.f32 %v2168, %v2168
        %v2681 = vmul.f32 %v2169, %v2169
        %v2682 = vmul.f32 %v2170, %v2170
        %v2683 = vmul.f32 %v2171, %v2171
        %v2684 = vmul.f32 %v2172, %v2172
        %v2685 = vmul.f32 %v2173, %v2173
        %v2686 = vmul.f32 %v2174, %v2174
        %v2687 = vmul.f32 %v2175, %v2175
        %v2688 = vmul.f32 %v2176, %v2176
        %v2689 = vmul.f32 %v2177, %v2177
        %v2690 = vmul.f32 %v2178, %v2178
        %v2691 = vmul.f32 %v2179, %v2179
        %v2692 = vmul.f32 %v2180, %v2180
        %v2693 = vmul.f32 %v2181, %v2181
        %v2694 = vmul.f32 %v2182, %v2182
        %v2695 = vmul.f32 %v2183, %v2183
        %v2696 = vmul.f32 %v2184, %v2184
        %v2697 = vmul.f32 %v2185, %v2185
        %v2698 = vmul.f32 %v2186, %v2186
        %v2699 = vmul.f32 %v2187, %v2187
        %v2700 = vmul.f32 %v2188, %v2188
        %v2701 = vmul.f32 %v2189, %v2189
        %v2702 = vmul.f32 %v2190, %v2190
        %v2703 = vmul.f32 %v2191, %v2191
        %v2704 = vmul.f32 %v2192, %v2192
        %v2705 = vmul.f32 %v2193, %v2193
        %v2706 = vmul.f32 %v2194, %v2194
        %v2707 = vmul.f32 %v2195, %v2195
        %v2708 = vmul.f32 %v2196, %v2196
        %v2709 = vmul.f32 %v2197, %v2197
        %v2710 = vmul.f32 %v2198, %v2198
        %v2711 = vmul.f32 %v2199, %v2199
        %v2712 = vmul.f32 %v2200, %v2200
        %v2713 = vmul.f32 %v2201, %v2201
        %v2714 = vmul.f32 %v2202, %v2202
        %v2715 = vmul.f32 %v2203, %v2203
        %v2716 = vmul.f32 %v2204, %v2204
        %v2717 = vmul.f32 %v2205, %v2205
        %v2718 = vmul.f32 %v2206, %v2206
        %v2719 = vmul.f32 %v2207, %v2207
        %v2720 = vmul.f32 %v2208, %v2208
        %v2721 = vmul.f32 %v2209, %v2209
        %v2722 = vmul.f32 %v2210, %v2210
        %v2723 = vmul.f32 %v2211, %v2211
        %v2724 = vmul.f32 %v2212, %v2212
        %v2725 = vmul.f32 %v2213, %v2213
        %v2726 = vmul.f32 %v2214, %v2214
        %v2727 = vmul.f32 %v2215, %v2215
        %v2728 = vmul.f32 %v2216, %v2216
        %v2729 = vmul.f32 %v2217, %v2217
        %v2730 = vmul.f32 %v2218, %v2218
        %v2731 = vmul.f32 %v2219, %v2219
        %v2732 = vmul.f32 %v2220, %v2220
        %v2733 = vmul.f32 %v2221, %v2221
        %v2734 = vmul.f32 %v2222, %v2222
        %v2735 = vmul.f32 %v2223, %v2223
        %v2736 = vmul.f32 %v2224, %v2224
        %v2737 = vmul.f32 %v2225, %v2225
        %v2738 = vmul.f32 %v2226, %v2226
        %v2739 = vmul.f32 %v2227, %v2227
        %v2740 = vmul.f32 %v2228, %v2228
        %v2741 = vmul.f32 %v2229, %v2229
        %v2742 = vmul.f32 %v2230, %v2230
        %v2743 = vmul.f32 %v2231, %v2231
        %v2744 = vmul.f32 %v2232, %v2232
        %v2745 = vmul.f32 %v2233, %v2233
        %v2746 = vmul.f32 %v2234, %v2234
        %v2747 = vmul.f32 %v2235, %v2235
        %v2748 = vmul.f32 %v2236, %v2236
        %v2749 = vmul.f32 %v2237, %v2237
        %v2750 = vmul.f32 %v2238, %v2238
        %v2751 = vmul.f32 %v2239, %v2239
        %v2752 = vmul.f32 %v2240, %v2240
        %v2753 = vmul.f32 %v2241, %v2241
        %v2754 = vmul.f32 %v2242, %v2242
        %v2755 = vmul.f32 %v2243, %v2243
        %v2756 = vmul.f32 %v2244, %v2244
        %v2757 = vmul.f32 %v2245, %v2245
        %v2758 = vmul.f32 %v2246, %v2246
        %v2759 = vmul.f32 %v2247, %v2247
        %v2760 = vmul.f32 %v2248, %v2248
        %v2761 = vmul.f32 %v2249, %v2249
        %v2762 = vmul.f32 %v2250, %v2250
        %v2763 = vmul.f32 %v2251, %v2251
        %v2764 = vmul.f32 %v2252, %v2252
        %v2765 = vmul.f32 %v2253, %v2253
        %v2766 = vmul.f32 %v2254, %v2254
        %v2767 = vmul.f32 %v2255, %v2255
        %v2768 = vmul.f32 %v2256, %v2256
        %v2769 = vmul.f32 %v2257, %v2257
        %v2770 = vmul.f32 %v2258, %v2258
        %v2771 = vmul.f32 %v2259, %v2259
        %v2772 = vmul.f32 %v2260, %v2260
        %v2773 = vmul.f32 %v2261, %v2261
        %v2774 = vmul.f32 %v2262, %v2262
        %v2775 = vmul.f32 %v2263, %v2263
        %v2776 = vmul.f32 %v2264, %v2264
        %v2777 = vmul.f32 %v2265, %v2265
        %v2778 = vmul.f32 %v2266, %v2266
        %v2779 = vmul.f32 %v2267, %v2267
        %v2780 = vmul.f32 %v2268, %v2268
        %v2781 = vmul.f32 %v2269, %v2269
        %v2782 = vmul.f32 %v2270, %v2270
        %v2783 = vmul.f32 %v2271, %v2271
        %v2784 = vmul.f32 %v2272, %v2272
        %v2785 = vmul.f32 %v2273, %v2273
        %v2786 = vmul.f32 %v2274, %v2274
        %v2787 = vmul.f32 %v2275, %v2275
        %s2788 = smul.u32 %s20, 512
        %s2789 = sadd.s32 %s2788, 512
        %p2790 = scmp.le.s32.totalorder %s2789, 520
        // Predicated region
        $region41: #{tpu_custom_call.1} parent=27 // pred_check
          %p2791 = pneg %p2790
        $region42: #{tpu_custom_call.1} parent=27 // pred_check_branch
          %2793 = sbr.rel (%p2791) target = $region44
        $region43: #{tpu_custom_call.1} parent=27 // pred_region
          %v2794 = vld [vmem:[#allocation2] sm:$0xff]
          %v2795 = vld [vmem:[#allocation2 + $0x8] sm:$0xff]
          %v2796 = vld [vmem:[#allocation2 + $0x10] sm:$0xff]
          %v2797 = vld [vmem:[#allocation2 + $0x18] sm:$0xff]
          %v2798 = vld [vmem:[#allocation2 + $0x20] sm:$0xff]
          %v2799 = vld [vmem:[#allocation2 + $0x28] sm:$0xff]
          %v2800 = vld [vmem:[#allocation2 + $0x30] sm:$0xff]
          %v2801 = vld [vmem:[#allocation2 + $0x38] sm:$0xff]
          %v2802 = vld [vmem:[#allocation2 + $0x40] sm:$0xff]
          %v2803 = vld [vmem:[#allocation2 + $0x48] sm:$0xff]
          %v2804 = vld [vmem:[#allocation2 + $0x50] sm:$0xff]
          %v2805 = vld [vmem:[#allocation2 + $0x58] sm:$0xff]
          %v2806 = vld [vmem:[#allocation2 + $0x60] sm:$0xff]
          %v2807 = vld [vmem:[#allocation2 + $0x68] sm:$0xff]
          %v2808 = vld [vmem:[#allocation2 + $0x70] sm:$0xff]
          %v2809 = vld [vmem:[#allocation2 + $0x78] sm:$0xff]
          %v2810 = vld [vmem:[#allocation2 + $0x80] sm:$0xff]
          %v2811 = vld [vmem:[#allocation2 + $0x88] sm:$0xff]
          %v2812 = vld [vmem:[#allocation2 + $0x90] sm:$0xff]
          %v2813 = vld [vmem:[#allocation2 + $0x98] sm:$0xff]
          %v2814 = vld [vmem:[#allocation2 + $0xa0] sm:$0xff]
          %v2815 = vld [vmem:[#allocation2 + $0xa8] sm:$0xff]
          %v2816 = vld [vmem:[#allocation2 + $0xb0] sm:$0xff]
          %v2817 = vld [vmem:[#allocation2 + $0xb8] sm:$0xff]
          %v2818 = vld [vmem:[#allocation2 + $0xc0] sm:$0xff]
          %v2819 = vld [vmem:[#allocation2 + $0xc8] sm:$0xff]
          %v2820 = vld [vmem:[#allocation2 + $0xd0] sm:$0xff]
          %v2821 = vld [vmem:[#allocation2 + $0xd8] sm:$0xff]
          %v2822 = vld [vmem:[#allocation2 + $0xe0] sm:$0xff]
          %v2823 = vld [vmem:[#allocation2 + $0xe8] sm:$0xff]
          %v2824 = vld [vmem:[#allocation2 + $0xf0] sm:$0xff]
          %v2825 = vld [vmem:[#allocation2 + $0xf8] sm:$0xff]
          %v2826 = vld [vmem:[#allocation2 + $0x100] sm:$0xff]
          %v2827 = vld [vmem:[#allocation2 + $0x108] sm:$0xff]
          %v2828 = vld [vmem:[#allocation2 + $0x110] sm:$0xff]
          %v2829 = vld [vmem:[#allocation2 + $0x118] sm:$0xff]
          %v2830 = vld [vmem:[#allocation2 + $0x120] sm:$0xff]
          %v2831 = vld [vmem:[#allocation2 + $0x128] sm:$0xff]
          %v2832 = vld [vmem:[#allocation2 + $0x130] sm:$0xff]
          %v2833 = vld [vmem:[#allocation2 + $0x138] sm:$0xff]
          %v2834 = vld [vmem:[#allocation2 + $0x140] sm:$0xff]
          %v2835 = vld [vmem:[#allocation2 + $0x148] sm:$0xff]
          %v2836 = vld [vmem:[#allocation2 + $0x150] sm:$0xff]
          %v2837 = vld [vmem:[#allocation2 + $0x158] sm:$0xff]
          %v2838 = vld [vmem:[#allocation2 + $0x160] sm:$0xff]
          %v2839 = vld [vmem:[#allocation2 + $0x168] sm:$0xff]
          %v2840 = vld [vmem:[#allocation2 + $0x170] sm:$0xff]
          %v2841 = vld [vmem:[#allocation2 + $0x178] sm:$0xff]
          %v2842 = vld [vmem:[#allocation2 + $0x180] sm:$0xff]
          %v2843 = vld [vmem:[#allocation2 + $0x188] sm:$0xff]
          %v2844 = vld [vmem:[#allocation2 + $0x190] sm:$0xff]
          %v2845 = vld [vmem:[#allocation2 + $0x198] sm:$0xff]
          %v2846 = vld [vmem:[#allocation2 + $0x1a0] sm:$0xff]
          %v2847 = vld [vmem:[#allocation2 + $0x1a8] sm:$0xff]
          %v2848 = vld [vmem:[#allocation2 + $0x1b0] sm:$0xff]
          %v2849 = vld [vmem:[#allocation2 + $0x1b8] sm:$0xff]
          %v2850 = vld [vmem:[#allocation2 + $0x1c0] sm:$0xff]
          %v2851 = vld [vmem:[#allocation2 + $0x1c8] sm:$0xff]
          %v2852 = vld [vmem:[#allocation2 + $0x1d0] sm:$0xff]
          %v2853 = vld [vmem:[#allocation2 + $0x1d8] sm:$0xff]
          %v2854 = vld [vmem:[#allocation2 + $0x1e0] sm:$0xff]
          %v2855 = vld [vmem:[#allocation2 + $0x1e8] sm:$0xff]
          %v2856 = vld [vmem:[#allocation2 + $0x1f0] sm:$0xff]
          %v2857 = vld [vmem:[#allocation2 + $0x1f8] sm:$0xff]
          %v2858 = vld [vmem:[#allocation2 + $0x200] sm:$0xff]
          %v2859 = vld [vmem:[#allocation2 + $0x208] sm:$0xff]
          %v2860 = vld [vmem:[#allocation2 + $0x210] sm:$0xff]
          %v2861 = vld [vmem:[#allocation2 + $0x218] sm:$0xff]
          %v2862 = vld [vmem:[#allocation2 + $0x220] sm:$0xff]
          %v2863 = vld [vmem:[#allocation2 + $0x228] sm:$0xff]
          %v2864 = vld [vmem:[#allocation2 + $0x230] sm:$0xff]
          %v2865 = vld [vmem:[#allocation2 + $0x238] sm:$0xff]
          %v2866 = vld [vmem:[#allocation2 + $0x240] sm:$0xff]
          %v2867 = vld [vmem:[#allocation2 + $0x248] sm:$0xff]
          %v2868 = vld [vmem:[#allocation2 + $0x250] sm:$0xff]
          %v2869 = vld [vmem:[#allocation2 + $0x258] sm:$0xff]
          %v2870 = vld [vmem:[#allocation2 + $0x260] sm:$0xff]
          %v2871 = vld [vmem:[#allocation2 + $0x268] sm:$0xff]
          %v2872 = vld [vmem:[#allocation2 + $0x270] sm:$0xff]
          %v2873 = vld [vmem:[#allocation2 + $0x278] sm:$0xff]
          %v2874 = vld [vmem:[#allocation2 + $0x280] sm:$0xff]
          %v2875 = vld [vmem:[#allocation2 + $0x288] sm:$0xff]
          %v2876 = vld [vmem:[#allocation2 + $0x290] sm:$0xff]
          %v2877 = vld [vmem:[#allocation2 + $0x298] sm:$0xff]
          %v2878 = vld [vmem:[#allocation2 + $0x2a0] sm:$0xff]
          %v2879 = vld [vmem:[#allocation2 + $0x2a8] sm:$0xff]
          %v2880 = vld [vmem:[#allocation2 + $0x2b0] sm:$0xff]
          %v2881 = vld [vmem:[#allocation2 + $0x2b8] sm:$0xff]
          %v2882 = vld [vmem:[#allocation2 + $0x2c0] sm:$0xff]
          %v2883 = vld [vmem:[#allocation2 + $0x2c8] sm:$0xff]
          %v2884 = vld [vmem:[#allocation2 + $0x2d0] sm:$0xff]
          %v2885 = vld [vmem:[#allocation2 + $0x2d8] sm:$0xff]
          %v2886 = vld [vmem:[#allocation2 + $0x2e0] sm:$0xff]
          %v2887 = vld [vmem:[#allocation2 + $0x2e8] sm:$0xff]
          %v2888 = vld [vmem:[#allocation2 + $0x2f0] sm:$0xff]
          %v2889 = vld [vmem:[#allocation2 + $0x2f8] sm:$0xff]
          %v2890 = vld [vmem:[#allocation2 + $0x300] sm:$0xff]
          %v2891 = vld [vmem:[#allocation2 + $0x308] sm:$0xff]
          %v2892 = vld [vmem:[#allocation2 + $0x310] sm:$0xff]
          %v2893 = vld [vmem:[#allocation2 + $0x318] sm:$0xff]
          %v2894 = vld [vmem:[#allocation2 + $0x320] sm:$0xff]
          %v2895 = vld [vmem:[#allocation2 + $0x328] sm:$0xff]
          %v2896 = vld [vmem:[#allocation2 + $0x330] sm:$0xff]
          %v2897 = vld [vmem:[#allocation2 + $0x338] sm:$0xff]
          %v2898 = vld [vmem:[#allocation2 + $0x340] sm:$0xff]
          %v2899 = vld [vmem:[#allocation2 + $0x348] sm:$0xff]
          %v2900 = vld [vmem:[#allocation2 + $0x350] sm:$0xff]
          %v2901 = vld [vmem:[#allocation2 + $0x358] sm:$0xff]
          %v2902 = vld [vmem:[#allocation2 + $0x360] sm:$0xff]
          %v2903 = vld [vmem:[#allocation2 + $0x368] sm:$0xff]
          %v2904 = vld [vmem:[#allocation2 + $0x370] sm:$0xff]
          %v2905 = vld [vmem:[#allocation2 + $0x378] sm:$0xff]
          %v2906 = vld [vmem:[#allocation2 + $0x380] sm:$0xff]
          %v2907 = vld [vmem:[#allocation2 + $0x388] sm:$0xff]
          %v2908 = vld [vmem:[#allocation2 + $0x390] sm:$0xff]
          %v2909 = vld [vmem:[#allocation2 + $0x398] sm:$0xff]
          %v2910 = vld [vmem:[#allocation2 + $0x3a0] sm:$0xff]
          %v2911 = vld [vmem:[#allocation2 + $0x3a8] sm:$0xff]
          %v2912 = vld [vmem:[#allocation2 + $0x3b0] sm:$0xff]
          %v2913 = vld [vmem:[#allocation2 + $0x3b8] sm:$0xff]
          %v2914 = vld [vmem:[#allocation2 + $0x3c0] sm:$0xff]
          %v2915 = vld [vmem:[#allocation2 + $0x3c8] sm:$0xff]
          %v2916 = vld [vmem:[#allocation2 + $0x3d0] sm:$0xff]
          %v2917 = vld [vmem:[#allocation2 + $0x3d8] sm:$0xff]
          %v2918 = vld [vmem:[#allocation2 + $0x3e0] sm:$0xff]
          %v2919 = vld [vmem:[#allocation2 + $0x3e8] sm:$0xff]
          %v2920 = vld [vmem:[#allocation2 + $0x3f0] sm:$0xff]
          %v2921 = vld [vmem:[#allocation2 + $0x3f8] sm:$0xff]
          %v2922 = vld [vmem:[#allocation2 + $0x400] sm:$0xff]
          %v2923 = vld [vmem:[#allocation2 + $0x408] sm:$0xff]
          %v2924 = vld [vmem:[#allocation2 + $0x410] sm:$0xff]
          %v2925 = vld [vmem:[#allocation2 + $0x418] sm:$0xff]
          %v2926 = vld [vmem:[#allocation2 + $0x420] sm:$0xff]
          %v2927 = vld [vmem:[#allocation2 + $0x428] sm:$0xff]
          %v2928 = vld [vmem:[#allocation2 + $0x430] sm:$0xff]
          %v2929 = vld [vmem:[#allocation2 + $0x438] sm:$0xff]
          %v2930 = vld [vmem:[#allocation2 + $0x440] sm:$0xff]
          %v2931 = vld [vmem:[#allocation2 + $0x448] sm:$0xff]
          %v2932 = vld [vmem:[#allocation2 + $0x450] sm:$0xff]
          %v2933 = vld [vmem:[#allocation2 + $0x458] sm:$0xff]
          %v2934 = vld [vmem:[#allocation2 + $0x460] sm:$0xff]
          %v2935 = vld [vmem:[#allocation2 + $0x468] sm:$0xff]
          %v2936 = vld [vmem:[#allocation2 + $0x470] sm:$0xff]
          %v2937 = vld [vmem:[#allocation2 + $0x478] sm:$0xff]
          %v2938 = vld [vmem:[#allocation2 + $0x480] sm:$0xff]
          %v2939 = vld [vmem:[#allocation2 + $0x488] sm:$0xff]
          %v2940 = vld [vmem:[#allocation2 + $0x490] sm:$0xff]
          %v2941 = vld [vmem:[#allocation2 + $0x498] sm:$0xff]
          %v2942 = vld [vmem:[#allocation2 + $0x4a0] sm:$0xff]
          %v2943 = vld [vmem:[#allocation2 + $0x4a8] sm:$0xff]
          %v2944 = vld [vmem:[#allocation2 + $0x4b0] sm:$0xff]
          %v2945 = vld [vmem:[#allocation2 + $0x4b8] sm:$0xff]
          %v2946 = vld [vmem:[#allocation2 + $0x4c0] sm:$0xff]
          %v2947 = vld [vmem:[#allocation2 + $0x4c8] sm:$0xff]
          %v2948 = vld [vmem:[#allocation2 + $0x4d0] sm:$0xff]
          %v2949 = vld [vmem:[#allocation2 + $0x4d8] sm:$0xff]
          %v2950 = vld [vmem:[#allocation2 + $0x4e0] sm:$0xff]
          %v2951 = vld [vmem:[#allocation2 + $0x4e8] sm:$0xff]
          %v2952 = vld [vmem:[#allocation2 + $0x4f0] sm:$0xff]
          %v2953 = vld [vmem:[#allocation2 + $0x4f8] sm:$0xff]
          %v2954 = vld [vmem:[#allocation2 + $0x500] sm:$0xff]
          %v2955 = vld [vmem:[#allocation2 + $0x508] sm:$0xff]
          %v2956 = vld [vmem:[#allocation2 + $0x510] sm:$0xff]
          %v2957 = vld [vmem:[#allocation2 + $0x518] sm:$0xff]
          %v2958 = vld [vmem:[#allocation2 + $0x520] sm:$0xff]
          %v2959 = vld [vmem:[#allocation2 + $0x528] sm:$0xff]
          %v2960 = vld [vmem:[#allocation2 + $0x530] sm:$0xff]
          %v2961 = vld [vmem:[#allocation2 + $0x538] sm:$0xff]
          %v2962 = vld [vmem:[#allocation2 + $0x540] sm:$0xff]
          %v2963 = vld [vmem:[#allocation2 + $0x548] sm:$0xff]
          %v2964 = vld [vmem:[#allocation2 + $0x550] sm:$0xff]
          %v2965 = vld [vmem:[#allocation2 + $0x558] sm:$0xff]
          %v2966 = vld [vmem:[#allocation2 + $0x560] sm:$0xff]
          %v2967 = vld [vmem:[#allocation2 + $0x568] sm:$0xff]
          %v2968 = vld [vmem:[#allocation2 + $0x570] sm:$0xff]
          %v2969 = vld [vmem:[#allocation2 + $0x578] sm:$0xff]
          %v2970 = vld [vmem:[#allocation2 + $0x580] sm:$0xff]
          %v2971 = vld [vmem:[#allocation2 + $0x588] sm:$0xff]
          %v2972 = vld [vmem:[#allocation2 + $0x590] sm:$0xff]
          %v2973 = vld [vmem:[#allocation2 + $0x598] sm:$0xff]
          %v2974 = vld [vmem:[#allocation2 + $0x5a0] sm:$0xff]
          %v2975 = vld [vmem:[#allocation2 + $0x5a8] sm:$0xff]
          %v2976 = vld [vmem:[#allocation2 + $0x5b0] sm:$0xff]
          %v2977 = vld [vmem:[#allocation2 + $0x5b8] sm:$0xff]
          %v2978 = vld [vmem:[#allocation2 + $0x5c0] sm:$0xff]
          %v2979 = vld [vmem:[#allocation2 + $0x5c8] sm:$0xff]
          %v2980 = vld [vmem:[#allocation2 + $0x5d0] sm:$0xff]
          %v2981 = vld [vmem:[#allocation2 + $0x5d8] sm:$0xff]
          %v2982 = vld [vmem:[#allocation2 + $0x5e0] sm:$0xff]
          %v2983 = vld [vmem:[#allocation2 + $0x5e8] sm:$0xff]
          %v2984 = vld [vmem:[#allocation2 + $0x5f0] sm:$0xff]
          %v2985 = vld [vmem:[#allocation2 + $0x5f8] sm:$0xff]
          %v2986 = vld [vmem:[#allocation2 + $0x600] sm:$0xff]
          %v2987 = vld [vmem:[#allocation2 + $0x608] sm:$0xff]
          %v2988 = vld [vmem:[#allocation2 + $0x610] sm:$0xff]
          %v2989 = vld [vmem:[#allocation2 + $0x618] sm:$0xff]
          %v2990 = vld [vmem:[#allocation2 + $0x620] sm:$0xff]
          %v2991 = vld [vmem:[#allocation2 + $0x628] sm:$0xff]
          %v2992 = vld [vmem:[#allocation2 + $0x630] sm:$0xff]
          %v2993 = vld [vmem:[#allocation2 + $0x638] sm:$0xff]
          %v2994 = vld [vmem:[#allocation2 + $0x640] sm:$0xff]
          %v2995 = vld [vmem:[#allocation2 + $0x648] sm:$0xff]
          %v2996 = vld [vmem:[#allocation2 + $0x650] sm:$0xff]
          %v2997 = vld [vmem:[#allocation2 + $0x658] sm:$0xff]
          %v2998 = vld [vmem:[#allocation2 + $0x660] sm:$0xff]
          %v2999 = vld [vmem:[#allocation2 + $0x668] sm:$0xff]
          %v3000 = vld [vmem:[#allocation2 + $0x670] sm:$0xff]
          %v3001 = vld [vmem:[#allocation2 + $0x678] sm:$0xff]
          %v3002 = vld [vmem:[#allocation2 + $0x680] sm:$0xff]
          %v3003 = vld [vmem:[#allocation2 + $0x688] sm:$0xff]
          %v3004 = vld [vmem:[#allocation2 + $0x690] sm:$0xff]
          %v3005 = vld [vmem:[#allocation2 + $0x698] sm:$0xff]
          %v3006 = vld [vmem:[#allocation2 + $0x6a0] sm:$0xff]
          %v3007 = vld [vmem:[#allocation2 + $0x6a8] sm:$0xff]
          %v3008 = vld [vmem:[#allocation2 + $0x6b0] sm:$0xff]
          %v3009 = vld [vmem:[#allocation2 + $0x6b8] sm:$0xff]
          %v3010 = vld [vmem:[#allocation2 + $0x6c0] sm:$0xff]
          %v3011 = vld [vmem:[#allocation2 + $0x6c8] sm:$0xff]
          %v3012 = vld [vmem:[#allocation2 + $0x6d0] sm:$0xff]
          %v3013 = vld [vmem:[#allocation2 + $0x6d8] sm:$0xff]
          %v3014 = vld [vmem:[#allocation2 + $0x6e0] sm:$0xff]
          %v3015 = vld [vmem:[#allocation2 + $0x6e8] sm:$0xff]
          %v3016 = vld [vmem:[#allocation2 + $0x6f0] sm:$0xff]
          %v3017 = vld [vmem:[#allocation2 + $0x6f8] sm:$0xff]
          %v3018 = vld [vmem:[#allocation2 + $0x700] sm:$0xff]
          %v3019 = vld [vmem:[#allocation2 + $0x708] sm:$0xff]
          %v3020 = vld [vmem:[#allocation2 + $0x710] sm:$0xff]
          %v3021 = vld [vmem:[#allocation2 + $0x718] sm:$0xff]
          %v3022 = vld [vmem:[#allocation2 + $0x720] sm:$0xff]
          %v3023 = vld [vmem:[#allocation2 + $0x728] sm:$0xff]
          %v3024 = vld [vmem:[#allocation2 + $0x730] sm:$0xff]
          %v3025 = vld [vmem:[#allocation2 + $0x738] sm:$0xff]
          %v3026 = vld [vmem:[#allocation2 + $0x740] sm:$0xff]
          %v3027 = vld [vmem:[#allocation2 + $0x748] sm:$0xff]
          %v3028 = vld [vmem:[#allocation2 + $0x750] sm:$0xff]
          %v3029 = vld [vmem:[#allocation2 + $0x758] sm:$0xff]
          %v3030 = vld [vmem:[#allocation2 + $0x760] sm:$0xff]
          %v3031 = vld [vmem:[#allocation2 + $0x768] sm:$0xff]
          %v3032 = vld [vmem:[#allocation2 + $0x770] sm:$0xff]
          %v3033 = vld [vmem:[#allocation2 + $0x778] sm:$0xff]
          %v3034 = vld [vmem:[#allocation2 + $0x780] sm:$0xff]
          %v3035 = vld [vmem:[#allocation2 + $0x788] sm:$0xff]
          %v3036 = vld [vmem:[#allocation2 + $0x790] sm:$0xff]
          %v3037 = vld [vmem:[#allocation2 + $0x798] sm:$0xff]
          %v3038 = vld [vmem:[#allocation2 + $0x7a0] sm:$0xff]
          %v3039 = vld [vmem:[#allocation2 + $0x7a8] sm:$0xff]
          %v3040 = vld [vmem:[#allocation2 + $0x7b0] sm:$0xff]
          %v3041 = vld [vmem:[#allocation2 + $0x7b8] sm:$0xff]
          %v3042 = vld [vmem:[#allocation2 + $0x7c0] sm:$0xff]
          %v3043 = vld [vmem:[#allocation2 + $0x7c8] sm:$0xff]
          %v3044 = vld [vmem:[#allocation2 + $0x7d0] sm:$0xff]
          %v3045 = vld [vmem:[#allocation2 + $0x7d8] sm:$0xff]
          %v3046 = vld [vmem:[#allocation2 + $0x7e0] sm:$0xff]
          %v3047 = vld [vmem:[#allocation2 + $0x7e8] sm:$0xff]
          %v3048 = vld [vmem:[#allocation2 + $0x7f0] sm:$0xff]
          %v3049 = vld [vmem:[#allocation2 + $0x7f8] sm:$0xff]
          %v3050 = vld [vmem:[#allocation2 + $0x800] sm:$0xff]
          %v3051 = vld [vmem:[#allocation2 + $0x808] sm:$0xff]
          %v3052 = vld [vmem:[#allocation2 + $0x810] sm:$0xff]
          %v3053 = vld [vmem:[#allocation2 + $0x818] sm:$0xff]
          %v3054 = vld [vmem:[#allocation2 + $0x820] sm:$0xff]
          %v3055 = vld [vmem:[#allocation2 + $0x828] sm:$0xff]
          %v3056 = vld [vmem:[#allocation2 + $0x830] sm:$0xff]
          %v3057 = vld [vmem:[#allocation2 + $0x838] sm:$0xff]
          %v3058 = vld [vmem:[#allocation2 + $0x840] sm:$0xff]
          %v3059 = vld [vmem:[#allocation2 + $0x848] sm:$0xff]
          %v3060 = vld [vmem:[#allocation2 + $0x850] sm:$0xff]
          %v3061 = vld [vmem:[#allocation2 + $0x858] sm:$0xff]
          %v3062 = vld [vmem:[#allocation2 + $0x860] sm:$0xff]
          %v3063 = vld [vmem:[#allocation2 + $0x868] sm:$0xff]
          %v3064 = vld [vmem:[#allocation2 + $0x870] sm:$0xff]
          %v3065 = vld [vmem:[#allocation2 + $0x878] sm:$0xff]
          %v3066 = vld [vmem:[#allocation2 + $0x880] sm:$0xff]
          %v3067 = vld [vmem:[#allocation2 + $0x888] sm:$0xff]
          %v3068 = vld [vmem:[#allocation2 + $0x890] sm:$0xff]
          %v3069 = vld [vmem:[#allocation2 + $0x898] sm:$0xff]
          %v3070 = vld [vmem:[#allocation2 + $0x8a0] sm:$0xff]
          %v3071 = vld [vmem:[#allocation2 + $0x8a8] sm:$0xff]
          %v3072 = vld [vmem:[#allocation2 + $0x8b0] sm:$0xff]
          %v3073 = vld [vmem:[#allocation2 + $0x8b8] sm:$0xff]
          %v3074 = vld [vmem:[#allocation2 + $0x8c0] sm:$0xff]
          %v3075 = vld [vmem:[#allocation2 + $0x8c8] sm:$0xff]
          %v3076 = vld [vmem:[#allocation2 + $0x8d0] sm:$0xff]
          %v3077 = vld [vmem:[#allocation2 + $0x8d8] sm:$0xff]
          %v3078 = vld [vmem:[#allocation2 + $0x8e0] sm:$0xff]
          %v3079 = vld [vmem:[#allocation2 + $0x8e8] sm:$0xff]
          %v3080 = vld [vmem:[#allocation2 + $0x8f0] sm:$0xff]
          %v3081 = vld [vmem:[#allocation2 + $0x8f8] sm:$0xff]
          %v3082 = vld [vmem:[#allocation2 + $0x900] sm:$0xff]
          %v3083 = vld [vmem:[#allocation2 + $0x908] sm:$0xff]
          %v3084 = vld [vmem:[#allocation2 + $0x910] sm:$0xff]
          %v3085 = vld [vmem:[#allocation2 + $0x918] sm:$0xff]
          %v3086 = vld [vmem:[#allocation2 + $0x920] sm:$0xff]
          %v3087 = vld [vmem:[#allocation2 + $0x928] sm:$0xff]
          %v3088 = vld [vmem:[#allocation2 + $0x930] sm:$0xff]
          %v3089 = vld [vmem:[#allocation2 + $0x938] sm:$0xff]
          %v3090 = vld [vmem:[#allocation2 + $0x940] sm:$0xff]
          %v3091 = vld [vmem:[#allocation2 + $0x948] sm:$0xff]
          %v3092 = vld [vmem:[#allocation2 + $0x950] sm:$0xff]
          %v3093 = vld [vmem:[#allocation2 + $0x958] sm:$0xff]
          %v3094 = vld [vmem:[#allocation2 + $0x960] sm:$0xff]
          %v3095 = vld [vmem:[#allocation2 + $0x968] sm:$0xff]
          %v3096 = vld [vmem:[#allocation2 + $0x970] sm:$0xff]
          %v3097 = vld [vmem:[#allocation2 + $0x978] sm:$0xff]
          %v3098 = vld [vmem:[#allocation2 + $0x980] sm:$0xff]
          %v3099 = vld [vmem:[#allocation2 + $0x988] sm:$0xff]
          %v3100 = vld [vmem:[#allocation2 + $0x990] sm:$0xff]
          %v3101 = vld [vmem:[#allocation2 + $0x998] sm:$0xff]
          %v3102 = vld [vmem:[#allocation2 + $0x9a0] sm:$0xff]
          %v3103 = vld [vmem:[#allocation2 + $0x9a8] sm:$0xff]
          %v3104 = vld [vmem:[#allocation2 + $0x9b0] sm:$0xff]
          %v3105 = vld [vmem:[#allocation2 + $0x9b8] sm:$0xff]
          %v3106 = vld [vmem:[#allocation2 + $0x9c0] sm:$0xff]
          %v3107 = vld [vmem:[#allocation2 + $0x9c8] sm:$0xff]
          %v3108 = vld [vmem:[#allocation2 + $0x9d0] sm:$0xff]
          %v3109 = vld [vmem:[#allocation2 + $0x9d8] sm:$0xff]
          %v3110 = vld [vmem:[#allocation2 + $0x9e0] sm:$0xff]
          %v3111 = vld [vmem:[#allocation2 + $0x9e8] sm:$0xff]
          %v3112 = vld [vmem:[#allocation2 + $0x9f0] sm:$0xff]
          %v3113 = vld [vmem:[#allocation2 + $0x9f8] sm:$0xff]
          %v3114 = vld [vmem:[#allocation2 + $0xa00] sm:$0xff]
          %v3115 = vld [vmem:[#allocation2 + $0xa08] sm:$0xff]
          %v3116 = vld [vmem:[#allocation2 + $0xa10] sm:$0xff]
          %v3117 = vld [vmem:[#allocation2 + $0xa18] sm:$0xff]
          %v3118 = vld [vmem:[#allocation2 + $0xa20] sm:$0xff]
          %v3119 = vld [vmem:[#allocation2 + $0xa28] sm:$0xff]
          %v3120 = vld [vmem:[#allocation2 + $0xa30] sm:$0xff]
          %v3121 = vld [vmem:[#allocation2 + $0xa38] sm:$0xff]
          %v3122 = vld [vmem:[#allocation2 + $0xa40] sm:$0xff]
          %v3123 = vld [vmem:[#allocation2 + $0xa48] sm:$0xff]
          %v3124 = vld [vmem:[#allocation2 + $0xa50] sm:$0xff]
          %v3125 = vld [vmem:[#allocation2 + $0xa58] sm:$0xff]
          %v3126 = vld [vmem:[#allocation2 + $0xa60] sm:$0xff]
          %v3127 = vld [vmem:[#allocation2 + $0xa68] sm:$0xff]
          %v3128 = vld [vmem:[#allocation2 + $0xa70] sm:$0xff]
          %v3129 = vld [vmem:[#allocation2 + $0xa78] sm:$0xff]
          %v3130 = vld [vmem:[#allocation2 + $0xa80] sm:$0xff]
          %v3131 = vld [vmem:[#allocation2 + $0xa88] sm:$0xff]
          %v3132 = vld [vmem:[#allocation2 + $0xa90] sm:$0xff]
          %v3133 = vld [vmem:[#allocation2 + $0xa98] sm:$0xff]
          %v3134 = vld [vmem:[#allocation2 + $0xaa0] sm:$0xff]
          %v3135 = vld [vmem:[#allocation2 + $0xaa8] sm:$0xff]
          %v3136 = vld [vmem:[#allocation2 + $0xab0] sm:$0xff]
          %v3137 = vld [vmem:[#allocation2 + $0xab8] sm:$0xff]
          %v3138 = vld [vmem:[#allocation2 + $0xac0] sm:$0xff]
          %v3139 = vld [vmem:[#allocation2 + $0xac8] sm:$0xff]
          %v3140 = vld [vmem:[#allocation2 + $0xad0] sm:$0xff]
          %v3141 = vld [vmem:[#allocation2 + $0xad8] sm:$0xff]
          %v3142 = vld [vmem:[#allocation2 + $0xae0] sm:$0xff]
          %v3143 = vld [vmem:[#allocation2 + $0xae8] sm:$0xff]
          %v3144 = vld [vmem:[#allocation2 + $0xaf0] sm:$0xff]
          %v3145 = vld [vmem:[#allocation2 + $0xaf8] sm:$0xff]
          %v3146 = vld [vmem:[#allocation2 + $0xb00] sm:$0xff]
          %v3147 = vld [vmem:[#allocation2 + $0xb08] sm:$0xff]
          %v3148 = vld [vmem:[#allocation2 + $0xb10] sm:$0xff]
          %v3149 = vld [vmem:[#allocation2 + $0xb18] sm:$0xff]
          %v3150 = vld [vmem:[#allocation2 + $0xb20] sm:$0xff]
          %v3151 = vld [vmem:[#allocation2 + $0xb28] sm:$0xff]
          %v3152 = vld [vmem:[#allocation2 + $0xb30] sm:$0xff]
          %v3153 = vld [vmem:[#allocation2 + $0xb38] sm:$0xff]
          %v3154 = vld [vmem:[#allocation2 + $0xb40] sm:$0xff]
          %v3155 = vld [vmem:[#allocation2 + $0xb48] sm:$0xff]
          %v3156 = vld [vmem:[#allocation2 + $0xb50] sm:$0xff]
          %v3157 = vld [vmem:[#allocation2 + $0xb58] sm:$0xff]
          %v3158 = vld [vmem:[#allocation2 + $0xb60] sm:$0xff]
          %v3159 = vld [vmem:[#allocation2 + $0xb68] sm:$0xff]
          %v3160 = vld [vmem:[#allocation2 + $0xb70] sm:$0xff]
          %v3161 = vld [vmem:[#allocation2 + $0xb78] sm:$0xff]
          %v3162 = vld [vmem:[#allocation2 + $0xb80] sm:$0xff]
          %v3163 = vld [vmem:[#allocation2 + $0xb88] sm:$0xff]
          %v3164 = vld [vmem:[#allocation2 + $0xb90] sm:$0xff]
          %v3165 = vld [vmem:[#allocation2 + $0xb98] sm:$0xff]
          %v3166 = vld [vmem:[#allocation2 + $0xba0] sm:$0xff]
          %v3167 = vld [vmem:[#allocation2 + $0xba8] sm:$0xff]
          %v3168 = vld [vmem:[#allocation2 + $0xbb0] sm:$0xff]
          %v3169 = vld [vmem:[#allocation2 + $0xbb8] sm:$0xff]
          %v3170 = vld [vmem:[#allocation2 + $0xbc0] sm:$0xff]
          %v3171 = vld [vmem:[#allocation2 + $0xbc8] sm:$0xff]
          %v3172 = vld [vmem:[#allocation2 + $0xbd0] sm:$0xff]
          %v3173 = vld [vmem:[#allocation2 + $0xbd8] sm:$0xff]
          %v3174 = vld [vmem:[#allocation2 + $0xbe0] sm:$0xff]
          %v3175 = vld [vmem:[#allocation2 + $0xbe8] sm:$0xff]
          %v3176 = vld [vmem:[#allocation2 + $0xbf0] sm:$0xff]
          %v3177 = vld [vmem:[#allocation2 + $0xbf8] sm:$0xff]
          %v3178 = vld [vmem:[#allocation2 + $0xc00] sm:$0xff]
          %v3179 = vld [vmem:[#allocation2 + $0xc08] sm:$0xff]
          %v3180 = vld [vmem:[#allocation2 + $0xc10] sm:$0xff]
          %v3181 = vld [vmem:[#allocation2 + $0xc18] sm:$0xff]
          %v3182 = vld [vmem:[#allocation2 + $0xc20] sm:$0xff]
          %v3183 = vld [vmem:[#allocation2 + $0xc28] sm:$0xff]
          %v3184 = vld [vmem:[#allocation2 + $0xc30] sm:$0xff]
          %v3185 = vld [vmem:[#allocation2 + $0xc38] sm:$0xff]
          %v3186 = vld [vmem:[#allocation2 + $0xc40] sm:$0xff]
          %v3187 = vld [vmem:[#allocation2 + $0xc48] sm:$0xff]
          %v3188 = vld [vmem:[#allocation2 + $0xc50] sm:$0xff]
          %v3189 = vld [vmem:[#allocation2 + $0xc58] sm:$0xff]
          %v3190 = vld [vmem:[#allocation2 + $0xc60] sm:$0xff]
          %v3191 = vld [vmem:[#allocation2 + $0xc68] sm:$0xff]
          %v3192 = vld [vmem:[#allocation2 + $0xc70] sm:$0xff]
          %v3193 = vld [vmem:[#allocation2 + $0xc78] sm:$0xff]
          %v3194 = vld [vmem:[#allocation2 + $0xc80] sm:$0xff]
          %v3195 = vld [vmem:[#allocation2 + $0xc88] sm:$0xff]
          %v3196 = vld [vmem:[#allocation2 + $0xc90] sm:$0xff]
          %v3197 = vld [vmem:[#allocation2 + $0xc98] sm:$0xff]
          %v3198 = vld [vmem:[#allocation2 + $0xca0] sm:$0xff]
          %v3199 = vld [vmem:[#allocation2 + $0xca8] sm:$0xff]
          %v3200 = vld [vmem:[#allocation2 + $0xcb0] sm:$0xff]
          %v3201 = vld [vmem:[#allocation2 + $0xcb8] sm:$0xff]
          %v3202 = vld [vmem:[#allocation2 + $0xcc0] sm:$0xff]
          %v3203 = vld [vmem:[#allocation2 + $0xcc8] sm:$0xff]
          %v3204 = vld [vmem:[#allocation2 + $0xcd0] sm:$0xff]
          %v3205 = vld [vmem:[#allocation2 + $0xcd8] sm:$0xff]
          %v3206 = vld [vmem:[#allocation2 + $0xce0] sm:$0xff]
          %v3207 = vld [vmem:[#allocation2 + $0xce8] sm:$0xff]
          %v3208 = vld [vmem:[#allocation2 + $0xcf0] sm:$0xff]
          %v3209 = vld [vmem:[#allocation2 + $0xcf8] sm:$0xff]
          %v3210 = vld [vmem:[#allocation2 + $0xd00] sm:$0xff]
          %v3211 = vld [vmem:[#allocation2 + $0xd08] sm:$0xff]
          %v3212 = vld [vmem:[#allocation2 + $0xd10] sm:$0xff]
          %v3213 = vld [vmem:[#allocation2 + $0xd18] sm:$0xff]
          %v3214 = vld [vmem:[#allocation2 + $0xd20] sm:$0xff]
          %v3215 = vld [vmem:[#allocation2 + $0xd28] sm:$0xff]
          %v3216 = vld [vmem:[#allocation2 + $0xd30] sm:$0xff]
          %v3217 = vld [vmem:[#allocation2 + $0xd38] sm:$0xff]
          %v3218 = vld [vmem:[#allocation2 + $0xd40] sm:$0xff]
          %v3219 = vld [vmem:[#allocation2 + $0xd48] sm:$0xff]
          %v3220 = vld [vmem:[#allocation2 + $0xd50] sm:$0xff]
          %v3221 = vld [vmem:[#allocation2 + $0xd58] sm:$0xff]
          %v3222 = vld [vmem:[#allocation2 + $0xd60] sm:$0xff]
          %v3223 = vld [vmem:[#allocation2 + $0xd68] sm:$0xff]
          %v3224 = vld [vmem:[#allocation2 + $0xd70] sm:$0xff]
          %v3225 = vld [vmem:[#allocation2 + $0xd78] sm:$0xff]
          %v3226 = vld [vmem:[#allocation2 + $0xd80] sm:$0xff]
          %v3227 = vld [vmem:[#allocation2 + $0xd88] sm:$0xff]
          %v3228 = vld [vmem:[#allocation2 + $0xd90] sm:$0xff]
          %v3229 = vld [vmem:[#allocation2 + $0xd98] sm:$0xff]
          %v3230 = vld [vmem:[#allocation2 + $0xda0] sm:$0xff]
          %v3231 = vld [vmem:[#allocation2 + $0xda8] sm:$0xff]
          %v3232 = vld [vmem:[#allocation2 + $0xdb0] sm:$0xff]
          %v3233 = vld [vmem:[#allocation2 + $0xdb8] sm:$0xff]
          %v3234 = vld [vmem:[#allocation2 + $0xdc0] sm:$0xff]
          %v3235 = vld [vmem:[#allocation2 + $0xdc8] sm:$0xff]
          %v3236 = vld [vmem:[#allocation2 + $0xdd0] sm:$0xff]
          %v3237 = vld [vmem:[#allocation2 + $0xdd8] sm:$0xff]
          %v3238 = vld [vmem:[#allocation2 + $0xde0] sm:$0xff]
          %v3239 = vld [vmem:[#allocation2 + $0xde8] sm:$0xff]
          %v3240 = vld [vmem:[#allocation2 + $0xdf0] sm:$0xff]
          %v3241 = vld [vmem:[#allocation2 + $0xdf8] sm:$0xff]
          %v3242 = vld [vmem:[#allocation2 + $0xe00] sm:$0xff]
          %v3243 = vld [vmem:[#allocation2 + $0xe08] sm:$0xff]
          %v3244 = vld [vmem:[#allocation2 + $0xe10] sm:$0xff]
          %v3245 = vld [vmem:[#allocation2 + $0xe18] sm:$0xff]
          %v3246 = vld [vmem:[#allocation2 + $0xe20] sm:$0xff]
          %v3247 = vld [vmem:[#allocation2 + $0xe28] sm:$0xff]
          %v3248 = vld [vmem:[#allocation2 + $0xe30] sm:$0xff]
          %v3249 = vld [vmem:[#allocation2 + $0xe38] sm:$0xff]
          %v3250 = vld [vmem:[#allocation2 + $0xe40] sm:$0xff]
          %v3251 = vld [vmem:[#allocation2 + $0xe48] sm:$0xff]
          %v3252 = vld [vmem:[#allocation2 + $0xe50] sm:$0xff]
          %v3253 = vld [vmem:[#allocation2 + $0xe58] sm:$0xff]
          %v3254 = vld [vmem:[#allocation2 + $0xe60] sm:$0xff]
          %v3255 = vld [vmem:[#allocation2 + $0xe68] sm:$0xff]
          %v3256 = vld [vmem:[#allocation2 + $0xe70] sm:$0xff]
          %v3257 = vld [vmem:[#allocation2 + $0xe78] sm:$0xff]
          %v3258 = vld [vmem:[#allocation2 + $0xe80] sm:$0xff]
          %v3259 = vld [vmem:[#allocation2 + $0xe88] sm:$0xff]
          %v3260 = vld [vmem:[#allocation2 + $0xe90] sm:$0xff]
          %v3261 = vld [vmem:[#allocation2 + $0xe98] sm:$0xff]
          %v3262 = vld [vmem:[#allocation2 + $0xea0] sm:$0xff]
          %v3263 = vld [vmem:[#allocation2 + $0xea8] sm:$0xff]
          %v3264 = vld [vmem:[#allocation2 + $0xeb0] sm:$0xff]
          %v3265 = vld [vmem:[#allocation2 + $0xeb8] sm:$0xff]
          %v3266 = vld [vmem:[#allocation2 + $0xec0] sm:$0xff]
          %v3267 = vld [vmem:[#allocation2 + $0xec8] sm:$0xff]
          %v3268 = vld [vmem:[#allocation2 + $0xed0] sm:$0xff]
          %v3269 = vld [vmem:[#allocation2 + $0xed8] sm:$0xff]
          %v3270 = vld [vmem:[#allocation2 + $0xee0] sm:$0xff]
          %v3271 = vld [vmem:[#allocation2 + $0xee8] sm:$0xff]
          %v3272 = vld [vmem:[#allocation2 + $0xef0] sm:$0xff]
          %v3273 = vld [vmem:[#allocation2 + $0xef8] sm:$0xff]
          %v3274 = vld [vmem:[#allocation2 + $0xf00] sm:$0xff]
          %v3275 = vld [vmem:[#allocation2 + $0xf08] sm:$0xff]
          %v3276 = vld [vmem:[#allocation2 + $0xf10] sm:$0xff]
          %v3277 = vld [vmem:[#allocation2 + $0xf18] sm:$0xff]
          %v3278 = vld [vmem:[#allocation2 + $0xf20] sm:$0xff]
          %v3279 = vld [vmem:[#allocation2 + $0xf28] sm:$0xff]
          %v3280 = vld [vmem:[#allocation2 + $0xf30] sm:$0xff]
          %v3281 = vld [vmem:[#allocation2 + $0xf38] sm:$0xff]
          %v3282 = vld [vmem:[#allocation2 + $0xf40] sm:$0xff]
          %v3283 = vld [vmem:[#allocation2 + $0xf48] sm:$0xff]
          %v3284 = vld [vmem:[#allocation2 + $0xf50] sm:$0xff]
          %v3285 = vld [vmem:[#allocation2 + $0xf58] sm:$0xff]
          %v3286 = vld [vmem:[#allocation2 + $0xf60] sm:$0xff]
          %v3287 = vld [vmem:[#allocation2 + $0xf68] sm:$0xff]
          %v3288 = vld [vmem:[#allocation2 + $0xf70] sm:$0xff]
          %v3289 = vld [vmem:[#allocation2 + $0xf78] sm:$0xff]
          %v3290 = vld [vmem:[#allocation2 + $0xf80] sm:$0xff]
          %v3291 = vld [vmem:[#allocation2 + $0xf88] sm:$0xff]
          %v3292 = vld [vmem:[#allocation2 + $0xf90] sm:$0xff]
          %v3293 = vld [vmem:[#allocation2 + $0xf98] sm:$0xff]
          %v3294 = vld [vmem:[#allocation2 + $0xfa0] sm:$0xff]
          %v3295 = vld [vmem:[#allocation2 + $0xfa8] sm:$0xff]
          %v3296 = vld [vmem:[#allocation2 + $0xfb0] sm:$0xff]
          %v3297 = vld [vmem:[#allocation2 + $0xfb8] sm:$0xff]
          %v3298 = vld [vmem:[#allocation2 + $0xfc0] sm:$0xff]
          %v3299 = vld [vmem:[#allocation2 + $0xfc8] sm:$0xff]
          %v3300 = vld [vmem:[#allocation2 + $0xfd0] sm:$0xff]
          %v3301 = vld [vmem:[#allocation2 + $0xfd8] sm:$0xff]
          %v3302 = vld [vmem:[#allocation2 + $0xfe0] sm:$0xff]
          %v3303 = vld [vmem:[#allocation2 + $0xfe8] sm:$0xff]
          %v3304 = vld [vmem:[#allocation2 + $0xff0] sm:$0xff]
          %v3305 = vld [vmem:[#allocation2 + $0xff8] sm:$0xff]
          %v3306 = vadd.f32 %v2794, %v2276
          %v3307 = vadd.f32 %v2795, %v2277
          %v3308 = vadd.f32 %v2796, %v2278
          %v3309 = vadd.f32 %v2797, %v2279
          %v3310 = vadd.f32 %v2798, %v2280
          %v3311 = vadd.f32 %v2799, %v2281
          %v3312 = vadd.f32 %v2800, %v2282
          %v3313 = vadd.f32 %v2801, %v2283
          %v3314 = vadd.f32 %v2802, %v2284
          %v3315 = vadd.f32 %v2803, %v2285
          %v3316 = vadd.f32 %v2804, %v2286
          %v3317 = vadd.f32 %v2805, %v2287
          %v3318 = vadd.f32 %v2806, %v2288
          %v3319 = vadd.f32 %v2807, %v2289
          %v3320 = vadd.f32 %v2808, %v2290
          %v3321 = vadd.f32 %v2809, %v2291
          %v3322 = vadd.f32 %v2810, %v2292
          %v3323 = vadd.f32 %v2811, %v2293
          %v3324 = vadd.f32 %v2812, %v2294
          %v3325 = vadd.f32 %v2813, %v2295
          %v3326 = vadd.f32 %v2814, %v2296
          %v3327 = vadd.f32 %v2815, %v2297
          %v3328 = vadd.f32 %v2816, %v2298
          %v3329 = vadd.f32 %v2817, %v2299
          %v3330 = vadd.f32 %v2818, %v2300
          %v3331 = vadd.f32 %v2819, %v2301
          %v3332 = vadd.f32 %v2820, %v2302
          %v3333 = vadd.f32 %v2821, %v2303
          %v3334 = vadd.f32 %v2822, %v2304
          %v3335 = vadd.f32 %v2823, %v2305
          %v3336 = vadd.f32 %v2824, %v2306
          %v3337 = vadd.f32 %v2825, %v2307
          %v3338 = vadd.f32 %v2826, %v2308
          %v3339 = vadd.f32 %v2827, %v2309
          %v3340 = vadd.f32 %v2828, %v2310
          %v3341 = vadd.f32 %v2829, %v2311
          %v3342 = vadd.f32 %v2830, %v2312
          %v3343 = vadd.f32 %v2831, %v2313
          %v3344 = vadd.f32 %v2832, %v2314
          %v3345 = vadd.f32 %v2833, %v2315
          %v3346 = vadd.f32 %v2834, %v2316
          %v3347 = vadd.f32 %v2835, %v2317
          %v3348 = vadd.f32 %v2836, %v2318
          %v3349 = vadd.f32 %v2837, %v2319
          %v3350 = vadd.f32 %v2838, %v2320
          %v3351 = vadd.f32 %v2839, %v2321
          %v3352 = vadd.f32 %v2840, %v2322
          %v3353 = vadd.f32 %v2841, %v2323
          %v3354 = vadd.f32 %v2842, %v2324
          %v3355 = vadd.f32 %v2843, %v2325
          %v3356 = vadd.f32 %v2844, %v2326
          %v3357 = vadd.f32 %v2845, %v2327
          %v3358 = vadd.f32 %v2846, %v2328
          %v3359 = vadd.f32 %v2847, %v2329
          %v3360 = vadd.f32 %v2848, %v2330
          %v3361 = vadd.f32 %v2849, %v2331
          %v3362 = vadd.f32 %v2850, %v2332
          %v3363 = vadd.f32 %v2851, %v2333
          %v3364 = vadd.f32 %v2852, %v2334
          %v3365 = vadd.f32 %v2853, %v2335
          %v3366 = vadd.f32 %v2854, %v2336
          %v3367 = vadd.f32 %v2855, %v2337
          %v3368 = vadd.f32 %v2856, %v2338
          %v3369 = vadd.f32 %v2857, %v2339
          %v3370 = vadd.f32 %v2858, %v2340
          %v3371 = vadd.f32 %v2859, %v2341
          %v3372 = vadd.f32 %v2860, %v2342
          %v3373 = vadd.f32 %v2861, %v2343
          %v3374 = vadd.f32 %v2862, %v2344
          %v3375 = vadd.f32 %v2863, %v2345
          %v3376 = vadd.f32 %v2864, %v2346
          %v3377 = vadd.f32 %v2865, %v2347
          %v3378 = vadd.f32 %v2866, %v2348
          %v3379 = vadd.f32 %v2867, %v2349
          %v3380 = vadd.f32 %v2868, %v2350
          %v3381 = vadd.f32 %v2869, %v2351
          %v3382 = vadd.f32 %v2870, %v2352
          %v3383 = vadd.f32 %v2871, %v2353
          %v3384 = vadd.f32 %v2872, %v2354
          %v3385 = vadd.f32 %v2873, %v2355
          %v3386 = vadd.f32 %v2874, %v2356
          %v3387 = vadd.f32 %v2875, %v2357
          %v3388 = vadd.f32 %v2876, %v2358
          %v3389 = vadd.f32 %v2877, %v2359
          %v3390 = vadd.f32 %v2878, %v2360
          %v3391 = vadd.f32 %v2879, %v2361
          %v3392 = vadd.f32 %v2880, %v2362
          %v3393 = vadd.f32 %v2881, %v2363
          %v3394 = vadd.f32 %v2882, %v2364
          %v3395 = vadd.f32 %v2883, %v2365
          %v3396 = vadd.f32 %v2884, %v2366
          %v3397 = vadd.f32 %v2885, %v2367
          %v3398 = vadd.f32 %v2886, %v2368
          %v3399 = vadd.f32 %v2887, %v2369
          %v3400 = vadd.f32 %v2888, %v2370
          %v3401 = vadd.f32 %v2889, %v2371
          %v3402 = vadd.f32 %v2890, %v2372
          %v3403 = vadd.f32 %v2891, %v2373
          %v3404 = vadd.f32 %v2892, %v2374
          %v3405 = vadd.f32 %v2893, %v2375
          %v3406 = vadd.f32 %v2894, %v2376
          %v3407 = vadd.f32 %v2895, %v2377
          %v3408 = vadd.f32 %v2896, %v2378
          %v3409 = vadd.f32 %v2897, %v2379
          %v3410 = vadd.f32 %v2898, %v2380
          %v3411 = vadd.f32 %v2899, %v2381
          %v3412 = vadd.f32 %v2900, %v2382
          %v3413 = vadd.f32 %v2901, %v2383
          %v3414 = vadd.f32 %v2902, %v2384
          %v3415 = vadd.f32 %v2903, %v2385
          %v3416 = vadd.f32 %v2904, %v2386
          %v3417 = vadd.f32 %v2905, %v2387
          %v3418 = vadd.f32 %v2906, %v2388
          %v3419 = vadd.f32 %v2907, %v2389
          %v3420 = vadd.f32 %v2908, %v2390
          %v3421 = vadd.f32 %v2909, %v2391
          %v3422 = vadd.f32 %v2910, %v2392
          %v3423 = vadd.f32 %v2911, %v2393
          %v3424 = vadd.f32 %v2912, %v2394
          %v3425 = vadd.f32 %v2913, %v2395
          %v3426 = vadd.f32 %v2914, %v2396
          %v3427 = vadd.f32 %v2915, %v2397
          %v3428 = vadd.f32 %v2916, %v2398
          %v3429 = vadd.f32 %v2917, %v2399
          %v3430 = vadd.f32 %v2918, %v2400
          %v3431 = vadd.f32 %v2919, %v2401
          %v3432 = vadd.f32 %v2920, %v2402
          %v3433 = vadd.f32 %v2921, %v2403
          %v3434 = vadd.f32 %v2922, %v2404
          %v3435 = vadd.f32 %v2923, %v2405
          %v3436 = vadd.f32 %v2924, %v2406
          %v3437 = vadd.f32 %v2925, %v2407
          %v3438 = vadd.f32 %v2926, %v2408
          %v3439 = vadd.f32 %v2927, %v2409
          %v3440 = vadd.f32 %v2928, %v2410
          %v3441 = vadd.f32 %v2929, %v2411
          %v3442 = vadd.f32 %v2930, %v2412
          %v3443 = vadd.f32 %v2931, %v2413
          %v3444 = vadd.f32 %v2932, %v2414
          %v3445 = vadd.f32 %v2933, %v2415
          %v3446 = vadd.f32 %v2934, %v2416
          %v3447 = vadd.f32 %v2935, %v2417
          %v3448 = vadd.f32 %v2936, %v2418
          %v3449 = vadd.f32 %v2937, %v2419
          %v3450 = vadd.f32 %v2938, %v2420
          %v3451 = vadd.f32 %v2939, %v2421
          %v3452 = vadd.f32 %v2940, %v2422
          %v3453 = vadd.f32 %v2941, %v2423
          %v3454 = vadd.f32 %v2942, %v2424
          %v3455 = vadd.f32 %v2943, %v2425
          %v3456 = vadd.f32 %v2944, %v2426
          %v3457 = vadd.f32 %v2945, %v2427
          %v3458 = vadd.f32 %v2946, %v2428
          %v3459 = vadd.f32 %v2947, %v2429
          %v3460 = vadd.f32 %v2948, %v2430
          %v3461 = vadd.f32 %v2949, %v2431
          %v3462 = vadd.f32 %v2950, %v2432
          %v3463 = vadd.f32 %v2951, %v2433
          %v3464 = vadd.f32 %v2952, %v2434
          %v3465 = vadd.f32 %v2953, %v2435
          %v3466 = vadd.f32 %v2954, %v2436
          %v3467 = vadd.f32 %v2955, %v2437
          %v3468 = vadd.f32 %v2956, %v2438
          %v3469 = vadd.f32 %v2957, %v2439
          %v3470 = vadd.f32 %v2958, %v2440
          %v3471 = vadd.f32 %v2959, %v2441
          %v3472 = vadd.f32 %v2960, %v2442
          %v3473 = vadd.f32 %v2961, %v2443
          %v3474 = vadd.f32 %v2962, %v2444
          %v3475 = vadd.f32 %v2963, %v2445
          %v3476 = vadd.f32 %v2964, %v2446
          %v3477 = vadd.f32 %v2965, %v2447
          %v3478 = vadd.f32 %v2966, %v2448
          %v3479 = vadd.f32 %v2967, %v2449
          %v3480 = vadd.f32 %v2968, %v2450
          %v3481 = vadd.f32 %v2969, %v2451
          %v3482 = vadd.f32 %v2970, %v2452
          %v3483 = vadd.f32 %v2971, %v2453
          %v3484 = vadd.f32 %v2972, %v2454
          %v3485 = vadd.f32 %v2973, %v2455
          %v3486 = vadd.f32 %v2974, %v2456
          %v3487 = vadd.f32 %v2975, %v2457
          %v3488 = vadd.f32 %v2976, %v2458
          %v3489 = vadd.f32 %v2977, %v2459
          %v3490 = vadd.f32 %v2978, %v2460
          %v3491 = vadd.f32 %v2979, %v2461
          %v3492 = vadd.f32 %v2980, %v2462
          %v3493 = vadd.f32 %v2981, %v2463
          %v3494 = vadd.f32 %v2982, %v2464
          %v3495 = vadd.f32 %v2983, %v2465
          %v3496 = vadd.f32 %v2984, %v2466
          %v3497 = vadd.f32 %v2985, %v2467
          %v3498 = vadd.f32 %v2986, %v2468
          %v3499 = vadd.f32 %v2987, %v2469
          %v3500 = vadd.f32 %v2988, %v2470
          %v3501 = vadd.f32 %v2989, %v2471
          %v3502 = vadd.f32 %v2990, %v2472
          %v3503 = vadd.f32 %v2991, %v2473
          %v3504 = vadd.f32 %v2992, %v2474
          %v3505 = vadd.f32 %v2993, %v2475
          %v3506 = vadd.f32 %v2994, %v2476
          %v3507 = vadd.f32 %v2995, %v2477
          %v3508 = vadd.f32 %v2996, %v2478
          %v3509 = vadd.f32 %v2997, %v2479
          %v3510 = vadd.f32 %v2998, %v2480
          %v3511 = vadd.f32 %v2999, %v2481
          %v3512 = vadd.f32 %v3000, %v2482
          %v3513 = vadd.f32 %v3001, %v2483
          %v3514 = vadd.f32 %v3002, %v2484
          %v3515 = vadd.f32 %v3003, %v2485
          %v3516 = vadd.f32 %v3004, %v2486
          %v3517 = vadd.f32 %v3005, %v2487
          %v3518 = vadd.f32 %v3006, %v2488
          %v3519 = vadd.f32 %v3007, %v2489
          %v3520 = vadd.f32 %v3008, %v2490
          %v3521 = vadd.f32 %v3009, %v2491
          %v3522 = vadd.f32 %v3010, %v2492
          %v3523 = vadd.f32 %v3011, %v2493
          %v3524 = vadd.f32 %v3012, %v2494
          %v3525 = vadd.f32 %v3013, %v2495
          %v3526 = vadd.f32 %v3014, %v2496
          %v3527 = vadd.f32 %v3015, %v2497
          %v3528 = vadd.f32 %v3016, %v2498
          %v3529 = vadd.f32 %v3017, %v2499
          %v3530 = vadd.f32 %v3018, %v2500
          %v3531 = vadd.f32 %v3019, %v2501
          %v3532 = vadd.f32 %v3020, %v2502
          %v3533 = vadd.f32 %v3021, %v2503
          %v3534 = vadd.f32 %v3022, %v2504
          %v3535 = vadd.f32 %v3023, %v2505
          %v3536 = vadd.f32 %v3024, %v2506
          %v3537 = vadd.f32 %v3025, %v2507
          %v3538 = vadd.f32 %v3026, %v2508
          %v3539 = vadd.f32 %v3027, %v2509
          %v3540 = vadd.f32 %v3028, %v2510
          %v3541 = vadd.f32 %v3029, %v2511
          %v3542 = vadd.f32 %v3030, %v2512
          %v3543 = vadd.f32 %v3031, %v2513
          %v3544 = vadd.f32 %v3032, %v2514
          %v3545 = vadd.f32 %v3033, %v2515
          %v3546 = vadd.f32 %v3034, %v2516
          %v3547 = vadd.f32 %v3035, %v2517
          %v3548 = vadd.f32 %v3036, %v2518
          %v3549 = vadd.f32 %v3037, %v2519
          %v3550 = vadd.f32 %v3038, %v2520
          %v3551 = vadd.f32 %v3039, %v2521
          %v3552 = vadd.f32 %v3040, %v2522
          %v3553 = vadd.f32 %v3041, %v2523
          %v3554 = vadd.f32 %v3042, %v2524
          %v3555 = vadd.f32 %v3043, %v2525
          %v3556 = vadd.f32 %v3044, %v2526
          %v3557 = vadd.f32 %v3045, %v2527
          %v3558 = vadd.f32 %v3046, %v2528
          %v3559 = vadd.f32 %v3047, %v2529
          %v3560 = vadd.f32 %v3048, %v2530
          %v3561 = vadd.f32 %v3049, %v2531
          %v3562 = vadd.f32 %v3050, %v2532
          %v3563 = vadd.f32 %v3051, %v2533
          %v3564 = vadd.f32 %v3052, %v2534
          %v3565 = vadd.f32 %v3053, %v2535
          %v3566 = vadd.f32 %v3054, %v2536
          %v3567 = vadd.f32 %v3055, %v2537
          %v3568 = vadd.f32 %v3056, %v2538
          %v3569 = vadd.f32 %v3057, %v2539
          %v3570 = vadd.f32 %v3058, %v2540
          %v3571 = vadd.f32 %v3059, %v2541
          %v3572 = vadd.f32 %v3060, %v2542
          %v3573 = vadd.f32 %v3061, %v2543
          %v3574 = vadd.f32 %v3062, %v2544
          %v3575 = vadd.f32 %v3063, %v2545
          %v3576 = vadd.f32 %v3064, %v2546
          %v3577 = vadd.f32 %v3065, %v2547
          %v3578 = vadd.f32 %v3066, %v2548
          %v3579 = vadd.f32 %v3067, %v2549
          %v3580 = vadd.f32 %v3068, %v2550
          %v3581 = vadd.f32 %v3069, %v2551
          %v3582 = vadd.f32 %v3070, %v2552
          %v3583 = vadd.f32 %v3071, %v2553
          %v3584 = vadd.f32 %v3072, %v2554
          %v3585 = vadd.f32 %v3073, %v2555
          %v3586 = vadd.f32 %v3074, %v2556
          %v3587 = vadd.f32 %v3075, %v2557
          %v3588 = vadd.f32 %v3076, %v2558
          %v3589 = vadd.f32 %v3077, %v2559
          %v3590 = vadd.f32 %v3078, %v2560
          %v3591 = vadd.f32 %v3079, %v2561
          %v3592 = vadd.f32 %v3080, %v2562
          %v3593 = vadd.f32 %v3081, %v2563
          %v3594 = vadd.f32 %v3082, %v2564
          %v3595 = vadd.f32 %v3083, %v2565
          %v3596 = vadd.f32 %v3084, %v2566
          %v3597 = vadd.f32 %v3085, %v2567
          %v3598 = vadd.f32 %v3086, %v2568
          %v3599 = vadd.f32 %v3087, %v2569
          %v3600 = vadd.f32 %v3088, %v2570
          %v3601 = vadd.f32 %v3089, %v2571
          %v3602 = vadd.f32 %v3090, %v2572
          %v3603 = vadd.f32 %v3091, %v2573
          %v3604 = vadd.f32 %v3092, %v2574
          %v3605 = vadd.f32 %v3093, %v2575
          %v3606 = vadd.f32 %v3094, %v2576
          %v3607 = vadd.f32 %v3095, %v2577
          %v3608 = vadd.f32 %v3096, %v2578
          %v3609 = vadd.f32 %v3097, %v2579
          %v3610 = vadd.f32 %v3098, %v2580
          %v3611 = vadd.f32 %v3099, %v2581
          %v3612 = vadd.f32 %v3100, %v2582
          %v3613 = vadd.f32 %v3101, %v2583
          %v3614 = vadd.f32 %v3102, %v2584
          %v3615 = vadd.f32 %v3103, %v2585
          %v3616 = vadd.f32 %v3104, %v2586
          %v3617 = vadd.f32 %v3105, %v2587
          %v3618 = vadd.f32 %v3106, %v2588
          %v3619 = vadd.f32 %v3107, %v2589
          %v3620 = vadd.f32 %v3108, %v2590
          %v3621 = vadd.f32 %v3109, %v2591
          %v3622 = vadd.f32 %v3110, %v2592
          %v3623 = vadd.f32 %v3111, %v2593
          %v3624 = vadd.f32 %v3112, %v2594
          %v3625 = vadd.f32 %v3113, %v2595
          %v3626 = vadd.f32 %v3114, %v2596
          %v3627 = vadd.f32 %v3115, %v2597
          %v3628 = vadd.f32 %v3116, %v2598
          %v3629 = vadd.f32 %v3117, %v2599
          %v3630 = vadd.f32 %v3118, %v2600
          %v3631 = vadd.f32 %v3119, %v2601
          %v3632 = vadd.f32 %v3120, %v2602
          %v3633 = vadd.f32 %v3121, %v2603
          %v3634 = vadd.f32 %v3122, %v2604
          %v3635 = vadd.f32 %v3123, %v2605
          %v3636 = vadd.f32 %v3124, %v2606
          %v3637 = vadd.f32 %v3125, %v2607
          %v3638 = vadd.f32 %v3126, %v2608
          %v3639 = vadd.f32 %v3127, %v2609
          %v3640 = vadd.f32 %v3128, %v2610
          %v3641 = vadd.f32 %v3129, %v2611
          %v3642 = vadd.f32 %v3130, %v2612
          %v3643 = vadd.f32 %v3131, %v2613
          %v3644 = vadd.f32 %v3132, %v2614
          %v3645 = vadd.f32 %v3133, %v2615
          %v3646 = vadd.f32 %v3134, %v2616
          %v3647 = vadd.f32 %v3135, %v2617
          %v3648 = vadd.f32 %v3136, %v2618
          %v3649 = vadd.f32 %v3137, %v2619
          %v3650 = vadd.f32 %v3138, %v2620
          %v3651 = vadd.f32 %v3139, %v2621
          %v3652 = vadd.f32 %v3140, %v2622
          %v3653 = vadd.f32 %v3141, %v2623
          %v3654 = vadd.f32 %v3142, %v2624
          %v3655 = vadd.f32 %v3143, %v2625
          %v3656 = vadd.f32 %v3144, %v2626
          %v3657 = vadd.f32 %v3145, %v2627
          %v3658 = vadd.f32 %v3146, %v2628
          %v3659 = vadd.f32 %v3147, %v2629
          %v3660 = vadd.f32 %v3148, %v2630
          %v3661 = vadd.f32 %v3149, %v2631
          %v3662 = vadd.f32 %v3150, %v2632
          %v3663 = vadd.f32 %v3151, %v2633
          %v3664 = vadd.f32 %v3152, %v2634
          %v3665 = vadd.f32 %v3153, %v2635
          %v3666 = vadd.f32 %v3154, %v2636
          %v3667 = vadd.f32 %v3155, %v2637
          %v3668 = vadd.f32 %v3156, %v2638
          %v3669 = vadd.f32 %v3157, %v2639
          %v3670 = vadd.f32 %v3158, %v2640
          %v3671 = vadd.f32 %v3159, %v2641
          %v3672 = vadd.f32 %v3160, %v2642
          %v3673 = vadd.f32 %v3161, %v2643
          %v3674 = vadd.f32 %v3162, %v2644
          %v3675 = vadd.f32 %v3163, %v2645
          %v3676 = vadd.f32 %v3164, %v2646
          %v3677 = vadd.f32 %v3165, %v2647
          %v3678 = vadd.f32 %v3166, %v2648
          %v3679 = vadd.f32 %v3167, %v2649
          %v3680 = vadd.f32 %v3168, %v2650
          %v3681 = vadd.f32 %v3169, %v2651
          %v3682 = vadd.f32 %v3170, %v2652
          %v3683 = vadd.f32 %v3171, %v2653
          %v3684 = vadd.f32 %v3172, %v2654
          %v3685 = vadd.f32 %v3173, %v2655
          %v3686 = vadd.f32 %v3174, %v2656
          %v3687 = vadd.f32 %v3175, %v2657
          %v3688 = vadd.f32 %v3176, %v2658
          %v3689 = vadd.f32 %v3177, %v2659
          %v3690 = vadd.f32 %v3178, %v2660
          %v3691 = vadd.f32 %v3179, %v2661
          %v3692 = vadd.f32 %v3180, %v2662
          %v3693 = vadd.f32 %v3181, %v2663
          %v3694 = vadd.f32 %v3182, %v2664
          %v3695 = vadd.f32 %v3183, %v2665
          %v3696 = vadd.f32 %v3184, %v2666
          %v3697 = vadd.f32 %v3185, %v2667
          %v3698 = vadd.f32 %v3186, %v2668
          %v3699 = vadd.f32 %v3187, %v2669
          %v3700 = vadd.f32 %v3188, %v2670
          %v3701 = vadd.f32 %v3189, %v2671
          %v3702 = vadd.f32 %v3190, %v2672
          %v3703 = vadd.f32 %v3191, %v2673
          %v3704 = vadd.f32 %v3192, %v2674
          %v3705 = vadd.f32 %v3193, %v2675
          %v3706 = vadd.f32 %v3194, %v2676
          %v3707 = vadd.f32 %v3195, %v2677
          %v3708 = vadd.f32 %v3196, %v2678
          %v3709 = vadd.f32 %v3197, %v2679
          %v3710 = vadd.f32 %v3198, %v2680
          %v3711 = vadd.f32 %v3199, %v2681
          %v3712 = vadd.f32 %v3200, %v2682
          %v3713 = vadd.f32 %v3201, %v2683
          %v3714 = vadd.f32 %v3202, %v2684
          %v3715 = vadd.f32 %v3203, %v2685
          %v3716 = vadd.f32 %v3204, %v2686
          %v3717 = vadd.f32 %v3205, %v2687
          %v3718 = vadd.f32 %v3206, %v2688
          %v3719 = vadd.f32 %v3207, %v2689
          %v3720 = vadd.f32 %v3208, %v2690
          %v3721 = vadd.f32 %v3209, %v2691
          %v3722 = vadd.f32 %v3210, %v2692
          %v3723 = vadd.f32 %v3211, %v2693
          %v3724 = vadd.f32 %v3212, %v2694
          %v3725 = vadd.f32 %v3213, %v2695
          %v3726 = vadd.f32 %v3214, %v2696
          %v3727 = vadd.f32 %v3215, %v2697
          %v3728 = vadd.f32 %v3216, %v2698
          %v3729 = vadd.f32 %v3217, %v2699
          %v3730 = vadd.f32 %v3218, %v2700
          %v3731 = vadd.f32 %v3219, %v2701
          %v3732 = vadd.f32 %v3220, %v2702
          %v3733 = vadd.f32 %v3221, %v2703
          %v3734 = vadd.f32 %v3222, %v2704
          %v3735 = vadd.f32 %v3223, %v2705
          %v3736 = vadd.f32 %v3224, %v2706
          %v3737 = vadd.f32 %v3225, %v2707
          %v3738 = vadd.f32 %v3226, %v2708
          %v3739 = vadd.f32 %v3227, %v2709
          %v3740 = vadd.f32 %v3228, %v2710
          %v3741 = vadd.f32 %v3229, %v2711
          %v3742 = vadd.f32 %v3230, %v2712
          %v3743 = vadd.f32 %v3231, %v2713
          %v3744 = vadd.f32 %v3232, %v2714
          %v3745 = vadd.f32 %v3233, %v2715
          %v3746 = vadd.f32 %v3234, %v2716
          %v3747 = vadd.f32 %v3235, %v2717
          %v3748 = vadd.f32 %v3236, %v2718
          %v3749 = vadd.f32 %v3237, %v2719
          %v3750 = vadd.f32 %v3238, %v2720
          %v3751 = vadd.f32 %v3239, %v2721
          %v3752 = vadd.f32 %v3240, %v2722
          %v3753 = vadd.f32 %v3241, %v2723
          %v3754 = vadd.f32 %v3242, %v2724
          %v3755 = vadd.f32 %v3243, %v2725
          %v3756 = vadd.f32 %v3244, %v2726
          %v3757 = vadd.f32 %v3245, %v2727
          %v3758 = vadd.f32 %v3246, %v2728
          %v3759 = vadd.f32 %v3247, %v2729
          %v3760 = vadd.f32 %v3248, %v2730
          %v3761 = vadd.f32 %v3249, %v2731
          %v3762 = vadd.f32 %v3250, %v2732
          %v3763 = vadd.f32 %v3251, %v2733
          %v3764 = vadd.f32 %v3252, %v2734
          %v3765 = vadd.f32 %v3253, %v2735
          %v3766 = vadd.f32 %v3254, %v2736
          %v3767 = vadd.f32 %v3255, %v2737
          %v3768 = vadd.f32 %v3256, %v2738
          %v3769 = vadd.f32 %v3257, %v2739
          %v3770 = vadd.f32 %v3258, %v2740
          %v3771 = vadd.f32 %v3259, %v2741
          %v3772 = vadd.f32 %v3260, %v2742
          %v3773 = vadd.f32 %v3261, %v2743
          %v3774 = vadd.f32 %v3262, %v2744
          %v3775 = vadd.f32 %v3263, %v2745
          %v3776 = vadd.f32 %v3264, %v2746
          %v3777 = vadd.f32 %v3265, %v2747
          %v3778 = vadd.f32 %v3266, %v2748
          %v3779 = vadd.f32 %v3267, %v2749
          %v3780 = vadd.f32 %v3268, %v2750
          %v3781 = vadd.f32 %v3269, %v2751
          %v3782 = vadd.f32 %v3270, %v2752
          %v3783 = vadd.f32 %v3271, %v2753
          %v3784 = vadd.f32 %v3272, %v2754
          %v3785 = vadd.f32 %v3273, %v2755
          %v3786 = vadd.f32 %v3274, %v2756
          %v3787 = vadd.f32 %v3275, %v2757
          %v3788 = vadd.f32 %v3276, %v2758
          %v3789 = vadd.f32 %v3277, %v2759
          %v3790 = vadd.f32 %v3278, %v2760
          %v3791 = vadd.f32 %v3279, %v2761
          %v3792 = vadd.f32 %v3280, %v2762
          %v3793 = vadd.f32 %v3281, %v2763
          %v3794 = vadd.f32 %v3282, %v2764
          %v3795 = vadd.f32 %v3283, %v2765
          %v3796 = vadd.f32 %v3284, %v2766
          %v3797 = vadd.f32 %v3285, %v2767
          %v3798 = vadd.f32 %v3286, %v2768
          %v3799 = vadd.f32 %v3287, %v2769
          %v3800 = vadd.f32 %v3288, %v2770
          %v3801 = vadd.f32 %v3289, %v2771
          %v3802 = vadd.f32 %v3290, %v2772
          %v3803 = vadd.f32 %v3291, %v2773
          %v3804 = vadd.f32 %v3292, %v2774
          %v3805 = vadd.f32 %v3293, %v2775
          %v3806 = vadd.f32 %v3294, %v2776
          %v3807 = vadd.f32 %v3295, %v2777
          %v3808 = vadd.f32 %v3296, %v2778
          %v3809 = vadd.f32 %v3297, %v2779
          %v3810 = vadd.f32 %v3298, %v2780
          %v3811 = vadd.f32 %v3299, %v2781
          %v3812 = vadd.f32 %v3300, %v2782
          %v3813 = vadd.f32 %v3301, %v2783
          %v3814 = vadd.f32 %v3302, %v2784
          %v3815 = vadd.f32 %v3303, %v2785
          %v3816 = vadd.f32 %v3304, %v2786
          %v3817 = vadd.f32 %v3305, %v2787
          %3818 = vst [vmem:[#allocation2] sm:$0xff] %v3306
          %3819 = vst [vmem:[#allocation2 + $0x8] sm:$0xff] %v3307
          %3820 = vst [vmem:[#allocation2 + $0x10] sm:$0xff] %v3308
          %3821 = vst [vmem:[#allocation2 + $0x18] sm:$0xff] %v3309
          %3822 = vst [vmem:[#allocation2 + $0x20] sm:$0xff] %v3310
          %3823 = vst [vmem:[#allocation2 + $0x28] sm:$0xff] %v3311
          %3824 = vst [vmem:[#allocation2 + $0x30] sm:$0xff] %v3312
          %3825 = vst [vmem:[#allocation2 + $0x38] sm:$0xff] %v3313
          %3826 = vst [vmem:[#allocation2 + $0x40] sm:$0xff] %v3314
          %3827 = vst [vmem:[#allocation2 + $0x48] sm:$0xff] %v3315
          %3828 = vst [vmem:[#allocation2 + $0x50] sm:$0xff] %v3316
          %3829 = vst [vmem:[#allocation2 + $0x58] sm:$0xff] %v3317
          %3830 = vst [vmem:[#allocation2 + $0x60] sm:$0xff] %v3318
          %3831 = vst [vmem:[#allocation2 + $0x68] sm:$0xff] %v3319
          %3832 = vst [vmem:[#allocation2 + $0x70] sm:$0xff] %v3320
          %3833 = vst [vmem:[#allocation2 + $0x78] sm:$0xff] %v3321
          %3834 = vst [vmem:[#allocation2 + $0x80] sm:$0xff] %v3322
          %3835 = vst [vmem:[#allocation2 + $0x88] sm:$0xff] %v3323
          %3836 = vst [vmem:[#allocation2 + $0x90] sm:$0xff] %v3324
          %3837 = vst [vmem:[#allocation2 + $0x98] sm:$0xff] %v3325
          %3838 = vst [vmem:[#allocation2 + $0xa0] sm:$0xff] %v3326
          %3839 = vst [vmem:[#allocation2 + $0xa8] sm:$0xff] %v3327
          %3840 = vst [vmem:[#allocation2 + $0xb0] sm:$0xff] %v3328
          %3841 = vst [vmem:[#allocation2 + $0xb8] sm:$0xff] %v3329
          %3842 = vst [vmem:[#allocation2 + $0xc0] sm:$0xff] %v3330
          %3843 = vst [vmem:[#allocation2 + $0xc8] sm:$0xff] %v3331
          %3844 = vst [vmem:[#allocation2 + $0xd0] sm:$0xff] %v3332
          %3845 = vst [vmem:[#allocation2 + $0xd8] sm:$0xff] %v3333
          %3846 = vst [vmem:[#allocation2 + $0xe0] sm:$0xff] %v3334
          %3847 = vst [vmem:[#allocation2 + $0xe8] sm:$0xff] %v3335
          %3848 = vst [vmem:[#allocation2 + $0xf0] sm:$0xff] %v3336
          %3849 = vst [vmem:[#allocation2 + $0xf8] sm:$0xff] %v3337
          %3850 = vst [vmem:[#allocation2 + $0x100] sm:$0xff] %v3338
          %3851 = vst [vmem:[#allocation2 + $0x108] sm:$0xff] %v3339
          %3852 = vst [vmem:[#allocation2 + $0x110] sm:$0xff] %v3340
          %3853 = vst [vmem:[#allocation2 + $0x118] sm:$0xff] %v3341
          %3854 = vst [vmem:[#allocation2 + $0x120] sm:$0xff] %v3342
          %3855 = vst [vmem:[#allocation2 + $0x128] sm:$0xff] %v3343
          %3856 = vst [vmem:[#allocation2 + $0x130] sm:$0xff] %v3344
          %3857 = vst [vmem:[#allocation2 + $0x138] sm:$0xff] %v3345
          %3858 = vst [vmem:[#allocation2 + $0x140] sm:$0xff] %v3346
          %3859 = vst [vmem:[#allocation2 + $0x148] sm:$0xff] %v3347
          %3860 = vst [vmem:[#allocation2 + $0x150] sm:$0xff] %v3348
          %3861 = vst [vmem:[#allocation2 + $0x158] sm:$0xff] %v3349
          %3862 = vst [vmem:[#allocation2 + $0x160] sm:$0xff] %v3350
          %3863 = vst [vmem:[#allocation2 + $0x168] sm:$0xff] %v3351
          %3864 = vst [vmem:[#allocation2 + $0x170] sm:$0xff] %v3352
          %3865 = vst [vmem:[#allocation2 + $0x178] sm:$0xff] %v3353
          %3866 = vst [vmem:[#allocation2 + $0x180] sm:$0xff] %v3354
          %3867 = vst [vmem:[#allocation2 + $0x188] sm:$0xff] %v3355
          %3868 = vst [vmem:[#allocation2 + $0x190] sm:$0xff] %v3356
          %3869 = vst [vmem:[#allocation2 + $0x198] sm:$0xff] %v3357
          %3870 = vst [vmem:[#allocation2 + $0x1a0] sm:$0xff] %v3358
          %3871 = vst [vmem:[#allocation2 + $0x1a8] sm:$0xff] %v3359
          %3872 = vst [vmem:[#allocation2 + $0x1b0] sm:$0xff] %v3360
          %3873 = vst [vmem:[#allocation2 + $0x1b8] sm:$0xff] %v3361
          %3874 = vst [vmem:[#allocation2 + $0x1c0] sm:$0xff] %v3362
          %3875 = vst [vmem:[#allocation2 + $0x1c8] sm:$0xff] %v3363
          %3876 = vst [vmem:[#allocation2 + $0x1d0] sm:$0xff] %v3364
          %3877 = vst [vmem:[#allocation2 + $0x1d8] sm:$0xff] %v3365
          %3878 = vst [vmem:[#allocation2 + $0x1e0] sm:$0xff] %v3366
          %3879 = vst [vmem:[#allocation2 + $0x1e8] sm:$0xff] %v3367
          %3880 = vst [vmem:[#allocation2 + $0x1f0] sm:$0xff] %v3368
          %3881 = vst [vmem:[#allocation2 + $0x1f8] sm:$0xff] %v3369
          %3882 = vst [vmem:[#allocation2 + $0x200] sm:$0xff] %v3370
          %3883 = vst [vmem:[#allocation2 + $0x208] sm:$0xff] %v3371
          %3884 = vst [vmem:[#allocation2 + $0x210] sm:$0xff] %v3372
          %3885 = vst [vmem:[#allocation2 + $0x218] sm:$0xff] %v3373
          %3886 = vst [vmem:[#allocation2 + $0x220] sm:$0xff] %v3374
          %3887 = vst [vmem:[#allocation2 + $0x228] sm:$0xff] %v3375
          %3888 = vst [vmem:[#allocation2 + $0x230] sm:$0xff] %v3376
          %3889 = vst [vmem:[#allocation2 + $0x238] sm:$0xff] %v3377
          %3890 = vst [vmem:[#allocation2 + $0x240] sm:$0xff] %v3378
          %3891 = vst [vmem:[#allocation2 + $0x248] sm:$0xff] %v3379
          %3892 = vst [vmem:[#allocation2 + $0x250] sm:$0xff] %v3380
          %3893 = vst [vmem:[#allocation2 + $0x258] sm:$0xff] %v3381
          %3894 = vst [vmem:[#allocation2 + $0x260] sm:$0xff] %v3382
          %3895 = vst [vmem:[#allocation2 + $0x268] sm:$0xff] %v3383
          %3896 = vst [vmem:[#allocation2 + $0x270] sm:$0xff] %v3384
          %3897 = vst [vmem:[#allocation2 + $0x278] sm:$0xff] %v3385
          %3898 = vst [vmem:[#allocation2 + $0x280] sm:$0xff] %v3386
          %3899 = vst [vmem:[#allocation2 + $0x288] sm:$0xff] %v3387
          %3900 = vst [vmem:[#allocation2 + $0x290] sm:$0xff] %v3388
          %3901 = vst [vmem:[#allocation2 + $0x298] sm:$0xff] %v3389
          %3902 = vst [vmem:[#allocation2 + $0x2a0] sm:$0xff] %v3390
          %3903 = vst [vmem:[#allocation2 + $0x2a8] sm:$0xff] %v3391
          %3904 = vst [vmem:[#allocation2 + $0x2b0] sm:$0xff] %v3392
          %3905 = vst [vmem:[#allocation2 + $0x2b8] sm:$0xff] %v3393
          %3906 = vst [vmem:[#allocation2 + $0x2c0] sm:$0xff] %v3394
          %3907 = vst [vmem:[#allocation2 + $0x2c8] sm:$0xff] %v3395
          %3908 = vst [vmem:[#allocation2 + $0x2d0] sm:$0xff] %v3396
          %3909 = vst [vmem:[#allocation2 + $0x2d8] sm:$0xff] %v3397
          %3910 = vst [vmem:[#allocation2 + $0x2e0] sm:$0xff] %v3398
          %3911 = vst [vmem:[#allocation2 + $0x2e8] sm:$0xff] %v3399
          %3912 = vst [vmem:[#allocation2 + $0x2f0] sm:$0xff] %v3400
          %3913 = vst [vmem:[#allocation2 + $0x2f8] sm:$0xff] %v3401
          %3914 = vst [vmem:[#allocation2 + $0x300] sm:$0xff] %v3402
          %3915 = vst [vmem:[#allocation2 + $0x308] sm:$0xff] %v3403
          %3916 = vst [vmem:[#allocation2 + $0x310] sm:$0xff] %v3404
          %3917 = vst [vmem:[#allocation2 + $0x318] sm:$0xff] %v3405
          %3918 = vst [vmem:[#allocation2 + $0x320] sm:$0xff] %v3406
          %3919 = vst [vmem:[#allocation2 + $0x328] sm:$0xff] %v3407
          %3920 = vst [vmem:[#allocation2 + $0x330] sm:$0xff] %v3408
          %3921 = vst [vmem:[#allocation2 + $0x338] sm:$0xff] %v3409
          %3922 = vst [vmem:[#allocation2 + $0x340] sm:$0xff] %v3410
          %3923 = vst [vmem:[#allocation2 + $0x348] sm:$0xff] %v3411
          %3924 = vst [vmem:[#allocation2 + $0x350] sm:$0xff] %v3412
          %3925 = vst [vmem:[#allocation2 + $0x358] sm:$0xff] %v3413
          %3926 = vst [vmem:[#allocation2 + $0x360] sm:$0xff] %v3414
          %3927 = vst [vmem:[#allocation2 + $0x368] sm:$0xff] %v3415
          %3928 = vst [vmem:[#allocation2 + $0x370] sm:$0xff] %v3416
          %3929 = vst [vmem:[#allocation2 + $0x378] sm:$0xff] %v3417
          %3930 = vst [vmem:[#allocation2 + $0x380] sm:$0xff] %v3418
          %3931 = vst [vmem:[#allocation2 + $0x388] sm:$0xff] %v3419
          %3932 = vst [vmem:[#allocation2 + $0x390] sm:$0xff] %v3420
          %3933 = vst [vmem:[#allocation2 + $0x398] sm:$0xff] %v3421
          %3934 = vst [vmem:[#allocation2 + $0x3a0] sm:$0xff] %v3422
          %3935 = vst [vmem:[#allocation2 + $0x3a8] sm:$0xff] %v3423
          %3936 = vst [vmem:[#allocation2 + $0x3b0] sm:$0xff] %v3424
          %3937 = vst [vmem:[#allocation2 + $0x3b8] sm:$0xff] %v3425
          %3938 = vst [vmem:[#allocation2 + $0x3c0] sm:$0xff] %v3426
          %3939 = vst [vmem:[#allocation2 + $0x3c8] sm:$0xff] %v3427
          %3940 = vst [vmem:[#allocation2 + $0x3d0] sm:$0xff] %v3428
          %3941 = vst [vmem:[#allocation2 + $0x3d8] sm:$0xff] %v3429
          %3942 = vst [vmem:[#allocation2 + $0x3e0] sm:$0xff] %v3430
          %3943 = vst [vmem:[#allocation2 + $0x3e8] sm:$0xff] %v3431
          %3944 = vst [vmem:[#allocation2 + $0x3f0] sm:$0xff] %v3432
          %3945 = vst [vmem:[#allocation2 + $0x3f8] sm:$0xff] %v3433
          %3946 = vst [vmem:[#allocation2 + $0x400] sm:$0xff] %v3434
          %3947 = vst [vmem:[#allocation2 + $0x408] sm:$0xff] %v3435
          %3948 = vst [vmem:[#allocation2 + $0x410] sm:$0xff] %v3436
          %3949 = vst [vmem:[#allocation2 + $0x418] sm:$0xff] %v3437
          %3950 = vst [vmem:[#allocation2 + $0x420] sm:$0xff] %v3438
          %3951 = vst [vmem:[#allocation2 + $0x428] sm:$0xff] %v3439
          %3952 = vst [vmem:[#allocation2 + $0x430] sm:$0xff] %v3440
          %3953 = vst [vmem:[#allocation2 + $0x438] sm:$0xff] %v3441
          %3954 = vst [vmem:[#allocation2 + $0x440] sm:$0xff] %v3442
          %3955 = vst [vmem:[#allocation2 + $0x448] sm:$0xff] %v3443
          %3956 = vst [vmem:[#allocation2 + $0x450] sm:$0xff] %v3444
          %3957 = vst [vmem:[#allocation2 + $0x458] sm:$0xff] %v3445
          %3958 = vst [vmem:[#allocation2 + $0x460] sm:$0xff] %v3446
          %3959 = vst [vmem:[#allocation2 + $0x468] sm:$0xff] %v3447
          %3960 = vst [vmem:[#allocation2 + $0x470] sm:$0xff] %v3448
          %3961 = vst [vmem:[#allocation2 + $0x478] sm:$0xff] %v3449
          %3962 = vst [vmem:[#allocation2 + $0x480] sm:$0xff] %v3450
          %3963 = vst [vmem:[#allocation2 + $0x488] sm:$0xff] %v3451
          %3964 = vst [vmem:[#allocation2 + $0x490] sm:$0xff] %v3452
          %3965 = vst [vmem:[#allocation2 + $0x498] sm:$0xff] %v3453
          %3966 = vst [vmem:[#allocation2 + $0x4a0] sm:$0xff] %v3454
          %3967 = vst [vmem:[#allocation2 + $0x4a8] sm:$0xff] %v3455
          %3968 = vst [vmem:[#allocation2 + $0x4b0] sm:$0xff] %v3456
          %3969 = vst [vmem:[#allocation2 + $0x4b8] sm:$0xff] %v3457
          %3970 = vst [vmem:[#allocation2 + $0x4c0] sm:$0xff] %v3458
          %3971 = vst [vmem:[#allocation2 + $0x4c8] sm:$0xff] %v3459
          %3972 = vst [vmem:[#allocation2 + $0x4d0] sm:$0xff] %v3460
          %3973 = vst [vmem:[#allocation2 + $0x4d8] sm:$0xff] %v3461
          %3974 = vst [vmem:[#allocation2 + $0x4e0] sm:$0xff] %v3462
          %3975 = vst [vmem:[#allocation2 + $0x4e8] sm:$0xff] %v3463
          %3976 = vst [vmem:[#allocation2 + $0x4f0] sm:$0xff] %v3464
          %3977 = vst [vmem:[#allocation2 + $0x4f8] sm:$0xff] %v3465
          %3978 = vst [vmem:[#allocation2 + $0x500] sm:$0xff] %v3466
          %3979 = vst [vmem:[#allocation2 + $0x508] sm:$0xff] %v3467
          %3980 = vst [vmem:[#allocation2 + $0x510] sm:$0xff] %v3468
          %3981 = vst [vmem:[#allocation2 + $0x518] sm:$0xff] %v3469
          %3982 = vst [vmem:[#allocation2 + $0x520] sm:$0xff] %v3470
          %3983 = vst [vmem:[#allocation2 + $0x528] sm:$0xff] %v3471
          %3984 = vst [vmem:[#allocation2 + $0x530] sm:$0xff] %v3472
          %3985 = vst [vmem:[#allocation2 + $0x538] sm:$0xff] %v3473
          %3986 = vst [vmem:[#allocation2 + $0x540] sm:$0xff] %v3474
          %3987 = vst [vmem:[#allocation2 + $0x548] sm:$0xff] %v3475
          %3988 = vst [vmem:[#allocation2 + $0x550] sm:$0xff] %v3476
          %3989 = vst [vmem:[#allocation2 + $0x558] sm:$0xff] %v3477
          %3990 = vst [vmem:[#allocation2 + $0x560] sm:$0xff] %v3478
          %3991 = vst [vmem:[#allocation2 + $0x568] sm:$0xff] %v3479
          %3992 = vst [vmem:[#allocation2 + $0x570] sm:$0xff] %v3480
          %3993 = vst [vmem:[#allocation2 + $0x578] sm:$0xff] %v3481
          %3994 = vst [vmem:[#allocation2 + $0x580] sm:$0xff] %v3482
          %3995 = vst [vmem:[#allocation2 + $0x588] sm:$0xff] %v3483
          %3996 = vst [vmem:[#allocation2 + $0x590] sm:$0xff] %v3484
          %3997 = vst [vmem:[#allocation2 + $0x598] sm:$0xff] %v3485
          %3998 = vst [vmem:[#allocation2 + $0x5a0] sm:$0xff] %v3486
          %3999 = vst [vmem:[#allocation2 + $0x5a8] sm:$0xff] %v3487
          %4000 = vst [vmem:[#allocation2 + $0x5b0] sm:$0xff] %v3488
          %4001 = vst [vmem:[#allocation2 + $0x5b8] sm:$0xff] %v3489
          %4002 = vst [vmem:[#allocation2 + $0x5c0] sm:$0xff] %v3490
          %4003 = vst [vmem:[#allocation2 + $0x5c8] sm:$0xff] %v3491
          %4004 = vst [vmem:[#allocation2 + $0x5d0] sm:$0xff] %v3492
          %4005 = vst [vmem:[#allocation2 + $0x5d8] sm:$0xff] %v3493
          %4006 = vst [vmem:[#allocation2 + $0x5e0] sm:$0xff] %v3494
          %4007 = vst [vmem:[#allocation2 + $0x5e8] sm:$0xff] %v3495
          %4008 = vst [vmem:[#allocation2 + $0x5f0] sm:$0xff] %v3496
          %4009 = vst [vmem:[#allocation2 + $0x5f8] sm:$0xff] %v3497
          %4010 = vst [vmem:[#allocation2 + $0x600] sm:$0xff] %v3498
          %4011 = vst [vmem:[#allocation2 + $0x608] sm:$0xff] %v3499
          %4012 = vst [vmem:[#allocation2 + $0x610] sm:$0xff] %v3500
          %4013 = vst [vmem:[#allocation2 + $0x618] sm:$0xff] %v3501
          %4014 = vst [vmem:[#allocation2 + $0x620] sm:$0xff] %v3502
          %4015 = vst [vmem:[#allocation2 + $0x628] sm:$0xff] %v3503
          %4016 = vst [vmem:[#allocation2 + $0x630] sm:$0xff] %v3504
          %4017 = vst [vmem:[#allocation2 + $0x638] sm:$0xff] %v3505
          %4018 = vst [vmem:[#allocation2 + $0x640] sm:$0xff] %v3506
          %4019 = vst [vmem:[#allocation2 + $0x648] sm:$0xff] %v3507
          %4020 = vst [vmem:[#allocation2 + $0x650] sm:$0xff] %v3508
          %4021 = vst [vmem:[#allocation2 + $0x658] sm:$0xff] %v3509
          %4022 = vst [vmem:[#allocation2 + $0x660] sm:$0xff] %v3510
          %4023 = vst [vmem:[#allocation2 + $0x668] sm:$0xff] %v3511
          %4024 = vst [vmem:[#allocation2 + $0x670] sm:$0xff] %v3512
          %4025 = vst [vmem:[#allocation2 + $0x678] sm:$0xff] %v3513
          %4026 = vst [vmem:[#allocation2 + $0x680] sm:$0xff] %v3514
          %4027 = vst [vmem:[#allocation2 + $0x688] sm:$0xff] %v3515
          %4028 = vst [vmem:[#allocation2 + $0x690] sm:$0xff] %v3516
          %4029 = vst [vmem:[#allocation2 + $0x698] sm:$0xff] %v3517
          %4030 = vst [vmem:[#allocation2 + $0x6a0] sm:$0xff] %v3518
          %4031 = vst [vmem:[#allocation2 + $0x6a8] sm:$0xff] %v3519
          %4032 = vst [vmem:[#allocation2 + $0x6b0] sm:$0xff] %v3520
          %4033 = vst [vmem:[#allocation2 + $0x6b8] sm:$0xff] %v3521
          %4034 = vst [vmem:[#allocation2 + $0x6c0] sm:$0xff] %v3522
          %4035 = vst [vmem:[#allocation2 + $0x6c8] sm:$0xff] %v3523
          %4036 = vst [vmem:[#allocation2 + $0x6d0] sm:$0xff] %v3524
          %4037 = vst [vmem:[#allocation2 + $0x6d8] sm:$0xff] %v3525
          %4038 = vst [vmem:[#allocation2 + $0x6e0] sm:$0xff] %v3526
          %4039 = vst [vmem:[#allocation2 + $0x6e8] sm:$0xff] %v3527
          %4040 = vst [vmem:[#allocation2 + $0x6f0] sm:$0xff] %v3528
          %4041 = vst [vmem:[#allocation2 + $0x6f8] sm:$0xff] %v3529
          %4042 = vst [vmem:[#allocation2 + $0x700] sm:$0xff] %v3530
          %4043 = vst [vmem:[#allocation2 + $0x708] sm:$0xff] %v3531
          %4044 = vst [vmem:[#allocation2 + $0x710] sm:$0xff] %v3532
          %4045 = vst [vmem:[#allocation2 + $0x718] sm:$0xff] %v3533
          %4046 = vst [vmem:[#allocation2 + $0x720] sm:$0xff] %v3534
          %4047 = vst [vmem:[#allocation2 + $0x728] sm:$0xff] %v3535
          %4048 = vst [vmem:[#allocation2 + $0x730] sm:$0xff] %v3536
          %4049 = vst [vmem:[#allocation2 + $0x738] sm:$0xff] %v3537
          %4050 = vst [vmem:[#allocation2 + $0x740] sm:$0xff] %v3538
          %4051 = vst [vmem:[#allocation2 + $0x748] sm:$0xff] %v3539
          %4052 = vst [vmem:[#allocation2 + $0x750] sm:$0xff] %v3540
          %4053 = vst [vmem:[#allocation2 + $0x758] sm:$0xff] %v3541
          %4054 = vst [vmem:[#allocation2 + $0x760] sm:$0xff] %v3542
          %4055 = vst [vmem:[#allocation2 + $0x768] sm:$0xff] %v3543
          %4056 = vst [vmem:[#allocation2 + $0x770] sm:$0xff] %v3544
          %4057 = vst [vmem:[#allocation2 + $0x778] sm:$0xff] %v3545
          %4058 = vst [vmem:[#allocation2 + $0x780] sm:$0xff] %v3546
          %4059 = vst [vmem:[#allocation2 + $0x788] sm:$0xff] %v3547
          %4060 = vst [vmem:[#allocation2 + $0x790] sm:$0xff] %v3548
          %4061 = vst [vmem:[#allocation2 + $0x798] sm:$0xff] %v3549
          %4062 = vst [vmem:[#allocation2 + $0x7a0] sm:$0xff] %v3550
          %4063 = vst [vmem:[#allocation2 + $0x7a8] sm:$0xff] %v3551
          %4064 = vst [vmem:[#allocation2 + $0x7b0] sm:$0xff] %v3552
          %4065 = vst [vmem:[#allocation2 + $0x7b8] sm:$0xff] %v3553
          %4066 = vst [vmem:[#allocation2 + $0x7c0] sm:$0xff] %v3554
          %4067 = vst [vmem:[#allocation2 + $0x7c8] sm:$0xff] %v3555
          %4068 = vst [vmem:[#allocation2 + $0x7d0] sm:$0xff] %v3556
          %4069 = vst [vmem:[#allocation2 + $0x7d8] sm:$0xff] %v3557
          %4070 = vst [vmem:[#allocation2 + $0x7e0] sm:$0xff] %v3558
          %4071 = vst [vmem:[#allocation2 + $0x7e8] sm:$0xff] %v3559
          %4072 = vst [vmem:[#allocation2 + $0x7f0] sm:$0xff] %v3560
          %4073 = vst [vmem:[#allocation2 + $0x7f8] sm:$0xff] %v3561
          %4074 = vst [vmem:[#allocation2 + $0x800] sm:$0xff] %v3562
          %4075 = vst [vmem:[#allocation2 + $0x808] sm:$0xff] %v3563
          %4076 = vst [vmem:[#allocation2 + $0x810] sm:$0xff] %v3564
          %4077 = vst [vmem:[#allocation2 + $0x818] sm:$0xff] %v3565
          %4078 = vst [vmem:[#allocation2 + $0x820] sm:$0xff] %v3566
          %4079 = vst [vmem:[#allocation2 + $0x828] sm:$0xff] %v3567
          %4080 = vst [vmem:[#allocation2 + $0x830] sm:$0xff] %v3568
          %4081 = vst [vmem:[#allocation2 + $0x838] sm:$0xff] %v3569
          %4082 = vst [vmem:[#allocation2 + $0x840] sm:$0xff] %v3570
          %4083 = vst [vmem:[#allocation2 + $0x848] sm:$0xff] %v3571
          %4084 = vst [vmem:[#allocation2 + $0x850] sm:$0xff] %v3572
          %4085 = vst [vmem:[#allocation2 + $0x858] sm:$0xff] %v3573
          %4086 = vst [vmem:[#allocation2 + $0x860] sm:$0xff] %v3574
          %4087 = vst [vmem:[#allocation2 + $0x868] sm:$0xff] %v3575
          %4088 = vst [vmem:[#allocation2 + $0x870] sm:$0xff] %v3576
          %4089 = vst [vmem:[#allocation2 + $0x878] sm:$0xff] %v3577
          %4090 = vst [vmem:[#allocation2 + $0x880] sm:$0xff] %v3578
          %4091 = vst [vmem:[#allocation2 + $0x888] sm:$0xff] %v3579
          %4092 = vst [vmem:[#allocation2 + $0x890] sm:$0xff] %v3580
          %4093 = vst [vmem:[#allocation2 + $0x898] sm:$0xff] %v3581
          %4094 = vst [vmem:[#allocation2 + $0x8a0] sm:$0xff] %v3582
          %4095 = vst [vmem:[#allocation2 + $0x8a8] sm:$0xff] %v3583
          %4096 = vst [vmem:[#allocation2 + $0x8b0] sm:$0xff] %v3584
          %4097 = vst [vmem:[#allocation2 + $0x8b8] sm:$0xff] %v3585
          %4098 = vst [vmem:[#allocation2 + $0x8c0] sm:$0xff] %v3586
          %4099 = vst [vmem:[#allocation2 + $0x8c8] sm:$0xff] %v3587
          %4100 = vst [vmem:[#allocation2 + $0x8d0] sm:$0xff] %v3588
          %4101 = vst [vmem:[#allocation2 + $0x8d8] sm:$0xff] %v3589
          %4102 = vst [vmem:[#allocation2 + $0x8e0] sm:$0xff] %v3590
          %4103 = vst [vmem:[#allocation2 + $0x8e8] sm:$0xff] %v3591
          %4104 = vst [vmem:[#allocation2 + $0x8f0] sm:$0xff] %v3592
          %4105 = vst [vmem:[#allocation2 + $0x8f8] sm:$0xff] %v3593
          %4106 = vst [vmem:[#allocation2 + $0x900] sm:$0xff] %v3594
          %4107 = vst [vmem:[#allocation2 + $0x908] sm:$0xff] %v3595
          %4108 = vst [vmem:[#allocation2 + $0x910] sm:$0xff] %v3596
          %4109 = vst [vmem:[#allocation2 + $0x918] sm:$0xff] %v3597
          %4110 = vst [vmem:[#allocation2 + $0x920] sm:$0xff] %v3598
          %4111 = vst [vmem:[#allocation2 + $0x928] sm:$0xff] %v3599
          %4112 = vst [vmem:[#allocation2 + $0x930] sm:$0xff] %v3600
          %4113 = vst [vmem:[#allocation2 + $0x938] sm:$0xff] %v3601
          %4114 = vst [vmem:[#allocation2 + $0x940] sm:$0xff] %v3602
          %4115 = vst [vmem:[#allocation2 + $0x948] sm:$0xff] %v3603
          %4116 = vst [vmem:[#allocation2 + $0x950] sm:$0xff] %v3604
          %4117 = vst [vmem:[#allocation2 + $0x958] sm:$0xff] %v3605
          %4118 = vst [vmem:[#allocation2 + $0x960] sm:$0xff] %v3606
          %4119 = vst [vmem:[#allocation2 + $0x968] sm:$0xff] %v3607
          %4120 = vst [vmem:[#allocation2 + $0x970] sm:$0xff] %v3608
          %4121 = vst [vmem:[#allocation2 + $0x978] sm:$0xff] %v3609
          %4122 = vst [vmem:[#allocation2 + $0x980] sm:$0xff] %v3610
          %4123 = vst [vmem:[#allocation2 + $0x988] sm:$0xff] %v3611
          %4124 = vst [vmem:[#allocation2 + $0x990] sm:$0xff] %v3612
          %4125 = vst [vmem:[#allocation2 + $0x998] sm:$0xff] %v3613
          %4126 = vst [vmem:[#allocation2 + $0x9a0] sm:$0xff] %v3614
          %4127 = vst [vmem:[#allocation2 + $0x9a8] sm:$0xff] %v3615
          %4128 = vst [vmem:[#allocation2 + $0x9b0] sm:$0xff] %v3616
          %4129 = vst [vmem:[#allocation2 + $0x9b8] sm:$0xff] %v3617
          %4130 = vst [vmem:[#allocation2 + $0x9c0] sm:$0xff] %v3618
          %4131 = vst [vmem:[#allocation2 + $0x9c8] sm:$0xff] %v3619
          %4132 = vst [vmem:[#allocation2 + $0x9d0] sm:$0xff] %v3620
          %4133 = vst [vmem:[#allocation2 + $0x9d8] sm:$0xff] %v3621
          %4134 = vst [vmem:[#allocation2 + $0x9e0] sm:$0xff] %v3622
          %4135 = vst [vmem:[#allocation2 + $0x9e8] sm:$0xff] %v3623
          %4136 = vst [vmem:[#allocation2 + $0x9f0] sm:$0xff] %v3624
          %4137 = vst [vmem:[#allocation2 + $0x9f8] sm:$0xff] %v3625
          %4138 = vst [vmem:[#allocation2 + $0xa00] sm:$0xff] %v3626
          %4139 = vst [vmem:[#allocation2 + $0xa08] sm:$0xff] %v3627
          %4140 = vst [vmem:[#allocation2 + $0xa10] sm:$0xff] %v3628
          %4141 = vst [vmem:[#allocation2 + $0xa18] sm:$0xff] %v3629
          %4142 = vst [vmem:[#allocation2 + $0xa20] sm:$0xff] %v3630
          %4143 = vst [vmem:[#allocation2 + $0xa28] sm:$0xff] %v3631
          %4144 = vst [vmem:[#allocation2 + $0xa30] sm:$0xff] %v3632
          %4145 = vst [vmem:[#allocation2 + $0xa38] sm:$0xff] %v3633
          %4146 = vst [vmem:[#allocation2 + $0xa40] sm:$0xff] %v3634
          %4147 = vst [vmem:[#allocation2 + $0xa48] sm:$0xff] %v3635
          %4148 = vst [vmem:[#allocation2 + $0xa50] sm:$0xff] %v3636
          %4149 = vst [vmem:[#allocation2 + $0xa58] sm:$0xff] %v3637
          %4150 = vst [vmem:[#allocation2 + $0xa60] sm:$0xff] %v3638
          %4151 = vst [vmem:[#allocation2 + $0xa68] sm:$0xff] %v3639
          %4152 = vst [vmem:[#allocation2 + $0xa70] sm:$0xff] %v3640
          %4153 = vst [vmem:[#allocation2 + $0xa78] sm:$0xff] %v3641
          %4154 = vst [vmem:[#allocation2 + $0xa80] sm:$0xff] %v3642
          %4155 = vst [vmem:[#allocation2 + $0xa88] sm:$0xff] %v3643
          %4156 = vst [vmem:[#allocation2 + $0xa90] sm:$0xff] %v3644
          %4157 = vst [vmem:[#allocation2 + $0xa98] sm:$0xff] %v3645
          %4158 = vst [vmem:[#allocation2 + $0xaa0] sm:$0xff] %v3646
          %4159 = vst [vmem:[#allocation2 + $0xaa8] sm:$0xff] %v3647
          %4160 = vst [vmem:[#allocation2 + $0xab0] sm:$0xff] %v3648
          %4161 = vst [vmem:[#allocation2 + $0xab8] sm:$0xff] %v3649
          %4162 = vst [vmem:[#allocation2 + $0xac0] sm:$0xff] %v3650
          %4163 = vst [vmem:[#allocation2 + $0xac8] sm:$0xff] %v3651
          %4164 = vst [vmem:[#allocation2 + $0xad0] sm:$0xff] %v3652
          %4165 = vst [vmem:[#allocation2 + $0xad8] sm:$0xff] %v3653
          %4166 = vst [vmem:[#allocation2 + $0xae0] sm:$0xff] %v3654
          %4167 = vst [vmem:[#allocation2 + $0xae8] sm:$0xff] %v3655
          %4168 = vst [vmem:[#allocation2 + $0xaf0] sm:$0xff] %v3656
          %4169 = vst [vmem:[#allocation2 + $0xaf8] sm:$0xff] %v3657
          %4170 = vst [vmem:[#allocation2 + $0xb00] sm:$0xff] %v3658
          %4171 = vst [vmem:[#allocation2 + $0xb08] sm:$0xff] %v3659
          %4172 = vst [vmem:[#allocation2 + $0xb10] sm:$0xff] %v3660
          %4173 = vst [vmem:[#allocation2 + $0xb18] sm:$0xff] %v3661
          %4174 = vst [vmem:[#allocation2 + $0xb20] sm:$0xff] %v3662
          %4175 = vst [vmem:[#allocation2 + $0xb28] sm:$0xff] %v3663
          %4176 = vst [vmem:[#allocation2 + $0xb30] sm:$0xff] %v3664
          %4177 = vst [vmem:[#allocation2 + $0xb38] sm:$0xff] %v3665
          %4178 = vst [vmem:[#allocation2 + $0xb40] sm:$0xff] %v3666
          %4179 = vst [vmem:[#allocation2 + $0xb48] sm:$0xff] %v3667
          %4180 = vst [vmem:[#allocation2 + $0xb50] sm:$0xff] %v3668
          %4181 = vst [vmem:[#allocation2 + $0xb58] sm:$0xff] %v3669
          %4182 = vst [vmem:[#allocation2 + $0xb60] sm:$0xff] %v3670
          %4183 = vst [vmem:[#allocation2 + $0xb68] sm:$0xff] %v3671
          %4184 = vst [vmem:[#allocation2 + $0xb70] sm:$0xff] %v3672
          %4185 = vst [vmem:[#allocation2 + $0xb78] sm:$0xff] %v3673
          %4186 = vst [vmem:[#allocation2 + $0xb80] sm:$0xff] %v3674
          %4187 = vst [vmem:[#allocation2 + $0xb88] sm:$0xff] %v3675
          %4188 = vst [vmem:[#allocation2 + $0xb90] sm:$0xff] %v3676
          %4189 = vst [vmem:[#allocation2 + $0xb98] sm:$0xff] %v3677
          %4190 = vst [vmem:[#allocation2 + $0xba0] sm:$0xff] %v3678
          %4191 = vst [vmem:[#allocation2 + $0xba8] sm:$0xff] %v3679
          %4192 = vst [vmem:[#allocation2 + $0xbb0] sm:$0xff] %v3680
          %4193 = vst [vmem:[#allocation2 + $0xbb8] sm:$0xff] %v3681
          %4194 = vst [vmem:[#allocation2 + $0xbc0] sm:$0xff] %v3682
          %4195 = vst [vmem:[#allocation2 + $0xbc8] sm:$0xff] %v3683
          %4196 = vst [vmem:[#allocation2 + $0xbd0] sm:$0xff] %v3684
          %4197 = vst [vmem:[#allocation2 + $0xbd8] sm:$0xff] %v3685
          %4198 = vst [vmem:[#allocation2 + $0xbe0] sm:$0xff] %v3686
          %4199 = vst [vmem:[#allocation2 + $0xbe8] sm:$0xff] %v3687
          %4200 = vst [vmem:[#allocation2 + $0xbf0] sm:$0xff] %v3688
          %4201 = vst [vmem:[#allocation2 + $0xbf8] sm:$0xff] %v3689
          %4202 = vst [vmem:[#allocation2 + $0xc00] sm:$0xff] %v3690
          %4203 = vst [vmem:[#allocation2 + $0xc08] sm:$0xff] %v3691
          %4204 = vst [vmem:[#allocation2 + $0xc10] sm:$0xff] %v3692
          %4205 = vst [vmem:[#allocation2 + $0xc18] sm:$0xff] %v3693
          %4206 = vst [vmem:[#allocation2 + $0xc20] sm:$0xff] %v3694
          %4207 = vst [vmem:[#allocation2 + $0xc28] sm:$0xff] %v3695
          %4208 = vst [vmem:[#allocation2 + $0xc30] sm:$0xff] %v3696
          %4209 = vst [vmem:[#allocation2 + $0xc38] sm:$0xff] %v3697
          %4210 = vst [vmem:[#allocation2 + $0xc40] sm:$0xff] %v3698
          %4211 = vst [vmem:[#allocation2 + $0xc48] sm:$0xff] %v3699
          %4212 = vst [vmem:[#allocation2 + $0xc50] sm:$0xff] %v3700
          %4213 = vst [vmem:[#allocation2 + $0xc58] sm:$0xff] %v3701
          %4214 = vst [vmem:[#allocation2 + $0xc60] sm:$0xff] %v3702
          %4215 = vst [vmem:[#allocation2 + $0xc68] sm:$0xff] %v3703
          %4216 = vst [vmem:[#allocation2 + $0xc70] sm:$0xff] %v3704
          %4217 = vst [vmem:[#allocation2 + $0xc78] sm:$0xff] %v3705
          %4218 = vst [vmem:[#allocation2 + $0xc80] sm:$0xff] %v3706
          %4219 = vst [vmem:[#allocation2 + $0xc88] sm:$0xff] %v3707
          %4220 = vst [vmem:[#allocation2 + $0xc90] sm:$0xff] %v3708
          %4221 = vst [vmem:[#allocation2 + $0xc98] sm:$0xff] %v3709
          %4222 = vst [vmem:[#allocation2 + $0xca0] sm:$0xff] %v3710
          %4223 = vst [vmem:[#allocation2 + $0xca8] sm:$0xff] %v3711
          %4224 = vst [vmem:[#allocation2 + $0xcb0] sm:$0xff] %v3712
          %4225 = vst [vmem:[#allocation2 + $0xcb8] sm:$0xff] %v3713
          %4226 = vst [vmem:[#allocation2 + $0xcc0] sm:$0xff] %v3714
          %4227 = vst [vmem:[#allocation2 + $0xcc8] sm:$0xff] %v3715
          %4228 = vst [vmem:[#allocation2 + $0xcd0] sm:$0xff] %v3716
          %4229 = vst [vmem:[#allocation2 + $0xcd8] sm:$0xff] %v3717
          %4230 = vst [vmem:[#allocation2 + $0xce0] sm:$0xff] %v3718
          %4231 = vst [vmem:[#allocation2 + $0xce8] sm:$0xff] %v3719
          %4232 = vst [vmem:[#allocation2 + $0xcf0] sm:$0xff] %v3720
          %4233 = vst [vmem:[#allocation2 + $0xcf8] sm:$0xff] %v3721
          %4234 = vst [vmem:[#allocation2 + $0xd00] sm:$0xff] %v3722
          %4235 = vst [vmem:[#allocation2 + $0xd08] sm:$0xff] %v3723
          %4236 = vst [vmem:[#allocation2 + $0xd10] sm:$0xff] %v3724
          %4237 = vst [vmem:[#allocation2 + $0xd18] sm:$0xff] %v3725
          %4238 = vst [vmem:[#allocation2 + $0xd20] sm:$0xff] %v3726
          %4239 = vst [vmem:[#allocation2 + $0xd28] sm:$0xff] %v3727
          %4240 = vst [vmem:[#allocation2 + $0xd30] sm:$0xff] %v3728
          %4241 = vst [vmem:[#allocation2 + $0xd38] sm:$0xff] %v3729
          %4242 = vst [vmem:[#allocation2 + $0xd40] sm:$0xff] %v3730
          %4243 = vst [vmem:[#allocation2 + $0xd48] sm:$0xff] %v3731
          %4244 = vst [vmem:[#allocation2 + $0xd50] sm:$0xff] %v3732
          %4245 = vst [vmem:[#allocation2 + $0xd58] sm:$0xff] %v3733
          %4246 = vst [vmem:[#allocation2 + $0xd60] sm:$0xff] %v3734
          %4247 = vst [vmem:[#allocation2 + $0xd68] sm:$0xff] %v3735
          %4248 = vst [vmem:[#allocation2 + $0xd70] sm:$0xff] %v3736
          %4249 = vst [vmem:[#allocation2 + $0xd78] sm:$0xff] %v3737
          %4250 = vst [vmem:[#allocation2 + $0xd80] sm:$0xff] %v3738
          %4251 = vst [vmem:[#allocation2 + $0xd88] sm:$0xff] %v3739
          %4252 = vst [vmem:[#allocation2 + $0xd90] sm:$0xff] %v3740
          %4253 = vst [vmem:[#allocation2 + $0xd98] sm:$0xff] %v3741
          %4254 = vst [vmem:[#allocation2 + $0xda0] sm:$0xff] %v3742
          %4255 = vst [vmem:[#allocation2 + $0xda8] sm:$0xff] %v3743
          %4256 = vst [vmem:[#allocation2 + $0xdb0] sm:$0xff] %v3744
          %4257 = vst [vmem:[#allocation2 + $0xdb8] sm:$0xff] %v3745
          %4258 = vst [vmem:[#allocation2 + $0xdc0] sm:$0xff] %v3746
          %4259 = vst [vmem:[#allocation2 + $0xdc8] sm:$0xff] %v3747
          %4260 = vst [vmem:[#allocation2 + $0xdd0] sm:$0xff] %v3748
          %4261 = vst [vmem:[#allocation2 + $0xdd8] sm:$0xff] %v3749
          %4262 = vst [vmem:[#allocation2 + $0xde0] sm:$0xff] %v3750
          %4263 = vst [vmem:[#allocation2 + $0xde8] sm:$0xff] %v3751
          %4264 = vst [vmem:[#allocation2 + $0xdf0] sm:$0xff] %v3752
          %4265 = vst [vmem:[#allocation2 + $0xdf8] sm:$0xff] %v3753
          %4266 = vst [vmem:[#allocation2 + $0xe00] sm:$0xff] %v3754
          %4267 = vst [vmem:[#allocation2 + $0xe08] sm:$0xff] %v3755
          %4268 = vst [vmem:[#allocation2 + $0xe10] sm:$0xff] %v3756
          %4269 = vst [vmem:[#allocation2 + $0xe18] sm:$0xff] %v3757
          %4270 = vst [vmem:[#allocation2 + $0xe20] sm:$0xff] %v3758
          %4271 = vst [vmem:[#allocation2 + $0xe28] sm:$0xff] %v3759
          %4272 = vst [vmem:[#allocation2 + $0xe30] sm:$0xff] %v3760
          %4273 = vst [vmem:[#allocation2 + $0xe38] sm:$0xff] %v3761
          %4274 = vst [vmem:[#allocation2 + $0xe40] sm:$0xff] %v3762
          %4275 = vst [vmem:[#allocation2 + $0xe48] sm:$0xff] %v3763
          %4276 = vst [vmem:[#allocation2 + $0xe50] sm:$0xff] %v3764
          %4277 = vst [vmem:[#allocation2 + $0xe58] sm:$0xff] %v3765
          %4278 = vst [vmem:[#allocation2 + $0xe60] sm:$0xff] %v3766
          %4279 = vst [vmem:[#allocation2 + $0xe68] sm:$0xff] %v3767
          %4280 = vst [vmem:[#allocation2 + $0xe70] sm:$0xff] %v3768
          %4281 = vst [vmem:[#allocation2 + $0xe78] sm:$0xff] %v3769
          %4282 = vst [vmem:[#allocation2 + $0xe80] sm:$0xff] %v3770
          %4283 = vst [vmem:[#allocation2 + $0xe88] sm:$0xff] %v3771
          %4284 = vst [vmem:[#allocation2 + $0xe90] sm:$0xff] %v3772
          %4285 = vst [vmem:[#allocation2 + $0xe98] sm:$0xff] %v3773
          %4286 = vst [vmem:[#allocation2 + $0xea0] sm:$0xff] %v3774
          %4287 = vst [vmem:[#allocation2 + $0xea8] sm:$0xff] %v3775
          %4288 = vst [vmem:[#allocation2 + $0xeb0] sm:$0xff] %v3776
          %4289 = vst [vmem:[#allocation2 + $0xeb8] sm:$0xff] %v3777
          %4290 = vst [vmem:[#allocation2 + $0xec0] sm:$0xff] %v3778
          %4291 = vst [vmem:[#allocation2 + $0xec8] sm:$0xff] %v3779
          %4292 = vst [vmem:[#allocation2 + $0xed0] sm:$0xff] %v3780
          %4293 = vst [vmem:[#allocation2 + $0xed8] sm:$0xff] %v3781
          %4294 = vst [vmem:[#allocation2 + $0xee0] sm:$0xff] %v3782
          %4295 = vst [vmem:[#allocation2 + $0xee8] sm:$0xff] %v3783
          %4296 = vst [vmem:[#allocation2 + $0xef0] sm:$0xff] %v3784
          %4297 = vst [vmem:[#allocation2 + $0xef8] sm:$0xff] %v3785
          %4298 = vst [vmem:[#allocation2 + $0xf00] sm:$0xff] %v3786
          %4299 = vst [vmem:[#allocation2 + $0xf08] sm:$0xff] %v3787
          %4300 = vst [vmem:[#allocation2 + $0xf10] sm:$0xff] %v3788
          %4301 = vst [vmem:[#allocation2 + $0xf18] sm:$0xff] %v3789
          %4302 = vst [vmem:[#allocation2 + $0xf20] sm:$0xff] %v3790
          %4303 = vst [vmem:[#allocation2 + $0xf28] sm:$0xff] %v3791
          %4304 = vst [vmem:[#allocation2 + $0xf30] sm:$0xff] %v3792
          %4305 = vst [vmem:[#allocation2 + $0xf38] sm:$0xff] %v3793
          %4306 = vst [vmem:[#allocation2 + $0xf40] sm:$0xff] %v3794
          %4307 = vst [vmem:[#allocation2 + $0xf48] sm:$0xff] %v3795
          %4308 = vst [vmem:[#allocation2 + $0xf50] sm:$0xff] %v3796
          %4309 = vst [vmem:[#allocation2 + $0xf58] sm:$0xff] %v3797
          %4310 = vst [vmem:[#allocation2 + $0xf60] sm:$0xff] %v3798
          %4311 = vst [vmem:[#allocation2 + $0xf68] sm:$0xff] %v3799
          %4312 = vst [vmem:[#allocation2 + $0xf70] sm:$0xff] %v3800
          %4313 = vst [vmem:[#allocation2 + $0xf78] sm:$0xff] %v3801
          %4314 = vst [vmem:[#allocation2 + $0xf80] sm:$0xff] %v3802
          %4315 = vst [vmem:[#allocation2 + $0xf88] sm:$0xff] %v3803
          %4316 = vst [vmem:[#allocation2 + $0xf90] sm:$0xff] %v3804
          %4317 = vst [vmem:[#allocation2 + $0xf98] sm:$0xff] %v3805
          %4318 = vst [vmem:[#allocation2 + $0xfa0] sm:$0xff] %v3806
          %4319 = vst [vmem:[#allocation2 + $0xfa8] sm:$0xff] %v3807
          %4320 = vst [vmem:[#allocation2 + $0xfb0] sm:$0xff] %v3808
          %4321 = vst [vmem:[#allocation2 + $0xfb8] sm:$0xff] %v3809
          %4322 = vst [vmem:[#allocation2 + $0xfc0] sm:$0xff] %v3810
          %4323 = vst [vmem:[#allocation2 + $0xfc8] sm:$0xff] %v3811
          %4324 = vst [vmem:[#allocation2 + $0xfd0] sm:$0xff] %v3812
          %4325 = vst [vmem:[#allocation2 + $0xfd8] sm:$0xff] %v3813
          %4326 = vst [vmem:[#allocation2 + $0xfe0] sm:$0xff] %v3814
          %4327 = vst [vmem:[#allocation2 + $0xfe8] sm:$0xff] %v3815
          %4328 = vst [vmem:[#allocation2 + $0xff0] sm:$0xff] %v3816
          %4329 = vst [vmem:[#allocation2 + $0xff8] sm:$0xff] %v3817
        $region44: #{tpu_custom_call.1} parent=27 // pred_fallthru
          _
        %p4330 = scmp.gt.s32.totalorder %s2789, 520
        // Predicated region
        $region45: #{tpu_custom_call.1} parent=27 // pred_check
          %p4331 = pneg %p4330
        $region46: #{tpu_custom_call.1} parent=27 // pred_check_branch
          %4333 = sbr.rel (%p4331) target = $region48
        $region47: #{tpu_custom_call.1} parent=27 // pred_region
          %v4334 = vlaneseq
          %v4335 = vshrl.u32 %v4334, 7
          %v4336 = vadd.s32 %v4335, 8
          %v4337 = vadd.s32 %v4335, 16
          %v4338 = vadd.s32 %v4335, 24
          %v4339 = vadd.s32 %v4335, 32
          %v4340 = vadd.s32 %v4335, 40
          %v4341 = vadd.s32 %v4335, 48
          %v4342 = vadd.s32 %v4335, 56
          %v4343 = vadd.s32 %v4335, 64
          %v4344 = vadd.s32 %v4335, 72
          %v4345 = vadd.s32 %v4335, 80
          %v4346 = vadd.s32 %v4335, 88
          %v4347 = vadd.s32 %v4335, 96
          %v4348 = vadd.s32 %v4335, 104
          %v4349 = vadd.s32 %v4335, 112
          %v4350 = vadd.s32 %v4335, 120
          %v4351 = vadd.s32 %v4335, 128
          %v4352 = vadd.s32 %v4335, 136
          %v4353 = vadd.s32 %v4335, 144
          %v4354 = vadd.s32 %v4335, 152
          %v4355 = vadd.s32 %v4335, 160
          %v4356 = vadd.s32 %v4335, 168
          %v4357 = vadd.s32 %v4335, 176
          %v4358 = vadd.s32 %v4335, 184
          %v4359 = vadd.s32 %v4335, 192
          %v4360 = vadd.s32 %v4335, 200
          %v4361 = vadd.s32 %v4335, 208
          %v4362 = vadd.s32 %v4335, 216
          %v4363 = vadd.s32 %v4335, 224
          %v4364 = vadd.s32 %v4335, 232
          %v4365 = vadd.s32 %v4335, 240
          %v4366 = vadd.s32 %v4335, 248
          %v4367 = vadd.s32 %v4335, 256
          %v4368 = vadd.s32 %v4335, 264
          %v4369 = vadd.s32 %v4335, 272
          %v4370 = vadd.s32 %v4335, 280
          %v4371 = vadd.s32 %v4335, 288
          %v4372 = vadd.s32 %v4335, 296
          %v4373 = vadd.s32 %v4335, 304
          %v4374 = vadd.s32 %v4335, 312
          %v4375 = vadd.s32 %v4335, 320
          %v4376 = vadd.s32 %v4335, 328
          %v4377 = vadd.s32 %v4335, 336
          %v4378 = vadd.s32 %v4335, 344
          %v4379 = vadd.s32 %v4335, 352
          %v4380 = vadd.s32 %v4335, 360
          %v4381 = vadd.s32 %v4335, 368
          %v4382 = vadd.s32 %v4335, 376
          %v4383 = vadd.s32 %v4335, 384
          %v4384 = vadd.s32 %v4335, 392
          %v4385 = vadd.s32 %v4335, 400
          %v4386 = vadd.s32 %v4335, 408
          %v4387 = vadd.s32 %v4335, 416
          %v4388 = vadd.s32 %v4335, 424
          %v4389 = vadd.s32 %v4335, 432
          %v4390 = vadd.s32 %v4335, 440
          %v4391 = vadd.s32 %v4335, 448
          %v4392 = vadd.s32 %v4335, 456
          %v4393 = vadd.s32 %v4335, 464
          %v4394 = vadd.s32 %v4335, 472
          %v4395 = vadd.s32 %v4335, 480
          %v4396 = vadd.s32 %v4335, 488
          %v4397 = vadd.s32 %v4335, 496
          %v4398 = vadd.s32 %v4335, 504
          %v4399 = vstv %s2788
          %v4400 = vadd.s32 %v4335, %v4399
          %v4401 = vadd.s32 %v4336, %v4399
          %v4402 = vadd.s32 %v4337, %v4399
          %v4403 = vadd.s32 %v4338, %v4399
          %v4404 = vadd.s32 %v4339, %v4399
          %v4405 = vadd.s32 %v4340, %v4399
          %v4406 = vadd.s32 %v4341, %v4399
          %v4407 = vadd.s32 %v4342, %v4399
          %v4408 = vadd.s32 %v4343, %v4399
          %v4409 = vadd.s32 %v4344, %v4399
          %v4410 = vadd.s32 %v4345, %v4399
          %v4411 = vadd.s32 %v4346, %v4399
          %v4412 = vadd.s32 %v4347, %v4399
          %v4413 = vadd.s32 %v4348, %v4399
          %v4414 = vadd.s32 %v4349, %v4399
          %v4415 = vadd.s32 %v4350, %v4399
          %v4416 = vadd.s32 %v4351, %v4399
          %v4417 = vadd.s32 %v4352, %v4399
          %v4418 = vadd.s32 %v4353, %v4399
          %v4419 = vadd.s32 %v4354, %v4399
          %v4420 = vadd.s32 %v4355, %v4399
          %v4421 = vadd.s32 %v4356, %v4399
          %v4422 = vadd.s32 %v4357, %v4399
          %v4423 = vadd.s32 %v4358, %v4399
          %v4424 = vadd.s32 %v4359, %v4399
          %v4425 = vadd.s32 %v4360, %v4399
          %v4426 = vadd.s32 %v4361, %v4399
          %v4427 = vadd.s32 %v4362, %v4399
          %v4428 = vadd.s32 %v4363, %v4399
          %v4429 = vadd.s32 %v4364, %v4399
          %v4430 = vadd.s32 %v4365, %v4399
          %v4431 = vadd.s32 %v4366, %v4399
          %v4432 = vadd.s32 %v4367, %v4399
          %v4433 = vadd.s32 %v4368, %v4399
          %v4434 = vadd.s32 %v4369, %v4399
          %v4435 = vadd.s32 %v4370, %v4399
          %v4436 = vadd.s32 %v4371, %v4399
          %v4437 = vadd.s32 %v4372, %v4399
          %v4438 = vadd.s32 %v4373, %v4399
          %v4439 = vadd.s32 %v4374, %v4399
          %v4440 = vadd.s32 %v4375, %v4399
          %v4441 = vadd.s32 %v4376, %v4399
          %v4442 = vadd.s32 %v4377, %v4399
          %v4443 = vadd.s32 %v4378, %v4399
          %v4444 = vadd.s32 %v4379, %v4399
          %v4445 = vadd.s32 %v4380, %v4399
          %v4446 = vadd.s32 %v4381, %v4399
          %v4447 = vadd.s32 %v4382, %v4399
          %v4448 = vadd.s32 %v4383, %v4399
          %v4449 = vadd.s32 %v4384, %v4399
          %v4450 = vadd.s32 %v4385, %v4399
          %v4451 = vadd.s32 %v4386, %v4399
          %v4452 = vadd.s32 %v4387, %v4399
          %v4453 = vadd.s32 %v4388, %v4399
          %v4454 = vadd.s32 %v4389, %v4399
          %v4455 = vadd.s32 %v4390, %v4399
          %v4456 = vadd.s32 %v4391, %v4399
          %v4457 = vadd.s32 %v4392, %v4399
          %v4458 = vadd.s32 %v4393, %v4399
          %v4459 = vadd.s32 %v4394, %v4399
          %v4460 = vadd.s32 %v4395, %v4399
          %v4461 = vadd.s32 %v4396, %v4399
          %v4462 = vadd.s32 %v4397, %v4399
          %v4463 = vadd.s32 %v4398, %v4399
          %v4464 = vld [vmem:[#allocation2] sm:$0xff]
          %v4465 = vld [vmem:[#allocation2 + $0x8] sm:$0xff]
          %v4466 = vld [vmem:[#allocation2 + $0x10] sm:$0xff]
          %v4467 = vld [vmem:[#allocation2 + $0x18] sm:$0xff]
          %v4468 = vld [vmem:[#allocation2 + $0x20] sm:$0xff]
          %v4469 = vld [vmem:[#allocation2 + $0x28] sm:$0xff]
          %v4470 = vld [vmem:[#allocation2 + $0x30] sm:$0xff]
          %v4471 = vld [vmem:[#allocation2 + $0x38] sm:$0xff]
          %v4472 = vld [vmem:[#allocation2 + $0x40] sm:$0xff]
          %v4473 = vld [vmem:[#allocation2 + $0x48] sm:$0xff]
          %v4474 = vld [vmem:[#allocation2 + $0x50] sm:$0xff]
          %v4475 = vld [vmem:[#allocation2 + $0x58] sm:$0xff]
          %v4476 = vld [vmem:[#allocation2 + $0x60] sm:$0xff]
          %v4477 = vld [vmem:[#allocation2 + $0x68] sm:$0xff]
          %v4478 = vld [vmem:[#allocation2 + $0x70] sm:$0xff]
          %v4479 = vld [vmem:[#allocation2 + $0x78] sm:$0xff]
          %v4480 = vld [vmem:[#allocation2 + $0x80] sm:$0xff]
          %v4481 = vld [vmem:[#allocation2 + $0x88] sm:$0xff]
          %v4482 = vld [vmem:[#allocation2 + $0x90] sm:$0xff]
          %v4483 = vld [vmem:[#allocation2 + $0x98] sm:$0xff]
          %v4484 = vld [vmem:[#allocation2 + $0xa0] sm:$0xff]
          %v4485 = vld [vmem:[#allocation2 + $0xa8] sm:$0xff]
          %v4486 = vld [vmem:[#allocation2 + $0xb0] sm:$0xff]
          %v4487 = vld [vmem:[#allocation2 + $0xb8] sm:$0xff]
          %v4488 = vld [vmem:[#allocation2 + $0xc0] sm:$0xff]
          %v4489 = vld [vmem:[#allocation2 + $0xc8] sm:$0xff]
          %v4490 = vld [vmem:[#allocation2 + $0xd0] sm:$0xff]
          %v4491 = vld [vmem:[#allocation2 + $0xd8] sm:$0xff]
          %v4492 = vld [vmem:[#allocation2 + $0xe0] sm:$0xff]
          %v4493 = vld [vmem:[#allocation2 + $0xe8] sm:$0xff]
          %v4494 = vld [vmem:[#allocation2 + $0xf0] sm:$0xff]
          %v4495 = vld [vmem:[#allocation2 + $0xf8] sm:$0xff]
          %v4496 = vld [vmem:[#allocation2 + $0x100] sm:$0xff]
          %v4497 = vld [vmem:[#allocation2 + $0x108] sm:$0xff]
          %v4498 = vld [vmem:[#allocation2 + $0x110] sm:$0xff]
          %v4499 = vld [vmem:[#allocation2 + $0x118] sm:$0xff]
          %v4500 = vld [vmem:[#allocation2 + $0x120] sm:$0xff]
          %v4501 = vld [vmem:[#allocation2 + $0x128] sm:$0xff]
          %v4502 = vld [vmem:[#allocation2 + $0x130] sm:$0xff]
          %v4503 = vld [vmem:[#allocation2 + $0x138] sm:$0xff]
          %v4504 = vld [vmem:[#allocation2 + $0x140] sm:$0xff]
          %v4505 = vld [vmem:[#allocation2 + $0x148] sm:$0xff]
          %v4506 = vld [vmem:[#allocation2 + $0x150] sm:$0xff]
          %v4507 = vld [vmem:[#allocation2 + $0x158] sm:$0xff]
          %v4508 = vld [vmem:[#allocation2 + $0x160] sm:$0xff]
          %v4509 = vld [vmem:[#allocation2 + $0x168] sm:$0xff]
          %v4510 = vld [vmem:[#allocation2 + $0x170] sm:$0xff]
          %v4511 = vld [vmem:[#allocation2 + $0x178] sm:$0xff]
          %v4512 = vld [vmem:[#allocation2 + $0x180] sm:$0xff]
          %v4513 = vld [vmem:[#allocation2 + $0x188] sm:$0xff]
          %v4514 = vld [vmem:[#allocation2 + $0x190] sm:$0xff]
          %v4515 = vld [vmem:[#allocation2 + $0x198] sm:$0xff]
          %v4516 = vld [vmem:[#allocation2 + $0x1a0] sm:$0xff]
          %v4517 = vld [vmem:[#allocation2 + $0x1a8] sm:$0xff]
          %v4518 = vld [vmem:[#allocation2 + $0x1b0] sm:$0xff]
          %v4519 = vld [vmem:[#allocation2 + $0x1b8] sm:$0xff]
          %v4520 = vld [vmem:[#allocation2 + $0x1c0] sm:$0xff]
          %v4521 = vld [vmem:[#allocation2 + $0x1c8] sm:$0xff]
          %v4522 = vld [vmem:[#allocation2 + $0x1d0] sm:$0xff]
          %v4523 = vld [vmem:[#allocation2 + $0x1d8] sm:$0xff]
          %v4524 = vld [vmem:[#allocation2 + $0x1e0] sm:$0xff]
          %v4525 = vld [vmem:[#allocation2 + $0x1e8] sm:$0xff]
          %v4526 = vld [vmem:[#allocation2 + $0x1f0] sm:$0xff]
          %v4527 = vld [vmem:[#allocation2 + $0x1f8] sm:$0xff]
          %v4528 = vld [vmem:[#allocation2 + $0x200] sm:$0xff]
          %v4529 = vld [vmem:[#allocation2 + $0x208] sm:$0xff]
          %v4530 = vld [vmem:[#allocation2 + $0x210] sm:$0xff]
          %v4531 = vld [vmem:[#allocation2 + $0x218] sm:$0xff]
          %v4532 = vld [vmem:[#allocation2 + $0x220] sm:$0xff]
          %v4533 = vld [vmem:[#allocation2 + $0x228] sm:$0xff]
          %v4534 = vld [vmem:[#allocation2 + $0x230] sm:$0xff]
          %v4535 = vld [vmem:[#allocation2 + $0x238] sm:$0xff]
          %v4536 = vld [vmem:[#allocation2 + $0x240] sm:$0xff]
          %v4537 = vld [vmem:[#allocation2 + $0x248] sm:$0xff]
          %v4538 = vld [vmem:[#allocation2 + $0x250] sm:$0xff]
          %v4539 = vld [vmem:[#allocation2 + $0x258] sm:$0xff]
          %v4540 = vld [vmem:[#allocation2 + $0x260] sm:$0xff]
          %v4541 = vld [vmem:[#allocation2 + $0x268] sm:$0xff]
          %v4542 = vld [vmem:[#allocation2 + $0x270] sm:$0xff]
          %v4543 = vld [vmem:[#allocation2 + $0x278] sm:$0xff]
          %v4544 = vld [vmem:[#allocation2 + $0x280] sm:$0xff]
          %v4545 = vld [vmem:[#allocation2 + $0x288] sm:$0xff]
          %v4546 = vld [vmem:[#allocation2 + $0x290] sm:$0xff]
          %v4547 = vld [vmem:[#allocation2 + $0x298] sm:$0xff]
          %v4548 = vld [vmem:[#allocation2 + $0x2a0] sm:$0xff]
          %v4549 = vld [vmem:[#allocation2 + $0x2a8] sm:$0xff]
          %v4550 = vld [vmem:[#allocation2 + $0x2b0] sm:$0xff]
          %v4551 = vld [vmem:[#allocation2 + $0x2b8] sm:$0xff]
          %v4552 = vld [vmem:[#allocation2 + $0x2c0] sm:$0xff]
          %v4553 = vld [vmem:[#allocation2 + $0x2c8] sm:$0xff]
          %v4554 = vld [vmem:[#allocation2 + $0x2d0] sm:$0xff]
          %v4555 = vld [vmem:[#allocation2 + $0x2d8] sm:$0xff]
          %v4556 = vld [vmem:[#allocation2 + $0x2e0] sm:$0xff]
          %v4557 = vld [vmem:[#allocation2 + $0x2e8] sm:$0xff]
          %v4558 = vld [vmem:[#allocation2 + $0x2f0] sm:$0xff]
          %v4559 = vld [vmem:[#allocation2 + $0x2f8] sm:$0xff]
          %v4560 = vld [vmem:[#allocation2 + $0x300] sm:$0xff]
          %v4561 = vld [vmem:[#allocation2 + $0x308] sm:$0xff]
          %v4562 = vld [vmem:[#allocation2 + $0x310] sm:$0xff]
          %v4563 = vld [vmem:[#allocation2 + $0x318] sm:$0xff]
          %v4564 = vld [vmem:[#allocation2 + $0x320] sm:$0xff]
          %v4565 = vld [vmem:[#allocation2 + $0x328] sm:$0xff]
          %v4566 = vld [vmem:[#allocation2 + $0x330] sm:$0xff]
          %v4567 = vld [vmem:[#allocation2 + $0x338] sm:$0xff]
          %v4568 = vld [vmem:[#allocation2 + $0x340] sm:$0xff]
          %v4569 = vld [vmem:[#allocation2 + $0x348] sm:$0xff]
          %v4570 = vld [vmem:[#allocation2 + $0x350] sm:$0xff]
          %v4571 = vld [vmem:[#allocation2 + $0x358] sm:$0xff]
          %v4572 = vld [vmem:[#allocation2 + $0x360] sm:$0xff]
          %v4573 = vld [vmem:[#allocation2 + $0x368] sm:$0xff]
          %v4574 = vld [vmem:[#allocation2 + $0x370] sm:$0xff]
          %v4575 = vld [vmem:[#allocation2 + $0x378] sm:$0xff]
          %v4576 = vld [vmem:[#allocation2 + $0x380] sm:$0xff]
          %v4577 = vld [vmem:[#allocation2 + $0x388] sm:$0xff]
          %v4578 = vld [vmem:[#allocation2 + $0x390] sm:$0xff]
          %v4579 = vld [vmem:[#allocation2 + $0x398] sm:$0xff]
          %v4580 = vld [vmem:[#allocation2 + $0x3a0] sm:$0xff]
          %v4581 = vld [vmem:[#allocation2 + $0x3a8] sm:$0xff]
          %v4582 = vld [vmem:[#allocation2 + $0x3b0] sm:$0xff]
          %v4583 = vld [vmem:[#allocation2 + $0x3b8] sm:$0xff]
          %v4584 = vld [vmem:[#allocation2 + $0x3c0] sm:$0xff]
          %v4585 = vld [vmem:[#allocation2 + $0x3c8] sm:$0xff]
          %v4586 = vld [vmem:[#allocation2 + $0x3d0] sm:$0xff]
          %v4587 = vld [vmem:[#allocation2 + $0x3d8] sm:$0xff]
          %v4588 = vld [vmem:[#allocation2 + $0x3e0] sm:$0xff]
          %v4589 = vld [vmem:[#allocation2 + $0x3e8] sm:$0xff]
          %v4590 = vld [vmem:[#allocation2 + $0x3f0] sm:$0xff]
          %v4591 = vld [vmem:[#allocation2 + $0x3f8] sm:$0xff]
          %v4592 = vld [vmem:[#allocation2 + $0x400] sm:$0xff]
          %v4593 = vld [vmem:[#allocation2 + $0x408] sm:$0xff]
          %v4594 = vld [vmem:[#allocation2 + $0x410] sm:$0xff]
          %v4595 = vld [vmem:[#allocation2 + $0x418] sm:$0xff]
          %v4596 = vld [vmem:[#allocation2 + $0x420] sm:$0xff]
          %v4597 = vld [vmem:[#allocation2 + $0x428] sm:$0xff]
          %v4598 = vld [vmem:[#allocation2 + $0x430] sm:$0xff]
          %v4599 = vld [vmem:[#allocation2 + $0x438] sm:$0xff]
          %v4600 = vld [vmem:[#allocation2 + $0x440] sm:$0xff]
          %v4601 = vld [vmem:[#allocation2 + $0x448] sm:$0xff]
          %v4602 = vld [vmem:[#allocation2 + $0x450] sm:$0xff]
          %v4603 = vld [vmem:[#allocation2 + $0x458] sm:$0xff]
          %v4604 = vld [vmem:[#allocation2 + $0x460] sm:$0xff]
          %v4605 = vld [vmem:[#allocation2 + $0x468] sm:$0xff]
          %v4606 = vld [vmem:[#allocation2 + $0x470] sm:$0xff]
          %v4607 = vld [vmem:[#allocation2 + $0x478] sm:$0xff]
          %v4608 = vld [vmem:[#allocation2 + $0x480] sm:$0xff]
          %v4609 = vld [vmem:[#allocation2 + $0x488] sm:$0xff]
          %v4610 = vld [vmem:[#allocation2 + $0x490] sm:$0xff]
          %v4611 = vld [vmem:[#allocation2 + $0x498] sm:$0xff]
          %v4612 = vld [vmem:[#allocation2 + $0x4a0] sm:$0xff]
          %v4613 = vld [vmem:[#allocation2 + $0x4a8] sm:$0xff]
          %v4614 = vld [vmem:[#allocation2 + $0x4b0] sm:$0xff]
          %v4615 = vld [vmem:[#allocation2 + $0x4b8] sm:$0xff]
          %v4616 = vld [vmem:[#allocation2 + $0x4c0] sm:$0xff]
          %v4617 = vld [vmem:[#allocation2 + $0x4c8] sm:$0xff]
          %v4618 = vld [vmem:[#allocation2 + $0x4d0] sm:$0xff]
          %v4619 = vld [vmem:[#allocation2 + $0x4d8] sm:$0xff]
          %v4620 = vld [vmem:[#allocation2 + $0x4e0] sm:$0xff]
          %v4621 = vld [vmem:[#allocation2 + $0x4e8] sm:$0xff]
          %v4622 = vld [vmem:[#allocation2 + $0x4f0] sm:$0xff]
          %v4623 = vld [vmem:[#allocation2 + $0x4f8] sm:$0xff]
          %v4624 = vld [vmem:[#allocation2 + $0x500] sm:$0xff]
          %v4625 = vld [vmem:[#allocation2 + $0x508] sm:$0xff]
          %v4626 = vld [vmem:[#allocation2 + $0x510] sm:$0xff]
          %v4627 = vld [vmem:[#allocation2 + $0x518] sm:$0xff]
          %v4628 = vld [vmem:[#allocation2 + $0x520] sm:$0xff]
          %v4629 = vld [vmem:[#allocation2 + $0x528] sm:$0xff]
          %v4630 = vld [vmem:[#allocation2 + $0x530] sm:$0xff]
          %v4631 = vld [vmem:[#allocation2 + $0x538] sm:$0xff]
          %v4632 = vld [vmem:[#allocation2 + $0x540] sm:$0xff]
          %v4633 = vld [vmem:[#allocation2 + $0x548] sm:$0xff]
          %v4634 = vld [vmem:[#allocation2 + $0x550] sm:$0xff]
          %v4635 = vld [vmem:[#allocation2 + $0x558] sm:$0xff]
          %v4636 = vld [vmem:[#allocation2 + $0x560] sm:$0xff]
          %v4637 = vld [vmem:[#allocation2 + $0x568] sm:$0xff]
          %v4638 = vld [vmem:[#allocation2 + $0x570] sm:$0xff]
          %v4639 = vld [vmem:[#allocation2 + $0x578] sm:$0xff]
          %v4640 = vld [vmem:[#allocation2 + $0x580] sm:$0xff]
          %v4641 = vld [vmem:[#allocation2 + $0x588] sm:$0xff]
          %v4642 = vld [vmem:[#allocation2 + $0x590] sm:$0xff]
          %v4643 = vld [vmem:[#allocation2 + $0x598] sm:$0xff]
          %v4644 = vld [vmem:[#allocation2 + $0x5a0] sm:$0xff]
          %v4645 = vld [vmem:[#allocation2 + $0x5a8] sm:$0xff]
          %v4646 = vld [vmem:[#allocation2 + $0x5b0] sm:$0xff]
          %v4647 = vld [vmem:[#allocation2 + $0x5b8] sm:$0xff]
          %v4648 = vld [vmem:[#allocation2 + $0x5c0] sm:$0xff]
          %v4649 = vld [vmem:[#allocation2 + $0x5c8] sm:$0xff]
          %v4650 = vld [vmem:[#allocation2 + $0x5d0] sm:$0xff]
          %v4651 = vld [vmem:[#allocation2 + $0x5d8] sm:$0xff]
          %v4652 = vld [vmem:[#allocation2 + $0x5e0] sm:$0xff]
          %v4653 = vld [vmem:[#allocation2 + $0x5e8] sm:$0xff]
          %v4654 = vld [vmem:[#allocation2 + $0x5f0] sm:$0xff]
          %v4655 = vld [vmem:[#allocation2 + $0x5f8] sm:$0xff]
          %v4656 = vld [vmem:[#allocation2 + $0x600] sm:$0xff]
          %v4657 = vld [vmem:[#allocation2 + $0x608] sm:$0xff]
          %v4658 = vld [vmem:[#allocation2 + $0x610] sm:$0xff]
          %v4659 = vld [vmem:[#allocation2 + $0x618] sm:$0xff]
          %v4660 = vld [vmem:[#allocation2 + $0x620] sm:$0xff]
          %v4661 = vld [vmem:[#allocation2 + $0x628] sm:$0xff]
          %v4662 = vld [vmem:[#allocation2 + $0x630] sm:$0xff]
          %v4663 = vld [vmem:[#allocation2 + $0x638] sm:$0xff]
          %v4664 = vld [vmem:[#allocation2 + $0x640] sm:$0xff]
          %v4665 = vld [vmem:[#allocation2 + $0x648] sm:$0xff]
          %v4666 = vld [vmem:[#allocation2 + $0x650] sm:$0xff]
          %v4667 = vld [vmem:[#allocation2 + $0x658] sm:$0xff]
          %v4668 = vld [vmem:[#allocation2 + $0x660] sm:$0xff]
          %v4669 = vld [vmem:[#allocation2 + $0x668] sm:$0xff]
          %v4670 = vld [vmem:[#allocation2 + $0x670] sm:$0xff]
          %v4671 = vld [vmem:[#allocation2 + $0x678] sm:$0xff]
          %v4672 = vld [vmem:[#allocation2 + $0x680] sm:$0xff]
          %v4673 = vld [vmem:[#allocation2 + $0x688] sm:$0xff]
          %v4674 = vld [vmem:[#allocation2 + $0x690] sm:$0xff]
          %v4675 = vld [vmem:[#allocation2 + $0x698] sm:$0xff]
          %v4676 = vld [vmem:[#allocation2 + $0x6a0] sm:$0xff]
          %v4677 = vld [vmem:[#allocation2 + $0x6a8] sm:$0xff]
          %v4678 = vld [vmem:[#allocation2 + $0x6b0] sm:$0xff]
          %v4679 = vld [vmem:[#allocation2 + $0x6b8] sm:$0xff]
          %v4680 = vld [vmem:[#allocation2 + $0x6c0] sm:$0xff]
          %v4681 = vld [vmem:[#allocation2 + $0x6c8] sm:$0xff]
          %v4682 = vld [vmem:[#allocation2 + $0x6d0] sm:$0xff]
          %v4683 = vld [vmem:[#allocation2 + $0x6d8] sm:$0xff]
          %v4684 = vld [vmem:[#allocation2 + $0x6e0] sm:$0xff]
          %v4685 = vld [vmem:[#allocation2 + $0x6e8] sm:$0xff]
          %v4686 = vld [vmem:[#allocation2 + $0x6f0] sm:$0xff]
          %v4687 = vld [vmem:[#allocation2 + $0x6f8] sm:$0xff]
          %v4688 = vld [vmem:[#allocation2 + $0x700] sm:$0xff]
          %v4689 = vld [vmem:[#allocation2 + $0x708] sm:$0xff]
          %v4690 = vld [vmem:[#allocation2 + $0x710] sm:$0xff]
          %v4691 = vld [vmem:[#allocation2 + $0x718] sm:$0xff]
          %v4692 = vld [vmem:[#allocation2 + $0x720] sm:$0xff]
          %v4693 = vld [vmem:[#allocation2 + $0x728] sm:$0xff]
          %v4694 = vld [vmem:[#allocation2 + $0x730] sm:$0xff]
          %v4695 = vld [vmem:[#allocation2 + $0x738] sm:$0xff]
          %v4696 = vld [vmem:[#allocation2 + $0x740] sm:$0xff]
          %v4697 = vld [vmem:[#allocation2 + $0x748] sm:$0xff]
          %v4698 = vld [vmem:[#allocation2 + $0x750] sm:$0xff]
          %v4699 = vld [vmem:[#allocation2 + $0x758] sm:$0xff]
          %v4700 = vld [vmem:[#allocation2 + $0x760] sm:$0xff]
          %v4701 = vld [vmem:[#allocation2 + $0x768] sm:$0xff]
          %v4702 = vld [vmem:[#allocation2 + $0x770] sm:$0xff]
          %v4703 = vld [vmem:[#allocation2 + $0x778] sm:$0xff]
          %v4704 = vld [vmem:[#allocation2 + $0x780] sm:$0xff]
          %v4705 = vld [vmem:[#allocation2 + $0x788] sm:$0xff]
          %v4706 = vld [vmem:[#allocation2 + $0x790] sm:$0xff]
          %v4707 = vld [vmem:[#allocation2 + $0x798] sm:$0xff]
          %v4708 = vld [vmem:[#allocation2 + $0x7a0] sm:$0xff]
          %v4709 = vld [vmem:[#allocation2 + $0x7a8] sm:$0xff]
          %v4710 = vld [vmem:[#allocation2 + $0x7b0] sm:$0xff]
          %v4711 = vld [vmem:[#allocation2 + $0x7b8] sm:$0xff]
          %v4712 = vld [vmem:[#allocation2 + $0x7c0] sm:$0xff]
          %v4713 = vld [vmem:[#allocation2 + $0x7c8] sm:$0xff]
          %v4714 = vld [vmem:[#allocation2 + $0x7d0] sm:$0xff]
          %v4715 = vld [vmem:[#allocation2 + $0x7d8] sm:$0xff]
          %v4716 = vld [vmem:[#allocation2 + $0x7e0] sm:$0xff]
          %v4717 = vld [vmem:[#allocation2 + $0x7e8] sm:$0xff]
          %v4718 = vld [vmem:[#allocation2 + $0x7f0] sm:$0xff]
          %v4719 = vld [vmem:[#allocation2 + $0x7f8] sm:$0xff]
          %v4720 = vld [vmem:[#allocation2 + $0x800] sm:$0xff]
          %v4721 = vld [vmem:[#allocation2 + $0x808] sm:$0xff]
          %v4722 = vld [vmem:[#allocation2 + $0x810] sm:$0xff]
          %v4723 = vld [vmem:[#allocation2 + $0x818] sm:$0xff]
          %v4724 = vld [vmem:[#allocation2 + $0x820] sm:$0xff]
          %v4725 = vld [vmem:[#allocation2 + $0x828] sm:$0xff]
          %v4726 = vld [vmem:[#allocation2 + $0x830] sm:$0xff]
          %v4727 = vld [vmem:[#allocation2 + $0x838] sm:$0xff]
          %v4728 = vld [vmem:[#allocation2 + $0x840] sm:$0xff]
          %v4729 = vld [vmem:[#allocation2 + $0x848] sm:$0xff]
          %v4730 = vld [vmem:[#allocation2 + $0x850] sm:$0xff]
          %v4731 = vld [vmem:[#allocation2 + $0x858] sm:$0xff]
          %v4732 = vld [vmem:[#allocation2 + $0x860] sm:$0xff]
          %v4733 = vld [vmem:[#allocation2 + $0x868] sm:$0xff]
          %v4734 = vld [vmem:[#allocation2 + $0x870] sm:$0xff]
          %v4735 = vld [vmem:[#allocation2 + $0x878] sm:$0xff]
          %v4736 = vld [vmem:[#allocation2 + $0x880] sm:$0xff]
          %v4737 = vld [vmem:[#allocation2 + $0x888] sm:$0xff]
          %v4738 = vld [vmem:[#allocation2 + $0x890] sm:$0xff]
          %v4739 = vld [vmem:[#allocation2 + $0x898] sm:$0xff]
          %v4740 = vld [vmem:[#allocation2 + $0x8a0] sm:$0xff]
          %v4741 = vld [vmem:[#allocation2 + $0x8a8] sm:$0xff]
          %v4742 = vld [vmem:[#allocation2 + $0x8b0] sm:$0xff]
          %v4743 = vld [vmem:[#allocation2 + $0x8b8] sm:$0xff]
          %v4744 = vld [vmem:[#allocation2 + $0x8c0] sm:$0xff]
          %v4745 = vld [vmem:[#allocation2 + $0x8c8] sm:$0xff]
          %v4746 = vld [vmem:[#allocation2 + $0x8d0] sm:$0xff]
          %v4747 = vld [vmem:[#allocation2 + $0x8d8] sm:$0xff]
          %v4748 = vld [vmem:[#allocation2 + $0x8e0] sm:$0xff]
          %v4749 = vld [vmem:[#allocation2 + $0x8e8] sm:$0xff]
          %v4750 = vld [vmem:[#allocation2 + $0x8f0] sm:$0xff]
          %v4751 = vld [vmem:[#allocation2 + $0x8f8] sm:$0xff]
          %v4752 = vld [vmem:[#allocation2 + $0x900] sm:$0xff]
          %v4753 = vld [vmem:[#allocation2 + $0x908] sm:$0xff]
          %v4754 = vld [vmem:[#allocation2 + $0x910] sm:$0xff]
          %v4755 = vld [vmem:[#allocation2 + $0x918] sm:$0xff]
          %v4756 = vld [vmem:[#allocation2 + $0x920] sm:$0xff]
          %v4757 = vld [vmem:[#allocation2 + $0x928] sm:$0xff]
          %v4758 = vld [vmem:[#allocation2 + $0x930] sm:$0xff]
          %v4759 = vld [vmem:[#allocation2 + $0x938] sm:$0xff]
          %v4760 = vld [vmem:[#allocation2 + $0x940] sm:$0xff]
          %v4761 = vld [vmem:[#allocation2 + $0x948] sm:$0xff]
          %v4762 = vld [vmem:[#allocation2 + $0x950] sm:$0xff]
          %v4763 = vld [vmem:[#allocation2 + $0x958] sm:$0xff]
          %v4764 = vld [vmem:[#allocation2 + $0x960] sm:$0xff]
          %v4765 = vld [vmem:[#allocation2 + $0x968] sm:$0xff]
          %v4766 = vld [vmem:[#allocation2 + $0x970] sm:$0xff]
          %v4767 = vld [vmem:[#allocation2 + $0x978] sm:$0xff]
          %v4768 = vld [vmem:[#allocation2 + $0x980] sm:$0xff]
          %v4769 = vld [vmem:[#allocation2 + $0x988] sm:$0xff]
          %v4770 = vld [vmem:[#allocation2 + $0x990] sm:$0xff]
          %v4771 = vld [vmem:[#allocation2 + $0x998] sm:$0xff]
          %v4772 = vld [vmem:[#allocation2 + $0x9a0] sm:$0xff]
          %v4773 = vld [vmem:[#allocation2 + $0x9a8] sm:$0xff]
          %v4774 = vld [vmem:[#allocation2 + $0x9b0] sm:$0xff]
          %v4775 = vld [vmem:[#allocation2 + $0x9b8] sm:$0xff]
          %v4776 = vld [vmem:[#allocation2 + $0x9c0] sm:$0xff]
          %v4777 = vld [vmem:[#allocation2 + $0x9c8] sm:$0xff]
          %v4778 = vld [vmem:[#allocation2 + $0x9d0] sm:$0xff]
          %v4779 = vld [vmem:[#allocation2 + $0x9d8] sm:$0xff]
          %v4780 = vld [vmem:[#allocation2 + $0x9e0] sm:$0xff]
          %v4781 = vld [vmem:[#allocation2 + $0x9e8] sm:$0xff]
          %v4782 = vld [vmem:[#allocation2 + $0x9f0] sm:$0xff]
          %v4783 = vld [vmem:[#allocation2 + $0x9f8] sm:$0xff]
          %v4784 = vld [vmem:[#allocation2 + $0xa00] sm:$0xff]
          %v4785 = vld [vmem:[#allocation2 + $0xa08] sm:$0xff]
          %v4786 = vld [vmem:[#allocation2 + $0xa10] sm:$0xff]
          %v4787 = vld [vmem:[#allocation2 + $0xa18] sm:$0xff]
          %v4788 = vld [vmem:[#allocation2 + $0xa20] sm:$0xff]
          %v4789 = vld [vmem:[#allocation2 + $0xa28] sm:$0xff]
          %v4790 = vld [vmem:[#allocation2 + $0xa30] sm:$0xff]
          %v4791 = vld [vmem:[#allocation2 + $0xa38] sm:$0xff]
          %v4792 = vld [vmem:[#allocation2 + $0xa40] sm:$0xff]
          %v4793 = vld [vmem:[#allocation2 + $0xa48] sm:$0xff]
          %v4794 = vld [vmem:[#allocation2 + $0xa50] sm:$0xff]
          %v4795 = vld [vmem:[#allocation2 + $0xa58] sm:$0xff]
          %v4796 = vld [vmem:[#allocation2 + $0xa60] sm:$0xff]
          %v4797 = vld [vmem:[#allocation2 + $0xa68] sm:$0xff]
          %v4798 = vld [vmem:[#allocation2 + $0xa70] sm:$0xff]
          %v4799 = vld [vmem:[#allocation2 + $0xa78] sm:$0xff]
          %v4800 = vld [vmem:[#allocation2 + $0xa80] sm:$0xff]
          %v4801 = vld [vmem:[#allocation2 + $0xa88] sm:$0xff]
          %v4802 = vld [vmem:[#allocation2 + $0xa90] sm:$0xff]
          %v4803 = vld [vmem:[#allocation2 + $0xa98] sm:$0xff]
          %v4804 = vld [vmem:[#allocation2 + $0xaa0] sm:$0xff]
          %v4805 = vld [vmem:[#allocation2 + $0xaa8] sm:$0xff]
          %v4806 = vld [vmem:[#allocation2 + $0xab0] sm:$0xff]
          %v4807 = vld [vmem:[#allocation2 + $0xab8] sm:$0xff]
          %v4808 = vld [vmem:[#allocation2 + $0xac0] sm:$0xff]
          %v4809 = vld [vmem:[#allocation2 + $0xac8] sm:$0xff]
          %v4810 = vld [vmem:[#allocation2 + $0xad0] sm:$0xff]
          %v4811 = vld [vmem:[#allocation2 + $0xad8] sm:$0xff]
          %v4812 = vld [vmem:[#allocation2 + $0xae0] sm:$0xff]
          %v4813 = vld [vmem:[#allocation2 + $0xae8] sm:$0xff]
          %v4814 = vld [vmem:[#allocation2 + $0xaf0] sm:$0xff]
          %v4815 = vld [vmem:[#allocation2 + $0xaf8] sm:$0xff]
          %v4816 = vld [vmem:[#allocation2 + $0xb00] sm:$0xff]
          %v4817 = vld [vmem:[#allocation2 + $0xb08] sm:$0xff]
          %v4818 = vld [vmem:[#allocation2 + $0xb10] sm:$0xff]
          %v4819 = vld [vmem:[#allocation2 + $0xb18] sm:$0xff]
          %v4820 = vld [vmem:[#allocation2 + $0xb20] sm:$0xff]
          %v4821 = vld [vmem:[#allocation2 + $0xb28] sm:$0xff]
          %v4822 = vld [vmem:[#allocation2 + $0xb30] sm:$0xff]
          %v4823 = vld [vmem:[#allocation2 + $0xb38] sm:$0xff]
          %v4824 = vld [vmem:[#allocation2 + $0xb40] sm:$0xff]
          %v4825 = vld [vmem:[#allocation2 + $0xb48] sm:$0xff]
          %v4826 = vld [vmem:[#allocation2 + $0xb50] sm:$0xff]
          %v4827 = vld [vmem:[#allocation2 + $0xb58] sm:$0xff]
          %v4828 = vld [vmem:[#allocation2 + $0xb60] sm:$0xff]
          %v4829 = vld [vmem:[#allocation2 + $0xb68] sm:$0xff]
          %v4830 = vld [vmem:[#allocation2 + $0xb70] sm:$0xff]
          %v4831 = vld [vmem:[#allocation2 + $0xb78] sm:$0xff]
          %v4832 = vld [vmem:[#allocation2 + $0xb80] sm:$0xff]
          %v4833 = vld [vmem:[#allocation2 + $0xb88] sm:$0xff]
          %v4834 = vld [vmem:[#allocation2 + $0xb90] sm:$0xff]
          %v4835 = vld [vmem:[#allocation2 + $0xb98] sm:$0xff]
          %v4836 = vld [vmem:[#allocation2 + $0xba0] sm:$0xff]
          %v4837 = vld [vmem:[#allocation2 + $0xba8] sm:$0xff]
          %v4838 = vld [vmem:[#allocation2 + $0xbb0] sm:$0xff]
          %v4839 = vld [vmem:[#allocation2 + $0xbb8] sm:$0xff]
          %v4840 = vld [vmem:[#allocation2 + $0xbc0] sm:$0xff]
          %v4841 = vld [vmem:[#allocation2 + $0xbc8] sm:$0xff]
          %v4842 = vld [vmem:[#allocation2 + $0xbd0] sm:$0xff]
          %v4843 = vld [vmem:[#allocation2 + $0xbd8] sm:$0xff]
          %v4844 = vld [vmem:[#allocation2 + $0xbe0] sm:$0xff]
          %v4845 = vld [vmem:[#allocation2 + $0xbe8] sm:$0xff]
          %v4846 = vld [vmem:[#allocation2 + $0xbf0] sm:$0xff]
          %v4847 = vld [vmem:[#allocation2 + $0xbf8] sm:$0xff]
          %v4848 = vld [vmem:[#allocation2 + $0xc00] sm:$0xff]
          %v4849 = vld [vmem:[#allocation2 + $0xc08] sm:$0xff]
          %v4850 = vld [vmem:[#allocation2 + $0xc10] sm:$0xff]
          %v4851 = vld [vmem:[#allocation2 + $0xc18] sm:$0xff]
          %v4852 = vld [vmem:[#allocation2 + $0xc20] sm:$0xff]
          %v4853 = vld [vmem:[#allocation2 + $0xc28] sm:$0xff]
          %v4854 = vld [vmem:[#allocation2 + $0xc30] sm:$0xff]
          %v4855 = vld [vmem:[#allocation2 + $0xc38] sm:$0xff]
          %v4856 = vld [vmem:[#allocation2 + $0xc40] sm:$0xff]
          %v4857 = vld [vmem:[#allocation2 + $0xc48] sm:$0xff]
          %v4858 = vld [vmem:[#allocation2 + $0xc50] sm:$0xff]
          %v4859 = vld [vmem:[#allocation2 + $0xc58] sm:$0xff]
          %v4860 = vld [vmem:[#allocation2 + $0xc60] sm:$0xff]
          %v4861 = vld [vmem:[#allocation2 + $0xc68] sm:$0xff]
          %v4862 = vld [vmem:[#allocation2 + $0xc70] sm:$0xff]
          %v4863 = vld [vmem:[#allocation2 + $0xc78] sm:$0xff]
          %v4864 = vld [vmem:[#allocation2 + $0xc80] sm:$0xff]
          %v4865 = vld [vmem:[#allocation2 + $0xc88] sm:$0xff]
          %v4866 = vld [vmem:[#allocation2 + $0xc90] sm:$0xff]
          %v4867 = vld [vmem:[#allocation2 + $0xc98] sm:$0xff]
          %v4868 = vld [vmem:[#allocation2 + $0xca0] sm:$0xff]
          %v4869 = vld [vmem:[#allocation2 + $0xca8] sm:$0xff]
          %v4870 = vld [vmem:[#allocation2 + $0xcb0] sm:$0xff]
          %v4871 = vld [vmem:[#allocation2 + $0xcb8] sm:$0xff]
          %v4872 = vld [vmem:[#allocation2 + $0xcc0] sm:$0xff]
          %v4873 = vld [vmem:[#allocation2 + $0xcc8] sm:$0xff]
          %v4874 = vld [vmem:[#allocation2 + $0xcd0] sm:$0xff]
          %v4875 = vld [vmem:[#allocation2 + $0xcd8] sm:$0xff]
          %v4876 = vld [vmem:[#allocation2 + $0xce0] sm:$0xff]
          %v4877 = vld [vmem:[#allocation2 + $0xce8] sm:$0xff]
          %v4878 = vld [vmem:[#allocation2 + $0xcf0] sm:$0xff]
          %v4879 = vld [vmem:[#allocation2 + $0xcf8] sm:$0xff]
          %v4880 = vld [vmem:[#allocation2 + $0xd00] sm:$0xff]
          %v4881 = vld [vmem:[#allocation2 + $0xd08] sm:$0xff]
          %v4882 = vld [vmem:[#allocation2 + $0xd10] sm:$0xff]
          %v4883 = vld [vmem:[#allocation2 + $0xd18] sm:$0xff]
          %v4884 = vld [vmem:[#allocation2 + $0xd20] sm:$0xff]
          %v4885 = vld [vmem:[#allocation2 + $0xd28] sm:$0xff]
          %v4886 = vld [vmem:[#allocation2 + $0xd30] sm:$0xff]
          %v4887 = vld [vmem:[#allocation2 + $0xd38] sm:$0xff]
          %v4888 = vld [vmem:[#allocation2 + $0xd40] sm:$0xff]
          %v4889 = vld [vmem:[#allocation2 + $0xd48] sm:$0xff]
          %v4890 = vld [vmem:[#allocation2 + $0xd50] sm:$0xff]
          %v4891 = vld [vmem:[#allocation2 + $0xd58] sm:$0xff]
          %v4892 = vld [vmem:[#allocation2 + $0xd60] sm:$0xff]
          %v4893 = vld [vmem:[#allocation2 + $0xd68] sm:$0xff]
          %v4894 = vld [vmem:[#allocation2 + $0xd70] sm:$0xff]
          %v4895 = vld [vmem:[#allocation2 + $0xd78] sm:$0xff]
          %v4896 = vld [vmem:[#allocation2 + $0xd80] sm:$0xff]
          %v4897 = vld [vmem:[#allocation2 + $0xd88] sm:$0xff]
          %v4898 = vld [vmem:[#allocation2 + $0xd90] sm:$0xff]
          %v4899 = vld [vmem:[#allocation2 + $0xd98] sm:$0xff]
          %v4900 = vld [vmem:[#allocation2 + $0xda0] sm:$0xff]
          %v4901 = vld [vmem:[#allocation2 + $0xda8] sm:$0xff]
          %v4902 = vld [vmem:[#allocation2 + $0xdb0] sm:$0xff]
          %v4903 = vld [vmem:[#allocation2 + $0xdb8] sm:$0xff]
          %v4904 = vld [vmem:[#allocation2 + $0xdc0] sm:$0xff]
          %v4905 = vld [vmem:[#allocation2 + $0xdc8] sm:$0xff]
          %v4906 = vld [vmem:[#allocation2 + $0xdd0] sm:$0xff]
          %v4907 = vld [vmem:[#allocation2 + $0xdd8] sm:$0xff]
          %v4908 = vld [vmem:[#allocation2 + $0xde0] sm:$0xff]
          %v4909 = vld [vmem:[#allocation2 + $0xde8] sm:$0xff]
          %v4910 = vld [vmem:[#allocation2 + $0xdf0] sm:$0xff]
          %v4911 = vld [vmem:[#allocation2 + $0xdf8] sm:$0xff]
          %v4912 = vld [vmem:[#allocation2 + $0xe00] sm:$0xff]
          %v4913 = vld [vmem:[#allocation2 + $0xe08] sm:$0xff]
          %v4914 = vld [vmem:[#allocation2 + $0xe10] sm:$0xff]
          %v4915 = vld [vmem:[#allocation2 + $0xe18] sm:$0xff]
          %v4916 = vld [vmem:[#allocation2 + $0xe20] sm:$0xff]
          %v4917 = vld [vmem:[#allocation2 + $0xe28] sm:$0xff]
          %v4918 = vld [vmem:[#allocation2 + $0xe30] sm:$0xff]
          %v4919 = vld [vmem:[#allocation2 + $0xe38] sm:$0xff]
          %v4920 = vld [vmem:[#allocation2 + $0xe40] sm:$0xff]
          %v4921 = vld [vmem:[#allocation2 + $0xe48] sm:$0xff]
          %v4922 = vld [vmem:[#allocation2 + $0xe50] sm:$0xff]
          %v4923 = vld [vmem:[#allocation2 + $0xe58] sm:$0xff]
          %v4924 = vld [vmem:[#allocation2 + $0xe60] sm:$0xff]
          %v4925 = vld [vmem:[#allocation2 + $0xe68] sm:$0xff]
          %v4926 = vld [vmem:[#allocation2 + $0xe70] sm:$0xff]
          %v4927 = vld [vmem:[#allocation2 + $0xe78] sm:$0xff]
          %v4928 = vld [vmem:[#allocation2 + $0xe80] sm:$0xff]
          %v4929 = vld [vmem:[#allocation2 + $0xe88] sm:$0xff]
          %v4930 = vld [vmem:[#allocation2 + $0xe90] sm:$0xff]
          %v4931 = vld [vmem:[#allocation2 + $0xe98] sm:$0xff]
          %v4932 = vld [vmem:[#allocation2 + $0xea0] sm:$0xff]
          %v4933 = vld [vmem:[#allocation2 + $0xea8] sm:$0xff]
          %v4934 = vld [vmem:[#allocation2 + $0xeb0] sm:$0xff]
          %v4935 = vld [vmem:[#allocation2 + $0xeb8] sm:$0xff]
          %v4936 = vld [vmem:[#allocation2 + $0xec0] sm:$0xff]
          %v4937 = vld [vmem:[#allocation2 + $0xec8] sm:$0xff]
          %v4938 = vld [vmem:[#allocation2 + $0xed0] sm:$0xff]
          %v4939 = vld [vmem:[#allocation2 + $0xed8] sm:$0xff]
          %v4940 = vld [vmem:[#allocation2 + $0xee0] sm:$0xff]
          %v4941 = vld [vmem:[#allocation2 + $0xee8] sm:$0xff]
          %v4942 = vld [vmem:[#allocation2 + $0xef0] sm:$0xff]
          %v4943 = vld [vmem:[#allocation2 + $0xef8] sm:$0xff]
          %v4944 = vld [vmem:[#allocation2 + $0xf00] sm:$0xff]
          %v4945 = vld [vmem:[#allocation2 + $0xf08] sm:$0xff]
          %v4946 = vld [vmem:[#allocation2 + $0xf10] sm:$0xff]
          %v4947 = vld [vmem:[#allocation2 + $0xf18] sm:$0xff]
          %v4948 = vld [vmem:[#allocation2 + $0xf20] sm:$0xff]
          %v4949 = vld [vmem:[#allocation2 + $0xf28] sm:$0xff]
          %v4950 = vld [vmem:[#allocation2 + $0xf30] sm:$0xff]
          %v4951 = vld [vmem:[#allocation2 + $0xf38] sm:$0xff]
          %v4952 = vld [vmem:[#allocation2 + $0xf40] sm:$0xff]
          %v4953 = vld [vmem:[#allocation2 + $0xf48] sm:$0xff]
          %v4954 = vld [vmem:[#allocation2 + $0xf50] sm:$0xff]
          %v4955 = vld [vmem:[#allocation2 + $0xf58] sm:$0xff]
          %v4956 = vld [vmem:[#allocation2 + $0xf60] sm:$0xff]
          %v4957 = vld [vmem:[#allocation2 + $0xf68] sm:$0xff]
          %v4958 = vld [vmem:[#allocation2 + $0xf70] sm:$0xff]
          %v4959 = vld [vmem:[#allocation2 + $0xf78] sm:$0xff]
          %v4960 = vld [vmem:[#allocation2 + $0xf80] sm:$0xff]
          %v4961 = vld [vmem:[#allocation2 + $0xf88] sm:$0xff]
          %v4962 = vld [vmem:[#allocation2 + $0xf90] sm:$0xff]
          %v4963 = vld [vmem:[#allocation2 + $0xf98] sm:$0xff]
          %v4964 = vld [vmem:[#allocation2 + $0xfa0] sm:$0xff]
          %v4965 = vld [vmem:[#allocation2 + $0xfa8] sm:$0xff]
          %v4966 = vld [vmem:[#allocation2 + $0xfb0] sm:$0xff]
          %v4967 = vld [vmem:[#allocation2 + $0xfb8] sm:$0xff]
          %v4968 = vld [vmem:[#allocation2 + $0xfc0] sm:$0xff]
          %v4969 = vld [vmem:[#allocation2 + $0xfc8] sm:$0xff]
          %v4970 = vld [vmem:[#allocation2 + $0xfd0] sm:$0xff]
          %v4971 = vld [vmem:[#allocation2 + $0xfd8] sm:$0xff]
          %v4972 = vld [vmem:[#allocation2 + $0xfe0] sm:$0xff]
          %v4973 = vld [vmem:[#allocation2 + $0xfe8] sm:$0xff]
          %v4974 = vld [vmem:[#allocation2 + $0xff0] sm:$0xff]
          %v4975 = vld [vmem:[#allocation2 + $0xff8] sm:$0xff]
          %vm4976 = vcmp.lt.s32.totalorder %v4400, 520
          %vm4977 = vcmp.lt.s32.totalorder %v4401, 520
          %vm4978 = vcmp.lt.s32.totalorder %v4402, 520
          %vm4979 = vcmp.lt.s32.totalorder %v4403, 520
          %vm4980 = vcmp.lt.s32.totalorder %v4404, 520
          %vm4981 = vcmp.lt.s32.totalorder %v4405, 520
          %vm4982 = vcmp.lt.s32.totalorder %v4406, 520
          %vm4983 = vcmp.lt.s32.totalorder %v4407, 520
          %vm4984 = vcmp.lt.s32.totalorder %v4408, 520
          %vm4985 = vcmp.lt.s32.totalorder %v4409, 520
          %vm4986 = vcmp.lt.s32.totalorder %v4410, 520
          %vm4987 = vcmp.lt.s32.totalorder %v4411, 520
          %vm4988 = vcmp.lt.s32.totalorder %v4412, 520
          %vm4989 = vcmp.lt.s32.totalorder %v4413, 520
          %vm4990 = vcmp.lt.s32.totalorder %v4414, 520
          %vm4991 = vcmp.lt.s32.totalorder %v4415, 520
          %vm4992 = vcmp.lt.s32.totalorder %v4416, 520
          %vm4993 = vcmp.lt.s32.totalorder %v4417, 520
          %vm4994 = vcmp.lt.s32.totalorder %v4418, 520
          %vm4995 = vcmp.lt.s32.totalorder %v4419, 520
          %vm4996 = vcmp.lt.s32.totalorder %v4420, 520
          %vm4997 = vcmp.lt.s32.totalorder %v4421, 520
          %vm4998 = vcmp.lt.s32.totalorder %v4422, 520
          %vm4999 = vcmp.lt.s32.totalorder %v4423, 520
          %vm5000 = vcmp.lt.s32.totalorder %v4424, 520
          %vm5001 = vcmp.lt.s32.totalorder %v4425, 520
          %vm5002 = vcmp.lt.s32.totalorder %v4426, 520
          %vm5003 = vcmp.lt.s32.totalorder %v4427, 520
          %vm5004 = vcmp.lt.s32.totalorder %v4428, 520
          %vm5005 = vcmp.lt.s32.totalorder %v4429, 520
          %vm5006 = vcmp.lt.s32.totalorder %v4430, 520
          %vm5007 = vcmp.lt.s32.totalorder %v4431, 520
          %vm5008 = vcmp.lt.s32.totalorder %v4432, 520
          %vm5009 = vcmp.lt.s32.totalorder %v4433, 520
          %vm5010 = vcmp.lt.s32.totalorder %v4434, 520
          %vm5011 = vcmp.lt.s32.totalorder %v4435, 520
          %vm5012 = vcmp.lt.s32.totalorder %v4436, 520
          %vm5013 = vcmp.lt.s32.totalorder %v4437, 520
          %vm5014 = vcmp.lt.s32.totalorder %v4438, 520
          %vm5015 = vcmp.lt.s32.totalorder %v4439, 520
          %vm5016 = vcmp.lt.s32.totalorder %v4440, 520
          %vm5017 = vcmp.lt.s32.totalorder %v4441, 520
          %vm5018 = vcmp.lt.s32.totalorder %v4442, 520
          %vm5019 = vcmp.lt.s32.totalorder %v4443, 520
          %vm5020 = vcmp.lt.s32.totalorder %v4444, 520
          %vm5021 = vcmp.lt.s32.totalorder %v4445, 520
          %vm5022 = vcmp.lt.s32.totalorder %v4446, 520
          %vm5023 = vcmp.lt.s32.totalorder %v4447, 520
          %vm5024 = vcmp.lt.s32.totalorder %v4448, 520
          %vm5025 = vcmp.lt.s32.totalorder %v4449, 520
          %vm5026 = vcmp.lt.s32.totalorder %v4450, 520
          %vm5027 = vcmp.lt.s32.totalorder %v4451, 520
          %vm5028 = vcmp.lt.s32.totalorder %v4452, 520
          %vm5029 = vcmp.lt.s32.totalorder %v4453, 520
          %vm5030 = vcmp.lt.s32.totalorder %v4454, 520
          %vm5031 = vcmp.lt.s32.totalorder %v4455, 520
          %vm5032 = vcmp.lt.s32.totalorder %v4456, 520
          %vm5033 = vcmp.lt.s32.totalorder %v4457, 520
          %vm5034 = vcmp.lt.s32.totalorder %v4458, 520
          %vm5035 = vcmp.lt.s32.totalorder %v4459, 520
          %vm5036 = vcmp.lt.s32.totalorder %v4460, 520
          %vm5037 = vcmp.lt.s32.totalorder %v4461, 520
          %vm5038 = vcmp.lt.s32.totalorder %v4462, 520
          %vm5039 = vcmp.lt.s32.totalorder %v4463, 520
          %v5040 = vsel %vm4976, %v2276, 0.0
          %v5041 = vsel %vm4976, %v2277, 0.0
          %v5042 = vsel %vm4976, %v2278, 0.0
          %v5043 = vsel %vm4976, %v2279, 0.0
          %v5044 = vsel %vm4976, %v2280, 0.0
          %v5045 = vsel %vm4976, %v2281, 0.0
          %v5046 = vsel %vm4976, %v2282, 0.0
          %v5047 = vsel %vm4976, %v2283, 0.0
          %v5048 = vsel %vm4977, %v2284, 0.0
          %v5049 = vsel %vm4977, %v2285, 0.0
          %v5050 = vsel %vm4977, %v2286, 0.0
          %v5051 = vsel %vm4977, %v2287, 0.0
          %v5052 = vsel %vm4977, %v2288, 0.0
          %v5053 = vsel %vm4977, %v2289, 0.0
          %v5054 = vsel %vm4977, %v2290, 0.0
          %v5055 = vsel %vm4977, %v2291, 0.0
          %v5056 = vsel %vm4978, %v2292, 0.0
          %v5057 = vsel %vm4978, %v2293, 0.0
          %v5058 = vsel %vm4978, %v2294, 0.0
          %v5059 = vsel %vm4978, %v2295, 0.0
          %v5060 = vsel %vm4978, %v2296, 0.0
          %v5061 = vsel %vm4978, %v2297, 0.0
          %v5062 = vsel %vm4978, %v2298, 0.0
          %v5063 = vsel %vm4978, %v2299, 0.0
          %v5064 = vsel %vm4979, %v2300, 0.0
          %v5065 = vsel %vm4979, %v2301, 0.0
          %v5066 = vsel %vm4979, %v2302, 0.0
          %v5067 = vsel %vm4979, %v2303, 0.0
          %v5068 = vsel %vm4979, %v2304, 0.0
          %v5069 = vsel %vm4979, %v2305, 0.0
          %v5070 = vsel %vm4979, %v2306, 0.0
          %v5071 = vsel %vm4979, %v2307, 0.0
          %v5072 = vsel %vm4980, %v2308, 0.0
          %v5073 = vsel %vm4980, %v2309, 0.0
          %v5074 = vsel %vm4980, %v2310, 0.0
          %v5075 = vsel %vm4980, %v2311, 0.0
          %v5076 = vsel %vm4980, %v2312, 0.0
          %v5077 = vsel %vm4980, %v2313, 0.0
          %v5078 = vsel %vm4980, %v2314, 0.0
          %v5079 = vsel %vm4980, %v2315, 0.0
          %v5080 = vsel %vm4981, %v2316, 0.0
          %v5081 = vsel %vm4981, %v2317, 0.0
          %v5082 = vsel %vm4981, %v2318, 0.0
          %v5083 = vsel %vm4981, %v2319, 0.0
          %v5084 = vsel %vm4981, %v2320, 0.0
          %v5085 = vsel %vm4981, %v2321, 0.0
          %v5086 = vsel %vm4981, %v2322, 0.0
          %v5087 = vsel %vm4981, %v2323, 0.0
          %v5088 = vsel %vm4982, %v2324, 0.0
          %v5089 = vsel %vm4982, %v2325, 0.0
          %v5090 = vsel %vm4982, %v2326, 0.0
          %v5091 = vsel %vm4982, %v2327, 0.0
          %v5092 = vsel %vm4982, %v2328, 0.0
          %v5093 = vsel %vm4982, %v2329, 0.0
          %v5094 = vsel %vm4982, %v2330, 0.0
          %v5095 = vsel %vm4982, %v2331, 0.0
          %v5096 = vsel %vm4983, %v2332, 0.0
          %v5097 = vsel %vm4983, %v2333, 0.0
          %v5098 = vsel %vm4983, %v2334, 0.0
          %v5099 = vsel %vm4983, %v2335, 0.0
          %v5100 = vsel %vm4983, %v2336, 0.0
          %v5101 = vsel %vm4983, %v2337, 0.0
          %v5102 = vsel %vm4983, %v2338, 0.0
          %v5103 = vsel %vm4983, %v2339, 0.0
          %v5104 = vsel %vm4984, %v2340, 0.0
          %v5105 = vsel %vm4984, %v2341, 0.0
          %v5106 = vsel %vm4984, %v2342, 0.0
          %v5107 = vsel %vm4984, %v2343, 0.0
          %v5108 = vsel %vm4984, %v2344, 0.0
          %v5109 = vsel %vm4984, %v2345, 0.0
          %v5110 = vsel %vm4984, %v2346, 0.0
          %v5111 = vsel %vm4984, %v2347, 0.0
          %v5112 = vsel %vm4985, %v2348, 0.0
          %v5113 = vsel %vm4985, %v2349, 0.0
          %v5114 = vsel %vm4985, %v2350, 0.0
          %v5115 = vsel %vm4985, %v2351, 0.0
          %v5116 = vsel %vm4985, %v2352, 0.0
          %v5117 = vsel %vm4985, %v2353, 0.0
          %v5118 = vsel %vm4985, %v2354, 0.0
          %v5119 = vsel %vm4985, %v2355, 0.0
          %v5120 = vsel %vm4986, %v2356, 0.0
          %v5121 = vsel %vm4986, %v2357, 0.0
          %v5122 = vsel %vm4986, %v2358, 0.0
          %v5123 = vsel %vm4986, %v2359, 0.0
          %v5124 = vsel %vm4986, %v2360, 0.0
          %v5125 = vsel %vm4986, %v2361, 0.0
          %v5126 = vsel %vm4986, %v2362, 0.0
          %v5127 = vsel %vm4986, %v2363, 0.0
          %v5128 = vsel %vm4987, %v2364, 0.0
          %v5129 = vsel %vm4987, %v2365, 0.0
          %v5130 = vsel %vm4987, %v2366, 0.0
          %v5131 = vsel %vm4987, %v2367, 0.0
          %v5132 = vsel %vm4987, %v2368, 0.0
          %v5133 = vsel %vm4987, %v2369, 0.0
          %v5134 = vsel %vm4987, %v2370, 0.0
          %v5135 = vsel %vm4987, %v2371, 0.0
          %v5136 = vsel %vm4988, %v2372, 0.0
          %v5137 = vsel %vm4988, %v2373, 0.0
          %v5138 = vsel %vm4988, %v2374, 0.0
          %v5139 = vsel %vm4988, %v2375, 0.0
          %v5140 = vsel %vm4988, %v2376, 0.0
          %v5141 = vsel %vm4988, %v2377, 0.0
          %v5142 = vsel %vm4988, %v2378, 0.0
          %v5143 = vsel %vm4988, %v2379, 0.0
          %v5144 = vsel %vm4989, %v2380, 0.0
          %v5145 = vsel %vm4989, %v2381, 0.0
          %v5146 = vsel %vm4989, %v2382, 0.0
          %v5147 = vsel %vm4989, %v2383, 0.0
          %v5148 = vsel %vm4989, %v2384, 0.0
          %v5149 = vsel %vm4989, %v2385, 0.0
          %v5150 = vsel %vm4989, %v2386, 0.0
          %v5151 = vsel %vm4989, %v2387, 0.0
          %v5152 = vsel %vm4990, %v2388, 0.0
          %v5153 = vsel %vm4990, %v2389, 0.0
          %v5154 = vsel %vm4990, %v2390, 0.0
          %v5155 = vsel %vm4990, %v2391, 0.0
          %v5156 = vsel %vm4990, %v2392, 0.0
          %v5157 = vsel %vm4990, %v2393, 0.0
          %v5158 = vsel %vm4990, %v2394, 0.0
          %v5159 = vsel %vm4990, %v2395, 0.0
          %v5160 = vsel %vm4991, %v2396, 0.0
          %v5161 = vsel %vm4991, %v2397, 0.0
          %v5162 = vsel %vm4991, %v2398, 0.0
          %v5163 = vsel %vm4991, %v2399, 0.0
          %v5164 = vsel %vm4991, %v2400, 0.0
          %v5165 = vsel %vm4991, %v2401, 0.0
          %v5166 = vsel %vm4991, %v2402, 0.0
          %v5167 = vsel %vm4991, %v2403, 0.0
          %v5168 = vsel %vm4992, %v2404, 0.0
          %v5169 = vsel %vm4992, %v2405, 0.0
          %v5170 = vsel %vm4992, %v2406, 0.0
          %v5171 = vsel %vm4992, %v2407, 0.0
          %v5172 = vsel %vm4992, %v2408, 0.0
          %v5173 = vsel %vm4992, %v2409, 0.0
          %v5174 = vsel %vm4992, %v2410, 0.0
          %v5175 = vsel %vm4992, %v2411, 0.0
          %v5176 = vsel %vm4993, %v2412, 0.0
          %v5177 = vsel %vm4993, %v2413, 0.0
          %v5178 = vsel %vm4993, %v2414, 0.0
          %v5179 = vsel %vm4993, %v2415, 0.0
          %v5180 = vsel %vm4993, %v2416, 0.0
          %v5181 = vsel %vm4993, %v2417, 0.0
          %v5182 = vsel %vm4993, %v2418, 0.0
          %v5183 = vsel %vm4993, %v2419, 0.0
          %v5184 = vsel %vm4994, %v2420, 0.0
          %v5185 = vsel %vm4994, %v2421, 0.0
          %v5186 = vsel %vm4994, %v2422, 0.0
          %v5187 = vsel %vm4994, %v2423, 0.0
          %v5188 = vsel %vm4994, %v2424, 0.0
          %v5189 = vsel %vm4994, %v2425, 0.0
          %v5190 = vsel %vm4994, %v2426, 0.0
          %v5191 = vsel %vm4994, %v2427, 0.0
          %v5192 = vsel %vm4995, %v2428, 0.0
          %v5193 = vsel %vm4995, %v2429, 0.0
          %v5194 = vsel %vm4995, %v2430, 0.0
          %v5195 = vsel %vm4995, %v2431, 0.0
          %v5196 = vsel %vm4995, %v2432, 0.0
          %v5197 = vsel %vm4995, %v2433, 0.0
          %v5198 = vsel %vm4995, %v2434, 0.0
          %v5199 = vsel %vm4995, %v2435, 0.0
          %v5200 = vsel %vm4996, %v2436, 0.0
          %v5201 = vsel %vm4996, %v2437, 0.0
          %v5202 = vsel %vm4996, %v2438, 0.0
          %v5203 = vsel %vm4996, %v2439, 0.0
          %v5204 = vsel %vm4996, %v2440, 0.0
          %v5205 = vsel %vm4996, %v2441, 0.0
          %v5206 = vsel %vm4996, %v2442, 0.0
          %v5207 = vsel %vm4996, %v2443, 0.0
          %v5208 = vsel %vm4997, %v2444, 0.0
          %v5209 = vsel %vm4997, %v2445, 0.0
          %v5210 = vsel %vm4997, %v2446, 0.0
          %v5211 = vsel %vm4997, %v2447, 0.0
          %v5212 = vsel %vm4997, %v2448, 0.0
          %v5213 = vsel %vm4997, %v2449, 0.0
          %v5214 = vsel %vm4997, %v2450, 0.0
          %v5215 = vsel %vm4997, %v2451, 0.0
          %v5216 = vsel %vm4998, %v2452, 0.0
          %v5217 = vsel %vm4998, %v2453, 0.0
          %v5218 = vsel %vm4998, %v2454, 0.0
          %v5219 = vsel %vm4998, %v2455, 0.0
          %v5220 = vsel %vm4998, %v2456, 0.0
          %v5221 = vsel %vm4998, %v2457, 0.0
          %v5222 = vsel %vm4998, %v2458, 0.0
          %v5223 = vsel %vm4998, %v2459, 0.0
          %v5224 = vsel %vm4999, %v2460, 0.0
          %v5225 = vsel %vm4999, %v2461, 0.0
          %v5226 = vsel %vm4999, %v2462, 0.0
          %v5227 = vsel %vm4999, %v2463, 0.0
          %v5228 = vsel %vm4999, %v2464, 0.0
          %v5229 = vsel %vm4999, %v2465, 0.0
          %v5230 = vsel %vm4999, %v2466, 0.0
          %v5231 = vsel %vm4999, %v2467, 0.0
          %v5232 = vsel %vm5000, %v2468, 0.0
          %v5233 = vsel %vm5000, %v2469, 0.0
          %v5234 = vsel %vm5000, %v2470, 0.0
          %v5235 = vsel %vm5000, %v2471, 0.0
          %v5236 = vsel %vm5000, %v2472, 0.0
          %v5237 = vsel %vm5000, %v2473, 0.0
          %v5238 = vsel %vm5000, %v2474, 0.0
          %v5239 = vsel %vm5000, %v2475, 0.0
          %v5240 = vsel %vm5001, %v2476, 0.0
          %v5241 = vsel %vm5001, %v2477, 0.0
          %v5242 = vsel %vm5001, %v2478, 0.0
          %v5243 = vsel %vm5001, %v2479, 0.0
          %v5244 = vsel %vm5001, %v2480, 0.0
          %v5245 = vsel %vm5001, %v2481, 0.0
          %v5246 = vsel %vm5001, %v2482, 0.0
          %v5247 = vsel %vm5001, %v2483, 0.0
          %v5248 = vsel %vm5002, %v2484, 0.0
          %v5249 = vsel %vm5002, %v2485, 0.0
          %v5250 = vsel %vm5002, %v2486, 0.0
          %v5251 = vsel %vm5002, %v2487, 0.0
          %v5252 = vsel %vm5002, %v2488, 0.0
          %v5253 = vsel %vm5002, %v2489, 0.0
          %v5254 = vsel %vm5002, %v2490, 0.0
          %v5255 = vsel %vm5002, %v2491, 0.0
          %v5256 = vsel %vm5003, %v2492, 0.0
          %v5257 = vsel %vm5003, %v2493, 0.0
          %v5258 = vsel %vm5003, %v2494, 0.0
          %v5259 = vsel %vm5003, %v2495, 0.0
          %v5260 = vsel %vm5003, %v2496, 0.0
          %v5261 = vsel %vm5003, %v2497, 0.0
          %v5262 = vsel %vm5003, %v2498, 0.0
          %v5263 = vsel %vm5003, %v2499, 0.0
          %v5264 = vsel %vm5004, %v2500, 0.0
          %v5265 = vsel %vm5004, %v2501, 0.0
          %v5266 = vsel %vm5004, %v2502, 0.0
          %v5267 = vsel %vm5004, %v2503, 0.0
          %v5268 = vsel %vm5004, %v2504, 0.0
          %v5269 = vsel %vm5004, %v2505, 0.0
          %v5270 = vsel %vm5004, %v2506, 0.0
          %v5271 = vsel %vm5004, %v2507, 0.0
          %v5272 = vsel %vm5005, %v2508, 0.0
          %v5273 = vsel %vm5005, %v2509, 0.0
          %v5274 = vsel %vm5005, %v2510, 0.0
          %v5275 = vsel %vm5005, %v2511, 0.0
          %v5276 = vsel %vm5005, %v2512, 0.0
          %v5277 = vsel %vm5005, %v2513, 0.0
          %v5278 = vsel %vm5005, %v2514, 0.0
          %v5279 = vsel %vm5005, %v2515, 0.0
          %v5280 = vsel %vm5006, %v2516, 0.0
          %v5281 = vsel %vm5006, %v2517, 0.0
          %v5282 = vsel %vm5006, %v2518, 0.0
          %v5283 = vsel %vm5006, %v2519, 0.0
          %v5284 = vsel %vm5006, %v2520, 0.0
          %v5285 = vsel %vm5006, %v2521, 0.0
          %v5286 = vsel %vm5006, %v2522, 0.0
          %v5287 = vsel %vm5006, %v2523, 0.0
          %v5288 = vsel %vm5007, %v2524, 0.0
          %v5289 = vsel %vm5007, %v2525, 0.0
          %v5290 = vsel %vm5007, %v2526, 0.0
          %v5291 = vsel %vm5007, %v2527, 0.0
          %v5292 = vsel %vm5007, %v2528, 0.0
          %v5293 = vsel %vm5007, %v2529, 0.0
          %v5294 = vsel %vm5007, %v2530, 0.0
          %v5295 = vsel %vm5007, %v2531, 0.0
          %v5296 = vsel %vm5008, %v2532, 0.0
          %v5297 = vsel %vm5008, %v2533, 0.0
          %v5298 = vsel %vm5008, %v2534, 0.0
          %v5299 = vsel %vm5008, %v2535, 0.0
          %v5300 = vsel %vm5008, %v2536, 0.0
          %v5301 = vsel %vm5008, %v2537, 0.0
          %v5302 = vsel %vm5008, %v2538, 0.0
          %v5303 = vsel %vm5008, %v2539, 0.0
          %v5304 = vsel %vm5009, %v2540, 0.0
          %v5305 = vsel %vm5009, %v2541, 0.0
          %v5306 = vsel %vm5009, %v2542, 0.0
          %v5307 = vsel %vm5009, %v2543, 0.0
          %v5308 = vsel %vm5009, %v2544, 0.0
          %v5309 = vsel %vm5009, %v2545, 0.0
          %v5310 = vsel %vm5009, %v2546, 0.0
          %v5311 = vsel %vm5009, %v2547, 0.0
          %v5312 = vsel %vm5010, %v2548, 0.0
          %v5313 = vsel %vm5010, %v2549, 0.0
          %v5314 = vsel %vm5010, %v2550, 0.0
          %v5315 = vsel %vm5010, %v2551, 0.0
          %v5316 = vsel %vm5010, %v2552, 0.0
          %v5317 = vsel %vm5010, %v2553, 0.0
          %v5318 = vsel %vm5010, %v2554, 0.0
          %v5319 = vsel %vm5010, %v2555, 0.0
          %v5320 = vsel %vm5011, %v2556, 0.0
          %v5321 = vsel %vm5011, %v2557, 0.0
          %v5322 = vsel %vm5011, %v2558, 0.0
          %v5323 = vsel %vm5011, %v2559, 0.0
          %v5324 = vsel %vm5011, %v2560, 0.0
          %v5325 = vsel %vm5011, %v2561, 0.0
          %v5326 = vsel %vm5011, %v2562, 0.0
          %v5327 = vsel %vm5011, %v2563, 0.0
          %v5328 = vsel %vm5012, %v2564, 0.0
          %v5329 = vsel %vm5012, %v2565, 0.0
          %v5330 = vsel %vm5012, %v2566, 0.0
          %v5331 = vsel %vm5012, %v2567, 0.0
          %v5332 = vsel %vm5012, %v2568, 0.0
          %v5333 = vsel %vm5012, %v2569, 0.0
          %v5334 = vsel %vm5012, %v2570, 0.0
          %v5335 = vsel %vm5012, %v2571, 0.0
          %v5336 = vsel %vm5013, %v2572, 0.0
          %v5337 = vsel %vm5013, %v2573, 0.0
          %v5338 = vsel %vm5013, %v2574, 0.0
          %v5339 = vsel %vm5013, %v2575, 0.0
          %v5340 = vsel %vm5013, %v2576, 0.0
          %v5341 = vsel %vm5013, %v2577, 0.0
          %v5342 = vsel %vm5013, %v2578, 0.0
          %v5343 = vsel %vm5013, %v2579, 0.0
          %v5344 = vsel %vm5014, %v2580, 0.0
          %v5345 = vsel %vm5014, %v2581, 0.0
          %v5346 = vsel %vm5014, %v2582, 0.0
          %v5347 = vsel %vm5014, %v2583, 0.0
          %v5348 = vsel %vm5014, %v2584, 0.0
          %v5349 = vsel %vm5014, %v2585, 0.0
          %v5350 = vsel %vm5014, %v2586, 0.0
          %v5351 = vsel %vm5014, %v2587, 0.0
          %v5352 = vsel %vm5015, %v2588, 0.0
          %v5353 = vsel %vm5015, %v2589, 0.0
          %v5354 = vsel %vm5015, %v2590, 0.0
          %v5355 = vsel %vm5015, %v2591, 0.0
          %v5356 = vsel %vm5015, %v2592, 0.0
          %v5357 = vsel %vm5015, %v2593, 0.0
          %v5358 = vsel %vm5015, %v2594, 0.0
          %v5359 = vsel %vm5015, %v2595, 0.0
          %v5360 = vsel %vm5016, %v2596, 0.0
          %v5361 = vsel %vm5016, %v2597, 0.0
          %v5362 = vsel %vm5016, %v2598, 0.0
          %v5363 = vsel %vm5016, %v2599, 0.0
          %v5364 = vsel %vm5016, %v2600, 0.0
          %v5365 = vsel %vm5016, %v2601, 0.0
          %v5366 = vsel %vm5016, %v2602, 0.0
          %v5367 = vsel %vm5016, %v2603, 0.0
          %v5368 = vsel %vm5017, %v2604, 0.0
          %v5369 = vsel %vm5017, %v2605, 0.0
          %v5370 = vsel %vm5017, %v2606, 0.0
          %v5371 = vsel %vm5017, %v2607, 0.0
          %v5372 = vsel %vm5017, %v2608, 0.0
          %v5373 = vsel %vm5017, %v2609, 0.0
          %v5374 = vsel %vm5017, %v2610, 0.0
          %v5375 = vsel %vm5017, %v2611, 0.0
          %v5376 = vsel %vm5018, %v2612, 0.0
          %v5377 = vsel %vm5018, %v2613, 0.0
          %v5378 = vsel %vm5018, %v2614, 0.0
          %v5379 = vsel %vm5018, %v2615, 0.0
          %v5380 = vsel %vm5018, %v2616, 0.0
          %v5381 = vsel %vm5018, %v2617, 0.0
          %v5382 = vsel %vm5018, %v2618, 0.0
          %v5383 = vsel %vm5018, %v2619, 0.0
          %v5384 = vsel %vm5019, %v2620, 0.0
          %v5385 = vsel %vm5019, %v2621, 0.0
          %v5386 = vsel %vm5019, %v2622, 0.0
          %v5387 = vsel %vm5019, %v2623, 0.0
          %v5388 = vsel %vm5019, %v2624, 0.0
          %v5389 = vsel %vm5019, %v2625, 0.0
          %v5390 = vsel %vm5019, %v2626, 0.0
          %v5391 = vsel %vm5019, %v2627, 0.0
          %v5392 = vsel %vm5020, %v2628, 0.0
          %v5393 = vsel %vm5020, %v2629, 0.0
          %v5394 = vsel %vm5020, %v2630, 0.0
          %v5395 = vsel %vm5020, %v2631, 0.0
          %v5396 = vsel %vm5020, %v2632, 0.0
          %v5397 = vsel %vm5020, %v2633, 0.0
          %v5398 = vsel %vm5020, %v2634, 0.0
          %v5399 = vsel %vm5020, %v2635, 0.0
          %v5400 = vsel %vm5021, %v2636, 0.0
          %v5401 = vsel %vm5021, %v2637, 0.0
          %v5402 = vsel %vm5021, %v2638, 0.0
          %v5403 = vsel %vm5021, %v2639, 0.0
          %v5404 = vsel %vm5021, %v2640, 0.0
          %v5405 = vsel %vm5021, %v2641, 0.0
          %v5406 = vsel %vm5021, %v2642, 0.0
          %v5407 = vsel %vm5021, %v2643, 0.0
          %v5408 = vsel %vm5022, %v2644, 0.0
          %v5409 = vsel %vm5022, %v2645, 0.0
          %v5410 = vsel %vm5022, %v2646, 0.0
          %v5411 = vsel %vm5022, %v2647, 0.0
          %v5412 = vsel %vm5022, %v2648, 0.0
          %v5413 = vsel %vm5022, %v2649, 0.0
          %v5414 = vsel %vm5022, %v2650, 0.0
          %v5415 = vsel %vm5022, %v2651, 0.0
          %v5416 = vsel %vm5023, %v2652, 0.0
          %v5417 = vsel %vm5023, %v2653, 0.0
          %v5418 = vsel %vm5023, %v2654, 0.0
          %v5419 = vsel %vm5023, %v2655, 0.0
          %v5420 = vsel %vm5023, %v2656, 0.0
          %v5421 = vsel %vm5023, %v2657, 0.0
          %v5422 = vsel %vm5023, %v2658, 0.0
          %v5423 = vsel %vm5023, %v2659, 0.0
          %v5424 = vsel %vm5024, %v2660, 0.0
          %v5425 = vsel %vm5024, %v2661, 0.0
          %v5426 = vsel %vm5024, %v2662, 0.0
          %v5427 = vsel %vm5024, %v2663, 0.0
          %v5428 = vsel %vm5024, %v2664, 0.0
          %v5429 = vsel %vm5024, %v2665, 0.0
          %v5430 = vsel %vm5024, %v2666, 0.0
          %v5431 = vsel %vm5024, %v2667, 0.0
          %v5432 = vsel %vm5025, %v2668, 0.0
          %v5433 = vsel %vm5025, %v2669, 0.0
          %v5434 = vsel %vm5025, %v2670, 0.0
          %v5435 = vsel %vm5025, %v2671, 0.0
          %v5436 = vsel %vm5025, %v2672, 0.0
          %v5437 = vsel %vm5025, %v2673, 0.0
          %v5438 = vsel %vm5025, %v2674, 0.0
          %v5439 = vsel %vm5025, %v2675, 0.0
          %v5440 = vsel %vm5026, %v2676, 0.0
          %v5441 = vsel %vm5026, %v2677, 0.0
          %v5442 = vsel %vm5026, %v2678, 0.0
          %v5443 = vsel %vm5026, %v2679, 0.0
          %v5444 = vsel %vm5026, %v2680, 0.0
          %v5445 = vsel %vm5026, %v2681, 0.0
          %v5446 = vsel %vm5026, %v2682, 0.0
          %v5447 = vsel %vm5026, %v2683, 0.0
          %v5448 = vsel %vm5027, %v2684, 0.0
          %v5449 = vsel %vm5027, %v2685, 0.0
          %v5450 = vsel %vm5027, %v2686, 0.0
          %v5451 = vsel %vm5027, %v2687, 0.0
          %v5452 = vsel %vm5027, %v2688, 0.0
          %v5453 = vsel %vm5027, %v2689, 0.0
          %v5454 = vsel %vm5027, %v2690, 0.0
          %v5455 = vsel %vm5027, %v2691, 0.0
          %v5456 = vsel %vm5028, %v2692, 0.0
          %v5457 = vsel %vm5028, %v2693, 0.0
          %v5458 = vsel %vm5028, %v2694, 0.0
          %v5459 = vsel %vm5028, %v2695, 0.0
          %v5460 = vsel %vm5028, %v2696, 0.0
          %v5461 = vsel %vm5028, %v2697, 0.0
          %v5462 = vsel %vm5028, %v2698, 0.0
          %v5463 = vsel %vm5028, %v2699, 0.0
          %v5464 = vsel %vm5029, %v2700, 0.0
          %v5465 = vsel %vm5029, %v2701, 0.0
          %v5466 = vsel %vm5029, %v2702, 0.0
          %v5467 = vsel %vm5029, %v2703, 0.0
          %v5468 = vsel %vm5029, %v2704, 0.0
          %v5469 = vsel %vm5029, %v2705, 0.0
          %v5470 = vsel %vm5029, %v2706, 0.0
          %v5471 = vsel %vm5029, %v2707, 0.0
          %v5472 = vsel %vm5030, %v2708, 0.0
          %v5473 = vsel %vm5030, %v2709, 0.0
          %v5474 = vsel %vm5030, %v2710, 0.0
          %v5475 = vsel %vm5030, %v2711, 0.0
          %v5476 = vsel %vm5030, %v2712, 0.0
          %v5477 = vsel %vm5030, %v2713, 0.0
          %v5478 = vsel %vm5030, %v2714, 0.0
          %v5479 = vsel %vm5030, %v2715, 0.0
          %v5480 = vsel %vm5031, %v2716, 0.0
          %v5481 = vsel %vm5031, %v2717, 0.0
          %v5482 = vsel %vm5031, %v2718, 0.0
          %v5483 = vsel %vm5031, %v2719, 0.0
          %v5484 = vsel %vm5031, %v2720, 0.0
          %v5485 = vsel %vm5031, %v2721, 0.0
          %v5486 = vsel %vm5031, %v2722, 0.0
          %v5487 = vsel %vm5031, %v2723, 0.0
          %v5488 = vsel %vm5032, %v2724, 0.0
          %v5489 = vsel %vm5032, %v2725, 0.0
          %v5490 = vsel %vm5032, %v2726, 0.0
          %v5491 = vsel %vm5032, %v2727, 0.0
          %v5492 = vsel %vm5032, %v2728, 0.0
          %v5493 = vsel %vm5032, %v2729, 0.0
          %v5494 = vsel %vm5032, %v2730, 0.0
          %v5495 = vsel %vm5032, %v2731, 0.0
          %v5496 = vsel %vm5033, %v2732, 0.0
          %v5497 = vsel %vm5033, %v2733, 0.0
          %v5498 = vsel %vm5033, %v2734, 0.0
          %v5499 = vsel %vm5033, %v2735, 0.0
          %v5500 = vsel %vm5033, %v2736, 0.0
          %v5501 = vsel %vm5033, %v2737, 0.0
          %v5502 = vsel %vm5033, %v2738, 0.0
          %v5503 = vsel %vm5033, %v2739, 0.0
          %v5504 = vsel %vm5034, %v2740, 0.0
          %v5505 = vsel %vm5034, %v2741, 0.0
          %v5506 = vsel %vm5034, %v2742, 0.0
          %v5507 = vsel %vm5034, %v2743, 0.0
          %v5508 = vsel %vm5034, %v2744, 0.0
          %v5509 = vsel %vm5034, %v2745, 0.0
          %v5510 = vsel %vm5034, %v2746, 0.0
          %v5511 = vsel %vm5034, %v2747, 0.0
          %v5512 = vsel %vm5035, %v2748, 0.0
          %v5513 = vsel %vm5035, %v2749, 0.0
          %v5514 = vsel %vm5035, %v2750, 0.0
          %v5515 = vsel %vm5035, %v2751, 0.0
          %v5516 = vsel %vm5035, %v2752, 0.0
          %v5517 = vsel %vm5035, %v2753, 0.0
          %v5518 = vsel %vm5035, %v2754, 0.0
          %v5519 = vsel %vm5035, %v2755, 0.0
          %v5520 = vsel %vm5036, %v2756, 0.0
          %v5521 = vsel %vm5036, %v2757, 0.0
          %v5522 = vsel %vm5036, %v2758, 0.0
          %v5523 = vsel %vm5036, %v2759, 0.0
          %v5524 = vsel %vm5036, %v2760, 0.0
          %v5525 = vsel %vm5036, %v2761, 0.0
          %v5526 = vsel %vm5036, %v2762, 0.0
          %v5527 = vsel %vm5036, %v2763, 0.0
          %v5528 = vsel %vm5037, %v2764, 0.0
          %v5529 = vsel %vm5037, %v2765, 0.0
          %v5530 = vsel %vm5037, %v2766, 0.0
          %v5531 = vsel %vm5037, %v2767, 0.0
          %v5532 = vsel %vm5037, %v2768, 0.0
          %v5533 = vsel %vm5037, %v2769, 0.0
          %v5534 = vsel %vm5037, %v2770, 0.0
          %v5535 = vsel %vm5037, %v2771, 0.0
          %v5536 = vsel %vm5038, %v2772, 0.0
          %v5537 = vsel %vm5038, %v2773, 0.0
          %v5538 = vsel %vm5038, %v2774, 0.0
          %v5539 = vsel %vm5038, %v2775, 0.0
          %v5540 = vsel %vm5038, %v2776, 0.0
          %v5541 = vsel %vm5038, %v2777, 0.0
          %v5542 = vsel %vm5038, %v2778, 0.0
          %v5543 = vsel %vm5038, %v2779, 0.0
          %v5544 = vsel %vm5039, %v2780, 0.0
          %v5545 = vsel %vm5039, %v2781, 0.0
          %v5546 = vsel %vm5039, %v2782, 0.0
          %v5547 = vsel %vm5039, %v2783, 0.0
          %v5548 = vsel %vm5039, %v2784, 0.0
          %v5549 = vsel %vm5039, %v2785, 0.0
          %v5550 = vsel %vm5039, %v2786, 0.0
          %v5551 = vsel %vm5039, %v2787, 0.0
          %v5552 = vadd.f32 %v4464, %v5040
          %v5553 = vadd.f32 %v4465, %v5041
          %v5554 = vadd.f32 %v4466, %v5042
          %v5555 = vadd.f32 %v4467, %v5043
          %v5556 = vadd.f32 %v4468, %v5044
          %v5557 = vadd.f32 %v4469, %v5045
          %v5558 = vadd.f32 %v4470, %v5046
          %v5559 = vadd.f32 %v4471, %v5047
          %v5560 = vadd.f32 %v4472, %v5048
          %v5561 = vadd.f32 %v4473, %v5049
          %v5562 = vadd.f32 %v4474, %v5050
          %v5563 = vadd.f32 %v4475, %v5051
          %v5564 = vadd.f32 %v4476, %v5052
          %v5565 = vadd.f32 %v4477, %v5053
          %v5566 = vadd.f32 %v4478, %v5054
          %v5567 = vadd.f32 %v4479, %v5055
          %v5568 = vadd.f32 %v4480, %v5056
          %v5569 = vadd.f32 %v4481, %v5057
          %v5570 = vadd.f32 %v4482, %v5058
          %v5571 = vadd.f32 %v4483, %v5059
          %v5572 = vadd.f32 %v4484, %v5060
          %v5573 = vadd.f32 %v4485, %v5061
          %v5574 = vadd.f32 %v4486, %v5062
          %v5575 = vadd.f32 %v4487, %v5063
          %v5576 = vadd.f32 %v4488, %v5064
          %v5577 = vadd.f32 %v4489, %v5065
          %v5578 = vadd.f32 %v4490, %v5066
          %v5579 = vadd.f32 %v4491, %v5067
          %v5580 = vadd.f32 %v4492, %v5068
          %v5581 = vadd.f32 %v4493, %v5069
          %v5582 = vadd.f32 %v4494, %v5070
          %v5583 = vadd.f32 %v4495, %v5071
          %v5584 = vadd.f32 %v4496, %v5072
          %v5585 = vadd.f32 %v4497, %v5073
          %v5586 = vadd.f32 %v4498, %v5074
          %v5587 = vadd.f32 %v4499, %v5075
          %v5588 = vadd.f32 %v4500, %v5076
          %v5589 = vadd.f32 %v4501, %v5077
          %v5590 = vadd.f32 %v4502, %v5078
          %v5591 = vadd.f32 %v4503, %v5079
          %v5592 = vadd.f32 %v4504, %v5080
          %v5593 = vadd.f32 %v4505, %v5081
          %v5594 = vadd.f32 %v4506, %v5082
          %v5595 = vadd.f32 %v4507, %v5083
          %v5596 = vadd.f32 %v4508, %v5084
          %v5597 = vadd.f32 %v4509, %v5085
          %v5598 = vadd.f32 %v4510, %v5086
          %v5599 = vadd.f32 %v4511, %v5087
          %v5600 = vadd.f32 %v4512, %v5088
          %v5601 = vadd.f32 %v4513, %v5089
          %v5602 = vadd.f32 %v4514, %v5090
          %v5603 = vadd.f32 %v4515, %v5091
          %v5604 = vadd.f32 %v4516, %v5092
          %v5605 = vadd.f32 %v4517, %v5093
          %v5606 = vadd.f32 %v4518, %v5094
          %v5607 = vadd.f32 %v4519, %v5095
          %v5608 = vadd.f32 %v4520, %v5096
          %v5609 = vadd.f32 %v4521, %v5097
          %v5610 = vadd.f32 %v4522, %v5098
          %v5611 = vadd.f32 %v4523, %v5099
          %v5612 = vadd.f32 %v4524, %v5100
          %v5613 = vadd.f32 %v4525, %v5101
          %v5614 = vadd.f32 %v4526, %v5102
          %v5615 = vadd.f32 %v4527, %v5103
          %v5616 = vadd.f32 %v4528, %v5104
          %v5617 = vadd.f32 %v4529, %v5105
          %v5618 = vadd.f32 %v4530, %v5106
          %v5619 = vadd.f32 %v4531, %v5107
          %v5620 = vadd.f32 %v4532, %v5108
          %v5621 = vadd.f32 %v4533, %v5109
          %v5622 = vadd.f32 %v4534, %v5110
          %v5623 = vadd.f32 %v4535, %v5111
          %v5624 = vadd.f32 %v4536, %v5112
          %v5625 = vadd.f32 %v4537, %v5113
          %v5626 = vadd.f32 %v4538, %v5114
          %v5627 = vadd.f32 %v4539, %v5115
          %v5628 = vadd.f32 %v4540, %v5116
          %v5629 = vadd.f32 %v4541, %v5117
          %v5630 = vadd.f32 %v4542, %v5118
          %v5631 = vadd.f32 %v4543, %v5119
          %v5632 = vadd.f32 %v4544, %v5120
          %v5633 = vadd.f32 %v4545, %v5121
          %v5634 = vadd.f32 %v4546, %v5122
          %v5635 = vadd.f32 %v4547, %v5123
          %v5636 = vadd.f32 %v4548, %v5124
          %v5637 = vadd.f32 %v4549, %v5125
          %v5638 = vadd.f32 %v4550, %v5126
          %v5639 = vadd.f32 %v4551, %v5127
          %v5640 = vadd.f32 %v4552, %v5128
          %v5641 = vadd.f32 %v4553, %v5129
          %v5642 = vadd.f32 %v4554, %v5130
          %v5643 = vadd.f32 %v4555, %v5131
          %v5644 = vadd.f32 %v4556, %v5132
          %v5645 = vadd.f32 %v4557, %v5133
          %v5646 = vadd.f32 %v4558, %v5134
          %v5647 = vadd.f32 %v4559, %v5135
          %v5648 = vadd.f32 %v4560, %v5136
          %v5649 = vadd.f32 %v4561, %v5137
          %v5650 = vadd.f32 %v4562, %v5138
          %v5651 = vadd.f32 %v4563, %v5139
          %v5652 = vadd.f32 %v4564, %v5140
          %v5653 = vadd.f32 %v4565, %v5141
          %v5654 = vadd.f32 %v4566, %v5142
          %v5655 = vadd.f32 %v4567, %v5143
          %v5656 = vadd.f32 %v4568, %v5144
          %v5657 = vadd.f32 %v4569, %v5145
          %v5658 = vadd.f32 %v4570, %v5146
          %v5659 = vadd.f32 %v4571, %v5147
          %v5660 = vadd.f32 %v4572, %v5148
          %v5661 = vadd.f32 %v4573, %v5149
          %v5662 = vadd.f32 %v4574, %v5150
          %v5663 = vadd.f32 %v4575, %v5151
          %v5664 = vadd.f32 %v4576, %v5152
          %v5665 = vadd.f32 %v4577, %v5153
          %v5666 = vadd.f32 %v4578, %v5154
          %v5667 = vadd.f32 %v4579, %v5155
          %v5668 = vadd.f32 %v4580, %v5156
          %v5669 = vadd.f32 %v4581, %v5157
          %v5670 = vadd.f32 %v4582, %v5158
          %v5671 = vadd.f32 %v4583, %v5159
          %v5672 = vadd.f32 %v4584, %v5160
          %v5673 = vadd.f32 %v4585, %v5161
          %v5674 = vadd.f32 %v4586, %v5162
          %v5675 = vadd.f32 %v4587, %v5163
          %v5676 = vadd.f32 %v4588, %v5164
          %v5677 = vadd.f32 %v4589, %v5165
          %v5678 = vadd.f32 %v4590, %v5166
          %v5679 = vadd.f32 %v4591, %v5167
          %v5680 = vadd.f32 %v4592, %v5168
          %v5681 = vadd.f32 %v4593, %v5169
          %v5682 = vadd.f32 %v4594, %v5170
          %v5683 = vadd.f32 %v4595, %v5171
          %v5684 = vadd.f32 %v4596, %v5172
          %v5685 = vadd.f32 %v4597, %v5173
          %v5686 = vadd.f32 %v4598, %v5174
          %v5687 = vadd.f32 %v4599, %v5175
          %v5688 = vadd.f32 %v4600, %v5176
          %v5689 = vadd.f32 %v4601, %v5177
          %v5690 = vadd.f32 %v4602, %v5178
          %v5691 = vadd.f32 %v4603, %v5179
          %v5692 = vadd.f32 %v4604, %v5180
          %v5693 = vadd.f32 %v4605, %v5181
          %v5694 = vadd.f32 %v4606, %v5182
          %v5695 = vadd.f32 %v4607, %v5183
          %v5696 = vadd.f32 %v4608, %v5184
          %v5697 = vadd.f32 %v4609, %v5185
          %v5698 = vadd.f32 %v4610, %v5186
          %v5699 = vadd.f32 %v4611, %v5187
          %v5700 = vadd.f32 %v4612, %v5188
          %v5701 = vadd.f32 %v4613, %v5189
          %v5702 = vadd.f32 %v4614, %v5190
          %v5703 = vadd.f32 %v4615, %v5191
          %v5704 = vadd.f32 %v4616, %v5192
          %v5705 = vadd.f32 %v4617, %v5193
          %v5706 = vadd.f32 %v4618, %v5194
          %v5707 = vadd.f32 %v4619, %v5195
          %v5708 = vadd.f32 %v4620, %v5196
          %v5709 = vadd.f32 %v4621, %v5197
          %v5710 = vadd.f32 %v4622, %v5198
          %v5711 = vadd.f32 %v4623, %v5199
          %v5712 = vadd.f32 %v4624, %v5200
          %v5713 = vadd.f32 %v4625, %v5201
          %v5714 = vadd.f32 %v4626, %v5202
          %v5715 = vadd.f32 %v4627, %v5203
          %v5716 = vadd.f32 %v4628, %v5204
          %v5717 = vadd.f32 %v4629, %v5205
          %v5718 = vadd.f32 %v4630, %v5206
          %v5719 = vadd.f32 %v4631, %v5207
          %v5720 = vadd.f32 %v4632, %v5208
          %v5721 = vadd.f32 %v4633, %v5209
          %v5722 = vadd.f32 %v4634, %v5210
          %v5723 = vadd.f32 %v4635, %v5211
          %v5724 = vadd.f32 %v4636, %v5212
          %v5725 = vadd.f32 %v4637, %v5213
          %v5726 = vadd.f32 %v4638, %v5214
          %v5727 = vadd.f32 %v4639, %v5215
          %v5728 = vadd.f32 %v4640, %v5216
          %v5729 = vadd.f32 %v4641, %v5217
          %v5730 = vadd.f32 %v4642, %v5218
          %v5731 = vadd.f32 %v4643, %v5219
          %v5732 = vadd.f32 %v4644, %v5220
          %v5733 = vadd.f32 %v4645, %v5221
          %v5734 = vadd.f32 %v4646, %v5222
          %v5735 = vadd.f32 %v4647, %v5223
          %v5736 = vadd.f32 %v4648, %v5224
          %v5737 = vadd.f32 %v4649, %v5225
          %v5738 = vadd.f32 %v4650, %v5226
          %v5739 = vadd.f32 %v4651, %v5227
          %v5740 = vadd.f32 %v4652, %v5228
          %v5741 = vadd.f32 %v4653, %v5229
          %v5742 = vadd.f32 %v4654, %v5230
          %v5743 = vadd.f32 %v4655, %v5231
          %v5744 = vadd.f32 %v4656, %v5232
          %v5745 = vadd.f32 %v4657, %v5233
          %v5746 = vadd.f32 %v4658, %v5234
          %v5747 = vadd.f32 %v4659, %v5235
          %v5748 = vadd.f32 %v4660, %v5236
          %v5749 = vadd.f32 %v4661, %v5237
          %v5750 = vadd.f32 %v4662, %v5238
          %v5751 = vadd.f32 %v4663, %v5239
          %v5752 = vadd.f32 %v4664, %v5240
          %v5753 = vadd.f32 %v4665, %v5241
          %v5754 = vadd.f32 %v4666, %v5242
          %v5755 = vadd.f32 %v4667, %v5243
          %v5756 = vadd.f32 %v4668, %v5244
          %v5757 = vadd.f32 %v4669, %v5245
          %v5758 = vadd.f32 %v4670, %v5246
          %v5759 = vadd.f32 %v4671, %v5247
          %v5760 = vadd.f32 %v4672, %v5248
          %v5761 = vadd.f32 %v4673, %v5249
          %v5762 = vadd.f32 %v4674, %v5250
          %v5763 = vadd.f32 %v4675, %v5251
          %v5764 = vadd.f32 %v4676, %v5252
          %v5765 = vadd.f32 %v4677, %v5253
          %v5766 = vadd.f32 %v4678, %v5254
          %v5767 = vadd.f32 %v4679, %v5255
          %v5768 = vadd.f32 %v4680, %v5256
          %v5769 = vadd.f32 %v4681, %v5257
          %v5770 = vadd.f32 %v4682, %v5258
          %v5771 = vadd.f32 %v4683, %v5259
          %v5772 = vadd.f32 %v4684, %v5260
          %v5773 = vadd.f32 %v4685, %v5261
          %v5774 = vadd.f32 %v4686, %v5262
          %v5775 = vadd.f32 %v4687, %v5263
          %v5776 = vadd.f32 %v4688, %v5264
          %v5777 = vadd.f32 %v4689, %v5265
          %v5778 = vadd.f32 %v4690, %v5266
          %v5779 = vadd.f32 %v4691, %v5267
          %v5780 = vadd.f32 %v4692, %v5268
          %v5781 = vadd.f32 %v4693, %v5269
          %v5782 = vadd.f32 %v4694, %v5270
          %v5783 = vadd.f32 %v4695, %v5271
          %v5784 = vadd.f32 %v4696, %v5272
          %v5785 = vadd.f32 %v4697, %v5273
          %v5786 = vadd.f32 %v4698, %v5274
          %v5787 = vadd.f32 %v4699, %v5275
          %v5788 = vadd.f32 %v4700, %v5276
          %v5789 = vadd.f32 %v4701, %v5277
          %v5790 = vadd.f32 %v4702, %v5278
          %v5791 = vadd.f32 %v4703, %v5279
          %v5792 = vadd.f32 %v4704, %v5280
          %v5793 = vadd.f32 %v4705, %v5281
          %v5794 = vadd.f32 %v4706, %v5282
          %v5795 = vadd.f32 %v4707, %v5283
          %v5796 = vadd.f32 %v4708, %v5284
          %v5797 = vadd.f32 %v4709, %v5285
          %v5798 = vadd.f32 %v4710, %v5286
          %v5799 = vadd.f32 %v4711, %v5287
          %v5800 = vadd.f32 %v4712, %v5288
          %v5801 = vadd.f32 %v4713, %v5289
          %v5802 = vadd.f32 %v4714, %v5290
          %v5803 = vadd.f32 %v4715, %v5291
          %v5804 = vadd.f32 %v4716, %v5292
          %v5805 = vadd.f32 %v4717, %v5293
          %v5806 = vadd.f32 %v4718, %v5294
          %v5807 = vadd.f32 %v4719, %v5295
          %v5808 = vadd.f32 %v4720, %v5296
          %v5809 = vadd.f32 %v4721, %v5297
          %v5810 = vadd.f32 %v4722, %v5298
          %v5811 = vadd.f32 %v4723, %v5299
          %v5812 = vadd.f32 %v4724, %v5300
          %v5813 = vadd.f32 %v4725, %v5301
          %v5814 = vadd.f32 %v4726, %v5302
          %v5815 = vadd.f32 %v4727, %v5303
          %v5816 = vadd.f32 %v4728, %v5304
          %v5817 = vadd.f32 %v4729, %v5305
          %v5818 = vadd.f32 %v4730, %v5306
          %v5819 = vadd.f32 %v4731, %v5307
          %v5820 = vadd.f32 %v4732, %v5308
          %v5821 = vadd.f32 %v4733, %v5309
          %v5822 = vadd.f32 %v4734, %v5310
          %v5823 = vadd.f32 %v4735, %v5311
          %v5824 = vadd.f32 %v4736, %v5312
          %v5825 = vadd.f32 %v4737, %v5313
          %v5826 = vadd.f32 %v4738, %v5314
          %v5827 = vadd.f32 %v4739, %v5315
          %v5828 = vadd.f32 %v4740, %v5316
          %v5829 = vadd.f32 %v4741, %v5317
          %v5830 = vadd.f32 %v4742, %v5318
          %v5831 = vadd.f32 %v4743, %v5319
          %v5832 = vadd.f32 %v4744, %v5320
          %v5833 = vadd.f32 %v4745, %v5321
          %v5834 = vadd.f32 %v4746, %v5322
          %v5835 = vadd.f32 %v4747, %v5323
          %v5836 = vadd.f32 %v4748, %v5324
          %v5837 = vadd.f32 %v4749, %v5325
          %v5838 = vadd.f32 %v4750, %v5326
          %v5839 = vadd.f32 %v4751, %v5327
          %v5840 = vadd.f32 %v4752, %v5328
          %v5841 = vadd.f32 %v4753, %v5329
          %v5842 = vadd.f32 %v4754, %v5330
          %v5843 = vadd.f32 %v4755, %v5331
          %v5844 = vadd.f32 %v4756, %v5332
          %v5845 = vadd.f32 %v4757, %v5333
          %v5846 = vadd.f32 %v4758, %v5334
          %v5847 = vadd.f32 %v4759, %v5335
          %v5848 = vadd.f32 %v4760, %v5336
          %v5849 = vadd.f32 %v4761, %v5337
          %v5850 = vadd.f32 %v4762, %v5338
          %v5851 = vadd.f32 %v4763, %v5339
          %v5852 = vadd.f32 %v4764, %v5340
          %v5853 = vadd.f32 %v4765, %v5341
          %v5854 = vadd.f32 %v4766, %v5342
          %v5855 = vadd.f32 %v4767, %v5343
          %v5856 = vadd.f32 %v4768, %v5344
          %v5857 = vadd.f32 %v4769, %v5345
          %v5858 = vadd.f32 %v4770, %v5346
          %v5859 = vadd.f32 %v4771, %v5347
          %v5860 = vadd.f32 %v4772, %v5348
          %v5861 = vadd.f32 %v4773, %v5349
          %v5862 = vadd.f32 %v4774, %v5350
          %v5863 = vadd.f32 %v4775, %v5351
          %v5864 = vadd.f32 %v4776, %v5352
          %v5865 = vadd.f32 %v4777, %v5353
          %v5866 = vadd.f32 %v4778, %v5354
          %v5867 = vadd.f32 %v4779, %v5355
          %v5868 = vadd.f32 %v4780, %v5356
          %v5869 = vadd.f32 %v4781, %v5357
          %v5870 = vadd.f32 %v4782, %v5358
          %v5871 = vadd.f32 %v4783, %v5359
          %v5872 = vadd.f32 %v4784, %v5360
          %v5873 = vadd.f32 %v4785, %v5361
          %v5874 = vadd.f32 %v4786, %v5362
          %v5875 = vadd.f32 %v4787, %v5363
          %v5876 = vadd.f32 %v4788, %v5364
          %v5877 = vadd.f32 %v4789, %v5365
          %v5878 = vadd.f32 %v4790, %v5366
          %v5879 = vadd.f32 %v4791, %v5367
          %v5880 = vadd.f32 %v4792, %v5368
          %v5881 = vadd.f32 %v4793, %v5369
          %v5882 = vadd.f32 %v4794, %v5370
          %v5883 = vadd.f32 %v4795, %v5371
          %v5884 = vadd.f32 %v4796, %v5372
          %v5885 = vadd.f32 %v4797, %v5373
          %v5886 = vadd.f32 %v4798, %v5374
          %v5887 = vadd.f32 %v4799, %v5375
          %v5888 = vadd.f32 %v4800, %v5376
          %v5889 = vadd.f32 %v4801, %v5377
          %v5890 = vadd.f32 %v4802, %v5378
          %v5891 = vadd.f32 %v4803, %v5379
          %v5892 = vadd.f32 %v4804, %v5380
          %v5893 = vadd.f32 %v4805, %v5381
          %v5894 = vadd.f32 %v4806, %v5382
          %v5895 = vadd.f32 %v4807, %v5383
          %v5896 = vadd.f32 %v4808, %v5384
          %v5897 = vadd.f32 %v4809, %v5385
          %v5898 = vadd.f32 %v4810, %v5386
          %v5899 = vadd.f32 %v4811, %v5387
          %v5900 = vadd.f32 %v4812, %v5388
          %v5901 = vadd.f32 %v4813, %v5389
          %v5902 = vadd.f32 %v4814, %v5390
          %v5903 = vadd.f32 %v4815, %v5391
          %v5904 = vadd.f32 %v4816, %v5392
          %v5905 = vadd.f32 %v4817, %v5393
          %v5906 = vadd.f32 %v4818, %v5394
          %v5907 = vadd.f32 %v4819, %v5395
          %v5908 = vadd.f32 %v4820, %v5396
          %v5909 = vadd.f32 %v4821, %v5397
          %v5910 = vadd.f32 %v4822, %v5398
          %v5911 = vadd.f32 %v4823, %v5399
          %v5912 = vadd.f32 %v4824, %v5400
          %v5913 = vadd.f32 %v4825, %v5401
          %v5914 = vadd.f32 %v4826, %v5402
          %v5915 = vadd.f32 %v4827, %v5403
          %v5916 = vadd.f32 %v4828, %v5404
          %v5917 = vadd.f32 %v4829, %v5405
          %v5918 = vadd.f32 %v4830, %v5406
          %v5919 = vadd.f32 %v4831, %v5407
          %v5920 = vadd.f32 %v4832, %v5408
          %v5921 = vadd.f32 %v4833, %v5409
          %v5922 = vadd.f32 %v4834, %v5410
          %v5923 = vadd.f32 %v4835, %v5411
          %v5924 = vadd.f32 %v4836, %v5412
          %v5925 = vadd.f32 %v4837, %v5413
          %v5926 = vadd.f32 %v4838, %v5414
          %v5927 = vadd.f32 %v4839, %v5415
          %v5928 = vadd.f32 %v4840, %v5416
          %v5929 = vadd.f32 %v4841, %v5417
          %v5930 = vadd.f32 %v4842, %v5418
          %v5931 = vadd.f32 %v4843, %v5419
          %v5932 = vadd.f32 %v4844, %v5420
          %v5933 = vadd.f32 %v4845, %v5421
          %v5934 = vadd.f32 %v4846, %v5422
          %v5935 = vadd.f32 %v4847, %v5423
          %v5936 = vadd.f32 %v4848, %v5424
          %v5937 = vadd.f32 %v4849, %v5425
          %v5938 = vadd.f32 %v4850, %v5426
          %v5939 = vadd.f32 %v4851, %v5427
          %v5940 = vadd.f32 %v4852, %v5428
          %v5941 = vadd.f32 %v4853, %v5429
          %v5942 = vadd.f32 %v4854, %v5430
          %v5943 = vadd.f32 %v4855, %v5431
          %v5944 = vadd.f32 %v4856, %v5432
          %v5945 = vadd.f32 %v4857, %v5433
          %v5946 = vadd.f32 %v4858, %v5434
          %v5947 = vadd.f32 %v4859, %v5435
          %v5948 = vadd.f32 %v4860, %v5436
          %v5949 = vadd.f32 %v4861, %v5437
          %v5950 = vadd.f32 %v4862, %v5438
          %v5951 = vadd.f32 %v4863, %v5439
          %v5952 = vadd.f32 %v4864, %v5440
          %v5953 = vadd.f32 %v4865, %v5441
          %v5954 = vadd.f32 %v4866, %v5442
          %v5955 = vadd.f32 %v4867, %v5443
          %v5956 = vadd.f32 %v4868, %v5444
          %v5957 = vadd.f32 %v4869, %v5445
          %v5958 = vadd.f32 %v4870, %v5446
          %v5959 = vadd.f32 %v4871, %v5447
          %v5960 = vadd.f32 %v4872, %v5448
          %v5961 = vadd.f32 %v4873, %v5449
          %v5962 = vadd.f32 %v4874, %v5450
          %v5963 = vadd.f32 %v4875, %v5451
          %v5964 = vadd.f32 %v4876, %v5452
          %v5965 = vadd.f32 %v4877, %v5453
          %v5966 = vadd.f32 %v4878, %v5454
          %v5967 = vadd.f32 %v4879, %v5455
          %v5968 = vadd.f32 %v4880, %v5456
          %v5969 = vadd.f32 %v4881, %v5457
          %v5970 = vadd.f32 %v4882, %v5458
          %v5971 = vadd.f32 %v4883, %v5459
          %v5972 = vadd.f32 %v4884, %v5460
          %v5973 = vadd.f32 %v4885, %v5461
          %v5974 = vadd.f32 %v4886, %v5462
          %v5975 = vadd.f32 %v4887, %v5463
          %v5976 = vadd.f32 %v4888, %v5464
          %v5977 = vadd.f32 %v4889, %v5465
          %v5978 = vadd.f32 %v4890, %v5466
          %v5979 = vadd.f32 %v4891, %v5467
          %v5980 = vadd.f32 %v4892, %v5468
          %v5981 = vadd.f32 %v4893, %v5469
          %v5982 = vadd.f32 %v4894, %v5470
          %v5983 = vadd.f32 %v4895, %v5471
          %v5984 = vadd.f32 %v4896, %v5472
          %v5985 = vadd.f32 %v4897, %v5473
          %v5986 = vadd.f32 %v4898, %v5474
          %v5987 = vadd.f32 %v4899, %v5475
          %v5988 = vadd.f32 %v4900, %v5476
          %v5989 = vadd.f32 %v4901, %v5477
          %v5990 = vadd.f32 %v4902, %v5478
          %v5991 = vadd.f32 %v4903, %v5479
          %v5992 = vadd.f32 %v4904, %v5480
          %v5993 = vadd.f32 %v4905, %v5481
          %v5994 = vadd.f32 %v4906, %v5482
          %v5995 = vadd.f32 %v4907, %v5483
          %v5996 = vadd.f32 %v4908, %v5484
          %v5997 = vadd.f32 %v4909, %v5485
          %v5998 = vadd.f32 %v4910, %v5486
          %v5999 = vadd.f32 %v4911, %v5487
          %v6000 = vadd.f32 %v4912, %v5488
          %v6001 = vadd.f32 %v4913, %v5489
          %v6002 = vadd.f32 %v4914, %v5490
          %v6003 = vadd.f32 %v4915, %v5491
          %v6004 = vadd.f32 %v4916, %v5492
          %v6005 = vadd.f32 %v4917, %v5493
          %v6006 = vadd.f32 %v4918, %v5494
          %v6007 = vadd.f32 %v4919, %v5495
          %v6008 = vadd.f32 %v4920, %v5496
          %v6009 = vadd.f32 %v4921, %v5497
          %v6010 = vadd.f32 %v4922, %v5498
          %v6011 = vadd.f32 %v4923, %v5499
          %v6012 = vadd.f32 %v4924, %v5500
          %v6013 = vadd.f32 %v4925, %v5501
          %v6014 = vadd.f32 %v4926, %v5502
          %v6015 = vadd.f32 %v4927, %v5503
          %v6016 = vadd.f32 %v4928, %v5504
          %v6017 = vadd.f32 %v4929, %v5505
          %v6018 = vadd.f32 %v4930, %v5506
          %v6019 = vadd.f32 %v4931, %v5507
          %v6020 = vadd.f32 %v4932, %v5508
          %v6021 = vadd.f32 %v4933, %v5509
          %v6022 = vadd.f32 %v4934, %v5510
          %v6023 = vadd.f32 %v4935, %v5511
          %v6024 = vadd.f32 %v4936, %v5512
          %v6025 = vadd.f32 %v4937, %v5513
          %v6026 = vadd.f32 %v4938, %v5514
          %v6027 = vadd.f32 %v4939, %v5515
          %v6028 = vadd.f32 %v4940, %v5516
          %v6029 = vadd.f32 %v4941, %v5517
          %v6030 = vadd.f32 %v4942, %v5518
          %v6031 = vadd.f32 %v4943, %v5519
          %v6032 = vadd.f32 %v4944, %v5520
          %v6033 = vadd.f32 %v4945, %v5521
          %v6034 = vadd.f32 %v4946, %v5522
          %v6035 = vadd.f32 %v4947, %v5523
          %v6036 = vadd.f32 %v4948, %v5524
          %v6037 = vadd.f32 %v4949, %v5525
          %v6038 = vadd.f32 %v4950, %v5526
          %v6039 = vadd.f32 %v4951, %v5527
          %v6040 = vadd.f32 %v4952, %v5528
          %v6041 = vadd.f32 %v4953, %v5529
          %v6042 = vadd.f32 %v4954, %v5530
          %v6043 = vadd.f32 %v4955, %v5531
          %v6044 = vadd.f32 %v4956, %v5532
          %v6045 = vadd.f32 %v4957, %v5533
          %v6046 = vadd.f32 %v4958, %v5534
          %v6047 = vadd.f32 %v4959, %v5535
          %v6048 = vadd.f32 %v4960, %v5536
          %v6049 = vadd.f32 %v4961, %v5537
          %v6050 = vadd.f32 %v4962, %v5538
          %v6051 = vadd.f32 %v4963, %v5539
          %v6052 = vadd.f32 %v4964, %v5540
          %v6053 = vadd.f32 %v4965, %v5541
          %v6054 = vadd.f32 %v4966, %v5542
          %v6055 = vadd.f32 %v4967, %v5543
          %v6056 = vadd.f32 %v4968, %v5544
          %v6057 = vadd.f32 %v4969, %v5545
          %v6058 = vadd.f32 %v4970, %v5546
          %v6059 = vadd.f32 %v4971, %v5547
          %v6060 = vadd.f32 %v4972, %v5548
          %v6061 = vadd.f32 %v4973, %v5549
          %v6062 = vadd.f32 %v4974, %v5550
          %v6063 = vadd.f32 %v4975, %v5551
          %6064 = vst [vmem:[#allocation2] sm:$0xff] %v5552
          %6065 = vst [vmem:[#allocation2 + $0x8] sm:$0xff] %v5553
          %6066 = vst [vmem:[#allocation2 + $0x10] sm:$0xff] %v5554
          %6067 = vst [vmem:[#allocation2 + $0x18] sm:$0xff] %v5555
          %6068 = vst [vmem:[#allocation2 + $0x20] sm:$0xff] %v5556
          %6069 = vst [vmem:[#allocation2 + $0x28] sm:$0xff] %v5557
          %6070 = vst [vmem:[#allocation2 + $0x30] sm:$0xff] %v5558
          %6071 = vst [vmem:[#allocation2 + $0x38] sm:$0xff] %v5559
          %6072 = vst [vmem:[#allocation2 + $0x40] sm:$0xff] %v5560
          %6073 = vst [vmem:[#allocation2 + $0x48] sm:$0xff] %v5561
          %6074 = vst [vmem:[#allocation2 + $0x50] sm:$0xff] %v5562
          %6075 = vst [vmem:[#allocation2 + $0x58] sm:$0xff] %v5563
          %6076 = vst [vmem:[#allocation2 + $0x60] sm:$0xff] %v5564
          %6077 = vst [vmem:[#allocation2 + $0x68] sm:$0xff] %v5565
          %6078 = vst [vmem:[#allocation2 + $0x70] sm:$0xff] %v5566
          %6079 = vst [vmem:[#allocation2 + $0x78] sm:$0xff] %v5567
          %6080 = vst [vmem:[#allocation2 + $0x80] sm:$0xff] %v5568
          %6081 = vst [vmem:[#allocation2 + $0x88] sm:$0xff] %v5569
          %6082 = vst [vmem:[#allocation2 + $0x90] sm:$0xff] %v5570
          %6083 = vst [vmem:[#allocation2 + $0x98] sm:$0xff] %v5571
          %6084 = vst [vmem:[#allocation2 + $0xa0] sm:$0xff] %v5572
          %6085 = vst [vmem:[#allocation2 + $0xa8] sm:$0xff] %v5573
          %6086 = vst [vmem:[#allocation2 + $0xb0] sm:$0xff] %v5574
          %6087 = vst [vmem:[#allocation2 + $0xb8] sm:$0xff] %v5575
          %6088 = vst [vmem:[#allocation2 + $0xc0] sm:$0xff] %v5576
          %6089 = vst [vmem:[#allocation2 + $0xc8] sm:$0xff] %v5577
          %6090 = vst [vmem:[#allocation2 + $0xd0] sm:$0xff] %v5578
          %6091 = vst [vmem:[#allocation2 + $0xd8] sm:$0xff] %v5579
          %6092 = vst [vmem:[#allocation2 + $0xe0] sm:$0xff] %v5580
          %6093 = vst [vmem:[#allocation2 + $0xe8] sm:$0xff] %v5581
          %6094 = vst [vmem:[#allocation2 + $0xf0] sm:$0xff] %v5582
          %6095 = vst [vmem:[#allocation2 + $0xf8] sm:$0xff] %v5583
          %6096 = vst [vmem:[#allocation2 + $0x100] sm:$0xff] %v5584
          %6097 = vst [vmem:[#allocation2 + $0x108] sm:$0xff] %v5585
          %6098 = vst [vmem:[#allocation2 + $0x110] sm:$0xff] %v5586
          %6099 = vst [vmem:[#allocation2 + $0x118] sm:$0xff] %v5587
          %6100 = vst [vmem:[#allocation2 + $0x120] sm:$0xff] %v5588
          %6101 = vst [vmem:[#allocation2 + $0x128] sm:$0xff] %v5589
          %6102 = vst [vmem:[#allocation2 + $0x130] sm:$0xff] %v5590
          %6103 = vst [vmem:[#allocation2 + $0x138] sm:$0xff] %v5591
          %6104 = vst [vmem:[#allocation2 + $0x140] sm:$0xff] %v5592
          %6105 = vst [vmem:[#allocation2 + $0x148] sm:$0xff] %v5593
          %6106 = vst [vmem:[#allocation2 + $0x150] sm:$0xff] %v5594
          %6107 = vst [vmem:[#allocation2 + $0x158] sm:$0xff] %v5595
          %6108 = vst [vmem:[#allocation2 + $0x160] sm:$0xff] %v5596
          %6109 = vst [vmem:[#allocation2 + $0x168] sm:$0xff] %v5597
          %6110 = vst [vmem:[#allocation2 + $0x170] sm:$0xff] %v5598
          %6111 = vst [vmem:[#allocation2 + $0x178] sm:$0xff] %v5599
          %6112 = vst [vmem:[#allocation2 + $0x180] sm:$0xff] %v5600
          %6113 = vst [vmem:[#allocation2 + $0x188] sm:$0xff] %v5601
          %6114 = vst [vmem:[#allocation2 + $0x190] sm:$0xff] %v5602
          %6115 = vst [vmem:[#allocation2 + $0x198] sm:$0xff] %v5603
          %6116 = vst [vmem:[#allocation2 + $0x1a0] sm:$0xff] %v5604
          %6117 = vst [vmem:[#allocation2 + $0x1a8] sm:$0xff] %v5605
          %6118 = vst [vmem:[#allocation2 + $0x1b0] sm:$0xff] %v5606
          %6119 = vst [vmem:[#allocation2 + $0x1b8] sm:$0xff] %v5607
          %6120 = vst [vmem:[#allocation2 + $0x1c0] sm:$0xff] %v5608
          %6121 = vst [vmem:[#allocation2 + $0x1c8] sm:$0xff] %v5609
          %6122 = vst [vmem:[#allocation2 + $0x1d0] sm:$0xff] %v5610
          %6123 = vst [vmem:[#allocation2 + $0x1d8] sm:$0xff] %v5611
          %6124 = vst [vmem:[#allocation2 + $0x1e0] sm:$0xff] %v5612
          %6125 = vst [vmem:[#allocation2 + $0x1e8] sm:$0xff] %v5613
          %6126 = vst [vmem:[#allocation2 + $0x1f0] sm:$0xff] %v5614
          %6127 = vst [vmem:[#allocation2 + $0x1f8] sm:$0xff] %v5615
          %6128 = vst [vmem:[#allocation2 + $0x200] sm:$0xff] %v5616
          %6129 = vst [vmem:[#allocation2 + $0x208] sm:$0xff] %v5617
          %6130 = vst [vmem:[#allocation2 + $0x210] sm:$0xff] %v5618
          %6131 = vst [vmem:[#allocation2 + $0x218] sm:$0xff] %v5619
          %6132 = vst [vmem:[#allocation2 + $0x220] sm:$0xff] %v5620
          %6133 = vst [vmem:[#allocation2 + $0x228] sm:$0xff] %v5621
          %6134 = vst [vmem:[#allocation2 + $0x230] sm:$0xff] %v5622
          %6135 = vst [vmem:[#allocation2 + $0x238] sm:$0xff] %v5623
          %6136 = vst [vmem:[#allocation2 + $0x240] sm:$0xff] %v5624
          %6137 = vst [vmem:[#allocation2 + $0x248] sm:$0xff] %v5625
          %6138 = vst [vmem:[#allocation2 + $0x250] sm:$0xff] %v5626
          %6139 = vst [vmem:[#allocation2 + $0x258] sm:$0xff] %v5627
          %6140 = vst [vmem:[#allocation2 + $0x260] sm:$0xff] %v5628
          %6141 = vst [vmem:[#allocation2 + $0x268] sm:$0xff] %v5629
          %6142 = vst [vmem:[#allocation2 + $0x270] sm:$0xff] %v5630
          %6143 = vst [vmem:[#allocation2 + $0x278] sm:$0xff] %v5631
          %6144 = vst [vmem:[#allocation2 + $0x280] sm:$0xff] %v5632
          %6145 = vst [vmem:[#allocation2 + $0x288] sm:$0xff] %v5633
          %6146 = vst [vmem:[#allocation2 + $0x290] sm:$0xff] %v5634
          %6147 = vst [vmem:[#allocation2 + $0x298] sm:$0xff] %v5635
          %6148 = vst [vmem:[#allocation2 + $0x2a0] sm:$0xff] %v5636
          %6149 = vst [vmem:[#allocation2 + $0x2a8] sm:$0xff] %v5637
          %6150 = vst [vmem:[#allocation2 + $0x2b0] sm:$0xff] %v5638
          %6151 = vst [vmem:[#allocation2 + $0x2b8] sm:$0xff] %v5639
          %6152 = vst [vmem:[#allocation2 + $0x2c0] sm:$0xff] %v5640
          %6153 = vst [vmem:[#allocation2 + $0x2c8] sm:$0xff] %v5641
          %6154 = vst [vmem:[#allocation2 + $0x2d0] sm:$0xff] %v5642
          %6155 = vst [vmem:[#allocation2 + $0x2d8] sm:$0xff] %v5643
          %6156 = vst [vmem:[#allocation2 + $0x2e0] sm:$0xff] %v5644
          %6157 = vst [vmem:[#allocation2 + $0x2e8] sm:$0xff] %v5645
          %6158 = vst [vmem:[#allocation2 + $0x2f0] sm:$0xff] %v5646
          %6159 = vst [vmem:[#allocation2 + $0x2f8] sm:$0xff] %v5647
          %6160 = vst [vmem:[#allocation2 + $0x300] sm:$0xff] %v5648
          %6161 = vst [vmem:[#allocation2 + $0x308] sm:$0xff] %v5649
          %6162 = vst [vmem:[#allocation2 + $0x310] sm:$0xff] %v5650
          %6163 = vst [vmem:[#allocation2 + $0x318] sm:$0xff] %v5651
          %6164 = vst [vmem:[#allocation2 + $0x320] sm:$0xff] %v5652
          %6165 = vst [vmem:[#allocation2 + $0x328] sm:$0xff] %v5653
          %6166 = vst [vmem:[#allocation2 + $0x330] sm:$0xff] %v5654
          %6167 = vst [vmem:[#allocation2 + $0x338] sm:$0xff] %v5655
          %6168 = vst [vmem:[#allocation2 + $0x340] sm:$0xff] %v5656
          %6169 = vst [vmem:[#allocation2 + $0x348] sm:$0xff] %v5657
          %6170 = vst [vmem:[#allocation2 + $0x350] sm:$0xff] %v5658
          %6171 = vst [vmem:[#allocation2 + $0x358] sm:$0xff] %v5659
          %6172 = vst [vmem:[#allocation2 + $0x360] sm:$0xff] %v5660
          %6173 = vst [vmem:[#allocation2 + $0x368] sm:$0xff] %v5661
          %6174 = vst [vmem:[#allocation2 + $0x370] sm:$0xff] %v5662
          %6175 = vst [vmem:[#allocation2 + $0x378] sm:$0xff] %v5663
          %6176 = vst [vmem:[#allocation2 + $0x380] sm:$0xff] %v5664
          %6177 = vst [vmem:[#allocation2 + $0x388] sm:$0xff] %v5665
          %6178 = vst [vmem:[#allocation2 + $0x390] sm:$0xff] %v5666
          %6179 = vst [vmem:[#allocation2 + $0x398] sm:$0xff] %v5667
          %6180 = vst [vmem:[#allocation2 + $0x3a0] sm:$0xff] %v5668
          %6181 = vst [vmem:[#allocation2 + $0x3a8] sm:$0xff] %v5669
          %6182 = vst [vmem:[#allocation2 + $0x3b0] sm:$0xff] %v5670
          %6183 = vst [vmem:[#allocation2 + $0x3b8] sm:$0xff] %v5671
          %6184 = vst [vmem:[#allocation2 + $0x3c0] sm:$0xff] %v5672
          %6185 = vst [vmem:[#allocation2 + $0x3c8] sm:$0xff] %v5673
          %6186 = vst [vmem:[#allocation2 + $0x3d0] sm:$0xff] %v5674
          %6187 = vst [vmem:[#allocation2 + $0x3d8] sm:$0xff] %v5675
          %6188 = vst [vmem:[#allocation2 + $0x3e0] sm:$0xff] %v5676
          %6189 = vst [vmem:[#allocation2 + $0x3e8] sm:$0xff] %v5677
          %6190 = vst [vmem:[#allocation2 + $0x3f0] sm:$0xff] %v5678
          %6191 = vst [vmem:[#allocation2 + $0x3f8] sm:$0xff] %v5679
          %6192 = vst [vmem:[#allocation2 + $0x400] sm:$0xff] %v5680
          %6193 = vst [vmem:[#allocation2 + $0x408] sm:$0xff] %v5681
          %6194 = vst [vmem:[#allocation2 + $0x410] sm:$0xff] %v5682
          %6195 = vst [vmem:[#allocation2 + $0x418] sm:$0xff] %v5683
          %6196 = vst [vmem:[#allocation2 + $0x420] sm:$0xff] %v5684
          %6197 = vst [vmem:[#allocation2 + $0x428] sm:$0xff] %v5685
          %6198 = vst [vmem:[#allocation2 + $0x430] sm:$0xff] %v5686
          %6199 = vst [vmem:[#allocation2 + $0x438] sm:$0xff] %v5687
          %6200 = vst [vmem:[#allocation2 + $0x440] sm:$0xff] %v5688
          %6201 = vst [vmem:[#allocation2 + $0x448] sm:$0xff] %v5689
          %6202 = vst [vmem:[#allocation2 + $0x450] sm:$0xff] %v5690
          %6203 = vst [vmem:[#allocation2 + $0x458] sm:$0xff] %v5691
          %6204 = vst [vmem:[#allocation2 + $0x460] sm:$0xff] %v5692
          %6205 = vst [vmem:[#allocation2 + $0x468] sm:$0xff] %v5693
          %6206 = vst [vmem:[#allocation2 + $0x470] sm:$0xff] %v5694
          %6207 = vst [vmem:[#allocation2 + $0x478] sm:$0xff] %v5695
          %6208 = vst [vmem:[#allocation2 + $0x480] sm:$0xff] %v5696
          %6209 = vst [vmem:[#allocation2 + $0x488] sm:$0xff] %v5697
          %6210 = vst [vmem:[#allocation2 + $0x490] sm:$0xff] %v5698
          %6211 = vst [vmem:[#allocation2 + $0x498] sm:$0xff] %v5699
          %6212 = vst [vmem:[#allocation2 + $0x4a0] sm:$0xff] %v5700
          %6213 = vst [vmem:[#allocation2 + $0x4a8] sm:$0xff] %v5701
          %6214 = vst [vmem:[#allocation2 + $0x4b0] sm:$0xff] %v5702
          %6215 = vst [vmem:[#allocation2 + $0x4b8] sm:$0xff] %v5703
          %6216 = vst [vmem:[#allocation2 + $0x4c0] sm:$0xff] %v5704
          %6217 = vst [vmem:[#allocation2 + $0x4c8] sm:$0xff] %v5705
          %6218 = vst [vmem:[#allocation2 + $0x4d0] sm:$0xff] %v5706
          %6219 = vst [vmem:[#allocation2 + $0x4d8] sm:$0xff] %v5707
          %6220 = vst [vmem:[#allocation2 + $0x4e0] sm:$0xff] %v5708
          %6221 = vst [vmem:[#allocation2 + $0x4e8] sm:$0xff] %v5709
          %6222 = vst [vmem:[#allocation2 + $0x4f0] sm:$0xff] %v5710
          %6223 = vst [vmem:[#allocation2 + $0x4f8] sm:$0xff] %v5711
          %6224 = vst [vmem:[#allocation2 + $0x500] sm:$0xff] %v5712
          %6225 = vst [vmem:[#allocation2 + $0x508] sm:$0xff] %v5713
          %6226 = vst [vmem:[#allocation2 + $0x510] sm:$0xff] %v5714
          %6227 = vst [vmem:[#allocation2 + $0x518] sm:$0xff] %v5715
          %6228 = vst [vmem:[#allocation2 + $0x520] sm:$0xff] %v5716
          %6229 = vst [vmem:[#allocation2 + $0x528] sm:$0xff] %v5717
          %6230 = vst [vmem:[#allocation2 + $0x530] sm:$0xff] %v5718
          %6231 = vst [vmem:[#allocation2 + $0x538] sm:$0xff] %v5719
          %6232 = vst [vmem:[#allocation2 + $0x540] sm:$0xff] %v5720
          %6233 = vst [vmem:[#allocation2 + $0x548] sm:$0xff] %v5721
          %6234 = vst [vmem:[#allocation2 + $0x550] sm:$0xff] %v5722
          %6235 = vst [vmem:[#allocation2 + $0x558] sm:$0xff] %v5723
          %6236 = vst [vmem:[#allocation2 + $0x560] sm:$0xff] %v5724
          %6237 = vst [vmem:[#allocation2 + $0x568] sm:$0xff] %v5725
          %6238 = vst [vmem:[#allocation2 + $0x570] sm:$0xff] %v5726
          %6239 = vst [vmem:[#allocation2 + $0x578] sm:$0xff] %v5727
          %6240 = vst [vmem:[#allocation2 + $0x580] sm:$0xff] %v5728
          %6241 = vst [vmem:[#allocation2 + $0x588] sm:$0xff] %v5729
          %6242 = vst [vmem:[#allocation2 + $0x590] sm:$0xff] %v5730
          %6243 = vst [vmem:[#allocation2 + $0x598] sm:$0xff] %v5731
          %6244 = vst [vmem:[#allocation2 + $0x5a0] sm:$0xff] %v5732
          %6245 = vst [vmem:[#allocation2 + $0x5a8] sm:$0xff] %v5733
          %6246 = vst [vmem:[#allocation2 + $0x5b0] sm:$0xff] %v5734
          %6247 = vst [vmem:[#allocation2 + $0x5b8] sm:$0xff] %v5735
          %6248 = vst [vmem:[#allocation2 + $0x5c0] sm:$0xff] %v5736
          %6249 = vst [vmem:[#allocation2 + $0x5c8] sm:$0xff] %v5737
          %6250 = vst [vmem:[#allocation2 + $0x5d0] sm:$0xff] %v5738
          %6251 = vst [vmem:[#allocation2 + $0x5d8] sm:$0xff] %v5739
          %6252 = vst [vmem:[#allocation2 + $0x5e0] sm:$0xff] %v5740
          %6253 = vst [vmem:[#allocation2 + $0x5e8] sm:$0xff] %v5741
          %6254 = vst [vmem:[#allocation2 + $0x5f0] sm:$0xff] %v5742
          %6255 = vst [vmem:[#allocation2 + $0x5f8] sm:$0xff] %v5743
          %6256 = vst [vmem:[#allocation2 + $0x600] sm:$0xff] %v5744
          %6257 = vst [vmem:[#allocation2 + $0x608] sm:$0xff] %v5745
          %6258 = vst [vmem:[#allocation2 + $0x610] sm:$0xff] %v5746
          %6259 = vst [vmem:[#allocation2 + $0x618] sm:$0xff] %v5747
          %6260 = vst [vmem:[#allocation2 + $0x620] sm:$0xff] %v5748
          %6261 = vst [vmem:[#allocation2 + $0x628] sm:$0xff] %v5749
          %6262 = vst [vmem:[#allocation2 + $0x630] sm:$0xff] %v5750
          %6263 = vst [vmem:[#allocation2 + $0x638] sm:$0xff] %v5751
          %6264 = vst [vmem:[#allocation2 + $0x640] sm:$0xff] %v5752
          %6265 = vst [vmem:[#allocation2 + $0x648] sm:$0xff] %v5753
          %6266 = vst [vmem:[#allocation2 + $0x650] sm:$0xff] %v5754
          %6267 = vst [vmem:[#allocation2 + $0x658] sm:$0xff] %v5755
          %6268 = vst [vmem:[#allocation2 + $0x660] sm:$0xff] %v5756
          %6269 = vst [vmem:[#allocation2 + $0x668] sm:$0xff] %v5757
          %6270 = vst [vmem:[#allocation2 + $0x670] sm:$0xff] %v5758
          %6271 = vst [vmem:[#allocation2 + $0x678] sm:$0xff] %v5759
          %6272 = vst [vmem:[#allocation2 + $0x680] sm:$0xff] %v5760
          %6273 = vst [vmem:[#allocation2 + $0x688] sm:$0xff] %v5761
          %6274 = vst [vmem:[#allocation2 + $0x690] sm:$0xff] %v5762
          %6275 = vst [vmem:[#allocation2 + $0x698] sm:$0xff] %v5763
          %6276 = vst [vmem:[#allocation2 + $0x6a0] sm:$0xff] %v5764
          %6277 = vst [vmem:[#allocation2 + $0x6a8] sm:$0xff] %v5765
          %6278 = vst [vmem:[#allocation2 + $0x6b0] sm:$0xff] %v5766
          %6279 = vst [vmem:[#allocation2 + $0x6b8] sm:$0xff] %v5767
          %6280 = vst [vmem:[#allocation2 + $0x6c0] sm:$0xff] %v5768
          %6281 = vst [vmem:[#allocation2 + $0x6c8] sm:$0xff] %v5769
          %6282 = vst [vmem:[#allocation2 + $0x6d0] sm:$0xff] %v5770
          %6283 = vst [vmem:[#allocation2 + $0x6d8] sm:$0xff] %v5771
          %6284 = vst [vmem:[#allocation2 + $0x6e0] sm:$0xff] %v5772
          %6285 = vst [vmem:[#allocation2 + $0x6e8] sm:$0xff] %v5773
          %6286 = vst [vmem:[#allocation2 + $0x6f0] sm:$0xff] %v5774
          %6287 = vst [vmem:[#allocation2 + $0x6f8] sm:$0xff] %v5775
          %6288 = vst [vmem:[#allocation2 + $0x700] sm:$0xff] %v5776
          %6289 = vst [vmem:[#allocation2 + $0x708] sm:$0xff] %v5777
          %6290 = vst [vmem:[#allocation2 + $0x710] sm:$0xff] %v5778
          %6291 = vst [vmem:[#allocation2 + $0x718] sm:$0xff] %v5779
          %6292 = vst [vmem:[#allocation2 + $0x720] sm:$0xff] %v5780
          %6293 = vst [vmem:[#allocation2 + $0x728] sm:$0xff] %v5781
          %6294 = vst [vmem:[#allocation2 + $0x730] sm:$0xff] %v5782
          %6295 = vst [vmem:[#allocation2 + $0x738] sm:$0xff] %v5783
          %6296 = vst [vmem:[#allocation2 + $0x740] sm:$0xff] %v5784
          %6297 = vst [vmem:[#allocation2 + $0x748] sm:$0xff] %v5785
          %6298 = vst [vmem:[#allocation2 + $0x750] sm:$0xff] %v5786
          %6299 = vst [vmem:[#allocation2 + $0x758] sm:$0xff] %v5787
          %6300 = vst [vmem:[#allocation2 + $0x760] sm:$0xff] %v5788
          %6301 = vst [vmem:[#allocation2 + $0x768] sm:$0xff] %v5789
          %6302 = vst [vmem:[#allocation2 + $0x770] sm:$0xff] %v5790
          %6303 = vst [vmem:[#allocation2 + $0x778] sm:$0xff] %v5791
          %6304 = vst [vmem:[#allocation2 + $0x780] sm:$0xff] %v5792
          %6305 = vst [vmem:[#allocation2 + $0x788] sm:$0xff] %v5793
          %6306 = vst [vmem:[#allocation2 + $0x790] sm:$0xff] %v5794
          %6307 = vst [vmem:[#allocation2 + $0x798] sm:$0xff] %v5795
          %6308 = vst [vmem:[#allocation2 + $0x7a0] sm:$0xff] %v5796
          %6309 = vst [vmem:[#allocation2 + $0x7a8] sm:$0xff] %v5797
          %6310 = vst [vmem:[#allocation2 + $0x7b0] sm:$0xff] %v5798
          %6311 = vst [vmem:[#allocation2 + $0x7b8] sm:$0xff] %v5799
          %6312 = vst [vmem:[#allocation2 + $0x7c0] sm:$0xff] %v5800
          %6313 = vst [vmem:[#allocation2 + $0x7c8] sm:$0xff] %v5801
          %6314 = vst [vmem:[#allocation2 + $0x7d0] sm:$0xff] %v5802
          %6315 = vst [vmem:[#allocation2 + $0x7d8] sm:$0xff] %v5803
          %6316 = vst [vmem:[#allocation2 + $0x7e0] sm:$0xff] %v5804
          %6317 = vst [vmem:[#allocation2 + $0x7e8] sm:$0xff] %v5805
          %6318 = vst [vmem:[#allocation2 + $0x7f0] sm:$0xff] %v5806
          %6319 = vst [vmem:[#allocation2 + $0x7f8] sm:$0xff] %v5807
          %6320 = vst [vmem:[#allocation2 + $0x800] sm:$0xff] %v5808
          %6321 = vst [vmem:[#allocation2 + $0x808] sm:$0xff] %v5809
          %6322 = vst [vmem:[#allocation2 + $0x810] sm:$0xff] %v5810
          %6323 = vst [vmem:[#allocation2 + $0x818] sm:$0xff] %v5811
          %6324 = vst [vmem:[#allocation2 + $0x820] sm:$0xff] %v5812
          %6325 = vst [vmem:[#allocation2 + $0x828] sm:$0xff] %v5813
          %6326 = vst [vmem:[#allocation2 + $0x830] sm:$0xff] %v5814
          %6327 = vst [vmem:[#allocation2 + $0x838] sm:$0xff] %v5815
          %6328 = vst [vmem:[#allocation2 + $0x840] sm:$0xff] %v5816
          %6329 = vst [vmem:[#allocation2 + $0x848] sm:$0xff] %v5817
          %6330 = vst [vmem:[#allocation2 + $0x850] sm:$0xff] %v5818
          %6331 = vst [vmem:[#allocation2 + $0x858] sm:$0xff] %v5819
          %6332 = vst [vmem:[#allocation2 + $0x860] sm:$0xff] %v5820
          %6333 = vst [vmem:[#allocation2 + $0x868] sm:$0xff] %v5821
          %6334 = vst [vmem:[#allocation2 + $0x870] sm:$0xff] %v5822
          %6335 = vst [vmem:[#allocation2 + $0x878] sm:$0xff] %v5823
          %6336 = vst [vmem:[#allocation2 + $0x880] sm:$0xff] %v5824
          %6337 = vst [vmem:[#allocation2 + $0x888] sm:$0xff] %v5825
          %6338 = vst [vmem:[#allocation2 + $0x890] sm:$0xff] %v5826
          %6339 = vst [vmem:[#allocation2 + $0x898] sm:$0xff] %v5827
          %6340 = vst [vmem:[#allocation2 + $0x8a0] sm:$0xff] %v5828
          %6341 = vst [vmem:[#allocation2 + $0x8a8] sm:$0xff] %v5829
          %6342 = vst [vmem:[#allocation2 + $0x8b0] sm:$0xff] %v5830
          %6343 = vst [vmem:[#allocation2 + $0x8b8] sm:$0xff] %v5831
          %6344 = vst [vmem:[#allocation2 + $0x8c0] sm:$0xff] %v5832
          %6345 = vst [vmem:[#allocation2 + $0x8c8] sm:$0xff] %v5833
          %6346 = vst [vmem:[#allocation2 + $0x8d0] sm:$0xff] %v5834
          %6347 = vst [vmem:[#allocation2 + $0x8d8] sm:$0xff] %v5835
          %6348 = vst [vmem:[#allocation2 + $0x8e0] sm:$0xff] %v5836
          %6349 = vst [vmem:[#allocation2 + $0x8e8] sm:$0xff] %v5837
          %6350 = vst [vmem:[#allocation2 + $0x8f0] sm:$0xff] %v5838
          %6351 = vst [vmem:[#allocation2 + $0x8f8] sm:$0xff] %v5839
          %6352 = vst [vmem:[#allocation2 + $0x900] sm:$0xff] %v5840
          %6353 = vst [vmem:[#allocation2 + $0x908] sm:$0xff] %v5841
          %6354 = vst [vmem:[#allocation2 + $0x910] sm:$0xff] %v5842
          %6355 = vst [vmem:[#allocation2 + $0x918] sm:$0xff] %v5843
          %6356 = vst [vmem:[#allocation2 + $0x920] sm:$0xff] %v5844
          %6357 = vst [vmem:[#allocation2 + $0x928] sm:$0xff] %v5845
          %6358 = vst [vmem:[#allocation2 + $0x930] sm:$0xff] %v5846
          %6359 = vst [vmem:[#allocation2 + $0x938] sm:$0xff] %v5847
          %6360 = vst [vmem:[#allocation2 + $0x940] sm:$0xff] %v5848
          %6361 = vst [vmem:[#allocation2 + $0x948] sm:$0xff] %v5849
          %6362 = vst [vmem:[#allocation2 + $0x950] sm:$0xff] %v5850
          %6363 = vst [vmem:[#allocation2 + $0x958] sm:$0xff] %v5851
          %6364 = vst [vmem:[#allocation2 + $0x960] sm:$0xff] %v5852
          %6365 = vst [vmem:[#allocation2 + $0x968] sm:$0xff] %v5853
          %6366 = vst [vmem:[#allocation2 + $0x970] sm:$0xff] %v5854
          %6367 = vst [vmem:[#allocation2 + $0x978] sm:$0xff] %v5855
          %6368 = vst [vmem:[#allocation2 + $0x980] sm:$0xff] %v5856
          %6369 = vst [vmem:[#allocation2 + $0x988] sm:$0xff] %v5857
          %6370 = vst [vmem:[#allocation2 + $0x990] sm:$0xff] %v5858
          %6371 = vst [vmem:[#allocation2 + $0x998] sm:$0xff] %v5859
          %6372 = vst [vmem:[#allocation2 + $0x9a0] sm:$0xff] %v5860
          %6373 = vst [vmem:[#allocation2 + $0x9a8] sm:$0xff] %v5861
          %6374 = vst [vmem:[#allocation2 + $0x9b0] sm:$0xff] %v5862
          %6375 = vst [vmem:[#allocation2 + $0x9b8] sm:$0xff] %v5863
          %6376 = vst [vmem:[#allocation2 + $0x9c0] sm:$0xff] %v5864
          %6377 = vst [vmem:[#allocation2 + $0x9c8] sm:$0xff] %v5865
          %6378 = vst [vmem:[#allocation2 + $0x9d0] sm:$0xff] %v5866
          %6379 = vst [vmem:[#allocation2 + $0x9d8] sm:$0xff] %v5867
          %6380 = vst [vmem:[#allocation2 + $0x9e0] sm:$0xff] %v5868
          %6381 = vst [vmem:[#allocation2 + $0x9e8] sm:$0xff] %v5869
          %6382 = vst [vmem:[#allocation2 + $0x9f0] sm:$0xff] %v5870
          %6383 = vst [vmem:[#allocation2 + $0x9f8] sm:$0xff] %v5871
          %6384 = vst [vmem:[#allocation2 + $0xa00] sm:$0xff] %v5872
          %6385 = vst [vmem:[#allocation2 + $0xa08] sm:$0xff] %v5873
          %6386 = vst [vmem:[#allocation2 + $0xa10] sm:$0xff] %v5874
          %6387 = vst [vmem:[#allocation2 + $0xa18] sm:$0xff] %v5875
          %6388 = vst [vmem:[#allocation2 + $0xa20] sm:$0xff] %v5876
          %6389 = vst [vmem:[#allocation2 + $0xa28] sm:$0xff] %v5877
          %6390 = vst [vmem:[#allocation2 + $0xa30] sm:$0xff] %v5878
          %6391 = vst [vmem:[#allocation2 + $0xa38] sm:$0xff] %v5879
          %6392 = vst [vmem:[#allocation2 + $0xa40] sm:$0xff] %v5880
          %6393 = vst [vmem:[#allocation2 + $0xa48] sm:$0xff] %v5881
          %6394 = vst [vmem:[#allocation2 + $0xa50] sm:$0xff] %v5882
          %6395 = vst [vmem:[#allocation2 + $0xa58] sm:$0xff] %v5883
          %6396 = vst [vmem:[#allocation2 + $0xa60] sm:$0xff] %v5884
          %6397 = vst [vmem:[#allocation2 + $0xa68] sm:$0xff] %v5885
          %6398 = vst [vmem:[#allocation2 + $0xa70] sm:$0xff] %v5886
          %6399 = vst [vmem:[#allocation2 + $0xa78] sm:$0xff] %v5887
          %6400 = vst [vmem:[#allocation2 + $0xa80] sm:$0xff] %v5888
          %6401 = vst [vmem:[#allocation2 + $0xa88] sm:$0xff] %v5889
          %6402 = vst [vmem:[#allocation2 + $0xa90] sm:$0xff] %v5890
          %6403 = vst [vmem:[#allocation2 + $0xa98] sm:$0xff] %v5891
          %6404 = vst [vmem:[#allocation2 + $0xaa0] sm:$0xff] %v5892
          %6405 = vst [vmem:[#allocation2 + $0xaa8] sm:$0xff] %v5893
          %6406 = vst [vmem:[#allocation2 + $0xab0] sm:$0xff] %v5894
          %6407 = vst [vmem:[#allocation2 + $0xab8] sm:$0xff] %v5895
          %6408 = vst [vmem:[#allocation2 + $0xac0] sm:$0xff] %v5896
          %6409 = vst [vmem:[#allocation2 + $0xac8] sm:$0xff] %v5897
          %6410 = vst [vmem:[#allocation2 + $0xad0] sm:$0xff] %v5898
          %6411 = vst [vmem:[#allocation2 + $0xad8] sm:$0xff] %v5899
          %6412 = vst [vmem:[#allocation2 + $0xae0] sm:$0xff] %v5900
          %6413 = vst [vmem:[#allocation2 + $0xae8] sm:$0xff] %v5901
          %6414 = vst [vmem:[#allocation2 + $0xaf0] sm:$0xff] %v5902
          %6415 = vst [vmem:[#allocation2 + $0xaf8] sm:$0xff] %v5903
          %6416 = vst [vmem:[#allocation2 + $0xb00] sm:$0xff] %v5904
          %6417 = vst [vmem:[#allocation2 + $0xb08] sm:$0xff] %v5905
          %6418 = vst [vmem:[#allocation2 + $0xb10] sm:$0xff] %v5906
          %6419 = vst [vmem:[#allocation2 + $0xb18] sm:$0xff] %v5907
          %6420 = vst [vmem:[#allocation2 + $0xb20] sm:$0xff] %v5908
          %6421 = vst [vmem:[#allocation2 + $0xb28] sm:$0xff] %v5909
          %6422 = vst [vmem:[#allocation2 + $0xb30] sm:$0xff] %v5910
          %6423 = vst [vmem:[#allocation2 + $0xb38] sm:$0xff] %v5911
          %6424 = vst [vmem:[#allocation2 + $0xb40] sm:$0xff] %v5912
          %6425 = vst [vmem:[#allocation2 + $0xb48] sm:$0xff] %v5913
          %6426 = vst [vmem:[#allocation2 + $0xb50] sm:$0xff] %v5914
          %6427 = vst [vmem:[#allocation2 + $0xb58] sm:$0xff] %v5915
          %6428 = vst [vmem:[#allocation2 + $0xb60] sm:$0xff] %v5916
          %6429 = vst [vmem:[#allocation2 + $0xb68] sm:$0xff] %v5917
          %6430 = vst [vmem:[#allocation2 + $0xb70] sm:$0xff] %v5918
          %6431 = vst [vmem:[#allocation2 + $0xb78] sm:$0xff] %v5919
          %6432 = vst [vmem:[#allocation2 + $0xb80] sm:$0xff] %v5920
          %6433 = vst [vmem:[#allocation2 + $0xb88] sm:$0xff] %v5921
          %6434 = vst [vmem:[#allocation2 + $0xb90] sm:$0xff] %v5922
          %6435 = vst [vmem:[#allocation2 + $0xb98] sm:$0xff] %v5923
          %6436 = vst [vmem:[#allocation2 + $0xba0] sm:$0xff] %v5924
          %6437 = vst [vmem:[#allocation2 + $0xba8] sm:$0xff] %v5925
          %6438 = vst [vmem:[#allocation2 + $0xbb0] sm:$0xff] %v5926
          %6439 = vst [vmem:[#allocation2 + $0xbb8] sm:$0xff] %v5927
          %6440 = vst [vmem:[#allocation2 + $0xbc0] sm:$0xff] %v5928
          %6441 = vst [vmem:[#allocation2 + $0xbc8] sm:$0xff] %v5929
          %6442 = vst [vmem:[#allocation2 + $0xbd0] sm:$0xff] %v5930
          %6443 = vst [vmem:[#allocation2 + $0xbd8] sm:$0xff] %v5931
          %6444 = vst [vmem:[#allocation2 + $0xbe0] sm:$0xff] %v5932
          %6445 = vst [vmem:[#allocation2 + $0xbe8] sm:$0xff] %v5933
          %6446 = vst [vmem:[#allocation2 + $0xbf0] sm:$0xff] %v5934
          %6447 = vst [vmem:[#allocation2 + $0xbf8] sm:$0xff] %v5935
          %6448 = vst [vmem:[#allocation2 + $0xc00] sm:$0xff] %v5936
          %6449 = vst [vmem:[#allocation2 + $0xc08] sm:$0xff] %v5937
          %6450 = vst [vmem:[#allocation2 + $0xc10] sm:$0xff] %v5938
          %6451 = vst [vmem:[#allocation2 + $0xc18] sm:$0xff] %v5939
          %6452 = vst [vmem:[#allocation2 + $0xc20] sm:$0xff] %v5940
          %6453 = vst [vmem:[#allocation2 + $0xc28] sm:$0xff] %v5941
          %6454 = vst [vmem:[#allocation2 + $0xc30] sm:$0xff] %v5942
          %6455 = vst [vmem:[#allocation2 + $0xc38] sm:$0xff] %v5943
          %6456 = vst [vmem:[#allocation2 + $0xc40] sm:$0xff] %v5944
          %6457 = vst [vmem:[#allocation2 + $0xc48] sm:$0xff] %v5945
          %6458 = vst [vmem:[#allocation2 + $0xc50] sm:$0xff] %v5946
          %6459 = vst [vmem:[#allocation2 + $0xc58] sm:$0xff] %v5947
          %6460 = vst [vmem:[#allocation2 + $0xc60] sm:$0xff] %v5948
          %6461 = vst [vmem:[#allocation2 + $0xc68] sm:$0xff] %v5949
          %6462 = vst [vmem:[#allocation2 + $0xc70] sm:$0xff] %v5950
          %6463 = vst [vmem:[#allocation2 + $0xc78] sm:$0xff] %v5951
          %6464 = vst [vmem:[#allocation2 + $0xc80] sm:$0xff] %v5952
          %6465 = vst [vmem:[#allocation2 + $0xc88] sm:$0xff] %v5953
          %6466 = vst [vmem:[#allocation2 + $0xc90] sm:$0xff] %v5954
          %6467 = vst [vmem:[#allocation2 + $0xc98] sm:$0xff] %v5955
          %6468 = vst [vmem:[#allocation2 + $0xca0] sm:$0xff] %v5956
          %6469 = vst [vmem:[#allocation2 + $0xca8] sm:$0xff] %v5957
          %6470 = vst [vmem:[#allocation2 + $0xcb0] sm:$0xff] %v5958
          %6471 = vst [vmem:[#allocation2 + $0xcb8] sm:$0xff] %v5959
          %6472 = vst [vmem:[#allocation2 + $0xcc0] sm:$0xff] %v5960
          %6473 = vst [vmem:[#allocation2 + $0xcc8] sm:$0xff] %v5961
          %6474 = vst [vmem:[#allocation2 + $0xcd0] sm:$0xff] %v5962
          %6475 = vst [vmem:[#allocation2 + $0xcd8] sm:$0xff] %v5963
          %6476 = vst [vmem:[#allocation2 + $0xce0] sm:$0xff] %v5964
          %6477 = vst [vmem:[#allocation2 + $0xce8] sm:$0xff] %v5965
          %6478 = vst [vmem:[#allocation2 + $0xcf0] sm:$0xff] %v5966
          %6479 = vst [vmem:[#allocation2 + $0xcf8] sm:$0xff] %v5967
          %6480 = vst [vmem:[#allocation2 + $0xd00] sm:$0xff] %v5968
          %6481 = vst [vmem:[#allocation2 + $0xd08] sm:$0xff] %v5969
          %6482 = vst [vmem:[#allocation2 + $0xd10] sm:$0xff] %v5970
          %6483 = vst [vmem:[#allocation2 + $0xd18] sm:$0xff] %v5971
          %6484 = vst [vmem:[#allocation2 + $0xd20] sm:$0xff] %v5972
          %6485 = vst [vmem:[#allocation2 + $0xd28] sm:$0xff] %v5973
          %6486 = vst [vmem:[#allocation2 + $0xd30] sm:$0xff] %v5974
          %6487 = vst [vmem:[#allocation2 + $0xd38] sm:$0xff] %v5975
          %6488 = vst [vmem:[#allocation2 + $0xd40] sm:$0xff] %v5976
          %6489 = vst [vmem:[#allocation2 + $0xd48] sm:$0xff] %v5977
          %6490 = vst [vmem:[#allocation2 + $0xd50] sm:$0xff] %v5978
          %6491 = vst [vmem:[#allocation2 + $0xd58] sm:$0xff] %v5979
          %6492 = vst [vmem:[#allocation2 + $0xd60] sm:$0xff] %v5980
          %6493 = vst [vmem:[#allocation2 + $0xd68] sm:$0xff] %v5981
          %6494 = vst [vmem:[#allocation2 + $0xd70] sm:$0xff] %v5982
          %6495 = vst [vmem:[#allocation2 + $0xd78] sm:$0xff] %v5983
          %6496 = vst [vmem:[#allocation2 + $0xd80] sm:$0xff] %v5984
          %6497 = vst [vmem:[#allocation2 + $0xd88] sm:$0xff] %v5985
          %6498 = vst [vmem:[#allocation2 + $0xd90] sm:$0xff] %v5986
          %6499 = vst [vmem:[#allocation2 + $0xd98] sm:$0xff] %v5987
          %6500 = vst [vmem:[#allocation2 + $0xda0] sm:$0xff] %v5988
          %6501 = vst [vmem:[#allocation2 + $0xda8] sm:$0xff] %v5989
          %6502 = vst [vmem:[#allocation2 + $0xdb0] sm:$0xff] %v5990
          %6503 = vst [vmem:[#allocation2 + $0xdb8] sm:$0xff] %v5991
          %6504 = vst [vmem:[#allocation2 + $0xdc0] sm:$0xff] %v5992
          %6505 = vst [vmem:[#allocation2 + $0xdc8] sm:$0xff] %v5993
          %6506 = vst [vmem:[#allocation2 + $0xdd0] sm:$0xff] %v5994
          %6507 = vst [vmem:[#allocation2 + $0xdd8] sm:$0xff] %v5995
          %6508 = vst [vmem:[#allocation2 + $0xde0] sm:$0xff] %v5996
          %6509 = vst [vmem:[#allocation2 + $0xde8] sm:$0xff] %v5997
          %6510 = vst [vmem:[#allocation2 + $0xdf0] sm:$0xff] %v5998
          %6511 = vst [vmem:[#allocation2 + $0xdf8] sm:$0xff] %v5999
          %6512 = vst [vmem:[#allocation2 + $0xe00] sm:$0xff] %v6000
          %6513 = vst [vmem:[#allocation2 + $0xe08] sm:$0xff] %v6001
          %6514 = vst [vmem:[#allocation2 + $0xe10] sm:$0xff] %v6002
          %6515 = vst [vmem:[#allocation2 + $0xe18] sm:$0xff] %v6003
          %6516 = vst [vmem:[#allocation2 + $0xe20] sm:$0xff] %v6004
          %6517 = vst [vmem:[#allocation2 + $0xe28] sm:$0xff] %v6005
          %6518 = vst [vmem:[#allocation2 + $0xe30] sm:$0xff] %v6006
          %6519 = vst [vmem:[#allocation2 + $0xe38] sm:$0xff] %v6007
          %6520 = vst [vmem:[#allocation2 + $0xe40] sm:$0xff] %v6008
          %6521 = vst [vmem:[#allocation2 + $0xe48] sm:$0xff] %v6009
          %6522 = vst [vmem:[#allocation2 + $0xe50] sm:$0xff] %v6010
          %6523 = vst [vmem:[#allocation2 + $0xe58] sm:$0xff] %v6011
          %6524 = vst [vmem:[#allocation2 + $0xe60] sm:$0xff] %v6012
          %6525 = vst [vmem:[#allocation2 + $0xe68] sm:$0xff] %v6013
          %6526 = vst [vmem:[#allocation2 + $0xe70] sm:$0xff] %v6014
          %6527 = vst [vmem:[#allocation2 + $0xe78] sm:$0xff] %v6015
          %6528 = vst [vmem:[#allocation2 + $0xe80] sm:$0xff] %v6016
          %6529 = vst [vmem:[#allocation2 + $0xe88] sm:$0xff] %v6017
          %6530 = vst [vmem:[#allocation2 + $0xe90] sm:$0xff] %v6018
          %6531 = vst [vmem:[#allocation2 + $0xe98] sm:$0xff] %v6019
          %6532 = vst [vmem:[#allocation2 + $0xea0] sm:$0xff] %v6020
          %6533 = vst [vmem:[#allocation2 + $0xea8] sm:$0xff] %v6021
          %6534 = vst [vmem:[#allocation2 + $0xeb0] sm:$0xff] %v6022
          %6535 = vst [vmem:[#allocation2 + $0xeb8] sm:$0xff] %v6023
          %6536 = vst [vmem:[#allocation2 + $0xec0] sm:$0xff] %v6024
          %6537 = vst [vmem:[#allocation2 + $0xec8] sm:$0xff] %v6025
          %6538 = vst [vmem:[#allocation2 + $0xed0] sm:$0xff] %v6026
          %6539 = vst [vmem:[#allocation2 + $0xed8] sm:$0xff] %v6027
          %6540 = vst [vmem:[#allocation2 + $0xee0] sm:$0xff] %v6028
          %6541 = vst [vmem:[#allocation2 + $0xee8] sm:$0xff] %v6029
          %6542 = vst [vmem:[#allocation2 + $0xef0] sm:$0xff] %v6030
          %6543 = vst [vmem:[#allocation2 + $0xef8] sm:$0xff] %v6031
          %6544 = vst [vmem:[#allocation2 + $0xf00] sm:$0xff] %v6032
          %6545 = vst [vmem:[#allocation2 + $0xf08] sm:$0xff] %v6033
          %6546 = vst [vmem:[#allocation2 + $0xf10] sm:$0xff] %v6034
          %6547 = vst [vmem:[#allocation2 + $0xf18] sm:$0xff] %v6035
          %6548 = vst [vmem:[#allocation2 + $0xf20] sm:$0xff] %v6036
          %6549 = vst [vmem:[#allocation2 + $0xf28] sm:$0xff] %v6037
          %6550 = vst [vmem:[#allocation2 + $0xf30] sm:$0xff] %v6038
          %6551 = vst [vmem:[#allocation2 + $0xf38] sm:$0xff] %v6039
          %6552 = vst [vmem:[#allocation2 + $0xf40] sm:$0xff] %v6040
          %6553 = vst [vmem:[#allocation2 + $0xf48] sm:$0xff] %v6041
          %6554 = vst [vmem:[#allocation2 + $0xf50] sm:$0xff] %v6042
          %6555 = vst [vmem:[#allocation2 + $0xf58] sm:$0xff] %v6043
          %6556 = vst [vmem:[#allocation2 + $0xf60] sm:$0xff] %v6044
          %6557 = vst [vmem:[#allocation2 + $0xf68] sm:$0xff] %v6045
          %6558 = vst [vmem:[#allocation2 + $0xf70] sm:$0xff] %v6046
          %6559 = vst [vmem:[#allocation2 + $0xf78] sm:$0xff] %v6047
          %6560 = vst [vmem:[#allocation2 + $0xf80] sm:$0xff] %v6048
          %6561 = vst [vmem:[#allocation2 + $0xf88] sm:$0xff] %v6049
          %6562 = vst [vmem:[#allocation2 + $0xf90] sm:$0xff] %v6050
          %6563 = vst [vmem:[#allocation2 + $0xf98] sm:$0xff] %v6051
          %6564 = vst [vmem:[#allocation2 + $0xfa0] sm:$0xff] %v6052
          %6565 = vst [vmem:[#allocation2 + $0xfa8] sm:$0xff] %v6053
          %6566 = vst [vmem:[#allocation2 + $0xfb0] sm:$0xff] %v6054
          %6567 = vst [vmem:[#allocation2 + $0xfb8] sm:$0xff] %v6055
          %6568 = vst [vmem:[#allocation2 + $0xfc0] sm:$0xff] %v6056
          %6569 = vst [vmem:[#allocation2 + $0xfc8] sm:$0xff] %v6057
          %6570 = vst [vmem:[#allocation2 + $0xfd0] sm:$0xff] %v6058
          %6571 = vst [vmem:[#allocation2 + $0xfd8] sm:$0xff] %v6059
          %6572 = vst [vmem:[#allocation2 + $0xfe0] sm:$0xff] %v6060
          %6573 = vst [vmem:[#allocation2 + $0xfe8] sm:$0xff] %v6061
          %6574 = vst [vmem:[#allocation2 + $0xff0] sm:$0xff] %v6062
          %6575 = vst [vmem:[#allocation2 + $0xff8] sm:$0xff] %v6063
        $region48: #{tpu_custom_call.1} parent=27 // pred_fallthru
          _
        %p6576 = scmp.eq.s32.totalorder %s20, 1
        // Predicated region
        $region49: #{tpu_custom_call.1} parent=27 // pred_check
          %p6577 = pneg %p6576
        $region50: #{tpu_custom_call.1} parent=27 // pred_check_branch
          %6579 = sbr.rel (%p6577) target = $region52
        $region51: #{tpu_custom_call.1} parent=27 // pred_region
          %v6580 = vld [vmem:[#allocation2] sm:$0xff]
          %v6581 = vld [vmem:[#allocation2 + $0x8] sm:$0xff]
          %v6582 = vld [vmem:[#allocation2 + $0x10] sm:$0xff]
          %v6583 = vld [vmem:[#allocation2 + $0x18] sm:$0xff]
          %v6584 = vld [vmem:[#allocation2 + $0x20] sm:$0xff]
          %v6585 = vld [vmem:[#allocation2 + $0x28] sm:$0xff]
          %v6586 = vld [vmem:[#allocation2 + $0x30] sm:$0xff]
          %v6587 = vld [vmem:[#allocation2 + $0x38] sm:$0xff]
          %v6588 = vld [vmem:[#allocation2 + $0x40] sm:$0xff]
          %v6589 = vld [vmem:[#allocation2 + $0x48] sm:$0xff]
          %v6590 = vld [vmem:[#allocation2 + $0x50] sm:$0xff]
          %v6591 = vld [vmem:[#allocation2 + $0x58] sm:$0xff]
          %v6592 = vld [vmem:[#allocation2 + $0x60] sm:$0xff]
          %v6593 = vld [vmem:[#allocation2 + $0x68] sm:$0xff]
          %v6594 = vld [vmem:[#allocation2 + $0x70] sm:$0xff]
          %v6595 = vld [vmem:[#allocation2 + $0x78] sm:$0xff]
          %v6596 = vld [vmem:[#allocation2 + $0x80] sm:$0xff]
          %v6597 = vld [vmem:[#allocation2 + $0x88] sm:$0xff]
          %v6598 = vld [vmem:[#allocation2 + $0x90] sm:$0xff]
          %v6599 = vld [vmem:[#allocation2 + $0x98] sm:$0xff]
          %v6600 = vld [vmem:[#allocation2 + $0xa0] sm:$0xff]
          %v6601 = vld [vmem:[#allocation2 + $0xa8] sm:$0xff]
          %v6602 = vld [vmem:[#allocation2 + $0xb0] sm:$0xff]
          %v6603 = vld [vmem:[#allocation2 + $0xb8] sm:$0xff]
          %v6604 = vld [vmem:[#allocation2 + $0xc0] sm:$0xff]
          %v6605 = vld [vmem:[#allocation2 + $0xc8] sm:$0xff]
          %v6606 = vld [vmem:[#allocation2 + $0xd0] sm:$0xff]
          %v6607 = vld [vmem:[#allocation2 + $0xd8] sm:$0xff]
          %v6608 = vld [vmem:[#allocation2 + $0xe0] sm:$0xff]
          %v6609 = vld [vmem:[#allocation2 + $0xe8] sm:$0xff]
          %v6610 = vld [vmem:[#allocation2 + $0xf0] sm:$0xff]
          %v6611 = vld [vmem:[#allocation2 + $0xf8] sm:$0xff]
          %v6612 = vld [vmem:[#allocation2 + $0x100] sm:$0xff]
          %v6613 = vld [vmem:[#allocation2 + $0x108] sm:$0xff]
          %v6614 = vld [vmem:[#allocation2 + $0x110] sm:$0xff]
          %v6615 = vld [vmem:[#allocation2 + $0x118] sm:$0xff]
          %v6616 = vld [vmem:[#allocation2 + $0x120] sm:$0xff]
          %v6617 = vld [vmem:[#allocation2 + $0x128] sm:$0xff]
          %v6618 = vld [vmem:[#allocation2 + $0x130] sm:$0xff]
          %v6619 = vld [vmem:[#allocation2 + $0x138] sm:$0xff]
          %v6620 = vld [vmem:[#allocation2 + $0x140] sm:$0xff]
          %v6621 = vld [vmem:[#allocation2 + $0x148] sm:$0xff]
          %v6622 = vld [vmem:[#allocation2 + $0x150] sm:$0xff]
          %v6623 = vld [vmem:[#allocation2 + $0x158] sm:$0xff]
          %v6624 = vld [vmem:[#allocation2 + $0x160] sm:$0xff]
          %v6625 = vld [vmem:[#allocation2 + $0x168] sm:$0xff]
          %v6626 = vld [vmem:[#allocation2 + $0x170] sm:$0xff]
          %v6627 = vld [vmem:[#allocation2 + $0x178] sm:$0xff]
          %v6628 = vld [vmem:[#allocation2 + $0x180] sm:$0xff]
          %v6629 = vld [vmem:[#allocation2 + $0x188] sm:$0xff]
          %v6630 = vld [vmem:[#allocation2 + $0x190] sm:$0xff]
          %v6631 = vld [vmem:[#allocation2 + $0x198] sm:$0xff]
          %v6632 = vld [vmem:[#allocation2 + $0x1a0] sm:$0xff]
          %v6633 = vld [vmem:[#allocation2 + $0x1a8] sm:$0xff]
          %v6634 = vld [vmem:[#allocation2 + $0x1b0] sm:$0xff]
          %v6635 = vld [vmem:[#allocation2 + $0x1b8] sm:$0xff]
          %v6636 = vld [vmem:[#allocation2 + $0x1c0] sm:$0xff]
          %v6637 = vld [vmem:[#allocation2 + $0x1c8] sm:$0xff]
          %v6638 = vld [vmem:[#allocation2 + $0x1d0] sm:$0xff]
          %v6639 = vld [vmem:[#allocation2 + $0x1d8] sm:$0xff]
          %v6640 = vld [vmem:[#allocation2 + $0x1e0] sm:$0xff]
          %v6641 = vld [vmem:[#allocation2 + $0x1e8] sm:$0xff]
          %v6642 = vld [vmem:[#allocation2 + $0x1f0] sm:$0xff]
          %v6643 = vld [vmem:[#allocation2 + $0x1f8] sm:$0xff]
          %v6644 = vld [vmem:[#allocation2 + $0x200] sm:$0xff]
          %v6645 = vld [vmem:[#allocation2 + $0x208] sm:$0xff]
          %v6646 = vld [vmem:[#allocation2 + $0x210] sm:$0xff]
          %v6647 = vld [vmem:[#allocation2 + $0x218] sm:$0xff]
          %v6648 = vld [vmem:[#allocation2 + $0x220] sm:$0xff]
          %v6649 = vld [vmem:[#allocation2 + $0x228] sm:$0xff]
          %v6650 = vld [vmem:[#allocation2 + $0x230] sm:$0xff]
          %v6651 = vld [vmem:[#allocation2 + $0x238] sm:$0xff]
          %v6652 = vld [vmem:[#allocation2 + $0x240] sm:$0xff]
          %v6653 = vld [vmem:[#allocation2 + $0x248] sm:$0xff]
          %v6654 = vld [vmem:[#allocation2 + $0x250] sm:$0xff]
          %v6655 = vld [vmem:[#allocation2 + $0x258] sm:$0xff]
          %v6656 = vld [vmem:[#allocation2 + $0x260] sm:$0xff]
          %v6657 = vld [vmem:[#allocation2 + $0x268] sm:$0xff]
          %v6658 = vld [vmem:[#allocation2 + $0x270] sm:$0xff]
          %v6659 = vld [vmem:[#allocation2 + $0x278] sm:$0xff]
          %v6660 = vld [vmem:[#allocation2 + $0x280] sm:$0xff]
          %v6661 = vld [vmem:[#allocation2 + $0x288] sm:$0xff]
          %v6662 = vld [vmem:[#allocation2 + $0x290] sm:$0xff]
          %v6663 = vld [vmem:[#allocation2 + $0x298] sm:$0xff]
          %v6664 = vld [vmem:[#allocation2 + $0x2a0] sm:$0xff]
          %v6665 = vld [vmem:[#allocation2 + $0x2a8] sm:$0xff]
          %v6666 = vld [vmem:[#allocation2 + $0x2b0] sm:$0xff]
          %v6667 = vld [vmem:[#allocation2 + $0x2b8] sm:$0xff]
          %v6668 = vld [vmem:[#allocation2 + $0x2c0] sm:$0xff]
          %v6669 = vld [vmem:[#allocation2 + $0x2c8] sm:$0xff]
          %v6670 = vld [vmem:[#allocation2 + $0x2d0] sm:$0xff]
          %v6671 = vld [vmem:[#allocation2 + $0x2d8] sm:$0xff]
          %v6672 = vld [vmem:[#allocation2 + $0x2e0] sm:$0xff]
          %v6673 = vld [vmem:[#allocation2 + $0x2e8] sm:$0xff]
          %v6674 = vld [vmem:[#allocation2 + $0x2f0] sm:$0xff]
          %v6675 = vld [vmem:[#allocation2 + $0x2f8] sm:$0xff]
          %v6676 = vld [vmem:[#allocation2 + $0x300] sm:$0xff]
          %v6677 = vld [vmem:[#allocation2 + $0x308] sm:$0xff]
          %v6678 = vld [vmem:[#allocation2 + $0x310] sm:$0xff]
          %v6679 = vld [vmem:[#allocation2 + $0x318] sm:$0xff]
          %v6680 = vld [vmem:[#allocation2 + $0x320] sm:$0xff]
          %v6681 = vld [vmem:[#allocation2 + $0x328] sm:$0xff]
          %v6682 = vld [vmem:[#allocation2 + $0x330] sm:$0xff]
          %v6683 = vld [vmem:[#allocation2 + $0x338] sm:$0xff]
          %v6684 = vld [vmem:[#allocation2 + $0x340] sm:$0xff]
          %v6685 = vld [vmem:[#allocation2 + $0x348] sm:$0xff]
          %v6686 = vld [vmem:[#allocation2 + $0x350] sm:$0xff]
          %v6687 = vld [vmem:[#allocation2 + $0x358] sm:$0xff]
          %v6688 = vld [vmem:[#allocation2 + $0x360] sm:$0xff]
          %v6689 = vld [vmem:[#allocation2 + $0x368] sm:$0xff]
          %v6690 = vld [vmem:[#allocation2 + $0x370] sm:$0xff]
          %v6691 = vld [vmem:[#allocation2 + $0x378] sm:$0xff]
          %v6692 = vld [vmem:[#allocation2 + $0x380] sm:$0xff]
          %v6693 = vld [vmem:[#allocation2 + $0x388] sm:$0xff]
          %v6694 = vld [vmem:[#allocation2 + $0x390] sm:$0xff]
          %v6695 = vld [vmem:[#allocation2 + $0x398] sm:$0xff]
          %v6696 = vld [vmem:[#allocation2 + $0x3a0] sm:$0xff]
          %v6697 = vld [vmem:[#allocation2 + $0x3a8] sm:$0xff]
          %v6698 = vld [vmem:[#allocation2 + $0x3b0] sm:$0xff]
          %v6699 = vld [vmem:[#allocation2 + $0x3b8] sm:$0xff]
          %v6700 = vld [vmem:[#allocation2 + $0x3c0] sm:$0xff]
          %v6701 = vld [vmem:[#allocation2 + $0x3c8] sm:$0xff]
          %v6702 = vld [vmem:[#allocation2 + $0x3d0] sm:$0xff]
          %v6703 = vld [vmem:[#allocation2 + $0x3d8] sm:$0xff]
          %v6704 = vld [vmem:[#allocation2 + $0x3e0] sm:$0xff]
          %v6705 = vld [vmem:[#allocation2 + $0x3e8] sm:$0xff]
          %v6706 = vld [vmem:[#allocation2 + $0x3f0] sm:$0xff]
          %v6707 = vld [vmem:[#allocation2 + $0x3f8] sm:$0xff]
          %v6708 = vld [vmem:[#allocation2 + $0x400] sm:$0xff]
          %v6709 = vld [vmem:[#allocation2 + $0x408] sm:$0xff]
          %v6710 = vld [vmem:[#allocation2 + $0x410] sm:$0xff]
          %v6711 = vld [vmem:[#allocation2 + $0x418] sm:$0xff]
          %v6712 = vld [vmem:[#allocation2 + $0x420] sm:$0xff]
          %v6713 = vld [vmem:[#allocation2 + $0x428] sm:$0xff]
          %v6714 = vld [vmem:[#allocation2 + $0x430] sm:$0xff]
          %v6715 = vld [vmem:[#allocation2 + $0x438] sm:$0xff]
          %v6716 = vld [vmem:[#allocation2 + $0x440] sm:$0xff]
          %v6717 = vld [vmem:[#allocation2 + $0x448] sm:$0xff]
          %v6718 = vld [vmem:[#allocation2 + $0x450] sm:$0xff]
          %v6719 = vld [vmem:[#allocation2 + $0x458] sm:$0xff]
          %v6720 = vld [vmem:[#allocation2 + $0x460] sm:$0xff]
          %v6721 = vld [vmem:[#allocation2 + $0x468] sm:$0xff]
          %v6722 = vld [vmem:[#allocation2 + $0x470] sm:$0xff]
          %v6723 = vld [vmem:[#allocation2 + $0x478] sm:$0xff]
          %v6724 = vld [vmem:[#allocation2 + $0x480] sm:$0xff]
          %v6725 = vld [vmem:[#allocation2 + $0x488] sm:$0xff]
          %v6726 = vld [vmem:[#allocation2 + $0x490] sm:$0xff]
          %v6727 = vld [vmem:[#allocation2 + $0x498] sm:$0xff]
          %v6728 = vld [vmem:[#allocation2 + $0x4a0] sm:$0xff]
          %v6729 = vld [vmem:[#allocation2 + $0x4a8] sm:$0xff]
          %v6730 = vld [vmem:[#allocation2 + $0x4b0] sm:$0xff]
          %v6731 = vld [vmem:[#allocation2 + $0x4b8] sm:$0xff]
          %v6732 = vld [vmem:[#allocation2 + $0x4c0] sm:$0xff]
          %v6733 = vld [vmem:[#allocation2 + $0x4c8] sm:$0xff]
          %v6734 = vld [vmem:[#allocation2 + $0x4d0] sm:$0xff]
          %v6735 = vld [vmem:[#allocation2 + $0x4d8] sm:$0xff]
          %v6736 = vld [vmem:[#allocation2 + $0x4e0] sm:$0xff]
          %v6737 = vld [vmem:[#allocation2 + $0x4e8] sm:$0xff]
          %v6738 = vld [vmem:[#allocation2 + $0x4f0] sm:$0xff]
          %v6739 = vld [vmem:[#allocation2 + $0x4f8] sm:$0xff]
          %v6740 = vld [vmem:[#allocation2 + $0x500] sm:$0xff]
          %v6741 = vld [vmem:[#allocation2 + $0x508] sm:$0xff]
          %v6742 = vld [vmem:[#allocation2 + $0x510] sm:$0xff]
          %v6743 = vld [vmem:[#allocation2 + $0x518] sm:$0xff]
          %v6744 = vld [vmem:[#allocation2 + $0x520] sm:$0xff]
          %v6745 = vld [vmem:[#allocation2 + $0x528] sm:$0xff]
          %v6746 = vld [vmem:[#allocation2 + $0x530] sm:$0xff]
          %v6747 = vld [vmem:[#allocation2 + $0x538] sm:$0xff]
          %v6748 = vld [vmem:[#allocation2 + $0x540] sm:$0xff]
          %v6749 = vld [vmem:[#allocation2 + $0x548] sm:$0xff]
          %v6750 = vld [vmem:[#allocation2 + $0x550] sm:$0xff]
          %v6751 = vld [vmem:[#allocation2 + $0x558] sm:$0xff]
          %v6752 = vld [vmem:[#allocation2 + $0x560] sm:$0xff]
          %v6753 = vld [vmem:[#allocation2 + $0x568] sm:$0xff]
          %v6754 = vld [vmem:[#allocation2 + $0x570] sm:$0xff]
          %v6755 = vld [vmem:[#allocation2 + $0x578] sm:$0xff]
          %v6756 = vld [vmem:[#allocation2 + $0x580] sm:$0xff]
          %v6757 = vld [vmem:[#allocation2 + $0x588] sm:$0xff]
          %v6758 = vld [vmem:[#allocation2 + $0x590] sm:$0xff]
          %v6759 = vld [vmem:[#allocation2 + $0x598] sm:$0xff]
          %v6760 = vld [vmem:[#allocation2 + $0x5a0] sm:$0xff]
          %v6761 = vld [vmem:[#allocation2 + $0x5a8] sm:$0xff]
          %v6762 = vld [vmem:[#allocation2 + $0x5b0] sm:$0xff]
          %v6763 = vld [vmem:[#allocation2 + $0x5b8] sm:$0xff]
          %v6764 = vld [vmem:[#allocation2 + $0x5c0] sm:$0xff]
          %v6765 = vld [vmem:[#allocation2 + $0x5c8] sm:$0xff]
          %v6766 = vld [vmem:[#allocation2 + $0x5d0] sm:$0xff]
          %v6767 = vld [vmem:[#allocation2 + $0x5d8] sm:$0xff]
          %v6768 = vld [vmem:[#allocation2 + $0x5e0] sm:$0xff]
          %v6769 = vld [vmem:[#allocation2 + $0x5e8] sm:$0xff]
          %v6770 = vld [vmem:[#allocation2 + $0x5f0] sm:$0xff]
          %v6771 = vld [vmem:[#allocation2 + $0x5f8] sm:$0xff]
          %v6772 = vld [vmem:[#allocation2 + $0x600] sm:$0xff]
          %v6773 = vld [vmem:[#allocation2 + $0x608] sm:$0xff]
          %v6774 = vld [vmem:[#allocation2 + $0x610] sm:$0xff]
          %v6775 = vld [vmem:[#allocation2 + $0x618] sm:$0xff]
          %v6776 = vld [vmem:[#allocation2 + $0x620] sm:$0xff]
          %v6777 = vld [vmem:[#allocation2 + $0x628] sm:$0xff]
          %v6778 = vld [vmem:[#allocation2 + $0x630] sm:$0xff]
          %v6779 = vld [vmem:[#allocation2 + $0x638] sm:$0xff]
          %v6780 = vld [vmem:[#allocation2 + $0x640] sm:$0xff]
          %v6781 = vld [vmem:[#allocation2 + $0x648] sm:$0xff]
          %v6782 = vld [vmem:[#allocation2 + $0x650] sm:$0xff]
          %v6783 = vld [vmem:[#allocation2 + $0x658] sm:$0xff]
          %v6784 = vld [vmem:[#allocation2 + $0x660] sm:$0xff]
          %v6785 = vld [vmem:[#allocation2 + $0x668] sm:$0xff]
          %v6786 = vld [vmem:[#allocation2 + $0x670] sm:$0xff]
          %v6787 = vld [vmem:[#allocation2 + $0x678] sm:$0xff]
          %v6788 = vld [vmem:[#allocation2 + $0x680] sm:$0xff]
          %v6789 = vld [vmem:[#allocation2 + $0x688] sm:$0xff]
          %v6790 = vld [vmem:[#allocation2 + $0x690] sm:$0xff]
          %v6791 = vld [vmem:[#allocation2 + $0x698] sm:$0xff]
          %v6792 = vld [vmem:[#allocation2 + $0x6a0] sm:$0xff]
          %v6793 = vld [vmem:[#allocation2 + $0x6a8] sm:$0xff]
          %v6794 = vld [vmem:[#allocation2 + $0x6b0] sm:$0xff]
          %v6795 = vld [vmem:[#allocation2 + $0x6b8] sm:$0xff]
          %v6796 = vld [vmem:[#allocation2 + $0x6c0] sm:$0xff]
          %v6797 = vld [vmem:[#allocation2 + $0x6c8] sm:$0xff]
          %v6798 = vld [vmem:[#allocation2 + $0x6d0] sm:$0xff]
          %v6799 = vld [vmem:[#allocation2 + $0x6d8] sm:$0xff]
          %v6800 = vld [vmem:[#allocation2 + $0x6e0] sm:$0xff]
          %v6801 = vld [vmem:[#allocation2 + $0x6e8] sm:$0xff]
          %v6802 = vld [vmem:[#allocation2 + $0x6f0] sm:$0xff]
          %v6803 = vld [vmem:[#allocation2 + $0x6f8] sm:$0xff]
          %v6804 = vld [vmem:[#allocation2 + $0x700] sm:$0xff]
          %v6805 = vld [vmem:[#allocation2 + $0x708] sm:$0xff]
          %v6806 = vld [vmem:[#allocation2 + $0x710] sm:$0xff]
          %v6807 = vld [vmem:[#allocation2 + $0x718] sm:$0xff]
          %v6808 = vld [vmem:[#allocation2 + $0x720] sm:$0xff]
          %v6809 = vld [vmem:[#allocation2 + $0x728] sm:$0xff]
          %v6810 = vld [vmem:[#allocation2 + $0x730] sm:$0xff]
          %v6811 = vld [vmem:[#allocation2 + $0x738] sm:$0xff]
          %v6812 = vld [vmem:[#allocation2 + $0x740] sm:$0xff]
          %v6813 = vld [vmem:[#allocation2 + $0x748] sm:$0xff]
          %v6814 = vld [vmem:[#allocation2 + $0x750] sm:$0xff]
          %v6815 = vld [vmem:[#allocation2 + $0x758] sm:$0xff]
          %v6816 = vld [vmem:[#allocation2 + $0x760] sm:$0xff]
          %v6817 = vld [vmem:[#allocation2 + $0x768] sm:$0xff]
          %v6818 = vld [vmem:[#allocation2 + $0x770] sm:$0xff]
          %v6819 = vld [vmem:[#allocation2 + $0x778] sm:$0xff]
          %v6820 = vld [vmem:[#allocation2 + $0x780] sm:$0xff]
          %v6821 = vld [vmem:[#allocation2 + $0x788] sm:$0xff]
          %v6822 = vld [vmem:[#allocation2 + $0x790] sm:$0xff]
          %v6823 = vld [vmem:[#allocation2 + $0x798] sm:$0xff]
          %v6824 = vld [vmem:[#allocation2 + $0x7a0] sm:$0xff]
          %v6825 = vld [vmem:[#allocation2 + $0x7a8] sm:$0xff]
          %v6826 = vld [vmem:[#allocation2 + $0x7b0] sm:$0xff]
          %v6827 = vld [vmem:[#allocation2 + $0x7b8] sm:$0xff]
          %v6828 = vld [vmem:[#allocation2 + $0x7c0] sm:$0xff]
          %v6829 = vld [vmem:[#allocation2 + $0x7c8] sm:$0xff]
          %v6830 = vld [vmem:[#allocation2 + $0x7d0] sm:$0xff]
          %v6831 = vld [vmem:[#allocation2 + $0x7d8] sm:$0xff]
          %v6832 = vld [vmem:[#allocation2 + $0x7e0] sm:$0xff]
          %v6833 = vld [vmem:[#allocation2 + $0x7e8] sm:$0xff]
          %v6834 = vld [vmem:[#allocation2 + $0x7f0] sm:$0xff]
          %v6835 = vld [vmem:[#allocation2 + $0x7f8] sm:$0xff]
          %v6836 = vld [vmem:[#allocation2 + $0x800] sm:$0xff]
          %v6837 = vld [vmem:[#allocation2 + $0x808] sm:$0xff]
          %v6838 = vld [vmem:[#allocation2 + $0x810] sm:$0xff]
          %v6839 = vld [vmem:[#allocation2 + $0x818] sm:$0xff]
          %v6840 = vld [vmem:[#allocation2 + $0x820] sm:$0xff]
          %v6841 = vld [vmem:[#allocation2 + $0x828] sm:$0xff]
          %v6842 = vld [vmem:[#allocation2 + $0x830] sm:$0xff]
          %v6843 = vld [vmem:[#allocation2 + $0x838] sm:$0xff]
          %v6844 = vld [vmem:[#allocation2 + $0x840] sm:$0xff]
          %v6845 = vld [vmem:[#allocation2 + $0x848] sm:$0xff]
          %v6846 = vld [vmem:[#allocation2 + $0x850] sm:$0xff]
          %v6847 = vld [vmem:[#allocation2 + $0x858] sm:$0xff]
          %v6848 = vld [vmem:[#allocation2 + $0x860] sm:$0xff]
          %v6849 = vld [vmem:[#allocation2 + $0x868] sm:$0xff]
          %v6850 = vld [vmem:[#allocation2 + $0x870] sm:$0xff]
          %v6851 = vld [vmem:[#allocation2 + $0x878] sm:$0xff]
          %v6852 = vld [vmem:[#allocation2 + $0x880] sm:$0xff]
          %v6853 = vld [vmem:[#allocation2 + $0x888] sm:$0xff]
          %v6854 = vld [vmem:[#allocation2 + $0x890] sm:$0xff]
          %v6855 = vld [vmem:[#allocation2 + $0x898] sm:$0xff]
          %v6856 = vld [vmem:[#allocation2 + $0x8a0] sm:$0xff]
          %v6857 = vld [vmem:[#allocation2 + $0x8a8] sm:$0xff]
          %v6858 = vld [vmem:[#allocation2 + $0x8b0] sm:$0xff]
          %v6859 = vld [vmem:[#allocation2 + $0x8b8] sm:$0xff]
          %v6860 = vld [vmem:[#allocation2 + $0x8c0] sm:$0xff]
          %v6861 = vld [vmem:[#allocation2 + $0x8c8] sm:$0xff]
          %v6862 = vld [vmem:[#allocation2 + $0x8d0] sm:$0xff]
          %v6863 = vld [vmem:[#allocation2 + $0x8d8] sm:$0xff]
          %v6864 = vld [vmem:[#allocation2 + $0x8e0] sm:$0xff]
          %v6865 = vld [vmem:[#allocation2 + $0x8e8] sm:$0xff]
          %v6866 = vld [vmem:[#allocation2 + $0x8f0] sm:$0xff]
          %v6867 = vld [vmem:[#allocation2 + $0x8f8] sm:$0xff]
          %v6868 = vld [vmem:[#allocation2 + $0x900] sm:$0xff]
          %v6869 = vld [vmem:[#allocation2 + $0x908] sm:$0xff]
          %v6870 = vld [vmem:[#allocation2 + $0x910] sm:$0xff]
          %v6871 = vld [vmem:[#allocation2 + $0x918] sm:$0xff]
          %v6872 = vld [vmem:[#allocation2 + $0x920] sm:$0xff]
          %v6873 = vld [vmem:[#allocation2 + $0x928] sm:$0xff]
          %v6874 = vld [vmem:[#allocation2 + $0x930] sm:$0xff]
          %v6875 = vld [vmem:[#allocation2 + $0x938] sm:$0xff]
          %v6876 = vld [vmem:[#allocation2 + $0x940] sm:$0xff]
          %v6877 = vld [vmem:[#allocation2 + $0x948] sm:$0xff]
          %v6878 = vld [vmem:[#allocation2 + $0x950] sm:$0xff]
          %v6879 = vld [vmem:[#allocation2 + $0x958] sm:$0xff]
          %v6880 = vld [vmem:[#allocation2 + $0x960] sm:$0xff]
          %v6881 = vld [vmem:[#allocation2 + $0x968] sm:$0xff]
          %v6882 = vld [vmem:[#allocation2 + $0x970] sm:$0xff]
          %v6883 = vld [vmem:[#allocation2 + $0x978] sm:$0xff]
          %v6884 = vld [vmem:[#allocation2 + $0x980] sm:$0xff]
          %v6885 = vld [vmem:[#allocation2 + $0x988] sm:$0xff]
          %v6886 = vld [vmem:[#allocation2 + $0x990] sm:$0xff]
          %v6887 = vld [vmem:[#allocation2 + $0x998] sm:$0xff]
          %v6888 = vld [vmem:[#allocation2 + $0x9a0] sm:$0xff]
          %v6889 = vld [vmem:[#allocation2 + $0x9a8] sm:$0xff]
          %v6890 = vld [vmem:[#allocation2 + $0x9b0] sm:$0xff]
          %v6891 = vld [vmem:[#allocation2 + $0x9b8] sm:$0xff]
          %v6892 = vld [vmem:[#allocation2 + $0x9c0] sm:$0xff]
          %v6893 = vld [vmem:[#allocation2 + $0x9c8] sm:$0xff]
          %v6894 = vld [vmem:[#allocation2 + $0x9d0] sm:$0xff]
          %v6895 = vld [vmem:[#allocation2 + $0x9d8] sm:$0xff]
          %v6896 = vld [vmem:[#allocation2 + $0x9e0] sm:$0xff]
          %v6897 = vld [vmem:[#allocation2 + $0x9e8] sm:$0xff]
          %v6898 = vld [vmem:[#allocation2 + $0x9f0] sm:$0xff]
          %v6899 = vld [vmem:[#allocation2 + $0x9f8] sm:$0xff]
          %v6900 = vld [vmem:[#allocation2 + $0xa00] sm:$0xff]
          %v6901 = vld [vmem:[#allocation2 + $0xa08] sm:$0xff]
          %v6902 = vld [vmem:[#allocation2 + $0xa10] sm:$0xff]
          %v6903 = vld [vmem:[#allocation2 + $0xa18] sm:$0xff]
          %v6904 = vld [vmem:[#allocation2 + $0xa20] sm:$0xff]
          %v6905 = vld [vmem:[#allocation2 + $0xa28] sm:$0xff]
          %v6906 = vld [vmem:[#allocation2 + $0xa30] sm:$0xff]
          %v6907 = vld [vmem:[#allocation2 + $0xa38] sm:$0xff]
          %v6908 = vld [vmem:[#allocation2 + $0xa40] sm:$0xff]
          %v6909 = vld [vmem:[#allocation2 + $0xa48] sm:$0xff]
          %v6910 = vld [vmem:[#allocation2 + $0xa50] sm:$0xff]
          %v6911 = vld [vmem:[#allocation2 + $0xa58] sm:$0xff]
          %v6912 = vld [vmem:[#allocation2 + $0xa60] sm:$0xff]
          %v6913 = vld [vmem:[#allocation2 + $0xa68] sm:$0xff]
          %v6914 = vld [vmem:[#allocation2 + $0xa70] sm:$0xff]
          %v6915 = vld [vmem:[#allocation2 + $0xa78] sm:$0xff]
          %v6916 = vld [vmem:[#allocation2 + $0xa80] sm:$0xff]
          %v6917 = vld [vmem:[#allocation2 + $0xa88] sm:$0xff]
          %v6918 = vld [vmem:[#allocation2 + $0xa90] sm:$0xff]
          %v6919 = vld [vmem:[#allocation2 + $0xa98] sm:$0xff]
          %v6920 = vld [vmem:[#allocation2 + $0xaa0] sm:$0xff]
          %v6921 = vld [vmem:[#allocation2 + $0xaa8] sm:$0xff]
          %v6922 = vld [vmem:[#allocation2 + $0xab0] sm:$0xff]
          %v6923 = vld [vmem:[#allocation2 + $0xab8] sm:$0xff]
          %v6924 = vld [vmem:[#allocation2 + $0xac0] sm:$0xff]
          %v6925 = vld [vmem:[#allocation2 + $0xac8] sm:$0xff]
          %v6926 = vld [vmem:[#allocation2 + $0xad0] sm:$0xff]
          %v6927 = vld [vmem:[#allocation2 + $0xad8] sm:$0xff]
          %v6928 = vld [vmem:[#allocation2 + $0xae0] sm:$0xff]
          %v6929 = vld [vmem:[#allocation2 + $0xae8] sm:$0xff]
          %v6930 = vld [vmem:[#allocation2 + $0xaf0] sm:$0xff]
          %v6931 = vld [vmem:[#allocation2 + $0xaf8] sm:$0xff]
          %v6932 = vld [vmem:[#allocation2 + $0xb00] sm:$0xff]
          %v6933 = vld [vmem:[#allocation2 + $0xb08] sm:$0xff]
          %v6934 = vld [vmem:[#allocation2 + $0xb10] sm:$0xff]
          %v6935 = vld [vmem:[#allocation2 + $0xb18] sm:$0xff]
          %v6936 = vld [vmem:[#allocation2 + $0xb20] sm:$0xff]
          %v6937 = vld [vmem:[#allocation2 + $0xb28] sm:$0xff]
          %v6938 = vld [vmem:[#allocation2 + $0xb30] sm:$0xff]
          %v6939 = vld [vmem:[#allocation2 + $0xb38] sm:$0xff]
          %v6940 = vld [vmem:[#allocation2 + $0xb40] sm:$0xff]
          %v6941 = vld [vmem:[#allocation2 + $0xb48] sm:$0xff]
          %v6942 = vld [vmem:[#allocation2 + $0xb50] sm:$0xff]
          %v6943 = vld [vmem:[#allocation2 + $0xb58] sm:$0xff]
          %v6944 = vld [vmem:[#allocation2 + $0xb60] sm:$0xff]
          %v6945 = vld [vmem:[#allocation2 + $0xb68] sm:$0xff]
          %v6946 = vld [vmem:[#allocation2 + $0xb70] sm:$0xff]
          %v6947 = vld [vmem:[#allocation2 + $0xb78] sm:$0xff]
          %v6948 = vld [vmem:[#allocation2 + $0xb80] sm:$0xff]
          %v6949 = vld [vmem:[#allocation2 + $0xb88] sm:$0xff]
          %v6950 = vld [vmem:[#allocation2 + $0xb90] sm:$0xff]
          %v6951 = vld [vmem:[#allocation2 + $0xb98] sm:$0xff]
          %v6952 = vld [vmem:[#allocation2 + $0xba0] sm:$0xff]
          %v6953 = vld [vmem:[#allocation2 + $0xba8] sm:$0xff]
          %v6954 = vld [vmem:[#allocation2 + $0xbb0] sm:$0xff]
          %v6955 = vld [vmem:[#allocation2 + $0xbb8] sm:$0xff]
          %v6956 = vld [vmem:[#allocation2 + $0xbc0] sm:$0xff]
          %v6957 = vld [vmem:[#allocation2 + $0xbc8] sm:$0xff]
          %v6958 = vld [vmem:[#allocation2 + $0xbd0] sm:$0xff]
          %v6959 = vld [vmem:[#allocation2 + $0xbd8] sm:$0xff]
          %v6960 = vld [vmem:[#allocation2 + $0xbe0] sm:$0xff]
          %v6961 = vld [vmem:[#allocation2 + $0xbe8] sm:$0xff]
          %v6962 = vld [vmem:[#allocation2 + $0xbf0] sm:$0xff]
          %v6963 = vld [vmem:[#allocation2 + $0xbf8] sm:$0xff]
          %v6964 = vld [vmem:[#allocation2 + $0xc00] sm:$0xff]
          %v6965 = vld [vmem:[#allocation2 + $0xc08] sm:$0xff]
          %v6966 = vld [vmem:[#allocation2 + $0xc10] sm:$0xff]
          %v6967 = vld [vmem:[#allocation2 + $0xc18] sm:$0xff]
          %v6968 = vld [vmem:[#allocation2 + $0xc20] sm:$0xff]
          %v6969 = vld [vmem:[#allocation2 + $0xc28] sm:$0xff]
          %v6970 = vld [vmem:[#allocation2 + $0xc30] sm:$0xff]
          %v6971 = vld [vmem:[#allocation2 + $0xc38] sm:$0xff]
          %v6972 = vld [vmem:[#allocation2 + $0xc40] sm:$0xff]
          %v6973 = vld [vmem:[#allocation2 + $0xc48] sm:$0xff]
          %v6974 = vld [vmem:[#allocation2 + $0xc50] sm:$0xff]
          %v6975 = vld [vmem:[#allocation2 + $0xc58] sm:$0xff]
          %v6976 = vld [vmem:[#allocation2 + $0xc60] sm:$0xff]
          %v6977 = vld [vmem:[#allocation2 + $0xc68] sm:$0xff]
          %v6978 = vld [vmem:[#allocation2 + $0xc70] sm:$0xff]
          %v6979 = vld [vmem:[#allocation2 + $0xc78] sm:$0xff]
          %v6980 = vld [vmem:[#allocation2 + $0xc80] sm:$0xff]
          %v6981 = vld [vmem:[#allocation2 + $0xc88] sm:$0xff]
          %v6982 = vld [vmem:[#allocation2 + $0xc90] sm:$0xff]
          %v6983 = vld [vmem:[#allocation2 + $0xc98] sm:$0xff]
          %v6984 = vld [vmem:[#allocation2 + $0xca0] sm:$0xff]
          %v6985 = vld [vmem:[#allocation2 + $0xca8] sm:$0xff]
          %v6986 = vld [vmem:[#allocation2 + $0xcb0] sm:$0xff]
          %v6987 = vld [vmem:[#allocation2 + $0xcb8] sm:$0xff]
          %v6988 = vld [vmem:[#allocation2 + $0xcc0] sm:$0xff]
          %v6989 = vld [vmem:[#allocation2 + $0xcc8] sm:$0xff]
          %v6990 = vld [vmem:[#allocation2 + $0xcd0] sm:$0xff]
          %v6991 = vld [vmem:[#allocation2 + $0xcd8] sm:$0xff]
          %v6992 = vld [vmem:[#allocation2 + $0xce0] sm:$0xff]
          %v6993 = vld [vmem:[#allocation2 + $0xce8] sm:$0xff]
          %v6994 = vld [vmem:[#allocation2 + $0xcf0] sm:$0xff]
          %v6995 = vld [vmem:[#allocation2 + $0xcf8] sm:$0xff]
          %v6996 = vld [vmem:[#allocation2 + $0xd00] sm:$0xff]
          %v6997 = vld [vmem:[#allocation2 + $0xd08] sm:$0xff]
          %v6998 = vld [vmem:[#allocation2 + $0xd10] sm:$0xff]
          %v6999 = vld [vmem:[#allocation2 + $0xd18] sm:$0xff]
          %v7000 = vld [vmem:[#allocation2 + $0xd20] sm:$0xff]
          %v7001 = vld [vmem:[#allocation2 + $0xd28] sm:$0xff]
          %v7002 = vld [vmem:[#allocation2 + $0xd30] sm:$0xff]
          %v7003 = vld [vmem:[#allocation2 + $0xd38] sm:$0xff]
          %v7004 = vld [vmem:[#allocation2 + $0xd40] sm:$0xff]
          %v7005 = vld [vmem:[#allocation2 + $0xd48] sm:$0xff]
          %v7006 = vld [vmem:[#allocation2 + $0xd50] sm:$0xff]
          %v7007 = vld [vmem:[#allocation2 + $0xd58] sm:$0xff]
          %v7008 = vld [vmem:[#allocation2 + $0xd60] sm:$0xff]
          %v7009 = vld [vmem:[#allocation2 + $0xd68] sm:$0xff]
          %v7010 = vld [vmem:[#allocation2 + $0xd70] sm:$0xff]
          %v7011 = vld [vmem:[#allocation2 + $0xd78] sm:$0xff]
          %v7012 = vld [vmem:[#allocation2 + $0xd80] sm:$0xff]
          %v7013 = vld [vmem:[#allocation2 + $0xd88] sm:$0xff]
          %v7014 = vld [vmem:[#allocation2 + $0xd90] sm:$0xff]
          %v7015 = vld [vmem:[#allocation2 + $0xd98] sm:$0xff]
          %v7016 = vld [vmem:[#allocation2 + $0xda0] sm:$0xff]
          %v7017 = vld [vmem:[#allocation2 + $0xda8] sm:$0xff]
          %v7018 = vld [vmem:[#allocation2 + $0xdb0] sm:$0xff]
          %v7019 = vld [vmem:[#allocation2 + $0xdb8] sm:$0xff]
          %v7020 = vld [vmem:[#allocation2 + $0xdc0] sm:$0xff]
          %v7021 = vld [vmem:[#allocation2 + $0xdc8] sm:$0xff]
          %v7022 = vld [vmem:[#allocation2 + $0xdd0] sm:$0xff]
          %v7023 = vld [vmem:[#allocation2 + $0xdd8] sm:$0xff]
          %v7024 = vld [vmem:[#allocation2 + $0xde0] sm:$0xff]
          %v7025 = vld [vmem:[#allocation2 + $0xde8] sm:$0xff]
          %v7026 = vld [vmem:[#allocation2 + $0xdf0] sm:$0xff]
          %v7027 = vld [vmem:[#allocation2 + $0xdf8] sm:$0xff]
          %v7028 = vld [vmem:[#allocation2 + $0xe00] sm:$0xff]
          %v7029 = vld [vmem:[#allocation2 + $0xe08] sm:$0xff]
          %v7030 = vld [vmem:[#allocation2 + $0xe10] sm:$0xff]
          %v7031 = vld [vmem:[#allocation2 + $0xe18] sm:$0xff]
          %v7032 = vld [vmem:[#allocation2 + $0xe20] sm:$0xff]
          %v7033 = vld [vmem:[#allocation2 + $0xe28] sm:$0xff]
          %v7034 = vld [vmem:[#allocation2 + $0xe30] sm:$0xff]
          %v7035 = vld [vmem:[#allocation2 + $0xe38] sm:$0xff]
          %v7036 = vld [vmem:[#allocation2 + $0xe40] sm:$0xff]
          %v7037 = vld [vmem:[#allocation2 + $0xe48] sm:$0xff]
          %v7038 = vld [vmem:[#allocation2 + $0xe50] sm:$0xff]
          %v7039 = vld [vmem:[#allocation2 + $0xe58] sm:$0xff]
          %v7040 = vld [vmem:[#allocation2 + $0xe60] sm:$0xff]
          %v7041 = vld [vmem:[#allocation2 + $0xe68] sm:$0xff]
          %v7042 = vld [vmem:[#allocation2 + $0xe70] sm:$0xff]
          %v7043 = vld [vmem:[#allocation2 + $0xe78] sm:$0xff]
          %v7044 = vld [vmem:[#allocation2 + $0xe80] sm:$0xff]
          %v7045 = vld [vmem:[#allocation2 + $0xe88] sm:$0xff]
          %v7046 = vld [vmem:[#allocation2 + $0xe90] sm:$0xff]
          %v7047 = vld [vmem:[#allocation2 + $0xe98] sm:$0xff]
          %v7048 = vld [vmem:[#allocation2 + $0xea0] sm:$0xff]
          %v7049 = vld [vmem:[#allocation2 + $0xea8] sm:$0xff]
          %v7050 = vld [vmem:[#allocation2 + $0xeb0] sm:$0xff]
          %v7051 = vld [vmem:[#allocation2 + $0xeb8] sm:$0xff]
          %v7052 = vld [vmem:[#allocation2 + $0xec0] sm:$0xff]
          %v7053 = vld [vmem:[#allocation2 + $0xec8] sm:$0xff]
          %v7054 = vld [vmem:[#allocation2 + $0xed0] sm:$0xff]
          %v7055 = vld [vmem:[#allocation2 + $0xed8] sm:$0xff]
          %v7056 = vld [vmem:[#allocation2 + $0xee0] sm:$0xff]
          %v7057 = vld [vmem:[#allocation2 + $0xee8] sm:$0xff]
          %v7058 = vld [vmem:[#allocation2 + $0xef0] sm:$0xff]
          %v7059 = vld [vmem:[#allocation2 + $0xef8] sm:$0xff]
          %v7060 = vld [vmem:[#allocation2 + $0xf00] sm:$0xff]
          %v7061 = vld [vmem:[#allocation2 + $0xf08] sm:$0xff]
          %v7062 = vld [vmem:[#allocation2 + $0xf10] sm:$0xff]
          %v7063 = vld [vmem:[#allocation2 + $0xf18] sm:$0xff]
          %v7064 = vld [vmem:[#allocation2 + $0xf20] sm:$0xff]
          %v7065 = vld [vmem:[#allocation2 + $0xf28] sm:$0xff]
          %v7066 = vld [vmem:[#allocation2 + $0xf30] sm:$0xff]
          %v7067 = vld [vmem:[#allocation2 + $0xf38] sm:$0xff]
          %v7068 = vld [vmem:[#allocation2 + $0xf40] sm:$0xff]
          %v7069 = vld [vmem:[#allocation2 + $0xf48] sm:$0xff]
          %v7070 = vld [vmem:[#allocation2 + $0xf50] sm:$0xff]
          %v7071 = vld [vmem:[#allocation2 + $0xf58] sm:$0xff]
          %v7072 = vld [vmem:[#allocation2 + $0xf60] sm:$0xff]
          %v7073 = vld [vmem:[#allocation2 + $0xf68] sm:$0xff]
          %v7074 = vld [vmem:[#allocation2 + $0xf70] sm:$0xff]
          %v7075 = vld [vmem:[#allocation2 + $0xf78] sm:$0xff]
          %v7076 = vld [vmem:[#allocation2 + $0xf80] sm:$0xff]
          %v7077 = vld [vmem:[#allocation2 + $0xf88] sm:$0xff]
          %v7078 = vld [vmem:[#allocation2 + $0xf90] sm:$0xff]
          %v7079 = vld [vmem:[#allocation2 + $0xf98] sm:$0xff]
          %v7080 = vld [vmem:[#allocation2 + $0xfa0] sm:$0xff]
          %v7081 = vld [vmem:[#allocation2 + $0xfa8] sm:$0xff]
          %v7082 = vld [vmem:[#allocation2 + $0xfb0] sm:$0xff]
          %v7083 = vld [vmem:[#allocation2 + $0xfb8] sm:$0xff]
          %v7084 = vld [vmem:[#allocation2 + $0xfc0] sm:$0xff]
          %v7085 = vld [vmem:[#allocation2 + $0xfc8] sm:$0xff]
          %v7086 = vld [vmem:[#allocation2 + $0xfd0] sm:$0xff]
          %v7087 = vld [vmem:[#allocation2 + $0xfd8] sm:$0xff]
          %v7088 = vld [vmem:[#allocation2 + $0xfe0] sm:$0xff]
          %v7089 = vld [vmem:[#allocation2 + $0xfe8] sm:$0xff]
          %v7090 = vld [vmem:[#allocation2 + $0xff0] sm:$0xff]
          %v7091 = vld [vmem:[#allocation2 + $0xff8] sm:$0xff]
          %v7092 = vadd.f32 %v6580, %v6581
          %v7093 = vadd.f32 %v7092, %v6582
          %v7094 = vadd.f32 %v7093, %v6583
          %v7095 = vadd.f32 %v7094, %v6584
          %v7096 = vadd.f32 %v7095, %v6585
          %v7097 = vadd.f32 %v7096, %v6586
          %v7098 = vadd.f32 %v7097, %v6587
          %v7099 = vadd.f32 %v7098, %v6588
          %v7100 = vadd.f32 %v7099, %v6589
          %v7101 = vadd.f32 %v7100, %v6590
          %v7102 = vadd.f32 %v7101, %v6591
          %v7103 = vadd.f32 %v7102, %v6592
          %v7104 = vadd.f32 %v7103, %v6593
          %v7105 = vadd.f32 %v7104, %v6594
          %v7106 = vadd.f32 %v7105, %v6595
          %v7107 = vadd.f32 %v7106, %v6596
          %v7108 = vadd.f32 %v7107, %v6597
          %v7109 = vadd.f32 %v7108, %v6598
          %v7110 = vadd.f32 %v7109, %v6599
          %v7111 = vadd.f32 %v7110, %v6600
          %v7112 = vadd.f32 %v7111, %v6601
          %v7113 = vadd.f32 %v7112, %v6602
          %v7114 = vadd.f32 %v7113, %v6603
          %v7115 = vadd.f32 %v7114, %v6604
          %v7116 = vadd.f32 %v7115, %v6605
          %v7117 = vadd.f32 %v7116, %v6606
          %v7118 = vadd.f32 %v7117, %v6607
          %v7119 = vadd.f32 %v7118, %v6608
          %v7120 = vadd.f32 %v7119, %v6609
          %v7121 = vadd.f32 %v7120, %v6610
          %v7122 = vadd.f32 %v7121, %v6611
          %v7123 = vadd.f32 %v7122, %v6612
          %v7124 = vadd.f32 %v7123, %v6613
          %v7125 = vadd.f32 %v7124, %v6614
          %v7126 = vadd.f32 %v7125, %v6615
          %v7127 = vadd.f32 %v7126, %v6616
          %v7128 = vadd.f32 %v7127, %v6617
          %v7129 = vadd.f32 %v7128, %v6618
          %v7130 = vadd.f32 %v7129, %v6619
          %v7131 = vadd.f32 %v7130, %v6620
          %v7132 = vadd.f32 %v7131, %v6621
          %v7133 = vadd.f32 %v7132, %v6622
          %v7134 = vadd.f32 %v7133, %v6623
          %v7135 = vadd.f32 %v7134, %v6624
          %v7136 = vadd.f32 %v7135, %v6625
          %v7137 = vadd.f32 %v7136, %v6626
          %v7138 = vadd.f32 %v7137, %v6627
          %v7139 = vadd.f32 %v7138, %v6628
          %v7140 = vadd.f32 %v7139, %v6629
          %v7141 = vadd.f32 %v7140, %v6630
          %v7142 = vadd.f32 %v7141, %v6631
          %v7143 = vadd.f32 %v7142, %v6632
          %v7144 = vadd.f32 %v7143, %v6633
          %v7145 = vadd.f32 %v7144, %v6634
          %v7146 = vadd.f32 %v7145, %v6635
          %v7147 = vadd.f32 %v7146, %v6636
          %v7148 = vadd.f32 %v7147, %v6637
          %v7149 = vadd.f32 %v7148, %v6638
          %v7150 = vadd.f32 %v7149, %v6639
          %v7151 = vadd.f32 %v7150, %v6640
          %v7152 = vadd.f32 %v7151, %v6641
          %v7153 = vadd.f32 %v7152, %v6642
          %v7154 = vadd.f32 %v7153, %v6643
          %v7155 = vadd.f32 %v7154, %v6644
          %v7156 = vadd.f32 %v7155, %v6645
          %v7157 = vadd.f32 %v7156, %v6646
          %v7158 = vadd.f32 %v7157, %v6647
          %v7159 = vadd.f32 %v7158, %v6648
          %v7160 = vadd.f32 %v7159, %v6649
          %v7161 = vadd.f32 %v7160, %v6650
          %v7162 = vadd.f32 %v7161, %v6651
          %v7163 = vadd.f32 %v7162, %v6652
          %v7164 = vadd.f32 %v7163, %v6653
          %v7165 = vadd.f32 %v7164, %v6654
          %v7166 = vadd.f32 %v7165, %v6655
          %v7167 = vadd.f32 %v7166, %v6656
          %v7168 = vadd.f32 %v7167, %v6657
          %v7169 = vadd.f32 %v7168, %v6658
          %v7170 = vadd.f32 %v7169, %v6659
          %v7171 = vadd.f32 %v7170, %v6660
          %v7172 = vadd.f32 %v7171, %v6661
          %v7173 = vadd.f32 %v7172, %v6662
          %v7174 = vadd.f32 %v7173, %v6663
          %v7175 = vadd.f32 %v7174, %v6664
          %v7176 = vadd.f32 %v7175, %v6665
          %v7177 = vadd.f32 %v7176, %v6666
          %v7178 = vadd.f32 %v7177, %v6667
          %v7179 = vadd.f32 %v7178, %v6668
          %v7180 = vadd.f32 %v7179, %v6669
          %v7181 = vadd.f32 %v7180, %v6670
          %v7182 = vadd.f32 %v7181, %v6671
          %v7183 = vadd.f32 %v7182, %v6672
          %v7184 = vadd.f32 %v7183, %v6673
          %v7185 = vadd.f32 %v7184, %v6674
          %v7186 = vadd.f32 %v7185, %v6675
          %v7187 = vadd.f32 %v7186, %v6676
          %v7188 = vadd.f32 %v7187, %v6677
          %v7189 = vadd.f32 %v7188, %v6678
          %v7190 = vadd.f32 %v7189, %v6679
          %v7191 = vadd.f32 %v7190, %v6680
          %v7192 = vadd.f32 %v7191, %v6681
          %v7193 = vadd.f32 %v7192, %v6682
          %v7194 = vadd.f32 %v7193, %v6683
          %v7195 = vadd.f32 %v7194, %v6684
          %v7196 = vadd.f32 %v7195, %v6685
          %v7197 = vadd.f32 %v7196, %v6686
          %v7198 = vadd.f32 %v7197, %v6687
          %v7199 = vadd.f32 %v7198, %v6688
          %v7200 = vadd.f32 %v7199, %v6689
          %v7201 = vadd.f32 %v7200, %v6690
          %v7202 = vadd.f32 %v7201, %v6691
          %v7203 = vadd.f32 %v7202, %v6692
          %v7204 = vadd.f32 %v7203, %v6693
          %v7205 = vadd.f32 %v7204, %v6694
          %v7206 = vadd.f32 %v7205, %v6695
          %v7207 = vadd.f32 %v7206, %v6696
          %v7208 = vadd.f32 %v7207, %v6697
          %v7209 = vadd.f32 %v7208, %v6698
          %v7210 = vadd.f32 %v7209, %v6699
          %v7211 = vadd.f32 %v7210, %v6700
          %v7212 = vadd.f32 %v7211, %v6701
          %v7213 = vadd.f32 %v7212, %v6702
          %v7214 = vadd.f32 %v7213, %v6703
          %v7215 = vadd.f32 %v7214, %v6704
          %v7216 = vadd.f32 %v7215, %v6705
          %v7217 = vadd.f32 %v7216, %v6706
          %v7218 = vadd.f32 %v7217, %v6707
          %v7219 = vadd.f32 %v7218, %v6708
          %v7220 = vadd.f32 %v7219, %v6709
          %v7221 = vadd.f32 %v7220, %v6710
          %v7222 = vadd.f32 %v7221, %v6711
          %v7223 = vadd.f32 %v7222, %v6712
          %v7224 = vadd.f32 %v7223, %v6713
          %v7225 = vadd.f32 %v7224, %v6714
          %v7226 = vadd.f32 %v7225, %v6715
          %v7227 = vadd.f32 %v7226, %v6716
          %v7228 = vadd.f32 %v7227, %v6717
          %v7229 = vadd.f32 %v7228, %v6718
          %v7230 = vadd.f32 %v7229, %v6719
          %v7231 = vadd.f32 %v7230, %v6720
          %v7232 = vadd.f32 %v7231, %v6721
          %v7233 = vadd.f32 %v7232, %v6722
          %v7234 = vadd.f32 %v7233, %v6723
          %v7235 = vadd.f32 %v7234, %v6724
          %v7236 = vadd.f32 %v7235, %v6725
          %v7237 = vadd.f32 %v7236, %v6726
          %v7238 = vadd.f32 %v7237, %v6727
          %v7239 = vadd.f32 %v7238, %v6728
          %v7240 = vadd.f32 %v7239, %v6729
          %v7241 = vadd.f32 %v7240, %v6730
          %v7242 = vadd.f32 %v7241, %v6731
          %v7243 = vadd.f32 %v7242, %v6732
          %v7244 = vadd.f32 %v7243, %v6733
          %v7245 = vadd.f32 %v7244, %v6734
          %v7246 = vadd.f32 %v7245, %v6735
          %v7247 = vadd.f32 %v7246, %v6736
          %v7248 = vadd.f32 %v7247, %v6737
          %v7249 = vadd.f32 %v7248, %v6738
          %v7250 = vadd.f32 %v7249, %v6739
          %v7251 = vadd.f32 %v7250, %v6740
          %v7252 = vadd.f32 %v7251, %v6741
          %v7253 = vadd.f32 %v7252, %v6742
          %v7254 = vadd.f32 %v7253, %v6743
          %v7255 = vadd.f32 %v7254, %v6744
          %v7256 = vadd.f32 %v7255, %v6745
          %v7257 = vadd.f32 %v7256, %v6746
          %v7258 = vadd.f32 %v7257, %v6747
          %v7259 = vadd.f32 %v7258, %v6748
          %v7260 = vadd.f32 %v7259, %v6749
          %v7261 = vadd.f32 %v7260, %v6750
          %v7262 = vadd.f32 %v7261, %v6751
          %v7263 = vadd.f32 %v7262, %v6752
          %v7264 = vadd.f32 %v7263, %v6753
          %v7265 = vadd.f32 %v7264, %v6754
          %v7266 = vadd.f32 %v7265, %v6755
          %v7267 = vadd.f32 %v7266, %v6756
          %v7268 = vadd.f32 %v7267, %v6757
          %v7269 = vadd.f32 %v7268, %v6758
          %v7270 = vadd.f32 %v7269, %v6759
          %v7271 = vadd.f32 %v7270, %v6760
          %v7272 = vadd.f32 %v7271, %v6761
          %v7273 = vadd.f32 %v7272, %v6762
          %v7274 = vadd.f32 %v7273, %v6763
          %v7275 = vadd.f32 %v7274, %v6764
          %v7276 = vadd.f32 %v7275, %v6765
          %v7277 = vadd.f32 %v7276, %v6766
          %v7278 = vadd.f32 %v7277, %v6767
          %v7279 = vadd.f32 %v7278, %v6768
          %v7280 = vadd.f32 %v7279, %v6769
          %v7281 = vadd.f32 %v7280, %v6770
          %v7282 = vadd.f32 %v7281, %v6771
          %v7283 = vadd.f32 %v7282, %v6772
          %v7284 = vadd.f32 %v7283, %v6773
          %v7285 = vadd.f32 %v7284, %v6774
          %v7286 = vadd.f32 %v7285, %v6775
          %v7287 = vadd.f32 %v7286, %v6776
          %v7288 = vadd.f32 %v7287, %v6777
          %v7289 = vadd.f32 %v7288, %v6778
          %v7290 = vadd.f32 %v7289, %v6779
          %v7291 = vadd.f32 %v7290, %v6780
          %v7292 = vadd.f32 %v7291, %v6781
          %v7293 = vadd.f32 %v7292, %v6782
          %v7294 = vadd.f32 %v7293, %v6783
          %v7295 = vadd.f32 %v7294, %v6784
          %v7296 = vadd.f32 %v7295, %v6785
          %v7297 = vadd.f32 %v7296, %v6786
          %v7298 = vadd.f32 %v7297, %v6787
          %v7299 = vadd.f32 %v7298, %v6788
          %v7300 = vadd.f32 %v7299, %v6789
          %v7301 = vadd.f32 %v7300, %v6790
          %v7302 = vadd.f32 %v7301, %v6791
          %v7303 = vadd.f32 %v7302, %v6792
          %v7304 = vadd.f32 %v7303, %v6793
          %v7305 = vadd.f32 %v7304, %v6794
          %v7306 = vadd.f32 %v7305, %v6795
          %v7307 = vadd.f32 %v7306, %v6796
          %v7308 = vadd.f32 %v7307, %v6797
          %v7309 = vadd.f32 %v7308, %v6798
          %v7310 = vadd.f32 %v7309, %v6799
          %v7311 = vadd.f32 %v7310, %v6800
          %v7312 = vadd.f32 %v7311, %v6801
          %v7313 = vadd.f32 %v7312, %v6802
          %v7314 = vadd.f32 %v7313, %v6803
          %v7315 = vadd.f32 %v7314, %v6804
          %v7316 = vadd.f32 %v7315, %v6805
          %v7317 = vadd.f32 %v7316, %v6806
          %v7318 = vadd.f32 %v7317, %v6807
          %v7319 = vadd.f32 %v7318, %v6808
          %v7320 = vadd.f32 %v7319, %v6809
          %v7321 = vadd.f32 %v7320, %v6810
          %v7322 = vadd.f32 %v7321, %v6811
          %v7323 = vadd.f32 %v7322, %v6812
          %v7324 = vadd.f32 %v7323, %v6813
          %v7325 = vadd.f32 %v7324, %v6814
          %v7326 = vadd.f32 %v7325, %v6815
          %v7327 = vadd.f32 %v7326, %v6816
          %v7328 = vadd.f32 %v7327, %v6817
          %v7329 = vadd.f32 %v7328, %v6818
          %v7330 = vadd.f32 %v7329, %v6819
          %v7331 = vadd.f32 %v7330, %v6820
          %v7332 = vadd.f32 %v7331, %v6821
          %v7333 = vadd.f32 %v7332, %v6822
          %v7334 = vadd.f32 %v7333, %v6823
          %v7335 = vadd.f32 %v7334, %v6824
          %v7336 = vadd.f32 %v7335, %v6825
          %v7337 = vadd.f32 %v7336, %v6826
          %v7338 = vadd.f32 %v7337, %v6827
          %v7339 = vadd.f32 %v7338, %v6828
          %v7340 = vadd.f32 %v7339, %v6829
          %v7341 = vadd.f32 %v7340, %v6830
          %v7342 = vadd.f32 %v7341, %v6831
          %v7343 = vadd.f32 %v7342, %v6832
          %v7344 = vadd.f32 %v7343, %v6833
          %v7345 = vadd.f32 %v7344, %v6834
          %v7346 = vadd.f32 %v7345, %v6835
          %v7347 = vadd.f32 %v7346, %v6836
          %v7348 = vadd.f32 %v7347, %v6837
          %v7349 = vadd.f32 %v7348, %v6838
          %v7350 = vadd.f32 %v7349, %v6839
          %v7351 = vadd.f32 %v7350, %v6840
          %v7352 = vadd.f32 %v7351, %v6841
          %v7353 = vadd.f32 %v7352, %v6842
          %v7354 = vadd.f32 %v7353, %v6843
          %v7355 = vadd.f32 %v7354, %v6844
          %v7356 = vadd.f32 %v7355, %v6845
          %v7357 = vadd.f32 %v7356, %v6846
          %v7358 = vadd.f32 %v7357, %v6847
          %v7359 = vadd.f32 %v7358, %v6848
          %v7360 = vadd.f32 %v7359, %v6849
          %v7361 = vadd.f32 %v7360, %v6850
          %v7362 = vadd.f32 %v7361, %v6851
          %v7363 = vadd.f32 %v7362, %v6852
          %v7364 = vadd.f32 %v7363, %v6853
          %v7365 = vadd.f32 %v7364, %v6854
          %v7366 = vadd.f32 %v7365, %v6855
          %v7367 = vadd.f32 %v7366, %v6856
          %v7368 = vadd.f32 %v7367, %v6857
          %v7369 = vadd.f32 %v7368, %v6858
          %v7370 = vadd.f32 %v7369, %v6859
          %v7371 = vadd.f32 %v7370, %v6860
          %v7372 = vadd.f32 %v7371, %v6861
          %v7373 = vadd.f32 %v7372, %v6862
          %v7374 = vadd.f32 %v7373, %v6863
          %v7375 = vadd.f32 %v7374, %v6864
          %v7376 = vadd.f32 %v7375, %v6865
          %v7377 = vadd.f32 %v7376, %v6866
          %v7378 = vadd.f32 %v7377, %v6867
          %v7379 = vadd.f32 %v7378, %v6868
          %v7380 = vadd.f32 %v7379, %v6869
          %v7381 = vadd.f32 %v7380, %v6870
          %v7382 = vadd.f32 %v7381, %v6871
          %v7383 = vadd.f32 %v7382, %v6872
          %v7384 = vadd.f32 %v7383, %v6873
          %v7385 = vadd.f32 %v7384, %v6874
          %v7386 = vadd.f32 %v7385, %v6875
          %v7387 = vadd.f32 %v7386, %v6876
          %v7388 = vadd.f32 %v7387, %v6877
          %v7389 = vadd.f32 %v7388, %v6878
          %v7390 = vadd.f32 %v7389, %v6879
          %v7391 = vadd.f32 %v7390, %v6880
          %v7392 = vadd.f32 %v7391, %v6881
          %v7393 = vadd.f32 %v7392, %v6882
          %v7394 = vadd.f32 %v7393, %v6883
          %v7395 = vadd.f32 %v7394, %v6884
          %v7396 = vadd.f32 %v7395, %v6885
          %v7397 = vadd.f32 %v7396, %v6886
          %v7398 = vadd.f32 %v7397, %v6887
          %v7399 = vadd.f32 %v7398, %v6888
          %v7400 = vadd.f32 %v7399, %v6889
          %v7401 = vadd.f32 %v7400, %v6890
          %v7402 = vadd.f32 %v7401, %v6891
          %v7403 = vadd.f32 %v7402, %v6892
          %v7404 = vadd.f32 %v7403, %v6893
          %v7405 = vadd.f32 %v7404, %v6894
          %v7406 = vadd.f32 %v7405, %v6895
          %v7407 = vadd.f32 %v7406, %v6896
          %v7408 = vadd.f32 %v7407, %v6897
          %v7409 = vadd.f32 %v7408, %v6898
          %v7410 = vadd.f32 %v7409, %v6899
          %v7411 = vadd.f32 %v7410, %v6900
          %v7412 = vadd.f32 %v7411, %v6901
          %v7413 = vadd.f32 %v7412, %v6902
          %v7414 = vadd.f32 %v7413, %v6903
          %v7415 = vadd.f32 %v7414, %v6904
          %v7416 = vadd.f32 %v7415, %v6905
          %v7417 = vadd.f32 %v7416, %v6906
          %v7418 = vadd.f32 %v7417, %v6907
          %v7419 = vadd.f32 %v7418, %v6908
          %v7420 = vadd.f32 %v7419, %v6909
          %v7421 = vadd.f32 %v7420, %v6910
          %v7422 = vadd.f32 %v7421, %v6911
          %v7423 = vadd.f32 %v7422, %v6912
          %v7424 = vadd.f32 %v7423, %v6913
          %v7425 = vadd.f32 %v7424, %v6914
          %v7426 = vadd.f32 %v7425, %v6915
          %v7427 = vadd.f32 %v7426, %v6916
          %v7428 = vadd.f32 %v7427, %v6917
          %v7429 = vadd.f32 %v7428, %v6918
          %v7430 = vadd.f32 %v7429, %v6919
          %v7431 = vadd.f32 %v7430, %v6920
          %v7432 = vadd.f32 %v7431, %v6921
          %v7433 = vadd.f32 %v7432, %v6922
          %v7434 = vadd.f32 %v7433, %v6923
          %v7435 = vadd.f32 %v7434, %v6924
          %v7436 = vadd.f32 %v7435, %v6925
          %v7437 = vadd.f32 %v7436, %v6926
          %v7438 = vadd.f32 %v7437, %v6927
          %v7439 = vadd.f32 %v7438, %v6928
          %v7440 = vadd.f32 %v7439, %v6929
          %v7441 = vadd.f32 %v7440, %v6930
          %v7442 = vadd.f32 %v7441, %v6931
          %v7443 = vadd.f32 %v7442, %v6932
          %v7444 = vadd.f32 %v7443, %v6933
          %v7445 = vadd.f32 %v7444, %v6934
          %v7446 = vadd.f32 %v7445, %v6935
          %v7447 = vadd.f32 %v7446, %v6936
          %v7448 = vadd.f32 %v7447, %v6937
          %v7449 = vadd.f32 %v7448, %v6938
          %v7450 = vadd.f32 %v7449, %v6939
          %v7451 = vadd.f32 %v7450, %v6940
          %v7452 = vadd.f32 %v7451, %v6941
          %v7453 = vadd.f32 %v7452, %v6942
          %v7454 = vadd.f32 %v7453, %v6943
          %v7455 = vadd.f32 %v7454, %v6944
          %v7456 = vadd.f32 %v7455, %v6945
          %v7457 = vadd.f32 %v7456, %v6946
          %v7458 = vadd.f32 %v7457, %v6947
          %v7459 = vadd.f32 %v7458, %v6948
          %v7460 = vadd.f32 %v7459, %v6949
          %v7461 = vadd.f32 %v7460, %v6950
          %v7462 = vadd.f32 %v7461, %v6951
          %v7463 = vadd.f32 %v7462, %v6952
          %v7464 = vadd.f32 %v7463, %v6953
          %v7465 = vadd.f32 %v7464, %v6954
          %v7466 = vadd.f32 %v7465, %v6955
          %v7467 = vadd.f32 %v7466, %v6956
          %v7468 = vadd.f32 %v7467, %v6957
          %v7469 = vadd.f32 %v7468, %v6958
          %v7470 = vadd.f32 %v7469, %v6959
          %v7471 = vadd.f32 %v7470, %v6960
          %v7472 = vadd.f32 %v7471, %v6961
          %v7473 = vadd.f32 %v7472, %v6962
          %v7474 = vadd.f32 %v7473, %v6963
          %v7475 = vadd.f32 %v7474, %v6964
          %v7476 = vadd.f32 %v7475, %v6965
          %v7477 = vadd.f32 %v7476, %v6966
          %v7478 = vadd.f32 %v7477, %v6967
          %v7479 = vadd.f32 %v7478, %v6968
          %v7480 = vadd.f32 %v7479, %v6969
          %v7481 = vadd.f32 %v7480, %v6970
          %v7482 = vadd.f32 %v7481, %v6971
          %v7483 = vadd.f32 %v7482, %v6972
          %v7484 = vadd.f32 %v7483, %v6973
          %v7485 = vadd.f32 %v7484, %v6974
          %v7486 = vadd.f32 %v7485, %v6975
          %v7487 = vadd.f32 %v7486, %v6976
          %v7488 = vadd.f32 %v7487, %v6977
          %v7489 = vadd.f32 %v7488, %v6978
          %v7490 = vadd.f32 %v7489, %v6979
          %v7491 = vadd.f32 %v7490, %v6980
          %v7492 = vadd.f32 %v7491, %v6981
          %v7493 = vadd.f32 %v7492, %v6982
          %v7494 = vadd.f32 %v7493, %v6983
          %v7495 = vadd.f32 %v7494, %v6984
          %v7496 = vadd.f32 %v7495, %v6985
          %v7497 = vadd.f32 %v7496, %v6986
          %v7498 = vadd.f32 %v7497, %v6987
          %v7499 = vadd.f32 %v7498, %v6988
          %v7500 = vadd.f32 %v7499, %v6989
          %v7501 = vadd.f32 %v7500, %v6990
          %v7502 = vadd.f32 %v7501, %v6991
          %v7503 = vadd.f32 %v7502, %v6992
          %v7504 = vadd.f32 %v7503, %v6993
          %v7505 = vadd.f32 %v7504, %v6994
          %v7506 = vadd.f32 %v7505, %v6995
          %v7507 = vadd.f32 %v7506, %v6996
          %v7508 = vadd.f32 %v7507, %v6997
          %v7509 = vadd.f32 %v7508, %v6998
          %v7510 = vadd.f32 %v7509, %v6999
          %v7511 = vadd.f32 %v7510, %v7000
          %v7512 = vadd.f32 %v7511, %v7001
          %v7513 = vadd.f32 %v7512, %v7002
          %v7514 = vadd.f32 %v7513, %v7003
          %v7515 = vadd.f32 %v7514, %v7004
          %v7516 = vadd.f32 %v7515, %v7005
          %v7517 = vadd.f32 %v7516, %v7006
          %v7518 = vadd.f32 %v7517, %v7007
          %v7519 = vadd.f32 %v7518, %v7008
          %v7520 = vadd.f32 %v7519, %v7009
          %v7521 = vadd.f32 %v7520, %v7010
          %v7522 = vadd.f32 %v7521, %v7011
          %v7523 = vadd.f32 %v7522, %v7012
          %v7524 = vadd.f32 %v7523, %v7013
          %v7525 = vadd.f32 %v7524, %v7014
          %v7526 = vadd.f32 %v7525, %v7015
          %v7527 = vadd.f32 %v7526, %v7016
          %v7528 = vadd.f32 %v7527, %v7017
          %v7529 = vadd.f32 %v7528, %v7018
          %v7530 = vadd.f32 %v7529, %v7019
          %v7531 = vadd.f32 %v7530, %v7020
          %v7532 = vadd.f32 %v7531, %v7021
          %v7533 = vadd.f32 %v7532, %v7022
          %v7534 = vadd.f32 %v7533, %v7023
          %v7535 = vadd.f32 %v7534, %v7024
          %v7536 = vadd.f32 %v7535, %v7025
          %v7537 = vadd.f32 %v7536, %v7026
          %v7538 = vadd.f32 %v7537, %v7027
          %v7539 = vadd.f32 %v7538, %v7028
          %v7540 = vadd.f32 %v7539, %v7029
          %v7541 = vadd.f32 %v7540, %v7030
          %v7542 = vadd.f32 %v7541, %v7031
          %v7543 = vadd.f32 %v7542, %v7032
          %v7544 = vadd.f32 %v7543, %v7033
          %v7545 = vadd.f32 %v7544, %v7034
          %v7546 = vadd.f32 %v7545, %v7035
          %v7547 = vadd.f32 %v7546, %v7036
          %v7548 = vadd.f32 %v7547, %v7037
          %v7549 = vadd.f32 %v7548, %v7038
          %v7550 = vadd.f32 %v7549, %v7039
          %v7551 = vadd.f32 %v7550, %v7040
          %v7552 = vadd.f32 %v7551, %v7041
          %v7553 = vadd.f32 %v7552, %v7042
          %v7554 = vadd.f32 %v7553, %v7043
          %v7555 = vadd.f32 %v7554, %v7044
          %v7556 = vadd.f32 %v7555, %v7045
          %v7557 = vadd.f32 %v7556, %v7046
          %v7558 = vadd.f32 %v7557, %v7047
          %v7559 = vadd.f32 %v7558, %v7048
          %v7560 = vadd.f32 %v7559, %v7049
          %v7561 = vadd.f32 %v7560, %v7050
          %v7562 = vadd.f32 %v7561, %v7051
          %v7563 = vadd.f32 %v7562, %v7052
          %v7564 = vadd.f32 %v7563, %v7053
          %v7565 = vadd.f32 %v7564, %v7054
          %v7566 = vadd.f32 %v7565, %v7055
          %v7567 = vadd.f32 %v7566, %v7056
          %v7568 = vadd.f32 %v7567, %v7057
          %v7569 = vadd.f32 %v7568, %v7058
          %v7570 = vadd.f32 %v7569, %v7059
          %v7571 = vadd.f32 %v7570, %v7060
          %v7572 = vadd.f32 %v7571, %v7061
          %v7573 = vadd.f32 %v7572, %v7062
          %v7574 = vadd.f32 %v7573, %v7063
          %v7575 = vadd.f32 %v7574, %v7064
          %v7576 = vadd.f32 %v7575, %v7065
          %v7577 = vadd.f32 %v7576, %v7066
          %v7578 = vadd.f32 %v7577, %v7067
          %v7579 = vadd.f32 %v7578, %v7068
          %v7580 = vadd.f32 %v7579, %v7069
          %v7581 = vadd.f32 %v7580, %v7070
          %v7582 = vadd.f32 %v7581, %v7071
          %v7583 = vadd.f32 %v7582, %v7072
          %v7584 = vadd.f32 %v7583, %v7073
          %v7585 = vadd.f32 %v7584, %v7074
          %v7586 = vadd.f32 %v7585, %v7075
          %v7587 = vadd.f32 %v7586, %v7076
          %v7588 = vadd.f32 %v7587, %v7077
          %v7589 = vadd.f32 %v7588, %v7078
          %v7590 = vadd.f32 %v7589, %v7079
          %v7591 = vadd.f32 %v7590, %v7080
          %v7592 = vadd.f32 %v7591, %v7081
          %v7593 = vadd.f32 %v7592, %v7082
          %v7594 = vadd.f32 %v7593, %v7083
          %v7595 = vadd.f32 %v7594, %v7084
          %v7596 = vadd.f32 %v7595, %v7085
          %v7597 = vadd.f32 %v7596, %v7086
          %v7598 = vadd.f32 %v7597, %v7087
          %v7599 = vadd.f32 %v7598, %v7088
          %v7600 = vadd.f32 %v7599, %v7089
          %v7601 = vadd.f32 %v7600, %v7090
          %v7602 = vadd.f32 %v7601, %v7091
          %7603 = vadd.xlane.f32.xlu0 %v7602
          %v7604 = vpop.xlane.xlu0 %7603
          %v7605 = vrot.slane %v7604, 4
          %v7606 = vadd.f32 %v7604, %v7605
          %v7607 = vrot.slane %v7606, 2
          %v7608 = vadd.f32 %v7606, %v7607
          %v7609 = vrot.slane %v7608, 1
          %v7610 = vadd.f32 %v7608, %v7609
          %s7611 = vtos %v7610
          %s7612 = smul.f32 %s7611, 1.8780048e-06
          %s7613 = scalar_lea.smem [#allocation8], 0
          %7614 = sst [smem:[%s7613]] %s7612
        $region52: #{tpu_custom_call.1} parent=27 // pred_fallthru
          _
        // Predicated region
        $region53: #{tpu_custom_call.1} parent=27 // pred_check
          %p7615 = pneg %p85
        $region54: #{tpu_custom_call.1} parent=27 // pred_check_branch
          %7617 = sbr.rel (%p7615) target = $region56
        $region55: #{tpu_custom_call.1} parent=27 // pred_region
          %7619 = vsyncadd [#allocation5], 0
          %s7621 = sshll.u32 %s2, 4
          %s7622 = int_to_ptr.hbm [resolvable:$true] %s7621
          %7624 = dma.smem_to_hbm [#allocation8], 16, %s7622, [#allocation5]
        $region56: #{tpu_custom_call.1} parent=27 // pred_fallthru
          _
        // Predicated region
        $region57: #{tpu_custom_call.1} parent=27 // pred_check
          %p7625 = pneg %p85
        $region58: #{tpu_custom_call.1} parent=27 // pred_check_branch
          %7627 = sbr.rel (%p7625) target = $region60
        $region59: #{tpu_custom_call.1} parent=27 // pred_region
          %7629 = dma.done [#allocation5], 16
        $region60: #{tpu_custom_call.1} parent=27 // pred_fallthru
          _
        %7630 = sfence
      $region28: #{tpu_custom_call.1} parent=5 // pred_fallthru
        _
      %p7631 = scmp.le.s32.totalorder 2, %s15
      // Predicated region
      $region61: #{tpu_custom_call.1} parent=5 // pred_check
        %p7632 = pneg %p7631
      $region62: #{tpu_custom_call.1} parent=5 // pred_check_branch
        %7634 = sbr.rel (%p7632) target = $region64
      $region63: #{tpu_custom_call.1} parent=5 // pred_region
        %s7635 = ssub.s32 %s15, 2
      $region64: #{tpu_custom_call.1} parent=5 // pred_fallthru
        _
    $region6: #{tpu_custom_call.1} parent=1 // loop_footer
      %s19 = sadd.s32 1, %s15
    $region7: #{tpu_custom_call.1} parent=1 // loop_footer_branch
      %14 = sbr.rel target = $region3
    $region8: #{tpu_custom_call.1} parent=1 // loop_exit
      _
    %7636 = vsyncpa [#allocation4], 1
    %s7637 = scalar_lea.sflag [#allocation4], 1
    %7638 = vsyncpa %s7637, 1
    %7639 = vsyncpa [#allocation7], 1
    %s7640 = scalar_lea.sflag [#allocation7], 1
    %7641 = vsyncpa %s7640, 1
    %7642 = vsyncpa [#allocation5], 1
    %s7643 = scalar_lea.sflag [#allocation5], 1
    %7644 = vsyncpa %s7643, 1

</llo_original>
